<compile_context>
chip_gen: v6e
topology: v6e:2x2x1
jax: 0.10.0
libtpu: 0.0.40
codegen_flags: <defaults>
</compile_context>

<pallas_src>
import functools

import jax
import jax.numpy as jnp
from jax.experimental import pallas as pl
from jax.experimental.pallas import tpu as pltpu


_LANE = 128
_COMPUTE_DTYPE = jnp.bfloat16          # MXU operand dtype (f32 accumulation)


def _device_kind():
    try:
        return jax.devices()[0].device_kind.lower()
    except Exception:
        return ""


_KIND = _device_kind()
if ("v5" in _KIND) or ("v6" in _KIND):
    # 128 MiB-VMEM parts: larger row tiles, larger scoped VMEM.
    _ROW_TILE_CAP = 512
    _VMEM_LIMIT_BYTES = 96 * 1024 * 1024
else:
    # v7x (64 MiB VMEM) and unknown/interpret backends: conservative.
    _ROW_TILE_CAP = 128
    _VMEM_LIMIT_BYTES = 48 * 1024 * 1024


def _pick_row_tile(n, cap):
    """Largest sublane-aligned divisor of n up to cap; ensure >=2 row tiles
    (when possible) so the 'parallel' axis can use both v7x TensorCores."""
    t = cap
    while t >= 8 and n % t != 0:
        t //= 2
    if t < 8:
        t = n
    if n // t < 2 and n >= 16 and n % 16 == 0:
        t = n // 2
    return t


def _pick_k_tile(n, cap=512):
    """Lane-aligned (multiple of 128) divisor of n up to cap, else full n."""
    t = cap
    while t >= _LANE:
        if n % t == 0:
            return t
        t //= 2
    return n


# -----------------------------------------------------------------------------
# Kernel 1: RGCNConv + shared BatchNorm (eval) + optional ReLU, row-tiled.
#   out[i] = BN( X[i] @ W_root + bias + sum_r (A[r, i, :] @ X) @ W_rel[r] )
# grid = (N // tm, R); node-row axis "parallel", relation reduction innermost.
# Accumulation in an f32 VMEM scratch; output written once, in bf16.
# -----------------------------------------------------------------------------
def _rgcn_bn_kernel(a_ref, x_ref, xr_ref, wrel_ref, wroot_ref, bias_ref,
                    scale_ref, shift_ref, o_ref, acc_ref, *, apply_relu):
    # NOTE: grid primitives only at kernel top level (never inside pl.when
    # bodies -- that embeds them in a cond branch the interpreter can't lower).
    r = pl.program_id(1)
    num_r = pl.num_programs(1)

    @pl.when(r == 0)
    def _init():
        # Root/self term + bias for this row tile (delivered by its own spec).
        acc_ref[...] = (
            jnp.dot(xr_ref[...], wroot_ref[...],
                    preferred_element_type=jnp.float32)
            + bias_ref[...])

    # Message passing for relation r: aggregate over ALL nodes, then project
    # with the (VMEM-resident) relation weight W_rel[r].
    msg = jnp.dot(a_ref[0], x_ref[...], preferred_element_type=jnp.float32)
    acc_ref[...] += jnp.dot(msg.astype(x_ref.dtype), wrel_ref[r],
                            preferred_element_type=jnp.float32)

    @pl.when(r == num_r - 1)
    def _finish():
        y = acc_ref[...] * scale_ref[...] + shift_ref[...]   # shared BN (eval)
        if apply_relu:
            y = jnp.maximum(y, 0.0)
        o_ref[...] = y.astype(o_ref.dtype)                   # bf16 writeback


def rgcn_bn_layer(x, A, w_rel, w_root, bias, bn_scale, bn_shift, apply_relu):
    R, N, _ = A.shape
    Cin, Cout = w_root.shape
    tm = _pick_row_tile(N, _ROW_TILE_CAP)

    x = x.astype(_COMPUTE_DTYPE)        # no-op when already bf16
    A = A.astype(_COMPUTE_DTYPE)        # no-op when already bf16 (hoisted cast)

    kernel = functools.partial(_rgcn_bn_kernel, apply_relu=apply_relu)
    return pl.pallas_call(
        kernel,
        out_shape=jax.ShapeDtypeStruct((N, Cout), _COMPUTE_DTYPE),
        grid=(N // tm, R),
        in_specs=[
            pl.BlockSpec((1, tm, N), lambda i, r: (r, i, 0)),      # A[r] rows (streamed)
            pl.BlockSpec((N, Cin), lambda i, r: (0, 0)),           # X (resident)
            pl.BlockSpec((tm, Cin), lambda i, r: (i, 0)),          # X row tile (root term)
            pl.BlockSpec((R, Cin, Cout), lambda i, r: (0, 0, 0)),  # all W_rel (resident)
            pl.BlockSpec((Cin, Cout), lambda i, r: (0, 0)),        # W_root
            pl.BlockSpec((1, Cout), lambda i, r: (0, 0)),          # bias
            pl.BlockSpec((1, Cout), lambda i, r: (0, 0)),          # BN scale
            pl.BlockSpec((1, Cout), lambda i, r: (0, 0)),          # BN shift
        ],
        out_specs=pl.BlockSpec((tm, Cout), lambda i, r: (i, 0)),
        scratch_shapes=[pltpu.VMEM((tm, Cout), jnp.float32)],      # f32 accumulator
        compiler_params=pltpu.CompilerParams(
            dimension_semantics=("parallel", "arbitrary"),
            vmem_limit_bytes=_VMEM_LIMIT_BYTES,
        ),
    )(A, x, x, w_rel, w_root, bias, bn_scale, bn_shift)


# -----------------------------------------------------------------------------
# Kernel 2: fused mean pooling + projection head.
#   pooled = pool_mat @ h            (K-tiled over nodes, f32 accumulator)
#   out    = ReLU(pooled @ W1 + b1) @ W2 + b2   (finish phase, all in VMEM)
# -----------------------------------------------------------------------------
def _pool_head_kernel(pm_ref, h_ref, w1_ref, b1_ref, w2_ref, b2_ref,
                      o_ref, acc_ref):
    k = pl.program_id(0)
    num_k = pl.num_programs(0)

    @pl.when(k == 0)
    def _init():
        acc_ref[...] = jnp.zeros_like(acc_ref)

    acc_ref[...] += jnp.dot(pm_ref[...], h_ref[...],
                            preferred_element_type=jnp.float32)

    @pl.when(k == num_k - 1)
    def _head():
        pooled = acc_ref[...].astype(w1_ref.dtype)
        z = jnp.dot(pooled, w1_ref[...], preferred_element_type=jnp.float32)
        z = jnp.maximum(z + b1_ref[...], 0.0)
        o_ref[...] = (jnp.dot(z.astype(w2_ref.dtype), w2_ref[...],
                              preferred_element_type=jnp.float32)
                      + b2_ref[...])


def pool_and_project(pool_mat, h, w1, b1, w2, b2):
    B, N = pool_mat.shape
    C = h.shape[1]
    H1 = w1.shape[1]
    P = w2.shape[1]
    tk = _pick_k_tile(N)

    pool_mat = pool_mat.astype(_COMPUTE_DTYPE)
    h = h.astype(_COMPUTE_DTYPE)

    return pl.pallas_call(
        _pool_head_kernel,
        out_shape=jax.ShapeDtypeStruct((B, P), jnp.float32),
        grid=(N // tk,),
        in_specs=[
            pl.BlockSpec((B, tk), lambda k: (0, k)),    # pool matrix K tile
            pl.BlockSpec((tk, C), lambda k: (k, 0)),    # node features K tile
            pl.BlockSpec((C, H1), lambda k: (0, 0)),    # W1 (resident)
            pl.BlockSpec((1, H1), lambda k: (0, 0)),    # b1
            pl.BlockSpec((H1, P), lambda k: (0, 0)),    # W2 (resident)
            pl.BlockSpec((1, P), lambda k: (0, 0)),     # b2
        ],
        out_specs=pl.BlockSpec((B, P), lambda k: (0, 0)),
        scratch_shapes=[pltpu.VMEM((B, C), jnp.float32)],
        compiler_params=pltpu.CompilerParams(
            dimension_semantics=("arbitrary",),
            vmem_limit_bytes=_VMEM_LIMIT_BYTES,
        ),
    )(pool_mat, h, w1, b1, w2, b2)


# -----------------------------------------------------------------------------
# Parameter preparation (outside jit): fold BN, pad layer-1 channels, cast bf16.
# -----------------------------------------------------------------------------
def prepare_params(params):
    bn_scale = params["bn_gamma"] / jnp.sqrt(params["bn_var"] + 1e-5)
    bn_shift = params["bn_beta"] - params["bn_mean"] * bn_scale

    convs = []
    for conv in params["convs"]:
        w_rel, w_root = conv["w_rel"], conv["w_root"]
        cin = w_root.shape[0]
        pad = (-cin) % _LANE
        if pad:  # layer 1: zero-pad 22 -> 128 input channels (MXU lane density)
            w_rel = jnp.pad(w_rel, ((0, 0), (0, pad), (0, 0)))
            w_root = jnp.pad(w_root, ((0, pad), (0, 0)))
        convs.append({
            "w_rel": w_rel.astype(_COMPUTE_DTYPE),
            "w_root": w_root.astype(_COMPUTE_DTYPE),
            "bias": conv["bias"].reshape(1, -1).astype(jnp.float32),
        })

    return {
        "convs": convs,
        "bn_scale": bn_scale.reshape(1, -1).astype(jnp.float32),
        "bn_shift": bn_shift.reshape(1, -1).astype(jnp.float32),
        "proj_w1": params["proj_w1"].astype(_COMPUTE_DTYPE),
        "proj_b1": params["proj_b1"].reshape(1, -1).astype(jnp.float32),
        "proj_w2": params["proj_w2"].astype(_COMPUTE_DTYPE),
        "proj_b2": params["proj_b2"].reshape(1, -1).astype(jnp.float32),
    }


# -----------------------------------------------------------------------------
# GearNet forward (glue)
# -----------------------------------------------------------------------------
def gearnet_forward(prep, x, A, pool_mat):
    h = x.astype(_COMPUTE_DTYPE)
    for li, conv in enumerate(prep["convs"]):
        cin = conv["w_root"].shape[0]
        pad = cin - h.shape[1]
        if pad > 0:  # layer 1: zero-pad node features to the padded weight width
            h = jnp.pad(h, ((0, 0), (0, pad)))
        relu = li < 5  # conv6: BN only, no ReLU
        h = rgcn_bn_layer(h, A, conv["w_rel"], conv["w_root"], conv["bias"],
                          prep["bn_scale"], prep["bn_shift"], apply_relu=relu)
        # Dropout with training=False is the identity (inference semantics).

    # TODO(synk): fuse the mean pooling into conv6's finish phase to avoid the
    #   h HBM round trip (requires the row axis to be "arbitrary" there).
    return pool_and_project(pool_mat, h, prep["proj_w1"], prep["proj_b1"],
                            prep["proj_w2"], prep["proj_b2"])


# -----------------------------------------------------------------------------
# Deterministic parameter / graph construction
# -----------------------------------------------------------------------------
def init_params(key, num_relations, in_dim=22, hidden=512, proj=300):
    keys = jax.random.split(key, 32)
    ki = iter(range(32))

    def dense(k, shape, fan_in):
        return (jax.random.normal(k, shape, jnp.float32) /
                jnp.sqrt(fan_in)).astype(jnp.float32)

    convs = []
    dims = [in_dim] + [hidden] * 6
    for li in range(6):
        cin, cout = dims[li], dims[li + 1]
        convs.append({
            "w_rel": dense(keys[next(ki)], (num_relations, cin, cout), cin),
            "w_root": dense(keys[next(ki)], (cin, cout), cin),
            "bias": 0.01 * jax.random.normal(keys[next(ki)], (cout,), jnp.float32),
        })

    return {
        "convs": convs,
        "bn_gamma": 1.0 + 0.1 * jax.random.normal(keys[next(ki)], (hidden,), jnp.float32),
        "bn_beta": 0.1 * jax.random.normal(keys[next(ki)], (hidden,), jnp.float32),
        "bn_mean": 0.05 * jax.random.normal(keys[next(ki)], (hidden,), jnp.float32),
        "bn_var": 1.0 + 0.1 * jax.random.uniform(keys[next(ki)], (hidden,), jnp.float32),
        "proj_w1": dense(keys[next(ki)], (hidden, proj), hidden),
        "proj_b1": 0.01 * jax.random.normal(keys[next(ki)], (proj,), jnp.float32),
        "proj_w2": dense(keys[next(ki)], (proj, proj), proj),
        "proj_b2": 0.01 * jax.random.normal(keys[next(ki)], (proj,), jnp.float32),
    }


def build_graph(key, num_nodes, num_edges, num_relations, num_graphs, in_dim=22):
    k_x, k_src, k_dst, k_rel = jax.random.split(key, 4)
    x = jax.random.normal(k_x, (num_nodes, in_dim), jnp.float32)
    src = jax.random.randint(k_src, (num_edges,), 0, num_nodes)
    dst = jax.random.randint(k_dst, (num_edges,), 0, num_nodes)
    etype = jax.random.randint(k_rel, (num_edges,), 0, num_relations)

    # dense relation-wise adjacency, row-normalized (mean aggregation per rel)
    A = jnp.zeros((num_relations, num_nodes, num_nodes), jnp.float32)
    A = A.at[etype, dst, src].add(1.0)
    deg = A.sum(axis=2, keepdims=True)
    A = A / jnp.maximum(deg, 1.0)

    # batch vector: first half of nodes -> graph 0, second half -> graph 1
    nodes_per_graph = num_nodes // num_graphs
    batch = jnp.repeat(jnp.arange(num_graphs), nodes_per_graph)
    pool_mat = (jnp.arange(num_graphs)[:, None] == batch[None, :]).astype(jnp.float32)
    pool_mat = pool_mat / jnp.maximum(pool_mat.sum(axis=1, keepdims=True), 1.0)
    return x, A, pool_mat


if __name__ == "__main__":
    NUM_RELATIONS = 3
    NUM_NODES = 16
    NUM_EDGES = 48
    NUM_GRAPHS = 2
    IN_DIM = 22

    key = jax.random.PRNGKey(0)
    k_params, k_graph = jax.random.split(key)

    params = init_params(k_params, NUM_RELATIONS, in_dim=IN_DIM)
    prep = prepare_params(params)
    x, A, pool_mat = build_graph(k_graph, NUM_NODES, NUM_EDGES,
                                 NUM_RELATIONS, NUM_GRAPHS, in_dim=IN_DIM)

    # Hoisted out of the jitted forward: keep A / pool_mat in bf16 persistently
    # (removes a full cast pass over A on every call).
    A = A.astype(_COMPUTE_DTYPE)
    pool_mat = pool_mat.astype(_COMPUTE_DTYPE)

    out = jax.jit(gearnet_forward)(prep, x, A, pool_mat)
    out = jax.block_until_ready(out)

    assert out.shape == (NUM_GRAPHS, 300), out.shape
    assert bool(jnp.all(jnp.isfinite(out)))
    print("KERNEL_OK")
</pallas_src>

<mosaic_0001>
module attributes {stable_mosaic.version = 11 : i64} {
  func.func @_rgcn_bn_kernel(%arg0: i32, %arg1: i32, %arg2: memref<1x8x16xbf16, #tpu.memory_space<vmem>>, %arg3: memref<16x512xbf16, #tpu.memory_space<vmem>>, %arg4: memref<8x512xbf16, #tpu.memory_space<vmem>>, %arg5: memref<3x512x512xbf16, #tpu.memory_space<vmem>>, %arg6: memref<512x512xbf16, #tpu.memory_space<vmem>>, %arg7: memref<1x512xf32, #tpu.memory_space<vmem>>, %arg8: memref<1x512xf32, #tpu.memory_space<vmem>>, %arg9: memref<1x512xf32, #tpu.memory_space<vmem>>, %arg10: memref<8x512xbf16, #tpu.memory_space<vmem>>, %arg11: memref<8x512xf32, #tpu.memory_space<vmem>>) attributes {dimension_semantics = [#tpu.dimension_semantics<parallel>, #tpu.dimension_semantics<arbitrary>], iteration_bounds = array<i64: 2, 3>, scalar_prefetch = 0 : i64, scratch_operands = 1 : i64, tpu.core_type = #tpu.core_type<tc>, window_params = [{transform_indices = @transform_0, window_bounds = array<i64: 1, 8, 16>}, {pipeline_mode = #tpu.pipeline_mode<synchronous>, transform_indices = @transform_1, window_bounds = array<i64: 16, 512>}, {transform_indices = @transform_2, window_bounds = array<i64: 8, 512>}, {pipeline_mode = #tpu.pipeline_mode<synchronous>, transform_indices = @transform_3, window_bounds = array<i64: 3, 512, 512>}, {pipeline_mode = #tpu.pipeline_mode<synchronous>, transform_indices = @transform_4, window_bounds = array<i64: 512, 512>}, {pipeline_mode = #tpu.pipeline_mode<synchronous>, transform_indices = @transform_5, window_bounds = array<i64: 1, 512>}, {pipeline_mode = #tpu.pipeline_mode<synchronous>, transform_indices = @transform_6, window_bounds = array<i64: 1, 512>}, {pipeline_mode = #tpu.pipeline_mode<synchronous>, transform_indices = @transform_7, window_bounds = array<i64: 1, 512>}, {transform_indices = @transform_8, window_bounds = array<i64: 8, 512>}]} {
    %c0_i32 = arith.constant 0 : i32
    %0 = arith.cmpi eq, %arg1, %c0_i32 : i32
    %1 = arith.extui %0 : i1 to i32
    %c0_i32_0 = arith.constant 0 : i32
    %2 = arith.cmpi ne, %1, %c0_i32_0 : i32
    scf.if %2 {
      %c0_13 = arith.constant 0 : index
      %c0_14 = arith.constant 0 : index
      %18 = vector.load %arg4[%c0_13, %c0_14] : memref<8x512xbf16, #tpu.memory_space<vmem>>, vector<8x512xbf16>
      %c0_15 = arith.constant 0 : index
      %c0_16 = arith.constant 0 : index
      %19 = vector.load %arg6[%c0_15, %c0_16] : memref<512x512xbf16, #tpu.memory_space<vmem>>, vector<512x512xbf16>
      %cst_17 = arith.constant dense<0.000000e+00> : vector<8x512xf32>
      %20 = tpu.matmul %18, %19, %cst_17 {dimension_numbers = #tpu.dot_dimension_numbers<[1], [0], [0], [1], [0, 0, 1, 1], [], []>} : vector<8x512xbf16>, vector<512x512xbf16>, vector<8x512xf32> -> vector<8x512xf32>
      %c0_18 = arith.constant 0 : index
      %c0_19 = arith.constant 0 : index
      %21 = vector.load %arg7[%c0_18, %c0_19] : memref<1x512xf32, #tpu.memory_space<vmem>>, vector<1x512xf32>
      %22 = vector.broadcast %21 : vector<1x512xf32> to vector<8x512xf32>
      %23 = arith.addf %20, %22 : vector<8x512xf32>
      %c0_20 = arith.constant 0 : index
      %c0_21 = arith.constant 0 : index
      %24 = vector.load %arg11[%c0_20, %c0_21] : memref<8x512xf32, #tpu.memory_space<vmem>>, vector<8x512xf32>
      tpu.vector_store %arg11[%c0_20, %c0_21], %23 {strides = array<i32>} : memref<8x512xf32, #tpu.memory_space<vmem>>, vector<8x512xf32>,
    } else {
    }
    %c0 = arith.constant 0 : index
    %c0_1 = arith.constant 0 : index
    %c0_2 = arith.constant 0 : index
    %3 = vector.load %arg2[%c0, %c0_1, %c0_2] : memref<1x8x16xbf16, #tpu.memory_space<vmem>>, vector<1x8x16xbf16>
    %4 = vector.shape_cast %3 : vector<1x8x16xbf16> to vector<8x16xbf16>
    %c0_3 = arith.constant 0 : index
    %c0_4 = arith.constant 0 : index
    %5 = vector.load %arg3[%c0_3, %c0_4] : memref<16x512xbf16, #tpu.memory_space<vmem>>, vector<16x512xbf16>
    %cst = arith.constant dense<0.000000e+00> : vector<8x512xf32>
    %6 = tpu.matmul %4, %5, %cst {dimension_numbers = #tpu.dot_dimension_numbers<[1], [0], [0], [1], [0, 0, 1, 1], [], []>} : vector<8x16xbf16>, vector<16x512xbf16>, vector<8x512xf32> -> vector<8x512xf32>
    %c0_5 = arith.constant 0 : index
    %c0_6 = arith.constant 0 : index
    %7 = vector.load %arg11[%c0_5, %c0_6] : memref<8x512xf32, #tpu.memory_space<vmem>>, vector<8x512xf32>
    %8 = arith.truncf %6 : vector<8x512xf32> to vector<8x512xbf16>
    %9 = arith.index_cast %arg1 : i32 to index
    %c0_7 = arith.constant 0 : index
    %c0_8 = arith.constant 0 : index
    %10 = vector.load %arg5[%9, %c0_7, %c0_8] : memref<3x512x512xbf16, #tpu.memory_space<vmem>>, vector<1x512x512xbf16>
    %11 = vector.shape_cast %10 : vector<1x512x512xbf16> to vector<512x512xbf16>
    %cst_9 = arith.constant dense<0.000000e+00> : vector<8x512xf32>
    %12 = tpu.matmul %8, %11, %cst_9 {dimension_numbers = #tpu.dot_dimension_numbers<[1], [0], [0], [1], [0, 0, 1, 1], [], []>} : vector<8x512xbf16>, vector<512x512xbf16>, vector<8x512xf32> -> vector<8x512xf32>
    %13 = arith.addf %7, %12 : vector<8x512xf32>
    %c0_10 = arith.constant 0 : index
    %c0_11 = arith.constant 0 : index
    %14 = vector.load %arg11[%c0_10, %c0_11] : memref<8x512xf32, #tpu.memory_space<vmem>>, vector<8x512xf32>
    tpu.vector_store %arg11[%c0_10, %c0_11], %13 {strides = array<i32>} : memref<8x512xf32, #tpu.memory_space<vmem>>, vector<8x512xf32>,
    %c2_i32 = arith.constant 2 : i32
    %15 = arith.cmpi eq, %arg1, %c2_i32 : i32
    %16 = arith.extui %15 : i1 to i32
    %c0_i32_12 = arith.constant 0 : i32
    %17 = arith.cmpi ne, %16, %c0_i32_12 : i32
    scf.if %17 {
      %c0_13 = arith.constant 0 : index
      %c0_14 = arith.constant 0 : index
      %18 = vector.load %arg11[%c0_13, %c0_14] : memref<8x512xf32, #tpu.memory_space<vmem>>, vector<8x512xf32>
      %c0_15 = arith.constant 0 : index
      %c0_16 = arith.constant 0 : index
      %19 = vector.load %arg8[%c0_15, %c0_16] : memref<1x512xf32, #tpu.memory_space<vmem>>, vector<1x512xf32>
      %20 = vector.broadcast %19 : vector<1x512xf32> to vector<8x512xf32>
      %21 = arith.mulf %18, %20 : vector<8x512xf32>
      %c0_17 = arith.constant 0 : index
      %c0_18 = arith.constant 0 : index
      %22 = vector.load %arg9[%c0_17, %c0_18] : memref<1x512xf32, #tpu.memory_space<vmem>>, vector<1x512xf32>
      %23 = vector.broadcast %22 : vector<1x512xf32> to vector<8x512xf32>
      %24 = arith.addf %21, %23 : vector<8x512xf32>
      %cst_19 = arith.constant 0.000000e+00 : f32
      %25 = vector.broadcast %cst_19 : f32 to vector<8x512xf32>
      %26 = arith.maximumf %24, %25 : vector<8x512xf32>
      %27 = arith.truncf %26 : vector<8x512xf32> to vector<8x512xbf16>
      %c0_20 = arith.constant 0 : index
      %c0_21 = arith.constant 0 : index
      %28 = vector.load %arg10[%c0_20, %c0_21] : memref<8x512xbf16, #tpu.memory_space<vmem>>, vector<8x512xbf16>
      tpu.vector_store %arg10[%c0_20, %c0_21], %27 {strides = array<i32>} : memref<8x512xbf16, #tpu.memory_space<vmem>>, vector<8x512xbf16>,
    } else {
    }
    return
  }
  func.func @transform_0(%arg0: i32, %arg1: i32) -> (i32, i32, i32) {
    %c0_i32 = arith.constant 0 : i32
    %c0_i32_0 = arith.constant 0 : i32
    return %arg1, %arg0, %c0_i32 : i32, i32, i32
  }
  func.func @transform_1(%arg0: i32, %arg1: i32) -> (i32, i32) {
    %c0_i32 = arith.constant 0 : i32
    %c0_i32_0 = arith.constant 0 : i32
    %c0_i32_1 = arith.constant 0 : i32
    return %c0_i32, %c0_i32_0 : i32, i32
  }
  func.func @transform_2(%arg0: i32, %arg1: i32) -> (i32, i32) {
    %c0_i32 = arith.constant 0 : i32
    %c0_i32_0 = arith.constant 0 : i32
    return %arg0, %c0_i32 : i32, i32
  }
  func.func @transform_3(%arg0: i32, %arg1: i32) -> (i32, i32, i32) {
    %c0_i32 = arith.constant 0 : i32
    %c0_i32_0 = arith.constant 0 : i32
    %c0_i32_1 = arith.constant 0 : i32
    %c0_i32_2 = arith.constant 0 : i32
    return %c0_i32, %c0_i32_0, %c0_i32_1 : i32, i32, i32
  }
  func.func @transform_4(%arg0: i32, %arg1: i32) -> (i32, i32) {
    %c0_i32 = arith.constant 0 : i32
    %c0_i32_0 = arith.constant 0 : i32
    %c0_i32_1 = arith.constant 0 : i32
    return %c0_i32, %c0_i32_0 : i32, i32
  }
  func.func @transform_5(%arg0: i32, %arg1: i32) -> (i32, i32) {
    %c0_i32 = arith.constant 0 : i32
    %c0_i32_0 = arith.constant 0 : i32
    %c0_i32_1 = arith.constant 0 : i32
    return %c0_i32, %c0_i32_0 : i32, i32
  }
  func.func @transform_6(%arg0: i32, %arg1: i32) -> (i32, i32) {
    %c0_i32 = arith.constant 0 : i32
    %c0_i32_0 = arith.constant 0 : i32
    %c0_i32_1 = arith.constant 0 : i32
    return %c0_i32, %c0_i32_0 : i32, i32
  }
  func.func @transform_7(%arg0: i32, %arg1: i32) -> (i32, i32) {
    %c0_i32 = arith.constant 0 : i32
    %c0_i32_0 = arith.constant 0 : i32
    %c0_i32_1 = arith.constant 0 : i32
    return %c0_i32, %c0_i32_0 : i32, i32
  }
  func.func @transform_8(%arg0: i32, %arg1: i32) -> (i32, i32) {
    %c0_i32 = arith.constant 0 : i32
    %c0_i32_0 = arith.constant 0 : i32
    return %arg0, %c0_i32 : i32, i32
  }
}

module attributes {stable_mosaic.version = 11 : i64} {
  func.func @_rgcn_bn_kernel(%arg0: i32, %arg1: i32, %arg2: memref<1x8x16xbf16, #tpu.memory_space<vmem>>, %arg3: memref<16x128xbf16, #tpu.memory_space<vmem>>, %arg4: memref<8x128xbf16, #tpu.memory_space<vmem>>, %arg5: memref<3x128x512xbf16, #tpu.memory_space<vmem>>, %arg6: memref<128x512xbf16, #tpu.memory_space<vmem>>, %arg7: memref<1x512xf32, #tpu.memory_space<vmem>>, %arg8: memref<1x512xf32, #tpu.memory_space<vmem>>, %arg9: memref<1x512xf32, #tpu.memory_space<vmem>>, %arg10: memref<8x512xbf16, #tpu.memory_space<vmem>>, %arg11: memref<8x512xf32, #tpu.memory_space<vmem>>) attributes {dimension_semantics = [#tpu.dimension_semantics<parallel>, #tpu.dimension_semantics<arbitrary>], iteration_bounds = array<i64: 2, 3>, scalar_prefetch = 0 : i64, scratch_operands = 1 : i64, tpu.core_type = #tpu.core_type<tc>, window_params = [{transform_indices = @transform_0, window_bounds = array<i64: 1, 8, 16>}, {pipeline_mode = #tpu.pipeline_mode<synchronous>, transform_indices = @transform_1, window_bounds = array<i64: 16, 128>}, {transform_indices = @transform_2, window_bounds = array<i64: 8, 128>}, {pipeline_mode = #tpu.pipeline_mode<synchronous>, transform_indices = @transform_3, window_bounds = array<i64: 3, 128, 512>}, {pipeline_mode = #tpu.pipeline_mode<synchronous>, transform_indices = @transform_4, window_bounds = array<i64: 128, 512>}, {pipeline_mode = #tpu.pipeline_mode<synchronous>, transform_indices = @transform_5, window_bounds = array<i64: 1, 512>}, {pipeline_mode = #tpu.pipeline_mode<synchronous>, transform_indices = @transform_6, window_bounds = array<i64: 1, 512>}, {pipeline_mode = #tpu.pipeline_mode<synchronous>, transform_indices = @transform_7, window_bounds = array<i64: 1, 512>}, {transform_indices = @transform_8, window_bounds = array<i64: 8, 512>}]} {
    %c0_i32 = arith.constant 0 : i32
    %0 = arith.cmpi eq, %arg1, %c0_i32 : i32
    %1 = arith.extui %0 : i1 to i32
    %c0_i32_0 = arith.constant 0 : i32
    %2 = arith.cmpi ne, %1, %c0_i32_0 : i32
    scf.if %2 {
      %c0_13 = arith.constant 0 : index
      %c0_14 = arith.constant 0 : index
      %18 = vector.load %arg4[%c0_13, %c0_14] : memref<8x128xbf16, #tpu.memory_space<vmem>>, vector<8x128xbf16>
      %c0_15 = arith.constant 0 : index
      %c0_16 = arith.constant 0 : index
      %19 = vector.load %arg6[%c0_15, %c0_16] : memref<128x512xbf16, #tpu.memory_space<vmem>>, vector<128x512xbf16>
      %cst_17 = arith.constant dense<0.000000e+00> : vector<8x512xf32>
      %20 = tpu.matmul %18, %19, %cst_17 {dimension_numbers = #tpu.dot_dimension_numbers<[1], [0], [0], [1], [0, 0, 1, 1], [], []>} : vector<8x128xbf16>, vector<128x512xbf16>, vector<8x512xf32> -> vector<8x512xf32>
      %c0_18 = arith.constant 0 : index
      %c0_19 = arith.constant 0 : index
      %21 = vector.load %arg7[%c0_18, %c0_19] : memref<1x512xf32, #tpu.memory_space<vmem>>, vector<1x512xf32>
      %22 = vector.broadcast %21 : vector<1x512xf32> to vector<8x512xf32>
      %23 = arith.addf %20, %22 : vector<8x512xf32>
      %c0_20 = arith.constant 0 : index
      %c0_21 = arith.constant 0 : index
      %24 = vector.load %arg11[%c0_20, %c0_21] : memref<8x512xf32, #tpu.memory_space<vmem>>, vector<8x512xf32>
      tpu.vector_store %arg11[%c0_20, %c0_21], %23 {strides = array<i32>} : memref<8x512xf32, #tpu.memory_space<vmem>>, vector<8x512xf32>,
    } else {
    }
    %c0 = arith.constant 0 : index
    %c0_1 = arith.constant 0 : index
    %c0_2 = arith.constant 0 : index
    %3 = vector.load %arg2[%c0, %c0_1, %c0_2] : memref<1x8x16xbf16, #tpu.memory_space<vmem>>, vector<1x8x16xbf16>
    %4 = vector.shape_cast %3 : vector<1x8x16xbf16> to vector<8x16xbf16>
    %c0_3 = arith.constant 0 : index
    %c0_4 = arith.constant 0 : index
    %5 = vector.load %arg3[%c0_3, %c0_4] : memref<16x128xbf16, #tpu.memory_space<vmem>>, vector<16x128xbf16>
    %cst = arith.constant dense<0.000000e+00> : vector<8x128xf32>
    %6 = tpu.matmul %4, %5, %cst {dimension_numbers = #tpu.dot_dimension_numbers<[1], [0], [0], [1], [0, 0, 1, 1], [], []>} : vector<8x16xbf16>, vector<16x128xbf16>, vector<8x128xf32> -> vector<8x128xf32>
    %c0_5 = arith.constant 0 : index
    %c0_6 = arith.constant 0 : index
    %7 = vector.load %arg11[%c0_5, %c0_6] : memref<8x512xf32, #tpu.memory_space<vmem>>, vector<8x512xf32>
    %8 = arith.truncf %6 : vector<8x128xf32> to vector<8x128xbf16>
    %9 = arith.index_cast %arg1 : i32 to index
    %c0_7 = arith.constant 0 : index
    %c0_8 = arith.constant 0 : index
    %10 = vector.load %arg5[%9, %c0_7, %c0_8] : memref<3x128x512xbf16, #tpu.memory_space<vmem>>, vector<1x128x512xbf16>
    %11 = vector.shape_cast %10 : vector<1x128x512xbf16> to vector<128x512xbf16>
    %cst_9 = arith.constant dense<0.000000e+00> : vector<8x512xf32>
    %12 = tpu.matmul %8, %11, %cst_9 {dimension_numbers = #tpu.dot_dimension_numbers<[1], [0], [0], [1], [0, 0, 1, 1], [], []>} : vector<8x128xbf16>, vector<128x512xbf16>, vector<8x512xf32> -> vector<8x512xf32>
    %13 = arith.addf %7, %12 : vector<8x512xf32>
    %c0_10 = arith.constant 0 : index
    %c0_11 = arith.constant 0 : index
    %14 = vector.load %arg11[%c0_10, %c0_11] : memref<8x512xf32, #tpu.memory_space<vmem>>, vector<8x512xf32>
    tpu.vector_store %arg11[%c0_10, %c0_11], %13 {strides = array<i32>} : memref<8x512xf32, #tpu.memory_space<vmem>>, vector<8x512xf32>,
    %c2_i32 = arith.constant 2 : i32
    %15 = arith.cmpi eq, %arg1, %c2_i32 : i32
    %16 = arith.extui %15 : i1 to i32
    %c0_i32_12 = arith.constant 0 : i32
    %17 = arith.cmpi ne, %16, %c0_i32_12 : i32
    scf.if %17 {
      %c0_13 = arith.constant 0 : index
      %c0_14 = arith.constant 0 : index
      %18 = vector.load %arg11[%c0_13, %c0_14] : memref<8x512xf32, #tpu.memory_space<vmem>>, vector<8x512xf32>
      %c0_15 = arith.constant 0 : index
      %c0_16 = arith.constant 0 : index
      %19 = vector.load %arg8[%c0_15, %c0_16] : memref<1x512xf32, #tpu.memory_space<vmem>>, vector<1x512xf32>
      %20 = vector.broadcast %19 : vector<1x512xf32> to vector<8x512xf32>
      %21 = arith.mulf %18, %20 : vector<8x512xf32>
      %c0_17 = arith.constant 0 : index
      %c0_18 = arith.constant 0 : index
      %22 = vector.load %arg9[%c0_17, %c0_18] : memref<1x512xf32, #tpu.memory_space<vmem>>, vector<1x512xf32>
      %23 = vector.broadcast %22 : vector<1x512xf32> to vector<8x512xf32>
      %24 = arith.addf %21, %23 : vector<8x512xf32>
      %cst_19 = arith.constant 0.000000e+00 : f32
      %25 = vector.broadcast %cst_19 : f32 to vector<8x512xf32>
      %26 = arith.maximumf %24, %25 : vector<8x512xf32>
      %27 = arith.truncf %26 : vector<8x512xf32> to vector<8x512xbf16>
      %c0_20 = arith.constant 0 : index
      %c0_21 = arith.constant 0 : index
      %28 = vector.load %arg10[%c0_20, %c0_21] : memref<8x512xbf16, #tpu.memory_space<vmem>>, vector<8x512xbf16>
      tpu.vector_store %arg10[%c0_20, %c0_21], %27 {strides = array<i32>} : memref<8x512xbf16, #tpu.memory_space<vmem>>, vector<8x512xbf16>,
    } else {
    }
    return
  }
  func.func @transform_0(%arg0: i32, %arg1: i32) -> (i32, i32, i32) {
    %c0_i32 = arith.constant 0 : i32
    %c0_i32_0 = arith.constant 0 : i32
    return %arg1, %arg0, %c0_i32 : i32, i32, i32
  }
  func.func @transform_1(%arg0: i32, %arg1: i32) -> (i32, i32) {
    %c0_i32 = arith.constant 0 : i32
    %c0_i32_0 = arith.constant 0 : i32
    %c0_i32_1 = arith.constant 0 : i32
    return %c0_i32, %c0_i32_0 : i32, i32
  }
  func.func @transform_2(%arg0: i32, %arg1: i32) -> (i32, i32) {
    %c0_i32 = arith.constant 0 : i32
    %c0_i32_0 = arith.constant 0 : i32
    return %arg0, %c0_i32 : i32, i32
  }
  func.func @transform_3(%arg0: i32, %arg1: i32) -> (i32, i32, i32) {
    %c0_i32 = arith.constant 0 : i32
    %c0_i32_0 = arith.constant 0 : i32
    %c0_i32_1 = arith.constant 0 : i32
    %c0_i32_2 = arith.constant 0 : i32
    return %c0_i32, %c0_i32_0, %c0_i32_1 : i32, i32, i32
  }
  func.func @transform_4(%arg0: i32, %arg1: i32) -> (i32, i32) {
    %c0_i32 = arith.constant 0 : i32
    %c0_i32_0 = arith.constant 0 : i32
    %c0_i32_1 = arith.constant 0 : i32
    return %c0_i32, %c0_i32_0 : i32, i32
  }
  func.func @transform_5(%arg0: i32, %arg1: i32) -> (i32, i32) {
    %c0_i32 = arith.constant 0 : i32
    %c0_i32_0 = arith.constant 0 : i32
    %c0_i32_1 = arith.constant 0 : i32
    return %c0_i32, %c0_i32_0 : i32, i32
  }
  func.func @transform_6(%arg0: i32, %arg1: i32) -> (i32, i32) {
    %c0_i32 = arith.constant 0 : i32
    %c0_i32_0 = arith.constant 0 : i32
    %c0_i32_1 = arith.constant 0 : i32
    return %c0_i32, %c0_i32_0 : i32, i32
  }
  func.func @transform_7(%arg0: i32, %arg1: i32) -> (i32, i32) {
    %c0_i32 = arith.constant 0 : i32
    %c0_i32_0 = arith.constant 0 : i32
    %c0_i32_1 = arith.constant 0 : i32
    return %c0_i32, %c0_i32_0 : i32, i32
  }
  func.func @transform_8(%arg0: i32, %arg1: i32) -> (i32, i32) {
    %c0_i32 = arith.constant 0 : i32
    %c0_i32_0 = arith.constant 0 : i32
    return %arg0, %c0_i32 : i32, i32
  }
}

module attributes {stable_mosaic.version = 11 : i64} {
  func.func @_rgcn_bn_kernel(%arg0: i32, %arg1: i32, %arg2: memref<1x8x16xbf16, #tpu.memory_space<vmem>>, %arg3: memref<16x512xbf16, #tpu.memory_space<vmem>>, %arg4: memref<8x512xbf16, #tpu.memory_space<vmem>>, %arg5: memref<3x512x512xbf16, #tpu.memory_space<vmem>>, %arg6: memref<512x512xbf16, #tpu.memory_space<vmem>>, %arg7: memref<1x512xf32, #tpu.memory_space<vmem>>, %arg8: memref<1x512xf32, #tpu.memory_space<vmem>>, %arg9: memref<1x512xf32, #tpu.memory_space<vmem>>, %arg10: memref<8x512xbf16, #tpu.memory_space<vmem>>, %arg11: memref<8x512xf32, #tpu.memory_space<vmem>>) attributes {dimension_semantics = [#tpu.dimension_semantics<parallel>, #tpu.dimension_semantics<arbitrary>], iteration_bounds = array<i64: 2, 3>, scalar_prefetch = 0 : i64, scratch_operands = 1 : i64, tpu.core_type = #tpu.core_type<tc>, window_params = [{transform_indices = @transform_0, window_bounds = array<i64: 1, 8, 16>}, {pipeline_mode = #tpu.pipeline_mode<synchronous>, transform_indices = @transform_1, window_bounds = array<i64: 16, 512>}, {transform_indices = @transform_2, window_bounds = array<i64: 8, 512>}, {pipeline_mode = #tpu.pipeline_mode<synchronous>, transform_indices = @transform_3, window_bounds = array<i64: 3, 512, 512>}, {pipeline_mode = #tpu.pipeline_mode<synchronous>, transform_indices = @transform_4, window_bounds = array<i64: 512, 512>}, {pipeline_mode = #tpu.pipeline_mode<synchronous>, transform_indices = @transform_5, window_bounds = array<i64: 1, 512>}, {pipeline_mode = #tpu.pipeline_mode<synchronous>, transform_indices = @transform_6, window_bounds = array<i64: 1, 512>}, {pipeline_mode = #tpu.pipeline_mode<synchronous>, transform_indices = @transform_7, window_bounds = array<i64: 1, 512>}, {transform_indices = @transform_8, window_bounds = array<i64: 8, 512>}]} {
    %c0_i32 = arith.constant 0 : i32
    %0 = arith.cmpi eq, %arg1, %c0_i32 : i32
    %1 = arith.extui %0 : i1 to i32
    %c0_i32_0 = arith.constant 0 : i32
    %2 = arith.cmpi ne, %1, %c0_i32_0 : i32
    scf.if %2 {
      %c0_13 = arith.constant 0 : index
      %c0_14 = arith.constant 0 : index
      %18 = vector.load %arg4[%c0_13, %c0_14] : memref<8x512xbf16, #tpu.memory_space<vmem>>, vector<8x512xbf16>
      %c0_15 = arith.constant 0 : index
      %c0_16 = arith.constant 0 : index
      %19 = vector.load %arg6[%c0_15, %c0_16] : memref<512x512xbf16, #tpu.memory_space<vmem>>, vector<512x512xbf16>
      %cst_17 = arith.constant dense<0.000000e+00> : vector<8x512xf32>
      %20 = tpu.matmul %18, %19, %cst_17 {dimension_numbers = #tpu.dot_dimension_numbers<[1], [0], [0], [1], [0, 0, 1, 1], [], []>} : vector<8x512xbf16>, vector<512x512xbf16>, vector<8x512xf32> -> vector<8x512xf32>
      %c0_18 = arith.constant 0 : index
      %c0_19 = arith.constant 0 : index
      %21 = vector.load %arg7[%c0_18, %c0_19] : memref<1x512xf32, #tpu.memory_space<vmem>>, vector<1x512xf32>
      %22 = vector.broadcast %21 : vector<1x512xf32> to vector<8x512xf32>
      %23 = arith.addf %20, %22 : vector<8x512xf32>
      %c0_20 = arith.constant 0 : index
      %c0_21 = arith.constant 0 : index
      %24 = vector.load %arg11[%c0_20, %c0_21] : memref<8x512xf32, #tpu.memory_space<vmem>>, vector<8x512xf32>
      tpu.vector_store %arg11[%c0_20, %c0_21], %23 {strides = array<i32>} : memref<8x512xf32, #tpu.memory_space<vmem>>, vector<8x512xf32>,
    } else {
    }
    %c0 = arith.constant 0 : index
    %c0_1 = arith.constant 0 : index
    %c0_2 = arith.constant 0 : index
    %3 = vector.load %arg2[%c0, %c0_1, %c0_2] : memref<1x8x16xbf16, #tpu.memory_space<vmem>>, vector<1x8x16xbf16>
    %4 = vector.shape_cast %3 : vector<1x8x16xbf16> to vector<8x16xbf16>
    %c0_3 = arith.constant 0 : index
    %c0_4 = arith.constant 0 : index
    %5 = vector.load %arg3[%c0_3, %c0_4] : memref<16x512xbf16, #tpu.memory_space<vmem>>, vector<16x512xbf16>
    %cst = arith.constant dense<0.000000e+00> : vector<8x512xf32>
    %6 = tpu.matmul %4, %5, %cst {dimension_numbers = #tpu.dot_dimension_numbers<[1], [0], [0], [1], [0, 0, 1, 1], [], []>} : vector<8x16xbf16>, vector<16x512xbf16>, vector<8x512xf32> -> vector<8x512xf32>
    %c0_5 = arith.constant 0 : index
    %c0_6 = arith.constant 0 : index
    %7 = vector.load %arg11[%c0_5, %c0_6] : memref<8x512xf32, #tpu.memory_space<vmem>>, vector<8x512xf32>
    %8 = arith.truncf %6 : vector<8x512xf32> to vector<8x512xbf16>
    %9 = arith.index_cast %arg1 : i32 to index
    %c0_7 = arith.constant 0 : index
    %c0_8 = arith.constant 0 : index
    %10 = vector.load %arg5[%9, %c0_7, %c0_8] : memref<3x512x512xbf16, #tpu.memory_space<vmem>>, vector<1x512x512xbf16>
    %11 = vector.shape_cast %10 : vector<1x512x512xbf16> to vector<512x512xbf16>
    %cst_9 = arith.constant dense<0.000000e+00> : vector<8x512xf32>
    %12 = tpu.matmul %8, %11, %cst_9 {dimension_numbers = #tpu.dot_dimension_numbers<[1], [0], [0], [1], [0, 0, 1, 1], [], []>} : vector<8x512xbf16>, vector<512x512xbf16>, vector<8x512xf32> -> vector<8x512xf32>
    %13 = arith.addf %7, %12 : vector<8x512xf32>
    %c0_10 = arith.constant 0 : index
    %c0_11 = arith.constant 0 : index
    %14 = vector.load %arg11[%c0_10, %c0_11] : memref<8x512xf32, #tpu.memory_space<vmem>>, vector<8x512xf32>
    tpu.vector_store %arg11[%c0_10, %c0_11], %13 {strides = array<i32>} : memref<8x512xf32, #tpu.memory_space<vmem>>, vector<8x512xf32>,
    %c2_i32 = arith.constant 2 : i32
    %15 = arith.cmpi eq, %arg1, %c2_i32 : i32
    %16 = arith.extui %15 : i1 to i32
    %c0_i32_12 = arith.constant 0 : i32
    %17 = arith.cmpi ne, %16, %c0_i32_12 : i32
    scf.if %17 {
      %c0_13 = arith.constant 0 : index
      %c0_14 = arith.constant 0 : index
      %18 = vector.load %arg11[%c0_13, %c0_14] : memref<8x512xf32, #tpu.memory_space<vmem>>, vector<8x512xf32>
      %c0_15 = arith.constant 0 : index
      %c0_16 = arith.constant 0 : index
      %19 = vector.load %arg8[%c0_15, %c0_16] : memref<1x512xf32, #tpu.memory_space<vmem>>, vector<1x512xf32>
      %20 = vector.broadcast %19 : vector<1x512xf32> to vector<8x512xf32>
      %21 = arith.mulf %18, %20 : vector<8x512xf32>
      %c0_17 = arith.constant 0 : index
      %c0_18 = arith.constant 0 : index
      %22 = vector.load %arg9[%c0_17, %c0_18] : memref<1x512xf32, #tpu.memory_space<vmem>>, vector<1x512xf32>
      %23 = vector.broadcast %22 : vector<1x512xf32> to vector<8x512xf32>
      %24 = arith.addf %21, %23 : vector<8x512xf32>
      %cst_19 = arith.constant 0.000000e+00 : f32
      %25 = vector.broadcast %cst_19 : f32 to vector<8x512xf32>
      %26 = arith.maximumf %24, %25 : vector<8x512xf32>
      %27 = arith.truncf %26 : vector<8x512xf32> to vector<8x512xbf16>
      %c0_20 = arith.constant 0 : index
      %c0_21 = arith.constant 0 : index
      %28 = vector.load %arg10[%c0_20, %c0_21] : memref<8x512xbf16, #tpu.memory_space<vmem>>, vector<8x512xbf16>
      tpu.vector_store %arg10[%c0_20, %c0_21], %27 {strides = array<i32>} : memref<8x512xbf16, #tpu.memory_space<vmem>>, vector<8x512xbf16>,
    } else {
    }
    return
  }
  func.func @transform_0(%arg0: i32, %arg1: i32) -> (i32, i32, i32) {
    %c0_i32 = arith.constant 0 : i32
    %c0_i32_0 = arith.constant 0 : i32
    return %arg1, %arg0, %c0_i32 : i32, i32, i32
  }
  func.func @transform_1(%arg0: i32, %arg1: i32) -> (i32, i32) {
    %c0_i32 = arith.constant 0 : i32
    %c0_i32_0 = arith.constant 0 : i32
    %c0_i32_1 = arith.constant 0 : i32
    return %c0_i32, %c0_i32_0 : i32, i32
  }
  func.func @transform_2(%arg0: i32, %arg1: i32) -> (i32, i32) {
    %c0_i32 = arith.constant 0 : i32
    %c0_i32_0 = arith.constant 0 : i32
    return %arg0, %c0_i32 : i32, i32
  }
  func.func @transform_3(%arg0: i32, %arg1: i32) -> (i32, i32, i32) {
    %c0_i32 = arith.constant 0 : i32
    %c0_i32_0 = arith.constant 0 : i32
    %c0_i32_1 = arith.constant 0 : i32
    %c0_i32_2 = arith.constant 0 : i32
    return %c0_i32, %c0_i32_0, %c0_i32_1 : i32, i32, i32
  }
  func.func @transform_4(%arg0: i32, %arg1: i32) -> (i32, i32) {
    %c0_i32 = arith.constant 0 : i32
    %c0_i32_0 = arith.constant 0 : i32
    %c0_i32_1 = arith.constant 0 : i32
    return %c0_i32, %c0_i32_0 : i32, i32
  }
  func.func @transform_5(%arg0: i32, %arg1: i32) -> (i32, i32) {
    %c0_i32 = arith.constant 0 : i32
    %c0_i32_0 = arith.constant 0 : i32
    %c0_i32_1 = arith.constant 0 : i32
    return %c0_i32, %c0_i32_0 : i32, i32
  }
  func.func @transform_6(%arg0: i32, %arg1: i32) -> (i32, i32) {
    %c0_i32 = arith.constant 0 : i32
    %c0_i32_0 = arith.constant 0 : i32
    %c0_i32_1 = arith.constant 0 : i32
    return %c0_i32, %c0_i32_0 : i32, i32
  }
  func.func @transform_7(%arg0: i32, %arg1: i32) -> (i32, i32) {
    %c0_i32 = arith.constant 0 : i32
    %c0_i32_0 = arith.constant 0 : i32
    %c0_i32_1 = arith.constant 0 : i32
    return %c0_i32, %c0_i32_0 : i32, i32
  }
  func.func @transform_8(%arg0: i32, %arg1: i32) -> (i32, i32) {
    %c0_i32 = arith.constant 0 : i32
    %c0_i32_0 = arith.constant 0 : i32
    return %arg0, %c0_i32 : i32, i32
  }
}

module attributes {stable_mosaic.version = 11 : i64} {
  func.func @_rgcn_bn_kernel(%arg0: i32, %arg1: i32, %arg2: memref<1x8x16xbf16, #tpu.memory_space<vmem>>, %arg3: memref<16x512xbf16, #tpu.memory_space<vmem>>, %arg4: memref<8x512xbf16, #tpu.memory_space<vmem>>, %arg5: memref<3x512x512xbf16, #tpu.memory_space<vmem>>, %arg6: memref<512x512xbf16, #tpu.memory_space<vmem>>, %arg7: memref<1x512xf32, #tpu.memory_space<vmem>>, %arg8: memref<1x512xf32, #tpu.memory_space<vmem>>, %arg9: memref<1x512xf32, #tpu.memory_space<vmem>>, %arg10: memref<8x512xbf16, #tpu.memory_space<vmem>>, %arg11: memref<8x512xf32, #tpu.memory_space<vmem>>) attributes {dimension_semantics = [#tpu.dimension_semantics<parallel>, #tpu.dimension_semantics<arbitrary>], iteration_bounds = array<i64: 2, 3>, scalar_prefetch = 0 : i64, scratch_operands = 1 : i64, tpu.core_type = #tpu.core_type<tc>, window_params = [{transform_indices = @transform_0, window_bounds = array<i64: 1, 8, 16>}, {pipeline_mode = #tpu.pipeline_mode<synchronous>, transform_indices = @transform_1, window_bounds = array<i64: 16, 512>}, {transform_indices = @transform_2, window_bounds = array<i64: 8, 512>}, {pipeline_mode = #tpu.pipeline_mode<synchronous>, transform_indices = @transform_3, window_bounds = array<i64: 3, 512, 512>}, {pipeline_mode = #tpu.pipeline_mode<synchronous>, transform_indices = @transform_4, window_bounds = array<i64: 512, 512>}, {pipeline_mode = #tpu.pipeline_mode<synchronous>, transform_indices = @transform_5, window_bounds = array<i64: 1, 512>}, {pipeline_mode = #tpu.pipeline_mode<synchronous>, transform_indices = @transform_6, window_bounds = array<i64: 1, 512>}, {pipeline_mode = #tpu.pipeline_mode<synchronous>, transform_indices = @transform_7, window_bounds = array<i64: 1, 512>}, {transform_indices = @transform_8, window_bounds = array<i64: 8, 512>}]} {
    %c0_i32 = arith.constant 0 : i32
    %0 = arith.cmpi eq, %arg1, %c0_i32 : i32
    %1 = arith.extui %0 : i1 to i32
    %c0_i32_0 = arith.constant 0 : i32
    %2 = arith.cmpi ne, %1, %c0_i32_0 : i32
    scf.if %2 {
      %c0_13 = arith.constant 0 : index
      %c0_14 = arith.constant 0 : index
      %18 = vector.load %arg4[%c0_13, %c0_14] : memref<8x512xbf16, #tpu.memory_space<vmem>>, vector<8x512xbf16>
      %c0_15 = arith.constant 0 : index
      %c0_16 = arith.constant 0 : index
      %19 = vector.load %arg6[%c0_15, %c0_16] : memref<512x512xbf16, #tpu.memory_space<vmem>>, vector<512x512xbf16>
      %cst_17 = arith.constant dense<0.000000e+00> : vector<8x512xf32>
      %20 = tpu.matmul %18, %19, %cst_17 {dimension_numbers = #tpu.dot_dimension_numbers<[1], [0], [0], [1], [0, 0, 1, 1], [], []>} : vector<8x512xbf16>, vector<512x512xbf16>, vector<8x512xf32> -> vector<8x512xf32>
      %c0_18 = arith.constant 0 : index
      %c0_19 = arith.constant 0 : index
      %21 = vector.load %arg7[%c0_18, %c0_19] : memref<1x512xf32, #tpu.memory_space<vmem>>, vector<1x512xf32>
      %22 = vector.broadcast %21 : vector<1x512xf32> to vector<8x512xf32>
      %23 = arith.addf %20, %22 : vector<8x512xf32>
      %c0_20 = arith.constant 0 : index
      %c0_21 = arith.constant 0 : index
      %24 = vector.load %arg11[%c0_20, %c0_21] : memref<8x512xf32, #tpu.memory_space<vmem>>, vector<8x512xf32>
      tpu.vector_store %arg11[%c0_20, %c0_21], %23 {strides = array<i32>} : memref<8x512xf32, #tpu.memory_space<vmem>>, vector<8x512xf32>,
    } else {
    }
    %c0 = arith.constant 0 : index
    %c0_1 = arith.constant 0 : index
    %c0_2 = arith.constant 0 : index
    %3 = vector.load %arg2[%c0, %c0_1, %c0_2] : memref<1x8x16xbf16, #tpu.memory_space<vmem>>, vector<1x8x16xbf16>
    %4 = vector.shape_cast %3 : vector<1x8x16xbf16> to vector<8x16xbf16>
    %c0_3 = arith.constant 0 : index
    %c0_4 = arith.constant 0 : index
    %5 = vector.load %arg3[%c0_3, %c0_4] : memref<16x512xbf16, #tpu.memory_space<vmem>>, vector<16x512xbf16>
    %cst = arith.constant dense<0.000000e+00> : vector<8x512xf32>
    %6 = tpu.matmul %4, %5, %cst {dimension_numbers = #tpu.dot_dimension_numbers<[1], [0], [0], [1], [0, 0, 1, 1], [], []>} : vector<8x16xbf16>, vector<16x512xbf16>, vector<8x512xf32> -> vector<8x512xf32>
    %c0_5 = arith.constant 0 : index
    %c0_6 = arith.constant 0 : index
    %7 = vector.load %arg11[%c0_5, %c0_6] : memref<8x512xf32, #tpu.memory_space<vmem>>, vector<8x512xf32>
    %8 = arith.truncf %6 : vector<8x512xf32> to vector<8x512xbf16>
    %9 = arith.index_cast %arg1 : i32 to index
    %c0_7 = arith.constant 0 : index
    %c0_8 = arith.constant 0 : index
    %10 = vector.load %arg5[%9, %c0_7, %c0_8] : memref<3x512x512xbf16, #tpu.memory_space<vmem>>, vector<1x512x512xbf16>
    %11 = vector.shape_cast %10 : vector<1x512x512xbf16> to vector<512x512xbf16>
    %cst_9 = arith.constant dense<0.000000e+00> : vector<8x512xf32>
    %12 = tpu.matmul %8, %11, %cst_9 {dimension_numbers = #tpu.dot_dimension_numbers<[1], [0], [0], [1], [0, 0, 1, 1], [], []>} : vector<8x512xbf16>, vector<512x512xbf16>, vector<8x512xf32> -> vector<8x512xf32>
    %13 = arith.addf %7, %12 : vector<8x512xf32>
    %c0_10 = arith.constant 0 : index
    %c0_11 = arith.constant 0 : index
    %14 = vector.load %arg11[%c0_10, %c0_11] : memref<8x512xf32, #tpu.memory_space<vmem>>, vector<8x512xf32>
    tpu.vector_store %arg11[%c0_10, %c0_11], %13 {strides = array<i32>} : memref<8x512xf32, #tpu.memory_space<vmem>>, vector<8x512xf32>,
    %c2_i32 = arith.constant 2 : i32
    %15 = arith.cmpi eq, %arg1, %c2_i32 : i32
    %16 = arith.extui %15 : i1 to i32
    %c0_i32_12 = arith.constant 0 : i32
    %17 = arith.cmpi ne, %16, %c0_i32_12 : i32
    scf.if %17 {
      %c0_13 = arith.constant 0 : index
      %c0_14 = arith.constant 0 : index
      %18 = vector.load %arg11[%c0_13, %c0_14] : memref<8x512xf32, #tpu.memory_space<vmem>>, vector<8x512xf32>
      %c0_15 = arith.constant 0 : index
      %c0_16 = arith.constant 0 : index
      %19 = vector.load %arg8[%c0_15, %c0_16] : memref<1x512xf32, #tpu.memory_space<vmem>>, vector<1x512xf32>
      %20 = vector.broadcast %19 : vector<1x512xf32> to vector<8x512xf32>
      %21 = arith.mulf %18, %20 : vector<8x512xf32>
      %c0_17 = arith.constant 0 : index
      %c0_18 = arith.constant 0 : index
      %22 = vector.load %arg9[%c0_17, %c0_18] : memref<1x512xf32, #tpu.memory_space<vmem>>, vector<1x512xf32>
      %23 = vector.broadcast %22 : vector<1x512xf32> to vector<8x512xf32>
      %24 = arith.addf %21, %23 : vector<8x512xf32>
      %25 = arith.truncf %24 : vector<8x512xf32> to vector<8x512xbf16>
      %c0_19 = arith.constant 0 : index
      %c0_20 = arith.constant 0 : index
      %26 = vector.load %arg10[%c0_19, %c0_20] : memref<8x512xbf16, #tpu.memory_space<vmem>>, vector<8x512xbf16>
      tpu.vector_store %arg10[%c0_19, %c0_20], %25 {strides = array<i32>} : memref<8x512xbf16, #tpu.memory_space<vmem>>, vector<8x512xbf16>,
    } else {
    }
    return
  }
  func.func @transform_0(%arg0: i32, %arg1: i32) -> (i32, i32, i32) {
    %c0_i32 = arith.constant 0 : i32
    %c0_i32_0 = arith.constant 0 : i32
    return %arg1, %arg0, %c0_i32 : i32, i32, i32
  }
  func.func @transform_1(%arg0: i32, %arg1: i32) -> (i32, i32) {
    %c0_i32 = arith.constant 0 : i32
    %c0_i32_0 = arith.constant 0 : i32
    %c0_i32_1 = arith.constant 0 : i32
    return %c0_i32, %c0_i32_0 : i32, i32
  }
  func.func @transform_2(%arg0: i32, %arg1: i32) -> (i32, i32) {
    %c0_i32 = arith.constant 0 : i32
    %c0_i32_0 = arith.constant 0 : i32
    return %arg0, %c0_i32 : i32, i32
  }
  func.func @transform_3(%arg0: i32, %arg1: i32) -> (i32, i32, i32) {
    %c0_i32 = arith.constant 0 : i32
    %c0_i32_0 = arith.constant 0 : i32
    %c0_i32_1 = arith.constant 0 : i32
    %c0_i32_2 = arith.constant 0 : i32
    return %c0_i32, %c0_i32_0, %c0_i32_1 : i32, i32, i32
  }
  func.func @transform_4(%arg0: i32, %arg1: i32) -> (i32, i32) {
    %c0_i32 = arith.constant 0 : i32
    %c0_i32_0 = arith.constant 0 : i32
    %c0_i32_1 = arith.constant 0 : i32
    return %c0_i32, %c0_i32_0 : i32, i32
  }
  func.func @transform_5(%arg0: i32, %arg1: i32) -> (i32, i32) {
    %c0_i32 = arith.constant 0 : i32
    %c0_i32_0 = arith.constant 0 : i32
    %c0_i32_1 = arith.constant 0 : i32
    return %c0_i32, %c0_i32_0 : i32, i32
  }
  func.func @transform_6(%arg0: i32, %arg1: i32) -> (i32, i32) {
    %c0_i32 = arith.constant 0 : i32
    %c0_i32_0 = arith.constant 0 : i32
    %c0_i32_1 = arith.constant 0 : i32
    return %c0_i32, %c0_i32_0 : i32, i32
  }
  func.func @transform_7(%arg0: i32, %arg1: i32) -> (i32, i32) {
    %c0_i32 = arith.constant 0 : i32
    %c0_i32_0 = arith.constant 0 : i32
    %c0_i32_1 = arith.constant 0 : i32
    return %c0_i32, %c0_i32_0 : i32, i32
  }
  func.func @transform_8(%arg0: i32, %arg1: i32) -> (i32, i32) {
    %c0_i32 = arith.constant 0 : i32
    %c0_i32_0 = arith.constant 0 : i32
    return %arg0, %c0_i32 : i32, i32
  }
}

module attributes {stable_mosaic.version = 11 : i64} {
  func.func @_pool_head_kernel(%arg0: i32, %arg1: memref<2x16xbf16, #tpu.memory_space<vmem>>, %arg2: memref<16x512xbf16, #tpu.memory_space<vmem>>, %arg3: memref<512x300xbf16, #tpu.memory_space<vmem>>, %arg4: memref<1x300xf32, #tpu.memory_space<vmem>>, %arg5: memref<300x300xbf16, #tpu.memory_space<vmem>>, %arg6: memref<1x300xf32, #tpu.memory_space<vmem>>, %arg7: memref<2x300xf32, #tpu.memory_space<vmem>>, %arg8: memref<2x512xf32, #tpu.memory_space<vmem>>) attributes {dimension_semantics = [#tpu.dimension_semantics<arbitrary>], iteration_bounds = array<i64: 1>, scalar_prefetch = 0 : i64, scratch_operands = 1 : i64, tpu.core_type = #tpu.core_type<tc>, window_params = [{transform_indices = @transform_0, window_bounds = array<i64: 2, 16>}, {transform_indices = @transform_1, window_bounds = array<i64: 16, 512>}, {pipeline_mode = #tpu.pipeline_mode<synchronous>, transform_indices = @transform_2, window_bounds = array<i64: 512, 300>}, {pipeline_mode = #tpu.pipeline_mode<synchronous>, transform_indices = @transform_3, window_bounds = array<i64: 1, 300>}, {pipeline_mode = #tpu.pipeline_mode<synchronous>, transform_indices = @transform_4, window_bounds = array<i64: 300, 300>}, {pipeline_mode = #tpu.pipeline_mode<synchronous>, transform_indices = @transform_5, window_bounds = array<i64: 1, 300>}, {pipeline_mode = #tpu.pipeline_mode<synchronous>, transform_indices = @transform_6, window_bounds = array<i64: 2, 300>}]} {
    %c0_i32 = arith.constant 0 : i32
    %0 = arith.cmpi eq, %arg0, %c0_i32 : i32
    %1 = arith.extui %0 : i1 to i32
    %c0_i32_0 = arith.constant 0 : i32
    %2 = arith.cmpi ne, %1, %c0_i32_0 : i32
    scf.if %2 {
      %cst_10 = arith.constant 0.000000e+00 : f32
      %12 = vector.broadcast %cst_10 : f32 to vector<2x512xf32>
      %c0_11 = arith.constant 0 : index
      %c0_12 = arith.constant 0 : index
      %13 = vector.load %arg8[%c0_11, %c0_12] : memref<2x512xf32, #tpu.memory_space<vmem>>, vector<2x512xf32>
      tpu.vector_store %arg8[%c0_11, %c0_12], %12 {strides = array<i32>} : memref<2x512xf32, #tpu.memory_space<vmem>>, vector<2x512xf32>,
    } else {
    }
    %c0 = arith.constant 0 : index
    %c0_1 = arith.constant 0 : index
    %3 = vector.load %arg8[%c0, %c0_1] : memref<2x512xf32, #tpu.memory_space<vmem>>, vector<2x512xf32>
    %c0_2 = arith.constant 0 : index
    %c0_3 = arith.constant 0 : index
    %4 = vector.load %arg1[%c0_2, %c0_3] : memref<2x16xbf16, #tpu.memory_space<vmem>>, vector<2x16xbf16>
    %c0_4 = arith.constant 0 : index
    %c0_5 = arith.constant 0 : index
    %5 = vector.load %arg2[%c0_4, %c0_5] : memref<16x512xbf16, #tpu.memory_space<vmem>>, vector<16x512xbf16>
    %cst = arith.constant dense<0.000000e+00> : vector<2x512xf32>
    %6 = tpu.matmul %4, %5, %cst {dimension_numbers = #tpu.dot_dimension_numbers<[1], [0], [0], [1], [0, 0, 1, 1], [], []>} : vector<2x16xbf16>, vector<16x512xbf16>, vector<2x512xf32> -> vector<2x512xf32>
    %7 = arith.addf %3, %6 : vector<2x512xf32>
    %c0_6 = arith.constant 0 : index
    %c0_7 = arith.constant 0 : index
    %8 = vector.load %arg8[%c0_6, %c0_7] : memref<2x512xf32, #tpu.memory_space<vmem>>, vector<2x512xf32>
    tpu.vector_store %arg8[%c0_6, %c0_7], %7 {strides = array<i32>} : memref<2x512xf32, #tpu.memory_space<vmem>>, vector<2x512xf32>,
    %c0_i32_8 = arith.constant 0 : i32
    %9 = arith.cmpi eq, %arg0, %c0_i32_8 : i32
    %10 = arith.extui %9 : i1 to i32
    %c0_i32_9 = arith.constant 0 : i32
    %11 = arith.cmpi ne, %10, %c0_i32_9 : i32
    scf.if %11 {
      %c0_10 = arith.constant 0 : index
      %c0_11 = arith.constant 0 : index
      %12 = vector.load %arg8[%c0_10, %c0_11] : memref<2x512xf32, #tpu.memory_space<vmem>>, vector<2x512xf32>
      %13 = arith.truncf %12 : vector<2x512xf32> to vector<2x512xbf16>
      %c0_12 = arith.constant 0 : index
      %c0_13 = arith.constant 0 : index
      %14 = vector.load %arg3[%c0_12, %c0_13] : memref<512x300xbf16, #tpu.memory_space<vmem>>, vector<512x300xbf16>
      %cst_14 = arith.constant dense<0.000000e+00> : vector<2x300xf32>
      %15 = tpu.matmul %13, %14, %cst_14 {dimension_numbers = #tpu.dot_dimension_numbers<[1], [0], [0], [1], [0, 0, 1, 1], [], []>} : vector<2x512xbf16>, vector<512x300xbf16>, vector<2x300xf32> -> vector<2x300xf32>
      %c0_15 = arith.constant 0 : index
      %c0_16 = arith.constant 0 : index
      %16 = vector.load %arg4[%c0_15, %c0_16] : memref<1x300xf32, #tpu.memory_space<vmem>>, vector<1x300xf32>
      %17 = vector.broadcast %16 : vector<1x300xf32> to vector<2x300xf32>
      %18 = arith.addf %15, %17 : vector<2x300xf32>
      %cst_17 = arith.constant 0.000000e+00 : f32
      %19 = vector.broadcast %cst_17 : f32 to vector<2x300xf32>
      %20 = arith.maximumf %18, %19 : vector<2x300xf32>
      %21 = arith.truncf %20 : vector<2x300xf32> to vector<2x300xbf16>
      %c0_18 = arith.constant 0 : index
      %c0_19 = arith.constant 0 : index
      %22 = vector.load %arg5[%c0_18, %c0_19] : memref<300x300xbf16, #tpu.memory_space<vmem>>, vector<300x300xbf16>
      %cst_20 = arith.constant dense<0.000000e+00> : vector<2x300xf32>
      %23 = tpu.matmul %21, %22, %cst_20 {dimension_numbers = #tpu.dot_dimension_numbers<[1], [0], [0], [1], [0, 0, 1, 1], [], []>} : vector<2x300xbf16>, vector<300x300xbf16>, vector<2x300xf32> -> vector<2x300xf32>
      %c0_21 = arith.constant 0 : index
      %c0_22 = arith.constant 0 : index
      %24 = vector.load %arg6[%c0_21, %c0_22] : memref<1x300xf32, #tpu.memory_space<vmem>>, vector<1x300xf32>
      %25 = vector.broadcast %24 : vector<1x300xf32> to vector<2x300xf32>
      %26 = arith.addf %23, %25 : vector<2x300xf32>
      %c0_23 = arith.constant 0 : index
      %c0_24 = arith.constant 0 : index
      %27 = vector.load %arg7[%c0_23, %c0_24] : memref<2x300xf32, #tpu.memory_space<vmem>>, vector<2x300xf32>
      tpu.vector_store %arg7[%c0_23, %c0_24], %26 {strides = array<i32>} : memref<2x300xf32, #tpu.memory_space<vmem>>, vector<2x300xf32>,
    } else {
    }
    return
  }
  func.func @transform_0(%arg0: i32) -> (i32, i32) {
    %c0_i32 = arith.constant 0 : i32
    %c0_i32_0 = arith.constant 0 : i32
    return %c0_i32, %arg0 : i32, i32
  }
  func.func @transform_1(%arg0: i32) -> (i32, i32) {
    %c0_i32 = arith.constant 0 : i32
    %c0_i32_0 = arith.constant 0 : i32
    return %arg0, %c0_i32 : i32, i32
  }
  func.func @transform_2(%arg0: i32) -> (i32, i32) {
    %c0_i32 = arith.constant 0 : i32
    %c0_i32_0 = arith.constant 0 : i32
    %c0_i32_1 = arith.constant 0 : i32
    return %c0_i32, %c0_i32_0 : i32, i32
  }
  func.func @transform_3(%arg0: i32) -> (i32, i32) {
    %c0_i32 = arith.constant 0 : i32
    %c0_i32_0 = arith.constant 0 : i32
    %c0_i32_1 = arith.constant 0 : i32
    return %c0_i32, %c0_i32_0 : i32, i32
  }
  func.func @transform_4(%arg0: i32) -> (i32, i32) {
    %c0_i32 = arith.constant 0 : i32
    %c0_i32_0 = arith.constant 0 : i32
    %c0_i32_1 = arith.constant 0 : i32
    return %c0_i32, %c0_i32_0 : i32, i32
  }
  func.func @transform_5(%arg0: i32) -> (i32, i32) {
    %c0_i32 = arith.constant 0 : i32
    %c0_i32_0 = arith.constant 0 : i32
    %c0_i32_1 = arith.constant 0 : i32
    return %c0_i32, %c0_i32_0 : i32, i32
  }
  func.func @transform_6(%arg0: i32) -> (i32, i32) {
    %c0_i32 = arith.constant 0 : i32
    %c0_i32_0 = arith.constant 0 : i32
    %c0_i32_1 = arith.constant 0 : i32
    return %c0_i32, %c0_i32_0 : i32, i32
  }
}

</mosaic_0001>

<llo_original>
// kernel: gearnet_forward.7
$region0: #{gearnet_forward.7}
  #allocation0 [shape = 'u32[]', space=smem, size = 0x4, offset = 0x4, fixed_abs, tag = 'smem constant byte address 0x4 - core index']
  #allocation1 [shape = 'u32[144,128]{1,0:T(1,128)}', space=vmem, size = 0x12000, scoped, tag = 'internal scratch']
  #allocation2 [shape = 'f32[8,512]{1,0:T(8,128)}', space=vmem, size = 0x4000, scoped, tag = 'scratch operand']
  %s0 = inlined_call_operand.hbm [shape: bf16[3,16,16], index: 0, kind: input, shape index: {}]
  %s1 = inlined_call_operand.vmem [shape: bf16[16,128], index: 1, kind: input, shape index: {}, may-alias: {1,2}]
  %s2 = inlined_call_operand.vmem [shape: bf16[16,128], index: 2, kind: input, shape index: {}, may-alias: {1,2}]
  %s3 = inlined_call_operand.hbm [shape: bf16[3,128,512], index: 3, kind: input, shape index: {}]
  %s4 = inlined_call_operand.hbm [shape: bf16[128,512], index: 4, kind: input, shape index: {}]
  %s5 = inlined_call_operand.hbm [shape: f32[1,512], index: 5, kind: input, shape index: {}]
  %s6 = inlined_call_operand.hbm [shape: f32[1,512], index: 6, kind: input, shape index: {}]
  %s7 = inlined_call_operand.hbm [shape: f32[1,512], index: 7, kind: input, shape index: {}]
  %s8 = inlined_call_operand.vmem [shape: bf16[16,512], index: 8, kind: output, shape index: {}]
  %s9 = sld [smem:[#allocation0]]
  $region97: #{gearnet_forward.7} parent=0
    _
  %s11 = ssub.s32 1, %s9
  %s12 = scalar_select 0, %s11, %s9
  $region1: #{gearnet_forward.7} parent=0
    #allocation3 [shape = 'u8[4096]{0}', space=vmem, size = 0x1000, scoped, tag = 'input window, operand 0']
    #allocation4 [shape = 's32[2]{0}', space=sflag, size = 0x8, scoped, tag = 'scoped memory for gearnet_forward.7']
    #allocation5 [shape = 'u8[393216]{0}', space=vmem, size = 0x60000, scoped, tag = 'input window, operand 3, single buffered']
    #allocation6 [shape = 's32[1]{0}', space=sflag, size = 0x4, scoped, tag = 'scoped memory for gearnet_forward.7']
    #allocation7 [shape = 'u8[131072]{0}', space=vmem, size = 0x20000, scoped, tag = 'input window, operand 4, single buffered']
    #allocation8 [shape = 'u8[2048]{0}', space=vmem, size = 0x800, scoped, tag = 'input window, operand 5, single buffered']
    #allocation9 [shape = 's32[1]{0}', space=sflag, size = 0x4, scoped, tag = 'scoped memory for gearnet_forward.7']
    #allocation10 [shape = 'u8[2048]{0}', space=vmem, size = 0x800, scoped, tag = 'input window, operand 6, single buffered']
    #allocation11 [shape = 'u8[2048]{0}', space=vmem, size = 0x800, scoped, tag = 'input window, operand 7, single buffered']
    #allocation12 [shape = 's32[1]{0}', space=sflag, size = 0x4, scoped, tag = 'scoped memory for gearnet_forward.7']
    %13 = vsyncpa [#allocation4], 0
    %s14 = scalar_lea.sflag [#allocation4], 1
    %15 = vsyncpa %s14, 0
    %16 = vsyncpa [#allocation6], 0
    %17 = vsyncpa [#allocation9], 0
    %18 = vsyncpa [#allocation12], 0
    loop: start=0, step=1, limit=8
    $region2: #{gearnet_forward.7} parent=1 // loop_pre_header
      _
    $region3: #{gearnet_forward.7} parent=1 // loop_header
      %s20 = sphi 0, %s24
      %p21 = scmp.ge.s32.totalorder %s20, 8
      %s27 = sphi 0, %s39
      %s28 = sphi 0, %s35
      %s29 = sphi 0, %s27
      %s30 = sphi 0, %s28
      %s31 = sphi 0, %s29
      %s32 = sphi 0, %s30
      %s44 = sphi 0, %s46
      %s47 = sphi 0, %s44
      %s48 = sphi 0, %s47
      %s64 = sphi 0, %s48
      %s68 = sphi 0, %s68
      %s70 = sphi 0, %s68
      %s71 = sphi 0, %s70
      %s85 = sphi 0, %s71
      %s91 = sphi 0, %s93
      %s94 = sphi 0, %s91
      %s95 = sphi 0, %s94
      %s111 = sphi 0, %s95
      %s115 = sphi 0, %s115
      %s117 = sphi 0, %s115
      %s118 = sphi 0, %s117
      %s132 = sphi 0, %s118
      %s136 = sphi 0, %s136
      %s138 = sphi 0, %s136
      %s139 = sphi 0, %s138
      %s153 = sphi 0, %s139
      %s157 = sphi 0, %s157
      %s159 = sphi 0, %s157
      %s160 = sphi 0, %s159
      %s174 = sphi 0, %s160
      %s178 = sphi 0, %s178
      %s180 = sphi 0, %s178
      %s181 = sphi 0, %s180
      %s195 = sphi 0, %s181
      %s199 = sphi 0, %s199
      %s201 = sphi 0, %s199
      %s202 = sphi 0, %s201
      %s216 = sphi 0, %s202
      %s222 = sphi 0, %s224
      %s225 = sphi 0, %s222
      %s226 = sphi 0, %s225
      %s242 = sphi 0, %s226
    $region4: #{gearnet_forward.7} parent=1 // loop_header_branch
      %23 = sbr.rel (%p21) target = $region8
    $region5: #{gearnet_forward.7} parent=1 // loop_body
      %s25 = ssub.s32 %s20, 1
      %s26 = ssub.s32 %s20, 2
      %s33 = sadd.s32 1, %s28
      %p34 = scmp.ge.s32.totalorder %s33, 3
      %s35 = scalar_select %p34, 0, %s33
      %s36 = sadd.s32 1, %s27
      %s37 = scalar_select %p34, %s36, %s27
      %p38 = scmp.ge.s32.totalorder %s37, 2
      %s39 = scalar_select %p38, 0, %s37
      %s40 = ssub.s32 %s28, %s35
      %s41 = ssub.s32 %s27, %s39
      %s42 = sor.u32 %s40, %s41
      %p43 = scmp.eq.s32.totalorder %s42, 0
      %s45 = sadd.s32 %s44, 1
      %s46 = scalar_select %p43, %s44, %s45
      %p49 = pneg %p43
      %p50 = scmp.eq.s32.totalorder %s20, 5
      %p51 = por %p49, %p50
      %p52 = scmp.ne.s32.totalorder %s44, %s47
      %p53 = scmp.eq.s32.totalorder %s20, 0
      %p54 = por %p52, %p53
      %p55 = scmp.ne.s32.totalorder %s44, %s47
      %p56 = scmp.eq.s32.totalorder %s25, 5
      %p57 = por %p55, %p56
      %p58 = scmp.ne.s32.totalorder %s47, %s48
      %p59 = scmp.eq.s32.totalorder %s25, 0
      %p60 = por %p58, %p59
      %p61 = scmp.ne.s32.totalorder %s47, %s48
      %p62 = scmp.eq.s32.totalorder %s26, 5
      %p63 = por %p61, %p62
      %p65 = scmp.ne.s32.totalorder %s48, %s64
      %p66 = scmp.eq.s32.totalorder %s26, 0
      %p67 = por %p65, %p66
      %s69 = sadd.s32 %s68, 1
      %p72 = scmp.eq.s32.totalorder %s20, 5
      %p73 = scmp.ne.s32.totalorder %s68, %s70
      %p74 = scmp.eq.s32.totalorder %s20, 0
      %p75 = por %p73, %p74
      %p76 = scmp.ne.s32.totalorder %s68, %s70
      %p77 = scmp.eq.s32.totalorder %s25, 5
      %p78 = por %p76, %p77
      %p79 = scmp.ne.s32.totalorder %s70, %s71
      %p80 = scmp.eq.s32.totalorder %s25, 0
      %p81 = por %p79, %p80
      %p82 = scmp.ne.s32.totalorder %s70, %s71
      %p83 = scmp.eq.s32.totalorder %s26, 5
      %p84 = por %p82, %p83
      %p86 = scmp.ne.s32.totalorder %s71, %s85
      %p87 = scmp.eq.s32.totalorder %s26, 0
      %p88 = por %p86, %p87
      %s89 = ssub.s32 %s27, %s39
      %p90 = scmp.eq.s32.totalorder %s89, 0
      %s92 = sadd.s32 %s91, 1
      %s93 = scalar_select %p90, %s91, %s92
      %p96 = pneg %p90
      %p97 = scmp.eq.s32.totalorder %s20, 5
      %p98 = por %p96, %p97
      %p99 = scmp.ne.s32.totalorder %s91, %s94
      %p100 = scmp.eq.s32.totalorder %s20, 0
      %p101 = por %p99, %p100
      %p102 = scmp.ne.s32.totalorder %s91, %s94
      %p103 = scmp.eq.s32.totalorder %s25, 5
      %p104 = por %p102, %p103
      %p105 = scmp.ne.s32.totalorder %s94, %s95
      %p106 = scmp.eq.s32.totalorder %s25, 0
      %p107 = por %p105, %p106
      %p108 = scmp.ne.s32.totalorder %s94, %s95
      %p109 = scmp.eq.s32.totalorder %s26, 5
      %p110 = por %p108, %p109
      %p112 = scmp.ne.s32.totalorder %s95, %s111
      %p113 = scmp.eq.s32.totalorder %s26, 0
      %p114 = por %p112, %p113
      %s116 = sadd.s32 %s115, 1
      %p119 = scmp.eq.s32.totalorder %s20, 5
      %p120 = scmp.ne.s32.totalorder %s115, %s117
      %p121 = scmp.eq.s32.totalorder %s20, 0
      %p122 = por %p120, %p121
      %p123 = scmp.ne.s32.totalorder %s115, %s117
      %p124 = scmp.eq.s32.totalorder %s25, 5
      %p125 = por %p123, %p124
      %p126 = scmp.ne.s32.totalorder %s117, %s118
      %p127 = scmp.eq.s32.totalorder %s25, 0
      %p128 = por %p126, %p127
      %p129 = scmp.ne.s32.totalorder %s117, %s118
      %p130 = scmp.eq.s32.totalorder %s26, 5
      %p131 = por %p129, %p130
      %p133 = scmp.ne.s32.totalorder %s118, %s132
      %p134 = scmp.eq.s32.totalorder %s26, 0
      %p135 = por %p133, %p134
      %s137 = sadd.s32 %s136, 1
      %p140 = scmp.eq.s32.totalorder %s20, 5
      %p141 = scmp.ne.s32.totalorder %s136, %s138
      %p142 = scmp.eq.s32.totalorder %s20, 0
      %p143 = por %p141, %p142
      %p144 = scmp.ne.s32.totalorder %s136, %s138
      %p145 = scmp.eq.s32.totalorder %s25, 5
      %p146 = por %p144, %p145
      %p147 = scmp.ne.s32.totalorder %s138, %s139
      %p148 = scmp.eq.s32.totalorder %s25, 0
      %p149 = por %p147, %p148
      %p150 = scmp.ne.s32.totalorder %s138, %s139
      %p151 = scmp.eq.s32.totalorder %s26, 5
      %p152 = por %p150, %p151
      %p154 = scmp.ne.s32.totalorder %s139, %s153
      %p155 = scmp.eq.s32.totalorder %s26, 0
      %p156 = por %p154, %p155
      %s158 = sadd.s32 %s157, 1
      %p161 = scmp.eq.s32.totalorder %s20, 5
      %p162 = scmp.ne.s32.totalorder %s157, %s159
      %p163 = scmp.eq.s32.totalorder %s20, 0
      %p164 = por %p162, %p163
      %p165 = scmp.ne.s32.totalorder %s157, %s159
      %p166 = scmp.eq.s32.totalorder %s25, 5
      %p167 = por %p165, %p166
      %p168 = scmp.ne.s32.totalorder %s159, %s160
      %p169 = scmp.eq.s32.totalorder %s25, 0
      %p170 = por %p168, %p169
      %p171 = scmp.ne.s32.totalorder %s159, %s160
      %p172 = scmp.eq.s32.totalorder %s26, 5
      %p173 = por %p171, %p172
      %p175 = scmp.ne.s32.totalorder %s160, %s174
      %p176 = scmp.eq.s32.totalorder %s26, 0
      %p177 = por %p175, %p176
      %s179 = sadd.s32 %s178, 1
      %p182 = scmp.eq.s32.totalorder %s20, 5
      %p183 = scmp.ne.s32.totalorder %s178, %s180
      %p184 = scmp.eq.s32.totalorder %s20, 0
      %p185 = por %p183, %p184
      %p186 = scmp.ne.s32.totalorder %s178, %s180
      %p187 = scmp.eq.s32.totalorder %s25, 5
      %p188 = por %p186, %p187
      %p189 = scmp.ne.s32.totalorder %s180, %s181
      %p190 = scmp.eq.s32.totalorder %s25, 0
      %p191 = por %p189, %p190
      %p192 = scmp.ne.s32.totalorder %s180, %s181
      %p193 = scmp.eq.s32.totalorder %s26, 5
      %p194 = por %p192, %p193
      %p196 = scmp.ne.s32.totalorder %s181, %s195
      %p197 = scmp.eq.s32.totalorder %s26, 0
      %p198 = por %p196, %p197
      %s200 = sadd.s32 %s199, 1
      %p203 = scmp.eq.s32.totalorder %s20, 5
      %p204 = scmp.ne.s32.totalorder %s199, %s201
      %p205 = scmp.eq.s32.totalorder %s20, 0
      %p206 = por %p204, %p205
      %p207 = scmp.ne.s32.totalorder %s199, %s201
      %p208 = scmp.eq.s32.totalorder %s25, 5
      %p209 = por %p207, %p208
      %p210 = scmp.ne.s32.totalorder %s201, %s202
      %p211 = scmp.eq.s32.totalorder %s25, 0
      %p212 = por %p210, %p211
      %p213 = scmp.ne.s32.totalorder %s201, %s202
      %p214 = scmp.eq.s32.totalorder %s26, 5
      %p215 = por %p213, %p214
      %p217 = scmp.ne.s32.totalorder %s202, %s216
      %p218 = scmp.eq.s32.totalorder %s26, 0
      %p219 = por %p217, %p218
      %s220 = ssub.s32 %s27, %s39
      %p221 = scmp.eq.s32.totalorder %s220, 0
      %s223 = sadd.s32 %s222, 1
      %s224 = scalar_select %p221, %s222, %s223
      %p227 = pneg %p221
      %p228 = scmp.eq.s32.totalorder %s20, 5
      %p229 = por %p227, %p228
      %p230 = scmp.ne.s32.totalorder %s222, %s225
      %p231 = scmp.eq.s32.totalorder %s20, 0
      %p232 = por %p230, %p231
      %p233 = scmp.ne.s32.totalorder %s222, %s225
      %p234 = scmp.eq.s32.totalorder %s25, 5
      %p235 = por %p233, %p234
      %p236 = scmp.ne.s32.totalorder %s225, %s226
      %p237 = scmp.eq.s32.totalorder %s25, 0
      %p238 = por %p236, %p237
      %p239 = scmp.ne.s32.totalorder %s225, %s226
      %p240 = scmp.eq.s32.totalorder %s26, 5
      %p241 = por %p239, %p240
      %p243 = scmp.ne.s32.totalorder %s226, %s242
      %p244 = scmp.eq.s32.totalorder %s26, 0
      %p245 = por %p243, %p244
      %p246 = scmp.le.s32.totalorder 1, %s20
      %p247 = scmp.lt.s32.totalorder %s20, 7
      %p248 = pnand %p246, %p247
      %p249 = pneg %p248
      // Predicated region
      $region9: #{gearnet_forward.7} parent=5 // pred_check
        _
      $region10: #{gearnet_forward.7} parent=5 // pred_check_branch
        %251 = sbr.rel (%p248) target = $region12
      $region11: #{gearnet_forward.7} parent=5 // pred_region
        %s252 = ssub.s32 %s20, 1
        // Predicated region
        $region13: #{gearnet_forward.7} parent=11 // pred_check
          %p253 = pneg %p81
        $region14: #{gearnet_forward.7} parent=11 // pred_check_branch
          %255 = sbr.rel (%p253) target = $region16
        $region15: #{gearnet_forward.7} parent=11 // pred_region
          _
        $region16: #{gearnet_forward.7} parent=11 // pred_fallthru
          _
        // Predicated region
        $region17: #{gearnet_forward.7} parent=11 // pred_check
          %p256 = pneg %p128
        $region18: #{gearnet_forward.7} parent=11 // pred_check_branch
          %258 = sbr.rel (%p256) target = $region20
        $region19: #{gearnet_forward.7} parent=11 // pred_region
          %s260 = ssub.s32 12288, 12288
          %261 = vsyncadd [#allocation6], %s260
          %s262 = sshll.u32 [#allocation5], 4
          %s263 = int_to_ptr.vmem [resolvable:$true] %s262
          %268 = dma.hbm_to_vmem [thread:$0]  %s3, 12288, %s263, [#allocation6], 256, 256, 16
        $region20: #{gearnet_forward.7} parent=11 // pred_fallthru
          _
        // Predicated region
        $region21: #{gearnet_forward.7} parent=11 // pred_check
          %p269 = pneg %p149
        $region22: #{gearnet_forward.7} parent=11 // pred_check_branch
          %271 = sbr.rel (%p269) target = $region24
        $region23: #{gearnet_forward.7} parent=11 // pred_region
          %s273 = ssub.s32 4096, 4096
          %274 = vsyncadd [#allocation6], %s273
          %s275 = sshll.u32 [#allocation7], 4
          %s276 = int_to_ptr.vmem [resolvable:$true] %s275
          %281 = dma.hbm_to_vmem [thread:$0]  %s4, 4096, %s276, [#allocation6], 256, 256, 16
        $region24: #{gearnet_forward.7} parent=11 // pred_fallthru
          _
        // Predicated region
        $region25: #{gearnet_forward.7} parent=11 // pred_check
          %p282 = pneg %p170
        $region26: #{gearnet_forward.7} parent=11 // pred_check_branch
          %284 = sbr.rel (%p282) target = $region28
        $region27: #{gearnet_forward.7} parent=11 // pred_region
          %s286 = ssub.s32 64, 64
          %287 = vsyncadd [#allocation9], %s286
          %s289 = sshll.u32 [#allocation8], 4
          %s290 = int_to_ptr.vmem [resolvable:$true] %s289
          %292 = dma.hbm_to_vmem [thread:$0]  %s5, 64, %s290, [#allocation9]
        $region28: #{gearnet_forward.7} parent=11 // pred_fallthru
          _
        // Predicated region
        $region29: #{gearnet_forward.7} parent=11 // pred_check
          %p293 = pneg %p191
        $region30: #{gearnet_forward.7} parent=11 // pred_check_branch
          %295 = sbr.rel (%p293) target = $region32
        $region31: #{gearnet_forward.7} parent=11 // pred_region
          %s297 = ssub.s32 64, 64
          %298 = vsyncadd [#allocation9], %s297
          %s300 = sshll.u32 [#allocation10], 4
          %s301 = int_to_ptr.vmem [resolvable:$true] %s300
          %303 = dma.hbm_to_vmem [thread:$0]  %s6, 64, %s301, [#allocation9]
        $region32: #{gearnet_forward.7} parent=11 // pred_fallthru
          _
        // Predicated region
        $region33: #{gearnet_forward.7} parent=11 // pred_check
          %p304 = pneg %p212
        $region34: #{gearnet_forward.7} parent=11 // pred_check_branch
          %306 = sbr.rel (%p304) target = $region36
        $region35: #{gearnet_forward.7} parent=11 // pred_region
          %s308 = ssub.s32 64, 64
          %309 = vsyncadd [#allocation12], %s308
          %s311 = sshll.u32 [#allocation11], 4
          %s312 = int_to_ptr.vmem [resolvable:$true] %s311
          %314 = dma.hbm_to_vmem [thread:$0]  %s7, 64, %s312, [#allocation12]
        $region36: #{gearnet_forward.7} parent=11 // pred_fallthru
          _
      $region12: #{gearnet_forward.7} parent=5 // pred_fallthru
        _
      %p315 = scmp.lt.s32.totalorder %s20, 6
      // Predicated region
      $region37: #{gearnet_forward.7} parent=5 // pred_check
        %p316 = pneg %p315
      $region38: #{gearnet_forward.7} parent=5 // pred_check_branch
        %318 = sbr.rel (%p316) target = $region40
      $region39: #{gearnet_forward.7} parent=5 // pred_region
        // Predicated region
        $region41: #{gearnet_forward.7} parent=39 // pred_check
          %p319 = pneg %p54
        $region42: #{gearnet_forward.7} parent=39 // pred_check_branch
          %321 = sbr.rel (%p319) target = $region44
        $region43: #{gearnet_forward.7} parent=39 // pred_region
          %s322 = sand.u32 %s44, 1
          %s323 = scalar_lea.sflag [#allocation4], %s322
          %s324 = sand.u32 %s44, 1
          %s325 = smul.addr %s324, 4
          %s326 = scalar_lea.vmem [#allocation3], %s325
          %s328 = ssub.s32 64, 64
          %329 = vsyncadd %s323, %s328
          %s330 = smul.addr %s28, 2
          %s331 = sadd.s32 %s27, %s330
          %s332 = smul.addr %s331, 64
          %s333 = scalar_lea.hbm %s0, %s332
          %s335 = sshll.u32 %s326, 4
          %s336 = int_to_ptr.vmem [resolvable:$true] %s335
          %338 = dma.hbm_to_vmem [thread:$0]  %s333, 64, %s336, %s323
        $region44: #{gearnet_forward.7} parent=39 // pred_fallthru
          _
        // Predicated region
        $region45: #{gearnet_forward.7} parent=39 // pred_check
          %p339 = pneg %p101
        $region46: #{gearnet_forward.7} parent=39 // pred_check_branch
          %341 = sbr.rel (%p339) target = $region48
        $region47: #{gearnet_forward.7} parent=39 // pred_region
          %p342 = scmp.lt.s32.totalorder %s27, 1
          %s343 = scalar_select %p342, %s27, 1
          %s344 = smul.addr %s343, 4
          %s345 = scalar_lea.vmem %s2, %s344
        $region48: #{gearnet_forward.7} parent=39 // pred_fallthru
          _
      $region40: #{gearnet_forward.7} parent=5 // pred_fallthru
        _
      %p346 = scmp.le.s32.totalorder 1, %s20
      %p347 = scmp.lt.s32.totalorder %s20, 7
      %p348 = pnand %p346, %p347
      %p349 = pneg %p348
      // Predicated region
      $region49: #{gearnet_forward.7} parent=5 // pred_check
        _
      $region50: #{gearnet_forward.7} parent=5 // pred_check_branch
        %351 = sbr.rel (%p348) target = $region52
      $region51: #{gearnet_forward.7} parent=5 // pred_region
        %s352 = ssub.s32 %s20, 1
        %s353 = sand.u32 %s47, 1
        %s354 = scalar_lea.sflag [#allocation4], %s353
        %s355 = sand.u32 %s47, 1
        %s356 = smul.addr %s355, 4
        %s357 = scalar_lea.vmem [#allocation3], %s356
        // Predicated region
        $region53: #{gearnet_forward.7} parent=51 // pred_check
          %p358 = pneg %p60
        $region54: #{gearnet_forward.7} parent=51 // pred_check_branch
          %360 = sbr.rel (%p358) target = $region56
        $region55: #{gearnet_forward.7} parent=51 // pred_region
          %361 = dma.done %s354, 64
        $region56: #{gearnet_forward.7} parent=51 // pred_fallthru
          _
        // Predicated region
        $region57: #{gearnet_forward.7} parent=51 // pred_check
          %p362 = pneg %p128
        $region58: #{gearnet_forward.7} parent=51 // pred_check_branch
          %364 = sbr.rel (%p362) target = $region60
        $region59: #{gearnet_forward.7} parent=51 // pred_region
          %365 = dma.done [#allocation6], 12288
        $region60: #{gearnet_forward.7} parent=51 // pred_fallthru
          _
        // Predicated region
        $region61: #{gearnet_forward.7} parent=51 // pred_check
          %p366 = pneg %p149
        $region62: #{gearnet_forward.7} parent=51 // pred_check_branch
          %368 = sbr.rel (%p366) target = $region64
        $region63: #{gearnet_forward.7} parent=51 // pred_region
          %369 = dma.done [#allocation6], 4096
        $region64: #{gearnet_forward.7} parent=51 // pred_fallthru
          _
        // Predicated region
        $region65: #{gearnet_forward.7} parent=51 // pred_check
          %p370 = pneg %p170
        $region66: #{gearnet_forward.7} parent=51 // pred_check_branch
          %372 = sbr.rel (%p370) target = $region68
        $region67: #{gearnet_forward.7} parent=51 // pred_region
          %373 = dma.done [#allocation9], 64
        $region68: #{gearnet_forward.7} parent=51 // pred_fallthru
          _
        // Predicated region
        $region69: #{gearnet_forward.7} parent=51 // pred_check
          %p374 = pneg %p191
        $region70: #{gearnet_forward.7} parent=51 // pred_check_branch
          %376 = sbr.rel (%p374) target = $region72
        $region71: #{gearnet_forward.7} parent=51 // pred_region
          %377 = dma.done [#allocation9], 64
        $region72: #{gearnet_forward.7} parent=51 // pred_fallthru
          _
        // Predicated region
        $region73: #{gearnet_forward.7} parent=51 // pred_check
          %p378 = pneg %p212
        $region74: #{gearnet_forward.7} parent=51 // pred_check_branch
          %380 = sbr.rel (%p378) target = $region76
        $region75: #{gearnet_forward.7} parent=51 // pred_region
          %381 = dma.done [#allocation12], 64
        $region76: #{gearnet_forward.7} parent=51 // pred_fallthru
          _
        %s382 = sand.u32 %s47, 1
        %s383 = scalar_lea.sflag [#allocation4], %s382
        %s384 = sand.u32 %s47, 1
        %s385 = smul.addr %s384, 4
        %s386 = scalar_lea.vmem [#allocation3], %s385
        %p387 = pneg %p60
        %p388 = pneg %p57
        %p389 = pneg %p81
        %p390 = pneg %p78
        %p391 = scmp.lt.s32.totalorder %s29, 1
        %s392 = scalar_select %p391, %s29, 1
        %s393 = smul.addr %s392, 4
        %s394 = scalar_lea.vmem %s2, %s393
        %p395 = pneg %p107
        %p396 = pneg %p104
        %p397 = pneg %p128
        %p398 = pneg %p125
        %p399 = pneg %p149
        %p400 = pneg %p146
        %p401 = pneg %p170
        %p402 = pneg %p167
        %p403 = pneg %p191
        %p404 = pneg %p188
        %p405 = pneg %p212
        %p406 = pneg %p209
        %p407 = pneg %p238
        %p408 = pneg %p235
        %p409 = scmp.lt.s32.totalorder %s29, 1
        %s410 = scalar_select %p409, %s29, 1
        %s411 = smul.addr %s410, 4
        %s412 = smul.addr %s411, 4
        %s413 = scalar_lea.vmem %s8, %s412
        %p414 = scmp.lt.s32.totalorder %s29, 1
        %s415 = scalar_select %p414, %s29, 1
        %s416 = smul.addr %s415, 4
        %s417 = scalar_lea.vmem %s2, %s416
        %p418 = scmp.lt.s32.totalorder %s29, 1
        %s419 = scalar_select %p418, %s29, 1
        %s420 = smul.addr %s419, 4
        %s421 = smul.addr %s420, 4
        %s422 = scalar_lea.vmem %s8, %s421
        %p424 = scmp.eq.s32.totalorder %s30, 0
        // Predicated region
        $region77: #{gearnet_forward.7} parent=51 // pred_check
          %p425 = pneg %p424
        $region78: #{gearnet_forward.7} parent=51 // pred_check_branch
          %427 = sbr.rel (%p425) target = $region80
        $region79: #{gearnet_forward.7} parent=51 // pred_region
          %v428 = vld [vmem:[%s417] sm:$0xf]
          %v429 = vld [vmem:[#allocation7] sm:$0xff]
          %v430 = vld [vmem:[#allocation7 + $0x8] sm:$0xff]
          %v431 = vld [vmem:[#allocation7 + $0x10] sm:$0xff]
          %v432 = vld [vmem:[#allocation7 + $0x18] sm:$0xff]
          %v433 = vld [vmem:[#allocation7 + $0x20] sm:$0xff]
          %v434 = vld [vmem:[#allocation7 + $0x28] sm:$0xff]
          %v435 = vld [vmem:[#allocation7 + $0x30] sm:$0xff]
          %v436 = vld [vmem:[#allocation7 + $0x38] sm:$0xff]
          %v437 = vld [vmem:[#allocation7 + $0x40] sm:$0xff]
          %v438 = vld [vmem:[#allocation7 + $0x48] sm:$0xff]
          %v439 = vld [vmem:[#allocation7 + $0x50] sm:$0xff]
          %v440 = vld [vmem:[#allocation7 + $0x58] sm:$0xff]
          %v441 = vld [vmem:[#allocation7 + $0x60] sm:$0xff]
          %v442 = vld [vmem:[#allocation7 + $0x68] sm:$0xff]
          %v443 = vld [vmem:[#allocation7 + $0x70] sm:$0xff]
          %v444 = vld [vmem:[#allocation7 + $0x78] sm:$0xff]
          %v445 = vld [vmem:[#allocation7 + $0x80] sm:$0xff]
          %v446 = vld [vmem:[#allocation7 + $0x88] sm:$0xff]
          %v447 = vld [vmem:[#allocation7 + $0x90] sm:$0xff]
          %v448 = vld [vmem:[#allocation7 + $0x98] sm:$0xff]
          %v449 = vld [vmem:[#allocation7 + $0xa0] sm:$0xff]
          %v450 = vld [vmem:[#allocation7 + $0xa8] sm:$0xff]
          %v451 = vld [vmem:[#allocation7 + $0xb0] sm:$0xff]
          %v452 = vld [vmem:[#allocation7 + $0xb8] sm:$0xff]
          %v453 = vld [vmem:[#allocation7 + $0xc0] sm:$0xff]
          %v454 = vld [vmem:[#allocation7 + $0xc8] sm:$0xff]
          %v455 = vld [vmem:[#allocation7 + $0xd0] sm:$0xff]
          %v456 = vld [vmem:[#allocation7 + $0xd8] sm:$0xff]
          %v457 = vld [vmem:[#allocation7 + $0xe0] sm:$0xff]
          %v458 = vld [vmem:[#allocation7 + $0xe8] sm:$0xff]
          %v459 = vld [vmem:[#allocation7 + $0xf0] sm:$0xff]
          %v460 = vld [vmem:[#allocation7 + $0xf8] sm:$0xff]
          %v461 = vld [vmem:[#allocation8] sm:$0xf]
          %v463 = vlaneseq
          %v464 = vshrl.u32 %v463, 7
          %v465 = vsub.s32 0, %v464
          %v466 = vrot.slane %v461, %v465
          %v467 = vlaneseq
          %v468 = vshrl.u32 %v467, 7
          %v469 = vsub.s32 1, %v468
          %v470 = vrot.slane %v461, %v469
          %v471 = vlaneseq
          %v472 = vshrl.u32 %v471, 7
          %v473 = vsub.s32 2, %v472
          %v474 = vrot.slane %v461, %v473
          %v475 = vlaneseq
          %v476 = vshrl.u32 %v475, 7
          %v477 = vsub.s32 3, %v476
          %v478 = vrot.slane %v461, %v477
          %v515 = vunpack.c.l.b16 %v429
          %v516 = vunpack.c.h.b16 %v429
          %v517 = vunpack.c.l.b16 %v430
          %v518 = vunpack.c.h.b16 %v430
          %v519 = vunpack.c.l.b16 %v431
          %v520 = vunpack.c.h.b16 %v431
          %v521 = vunpack.c.l.b16 %v432
          %v522 = vunpack.c.h.b16 %v432
          %v523 = vunpack.c.l.b16 %v433
          %v524 = vunpack.c.h.b16 %v433
          %v525 = vunpack.c.l.b16 %v434
          %v526 = vunpack.c.h.b16 %v434
          %v527 = vunpack.c.l.b16 %v435
          %v528 = vunpack.c.h.b16 %v435
          %v529 = vunpack.c.l.b16 %v436
          %v530 = vunpack.c.h.b16 %v436
          %v531 = vunpack.c.l.b16 %v437
          %v532 = vunpack.c.h.b16 %v437
          %v533 = vunpack.c.l.b16 %v438
          %v534 = vunpack.c.h.b16 %v438
          %v535 = vunpack.c.l.b16 %v439
          %v536 = vunpack.c.h.b16 %v439
          %v537 = vunpack.c.l.b16 %v440
          %v538 = vunpack.c.h.b16 %v440
          %v539 = vunpack.c.l.b16 %v441
          %v540 = vunpack.c.h.b16 %v441
          %v541 = vunpack.c.l.b16 %v442
          %v542 = vunpack.c.h.b16 %v442
          %v543 = vunpack.c.l.b16 %v443
          %v544 = vunpack.c.h.b16 %v443
          %v545 = vunpack.c.l.b16 %v444
          %v546 = vunpack.c.h.b16 %v444
          %v547 = vunpack.c.l.b16 %v445
          %v548 = vunpack.c.h.b16 %v445
          %v549 = vunpack.c.l.b16 %v446
          %v550 = vunpack.c.h.b16 %v446
          %v551 = vunpack.c.l.b16 %v447
          %v552 = vunpack.c.h.b16 %v447
          %v553 = vunpack.c.l.b16 %v448
          %v554 = vunpack.c.h.b16 %v448
          %v555 = vunpack.c.l.b16 %v449
          %v556 = vunpack.c.h.b16 %v449
          %v557 = vunpack.c.l.b16 %v450
          %v558 = vunpack.c.h.b16 %v450
          %v559 = vunpack.c.l.b16 %v451
          %v560 = vunpack.c.h.b16 %v451
          %v561 = vunpack.c.l.b16 %v452
          %v562 = vunpack.c.h.b16 %v452
          %v563 = vunpack.c.l.b16 %v453
          %v564 = vunpack.c.h.b16 %v453
          %v565 = vunpack.c.l.b16 %v454
          %v566 = vunpack.c.h.b16 %v454
          %v567 = vunpack.c.l.b16 %v455
          %v568 = vunpack.c.h.b16 %v455
          %v569 = vunpack.c.l.b16 %v456
          %v570 = vunpack.c.h.b16 %v456
          %v571 = vunpack.c.l.b16 %v457
          %v572 = vunpack.c.h.b16 %v457
          %v573 = vunpack.c.l.b16 %v458
          %v574 = vunpack.c.h.b16 %v458
          %v575 = vunpack.c.l.b16 %v459
          %v576 = vunpack.c.h.b16 %v459
          %v577 = vunpack.c.l.b16 %v460
          %v578 = vunpack.c.h.b16 %v460
          %v579 = vpack.c.b16 %v519, %v515
          %v580 = vpack.c.b16 %v520, %v516
          %v581 = vpack.c.b16 %v521, %v517
          %v582 = vpack.c.b16 %v522, %v518
          %v583 = vpack.c.b16 %v527, %v523
          %v584 = vpack.c.b16 %v528, %v524
          %v585 = vpack.c.b16 %v529, %v525
          %v586 = vpack.c.b16 %v530, %v526
          %v587 = vpack.c.b16 %v535, %v531
          %v588 = vpack.c.b16 %v536, %v532
          %v589 = vpack.c.b16 %v537, %v533
          %v590 = vpack.c.b16 %v538, %v534
          %v591 = vpack.c.b16 %v543, %v539
          %v592 = vpack.c.b16 %v544, %v540
          %v593 = vpack.c.b16 %v545, %v541
          %v594 = vpack.c.b16 %v546, %v542
          %v595 = vpack.c.b16 %v551, %v547
          %v596 = vpack.c.b16 %v552, %v548
          %v597 = vpack.c.b16 %v553, %v549
          %v598 = vpack.c.b16 %v554, %v550
          %v599 = vpack.c.b16 %v559, %v555
          %v600 = vpack.c.b16 %v560, %v556
          %v601 = vpack.c.b16 %v561, %v557
          %v602 = vpack.c.b16 %v562, %v558
          %v603 = vpack.c.b16 %v567, %v563
          %v604 = vpack.c.b16 %v568, %v564
          %v605 = vpack.c.b16 %v569, %v565
          %v606 = vpack.c.b16 %v570, %v566
          %v607 = vpack.c.b16 %v575, %v571
          %v608 = vpack.c.b16 %v576, %v572
          %v609 = vpack.c.b16 %v577, %v573
          %v610 = vpack.c.b16 %v578, %v574
          %643 = vmatprep.subr.bf16.mxu0 %v608
          %644 = vmatpush1.bf16.msra.mxu0 %v607
          %645 = vmatprep.subr.bf16.mxu0 %v604
          %646 = vmatpush1.bf16.msra.mxu0 %v603
          %647 = vmatprep.subr.bf16.mxu0 %v600
          %648 = vmatpush1.bf16.msra.mxu0 %v599
          %649 = vmatprep.subr.bf16.mxu0 %v596
          %650 = vmatpush1.bf16.msra.mxu0 %v595
          %651 = vmatprep.subr.bf16.mxu0 %v592
          %652 = vmatpush1.bf16.msra.mxu0 %v591
          %653 = vmatprep.subr.bf16.mxu0 %v588
          %654 = vmatpush1.bf16.msra.mxu0 %v587
          %655 = vmatprep.subr.bf16.mxu0 %v584
          %656 = vmatpush1.bf16.msra.mxu0 %v583
          %657 = vmatprep.subr.bf16.mxu0 %v580
          %658 = vmatpush1.bf16.msra.mxu0 %v579
          %659 = vmatprep.subr.bf16.mxu0 0
          %660 = vmatpush2.bf16.msra.mxu0 0
          %661 = vmatprep.subr.bf16.mxu0 0
          %662 = vmatpush2.bf16.msra.mxu0 0
          %663 = vmatprep.subr.bf16.mxu0 0
          %664 = vmatpush2.bf16.msra.mxu0 0
          %665 = vmatprep.subr.bf16.mxu0 0
          %666 = vmatpush2.bf16.msra.mxu0 0
          %667 = vmatprep.subr.bf16.mxu0 0
          %668 = vmatpush2.bf16.msra.mxu0 0
          %669 = vmatprep.subr.bf16.mxu0 0
          %670 = vmatpush2.bf16.msra.mxu0 0
          %671 = vmatprep.subr.bf16.mxu0 0
          %672 = vmatpush2.bf16.msra.mxu0 0
          %673 = vmatprep.subr.bf16.mxu0 0
          %674 = vmatpush2.bf16.msra.mxu0 0
          %675 = vmatprep.mubr.bf16.mxu0 0
          %676 = vmatmul.mubr.bf16.gmra.mxu0 %v428
          %v677 = vpop.f32.mrf.mxu0
          %v678 = vadd.f32 %v466, %v677
          %v679 = vpop.f32.mrf.mxu0
          %v680 = vadd.f32 %v470, %v679
          %v681 = vpop.f32.mrf.mxu0
          %v682 = vpop.f32.mrf.mxu0
          %683 = vdwg.mxu0
          %684 = vmatprep.subr.bf16.mxu0 %v610
          %685 = vmatpush1.bf16.msra.mxu0 %v609
          %686 = vmatprep.subr.bf16.mxu0 %v606
          %687 = vmatpush1.bf16.msra.mxu0 %v605
          %688 = vmatprep.subr.bf16.mxu0 %v602
          %689 = vmatpush1.bf16.msra.mxu0 %v601
          %690 = vmatprep.subr.bf16.mxu0 %v598
          %691 = vmatpush1.bf16.msra.mxu0 %v597
          %692 = vmatprep.subr.bf16.mxu0 %v594
          %693 = vmatpush1.bf16.msra.mxu0 %v593
          %694 = vmatprep.subr.bf16.mxu0 %v590
          %695 = vmatpush1.bf16.msra.mxu0 %v589
          %696 = vmatprep.subr.bf16.mxu0 %v586
          %697 = vmatpush1.bf16.msra.mxu0 %v585
          %698 = vmatprep.subr.bf16.mxu0 %v582
          %699 = vmatpush1.bf16.msra.mxu0 %v581
          %700 = vmatprep.subr.bf16.mxu0 0
          %701 = vmatpush2.bf16.msra.mxu0 0
          %702 = vmatprep.subr.bf16.mxu0 0
          %703 = vmatpush2.bf16.msra.mxu0 0
          %704 = vmatprep.subr.bf16.mxu0 0
          %705 = vmatpush2.bf16.msra.mxu0 0
          %706 = vmatprep.subr.bf16.mxu0 0
          %707 = vmatpush2.bf16.msra.mxu0 0
          %708 = vmatprep.subr.bf16.mxu0 0
          %709 = vmatpush2.bf16.msra.mxu0 0
          %710 = vmatprep.subr.bf16.mxu0 0
          %711 = vmatpush2.bf16.msra.mxu0 0
          %712 = vmatprep.subr.bf16.mxu0 0
          %713 = vmatpush2.bf16.msra.mxu0 0
          %714 = vmatprep.subr.bf16.mxu0 0
          %715 = vmatpush2.bf16.msra.mxu0 0
          %716 = vmatprep.mubr.bf16.mxu0 0
          %717 = vmatmul.mubr.bf16.gmra.mxu0 %v428
          %v718 = vpop.f32.mrf.mxu0
          %v719 = vadd.f32 %v474, %v718
          %v720 = vpop.f32.mrf.mxu0
          %v721 = vadd.f32 %v478, %v720
          %v722 = vpop.f32.mrf.mxu0
          %v723 = vpop.f32.mrf.mxu0
          %724 = vdwg.mxu0
          %725 = vst [vmem:[#allocation2] sm:$0xff] %v678
          %726 = vst [vmem:[#allocation2 + $0x8] sm:$0xff] %v680
          %727 = vst [vmem:[#allocation2 + $0x10] sm:$0xff] %v719
          %728 = vst [vmem:[#allocation2 + $0x18] sm:$0xff] %v721
        $region80: #{gearnet_forward.7} parent=51 // pred_fallthru
          _
        %v729 = vld [vmem:[%s357] sm:$0xf]
        %v730 = vld [vmem:[%s1] sm:$0xf]
        %v731 = vld [vmem:[%s1 + $0x4] sm:$0xf]
        %v734 = vunpack.c.l.b16 %v730
        %v735 = vunpack.c.l.b16 %v731
        %v736 = vpack.c.b16 %v735, %v734
        %vm738 = vcmask 130048
        %v740 = vsel %vm738, %v729, 0
        %742 = vmatprep.subr.bf16.mxu0 0
        %743 = vmatpush1.bf16.msra.mxu0 0
        %744 = vmatprep.subr.bf16.mxu0 0
        %745 = vmatpush1.bf16.msra.mxu0 0
        %746 = vmatprep.subr.bf16.mxu0 0
        %747 = vmatpush1.bf16.msra.mxu0 0
        %748 = vmatprep.subr.bf16.mxu0 0
        %749 = vmatpush1.bf16.msra.mxu0 0
        %750 = vmatprep.subr.bf16.mxu0 0
        %751 = vmatpush1.bf16.msra.mxu0 0
        %752 = vmatprep.subr.bf16.mxu0 0
        %753 = vmatpush1.bf16.msra.mxu0 0
        %754 = vmatprep.subr.bf16.mxu0 0
        %755 = vmatpush1.bf16.msra.mxu0 0
        %756 = vmatprep.subr.bf16.mxu0 0
        %757 = vmatpush1.bf16.msra.mxu0 %v736
        %758 = vmatprep.subr.bf16.mxu0 0
        %759 = vmatpush2.bf16.msra.mxu0 0
        %760 = vmatprep.subr.bf16.mxu0 0
        %761 = vmatpush2.bf16.msra.mxu0 0
        %762 = vmatprep.subr.bf16.mxu0 0
        %763 = vmatpush2.bf16.msra.mxu0 0
        %764 = vmatprep.subr.bf16.mxu0 0
        %765 = vmatpush2.bf16.msra.mxu0 0
        %766 = vmatprep.subr.bf16.mxu0 0
        %767 = vmatpush2.bf16.msra.mxu0 0
        %768 = vmatprep.subr.bf16.mxu0 0
        %769 = vmatpush2.bf16.msra.mxu0 0
        %770 = vmatprep.subr.bf16.mxu0 0
        %771 = vmatpush2.bf16.msra.mxu0 0
        %772 = vmatprep.subr.bf16.mxu0 0
        %773 = vmatpush2.bf16.msra.mxu0 0
        %774 = vmatprep.mubr.bf16.mxu0 0
        %775 = vmatmul.mubr.bf16.gmra.mxu0 %v740
        %v776 = vpop.f32.mrf.mxu0
        %v777 = vadd.f32 0.0, %v776
        %v778 = vpop.f32.mrf.mxu0
        %v779 = vpop.f32.mrf.mxu0
        %v780 = vpop.f32.mrf.mxu0
        %781 = vdwg.mxu0
        %v782 = vld [vmem:[#allocation2] sm:$0xff]
        %v783 = vld [vmem:[#allocation2 + $0x8] sm:$0xff]
        %v784 = vld [vmem:[#allocation2 + $0x10] sm:$0xff]
        %v785 = vld [vmem:[#allocation2 + $0x18] sm:$0xff]
        %v786 = vpack.c.bf16 %v777, %v777
        %s787 = smul.u32 %s30, 64
        %s788 = smul.addr %s787, 4
        %s789 = scalar_lea.vmem [#allocation5], %s788
        %v790 = vld [vmem:[%s789] sm:$0xff]
        %v791 = vld [vmem:[%s789 + $0x8] sm:$0xff]
        %v792 = vld [vmem:[%s789 + $0x10] sm:$0xff]
        %v793 = vld [vmem:[%s789 + $0x18] sm:$0xff]
        %v794 = vld [vmem:[%s789 + $0x20] sm:$0xff]
        %v795 = vld [vmem:[%s789 + $0x28] sm:$0xff]
        %v796 = vld [vmem:[%s789 + $0x30] sm:$0xff]
        %v797 = vld [vmem:[%s789 + $0x38] sm:$0xff]
        %v798 = vld [vmem:[%s789 + $0x40] sm:$0xff]
        %v799 = vld [vmem:[%s789 + $0x48] sm:$0xff]
        %v800 = vld [vmem:[%s789 + $0x50] sm:$0xff]
        %v801 = vld [vmem:[%s789 + $0x58] sm:$0xff]
        %v802 = vld [vmem:[%s789 + $0x60] sm:$0xff]
        %v803 = vld [vmem:[%s789 + $0x68] sm:$0xff]
        %v804 = vld [vmem:[%s789 + $0x70] sm:$0xff]
        %v805 = vld [vmem:[%s789 + $0x78] sm:$0xff]
        %v806 = vld [vmem:[%s789 + $0x80] sm:$0xff]
        %v807 = vld [vmem:[%s789 + $0x88] sm:$0xff]
        %v808 = vld [vmem:[%s789 + $0x90] sm:$0xff]
        %v809 = vld [vmem:[%s789 + $0x98] sm:$0xff]
        %v810 = vld [vmem:[%s789 + $0xa0] sm:$0xff]
        %v811 = vld [vmem:[%s789 + $0xa8] sm:$0xff]
        %v812 = vld [vmem:[%s789 + $0xb0] sm:$0xff]
        %v813 = vld [vmem:[%s789 + $0xb8] sm:$0xff]
        %v814 = vld [vmem:[%s789 + $0xc0] sm:$0xff]
        %v815 = vld [vmem:[%s789 + $0xc8] sm:$0xff]
        %v816 = vld [vmem:[%s789 + $0xd0] sm:$0xff]
        %v817 = vld [vmem:[%s789 + $0xd8] sm:$0xff]
        %v818 = vld [vmem:[%s789 + $0xe0] sm:$0xff]
        %v819 = vld [vmem:[%s789 + $0xe8] sm:$0xff]
        %v820 = vld [vmem:[%s789 + $0xf0] sm:$0xff]
        %v821 = vld [vmem:[%s789 + $0xf8] sm:$0xff]
        %v854 = vunpack.c.l.b16 %v790
        %v855 = vunpack.c.h.b16 %v790
        %v856 = vunpack.c.l.b16 %v791
        %v857 = vunpack.c.h.b16 %v791
        %v858 = vunpack.c.l.b16 %v792
        %v859 = vunpack.c.h.b16 %v792
        %v860 = vunpack.c.l.b16 %v793
        %v861 = vunpack.c.h.b16 %v793
        %v862 = vunpack.c.l.b16 %v794
        %v863 = vunpack.c.h.b16 %v794
        %v864 = vunpack.c.l.b16 %v795
        %v865 = vunpack.c.h.b16 %v795
        %v866 = vunpack.c.l.b16 %v796
        %v867 = vunpack.c.h.b16 %v796
        %v868 = vunpack.c.l.b16 %v797
        %v869 = vunpack.c.h.b16 %v797
        %v870 = vunpack.c.l.b16 %v798
        %v871 = vunpack.c.h.b16 %v798
        %v872 = vunpack.c.l.b16 %v799
        %v873 = vunpack.c.h.b16 %v799
        %v874 = vunpack.c.l.b16 %v800
        %v875 = vunpack.c.h.b16 %v800
        %v876 = vunpack.c.l.b16 %v801
        %v877 = vunpack.c.h.b16 %v801
        %v878 = vunpack.c.l.b16 %v802
        %v879 = vunpack.c.h.b16 %v802
        %v880 = vunpack.c.l.b16 %v803
        %v881 = vunpack.c.h.b16 %v803
        %v882 = vunpack.c.l.b16 %v804
        %v883 = vunpack.c.h.b16 %v804
        %v884 = vunpack.c.l.b16 %v805
        %v885 = vunpack.c.h.b16 %v805
        %v886 = vunpack.c.l.b16 %v806
        %v887 = vunpack.c.h.b16 %v806
        %v888 = vunpack.c.l.b16 %v807
        %v889 = vunpack.c.h.b16 %v807
        %v890 = vunpack.c.l.b16 %v808
        %v891 = vunpack.c.h.b16 %v808
        %v892 = vunpack.c.l.b16 %v809
        %v893 = vunpack.c.h.b16 %v809
        %v894 = vunpack.c.l.b16 %v810
        %v895 = vunpack.c.h.b16 %v810
        %v896 = vunpack.c.l.b16 %v811
        %v897 = vunpack.c.h.b16 %v811
        %v898 = vunpack.c.l.b16 %v812
        %v899 = vunpack.c.h.b16 %v812
        %v900 = vunpack.c.l.b16 %v813
        %v901 = vunpack.c.h.b16 %v813
        %v902 = vunpack.c.l.b16 %v814
        %v903 = vunpack.c.h.b16 %v814
        %v904 = vunpack.c.l.b16 %v815
        %v905 = vunpack.c.h.b16 %v815
        %v906 = vunpack.c.l.b16 %v816
        %v907 = vunpack.c.h.b16 %v816
        %v908 = vunpack.c.l.b16 %v817
        %v909 = vunpack.c.h.b16 %v817
        %v910 = vunpack.c.l.b16 %v818
        %v911 = vunpack.c.h.b16 %v818
        %v912 = vunpack.c.l.b16 %v819
        %v913 = vunpack.c.h.b16 %v819
        %v914 = vunpack.c.l.b16 %v820
        %v915 = vunpack.c.h.b16 %v820
        %v916 = vunpack.c.l.b16 %v821
        %v917 = vunpack.c.h.b16 %v821
        %v918 = vpack.c.b16 %v858, %v854
        %v919 = vpack.c.b16 %v859, %v855
        %v920 = vpack.c.b16 %v860, %v856
        %v921 = vpack.c.b16 %v861, %v857
        %v922 = vpack.c.b16 %v866, %v862
        %v923 = vpack.c.b16 %v867, %v863
        %v924 = vpack.c.b16 %v868, %v864
        %v925 = vpack.c.b16 %v869, %v865
        %v926 = vpack.c.b16 %v874, %v870
        %v927 = vpack.c.b16 %v875, %v871
        %v928 = vpack.c.b16 %v876, %v872
        %v929 = vpack.c.b16 %v877, %v873
        %v930 = vpack.c.b16 %v882, %v878
        %v931 = vpack.c.b16 %v883, %v879
        %v932 = vpack.c.b16 %v884, %v880
        %v933 = vpack.c.b16 %v885, %v881
        %v934 = vpack.c.b16 %v890, %v886
        %v935 = vpack.c.b16 %v891, %v887
        %v936 = vpack.c.b16 %v892, %v888
        %v937 = vpack.c.b16 %v893, %v889
        %v938 = vpack.c.b16 %v898, %v894
        %v939 = vpack.c.b16 %v899, %v895
        %v940 = vpack.c.b16 %v900, %v896
        %v941 = vpack.c.b16 %v901, %v897
        %v942 = vpack.c.b16 %v906, %v902
        %v943 = vpack.c.b16 %v907, %v903
        %v944 = vpack.c.b16 %v908, %v904
        %v945 = vpack.c.b16 %v909, %v905
        %v946 = vpack.c.b16 %v914, %v910
        %v947 = vpack.c.b16 %v915, %v911
        %v948 = vpack.c.b16 %v916, %v912
        %v949 = vpack.c.b16 %v917, %v913
        %982 = vmatprep.subr.bf16.mxu0 %v947
        %983 = vmatpush1.bf16.msra.mxu0 %v946
        %984 = vmatprep.subr.bf16.mxu0 %v943
        %985 = vmatpush1.bf16.msra.mxu0 %v942
        %986 = vmatprep.subr.bf16.mxu0 %v939
        %987 = vmatpush1.bf16.msra.mxu0 %v938
        %988 = vmatprep.subr.bf16.mxu0 %v935
        %989 = vmatpush1.bf16.msra.mxu0 %v934
        %990 = vmatprep.subr.bf16.mxu0 %v931
        %991 = vmatpush1.bf16.msra.mxu0 %v930
        %992 = vmatprep.subr.bf16.mxu0 %v927
        %993 = vmatpush1.bf16.msra.mxu0 %v926
        %994 = vmatprep.subr.bf16.mxu0 %v923
        %995 = vmatpush1.bf16.msra.mxu0 %v922
        %996 = vmatprep.subr.bf16.mxu0 %v919
        %997 = vmatpush1.bf16.msra.mxu0 %v918
        %998 = vmatprep.subr.bf16.mxu0 0
        %999 = vmatpush2.bf16.msra.mxu0 0
        %1000 = vmatprep.subr.bf16.mxu0 0
        %1001 = vmatpush2.bf16.msra.mxu0 0
        %1002 = vmatprep.subr.bf16.mxu0 0
        %1003 = vmatpush2.bf16.msra.mxu0 0
        %1004 = vmatprep.subr.bf16.mxu0 0
        %1005 = vmatpush2.bf16.msra.mxu0 0
        %1006 = vmatprep.subr.bf16.mxu0 0
        %1007 = vmatpush2.bf16.msra.mxu0 0
        %1008 = vmatprep.subr.bf16.mxu0 0
        %1009 = vmatpush2.bf16.msra.mxu0 0
        %1010 = vmatprep.subr.bf16.mxu0 0
        %1011 = vmatpush2.bf16.msra.mxu0 0
        %1012 = vmatprep.subr.bf16.mxu0 0
        %1013 = vmatpush2.bf16.msra.mxu0 0
        %1014 = vmatprep.mubr.bf16.mxu0 0
        %1015 = vmatmul.mubr.bf16.gmra.mxu0 %v786
        %v1016 = vpop.f32.mrf.mxu0
        %v1017 = vadd.f32 0.0, %v1016
        %v1018 = vpop.f32.mrf.mxu0
        %v1019 = vadd.f32 0.0, %v1018
        %v1020 = vpop.f32.mrf.mxu0
        %v1021 = vpop.f32.mrf.mxu0
        %1022 = vdwg.mxu0
        %1023 = vmatprep.subr.bf16.mxu0 %v949
        %1024 = vmatpush1.bf16.msra.mxu0 %v948
        %1025 = vmatprep.subr.bf16.mxu0 %v945
        %1026 = vmatpush1.bf16.msra.mxu0 %v944
        %1027 = vmatprep.subr.bf16.mxu0 %v941
        %1028 = vmatpush1.bf16.msra.mxu0 %v940
        %1029 = vmatprep.subr.bf16.mxu0 %v937
        %1030 = vmatpush1.bf16.msra.mxu0 %v936
        %1031 = vmatprep.subr.bf16.mxu0 %v933
        %1032 = vmatpush1.bf16.msra.mxu0 %v932
        %1033 = vmatprep.subr.bf16.mxu0 %v929
        %1034 = vmatpush1.bf16.msra.mxu0 %v928
        %1035 = vmatprep.subr.bf16.mxu0 %v925
        %1036 = vmatpush1.bf16.msra.mxu0 %v924
        %1037 = vmatprep.subr.bf16.mxu0 %v921
        %1038 = vmatpush1.bf16.msra.mxu0 %v920
        %1039 = vmatprep.subr.bf16.mxu0 0
        %1040 = vmatpush2.bf16.msra.mxu0 0
        %1041 = vmatprep.subr.bf16.mxu0 0
        %1042 = vmatpush2.bf16.msra.mxu0 0
        %1043 = vmatprep.subr.bf16.mxu0 0
        %1044 = vmatpush2.bf16.msra.mxu0 0
        %1045 = vmatprep.subr.bf16.mxu0 0
        %1046 = vmatpush2.bf16.msra.mxu0 0
        %1047 = vmatprep.subr.bf16.mxu0 0
        %1048 = vmatpush2.bf16.msra.mxu0 0
        %1049 = vmatprep.subr.bf16.mxu0 0
        %1050 = vmatpush2.bf16.msra.mxu0 0
        %1051 = vmatprep.subr.bf16.mxu0 0
        %1052 = vmatpush2.bf16.msra.mxu0 0
        %1053 = vmatprep.subr.bf16.mxu0 0
        %1054 = vmatpush2.bf16.msra.mxu0 0
        %1055 = vmatprep.mubr.bf16.mxu0 0
        %1056 = vmatmul.mubr.bf16.gmra.mxu0 %v786
        %v1057 = vpop.f32.mrf.mxu0
        %v1058 = vadd.f32 0.0, %v1057
        %v1059 = vpop.f32.mrf.mxu0
        %v1060 = vadd.f32 0.0, %v1059
        %v1061 = vpop.f32.mrf.mxu0
        %v1062 = vpop.f32.mrf.mxu0
        %1063 = vdwg.mxu0
        %v1064 = vadd.f32 %v782, %v1017
        %v1065 = vadd.f32 %v783, %v1019
        %v1066 = vadd.f32 %v784, %v1058
        %v1067 = vadd.f32 %v785, %v1060
        %1068 = vst [vmem:[#allocation2] sm:$0xff] %v1064
        %1069 = vst [vmem:[#allocation2 + $0x8] sm:$0xff] %v1065
        %1070 = vst [vmem:[#allocation2 + $0x10] sm:$0xff] %v1066
        %1071 = vst [vmem:[#allocation2 + $0x18] sm:$0xff] %v1067
        %p1072 = scmp.eq.s32.totalorder %s30, 2
        // Predicated region
        $region81: #{gearnet_forward.7} parent=51 // pred_check
          %p1073 = pneg %p1072
        $region82: #{gearnet_forward.7} parent=51 // pred_check_branch
          %1075 = sbr.rel (%p1073) target = $region84
        $region83: #{gearnet_forward.7} parent=51 // pred_region
          %v1076 = vld [vmem:[#allocation2] sm:$0xff]
          %v1077 = vld [vmem:[#allocation2 + $0x8] sm:$0xff]
          %v1078 = vld [vmem:[#allocation2 + $0x10] sm:$0xff]
          %v1079 = vld [vmem:[#allocation2 + $0x18] sm:$0xff]
          %v1080 = vld [vmem:[#allocation10] sm:$0xf]
          %v1082 = vlaneseq
          %v1083 = vshrl.u32 %v1082, 7
          %v1084 = vsub.s32 0, %v1083
          %v1085 = vrot.slane %v1080, %v1084
          %v1086 = vlaneseq
          %v1087 = vshrl.u32 %v1086, 7
          %v1088 = vsub.s32 1, %v1087
          %v1089 = vrot.slane %v1080, %v1088
          %v1090 = vlaneseq
          %v1091 = vshrl.u32 %v1090, 7
          %v1092 = vsub.s32 2, %v1091
          %v1093 = vrot.slane %v1080, %v1092
          %v1094 = vlaneseq
          %v1095 = vshrl.u32 %v1094, 7
          %v1096 = vsub.s32 3, %v1095
          %v1097 = vrot.slane %v1080, %v1096
          %v1102 = vmul.f32 %v1076, %v1085
          %v1103 = vmul.f32 %v1077, %v1089
          %v1104 = vmul.f32 %v1078, %v1093
          %v1105 = vmul.f32 %v1079, %v1097
          %v1106 = vld [vmem:[#allocation11] sm:$0xf]
          %v1108 = vlaneseq
          %v1109 = vshrl.u32 %v1108, 7
          %v1110 = vsub.s32 0, %v1109
          %v1111 = vrot.slane %v1106, %v1110
          %v1112 = vlaneseq
          %v1113 = vshrl.u32 %v1112, 7
          %v1114 = vsub.s32 1, %v1113
          %v1115 = vrot.slane %v1106, %v1114
          %v1116 = vlaneseq
          %v1117 = vshrl.u32 %v1116, 7
          %v1118 = vsub.s32 2, %v1117
          %v1119 = vrot.slane %v1106, %v1118
          %v1120 = vlaneseq
          %v1121 = vshrl.u32 %v1120, 7
          %v1122 = vsub.s32 3, %v1121
          %v1123 = vrot.slane %v1106, %v1122
          %v1128 = vadd.f32 %v1102, %v1111
          %v1129 = vadd.f32 %v1103, %v1115
          %v1130 = vadd.f32 %v1104, %v1119
          %v1131 = vadd.f32 %v1105, %v1123
          %v1132 = vmax.f32 %v1128, 0.0
          %v1133 = vmax.f32 %v1129, 0.0
          %v1134 = vmax.f32 %v1130, 0.0
          %v1135 = vmax.f32 %v1131, 0.0
          %v1136 = vpack.c.bf16 %v1132, %v1132
          %v1137 = vpack.c.bf16 %v1133, %v1133
          %v1138 = vpack.c.bf16 %v1134, %v1134
          %v1139 = vpack.c.bf16 %v1135, %v1135
          %v1144 = vunpack.c.l.b16 %v1136
          %v1145 = vunpack.c.l.b16 %v1137
          %v1146 = vunpack.c.l.b16 %v1138
          %v1147 = vunpack.c.l.b16 %v1139
          %v1148 = vpack.c.b16 %v1145, %v1144
          %v1149 = vpack.c.b16 %v1147, %v1146
          %1152 = vst [vmem:[%s422] sm:$0xff] %v1148
          %1153 = vst [vmem:[%s422 + $0x8] sm:$0xff] %v1149
        $region84: #{gearnet_forward.7} parent=51 // pred_fallthru
          _
        %p1154 = scmp.lt.s32.totalorder %s29, 1
        %s1155 = scalar_select %p1154, %s29, 1
        %s1156 = smul.addr %s1155, 4
        %s1157 = smul.addr %s1156, 4
        %s1158 = scalar_lea.vmem %s8, %s1157
        // Predicated region
        $region85: #{gearnet_forward.7} parent=51 // pred_check
          %p1159 = pneg %p235
        $region86: #{gearnet_forward.7} parent=51 // pred_check_branch
          %1161 = sbr.rel (%p1159) target = $region88
        $region87: #{gearnet_forward.7} parent=51 // pred_region
          _
        $region88: #{gearnet_forward.7} parent=51 // pred_fallthru
          _
      $region52: #{gearnet_forward.7} parent=5 // pred_fallthru
        _
      %p1162 = scmp.le.s32.totalorder 2, %s20
      // Predicated region
      $region89: #{gearnet_forward.7} parent=5 // pred_check
        %p1163 = pneg %p1162
      $region90: #{gearnet_forward.7} parent=5 // pred_check_branch
        %1165 = sbr.rel (%p1163) target = $region92
      $region91: #{gearnet_forward.7} parent=5 // pred_region
        %s1166 = ssub.s32 %s20, 2
        // Predicated region
        $region93: #{gearnet_forward.7} parent=91 // pred_check
          %p1167 = pneg %p241
        $region94: #{gearnet_forward.7} parent=91 // pred_check_branch
          %1169 = sbr.rel (%p1167) target = $region96
        $region95: #{gearnet_forward.7} parent=91 // pred_region
          %p1170 = scmp.lt.s32.totalorder %s31, 1
          %s1171 = scalar_select %p1170, %s31, 1
          %s1172 = smul.addr %s1171, 4
          %s1173 = smul.addr %s1172, 4
          %s1174 = scalar_lea.vmem %s8, %s1173
        $region96: #{gearnet_forward.7} parent=91 // pred_fallthru
          _
      $region92: #{gearnet_forward.7} parent=5 // pred_fallthru
        _
    $region6: #{gearnet_forward.7} parent=1 // loop_footer
      %s24 = sadd.s32 1, %s20
    $region7: #{gearnet_forward.7} parent=1 // loop_footer_branch
      %19 = sbr.rel target = $region3
    $region8: #{gearnet_forward.7} parent=1 // loop_exit
      _
    %1175 = vsyncpa [#allocation4], 1
    %s1176 = scalar_lea.sflag [#allocation4], 1
    %1177 = vsyncpa %s1176, 1
    %1178 = vsyncpa [#allocation6], 1
    %1179 = vsyncpa [#allocation9], 1
    %1180 = vsyncpa [#allocation12], 1

// kernel: gearnet_forward.8
$region0: #{gearnet_forward.8}
  #allocation0 [shape = 'u32[]', space=smem, size = 0x4, offset = 0x4, fixed_abs, tag = 'smem constant byte address 0x4 - core index']
  #allocation1 [shape = 'u32[144,128]{1,0:T(1,128)}', space=vmem, size = 0x12000, scoped, tag = 'internal scratch']
  #allocation2 [shape = 'f32[8,512]{1,0:T(8,128)}', space=vmem, size = 0x4000, scoped, tag = 'scratch operand']
  %s0 = inlined_call_operand.hbm [shape: bf16[3,16,16], index: 0, kind: input, shape index: {}]
  %s1 = inlined_call_operand.vmem [shape: bf16[16,512], index: 1, kind: input, shape index: {}, may-alias: {1,2}]
  %s2 = inlined_call_operand.vmem [shape: bf16[16,512], index: 2, kind: input, shape index: {}, may-alias: {1,2}]
  %s3 = inlined_call_operand.hbm [shape: bf16[3,512,512], index: 3, kind: input, shape index: {}]
  %s4 = inlined_call_operand.hbm [shape: bf16[512,512], index: 4, kind: input, shape index: {}]
  %s5 = inlined_call_operand.hbm [shape: f32[1,512], index: 5, kind: input, shape index: {}]
  %s6 = inlined_call_operand.hbm [shape: f32[1,512], index: 6, kind: input, shape index: {}]
  %s7 = inlined_call_operand.hbm [shape: f32[1,512], index: 7, kind: input, shape index: {}]
  %s8 = inlined_call_operand.vmem [shape: bf16[16,512], index: 8, kind: output, shape index: {}]
  %s9 = sld [smem:[#allocation0]]
  $region97: #{gearnet_forward.8} parent=0
    _
  %s11 = ssub.s32 1, %s9
  %s12 = scalar_select 0, %s11, %s9
  $region1: #{gearnet_forward.8} parent=0
    #allocation3 [shape = 'u8[4096]{0}', space=vmem, size = 0x1000, scoped, tag = 'input window, operand 0']
    #allocation4 [shape = 's32[2]{0}', space=sflag, size = 0x8, scoped, tag = 'scoped memory for gearnet_forward.8']
    #allocation5 [shape = 'u8[1572864]{0}', space=vmem, size = 0x180000, scoped, tag = 'input window, operand 3, single buffered']
    #allocation6 [shape = 's32[1]{0}', space=sflag, size = 0x4, scoped, tag = 'scoped memory for gearnet_forward.8']
    #allocation7 [shape = 'u8[524288]{0}', space=vmem, size = 0x80000, scoped, tag = 'input window, operand 4, single buffered']
    #allocation8 [shape = 'u8[2048]{0}', space=vmem, size = 0x800, scoped, tag = 'input window, operand 5, single buffered']
    #allocation9 [shape = 's32[1]{0}', space=sflag, size = 0x4, scoped, tag = 'scoped memory for gearnet_forward.8']
    #allocation10 [shape = 'u8[2048]{0}', space=vmem, size = 0x800, scoped, tag = 'input window, operand 6, single buffered']
    #allocation11 [shape = 'u8[2048]{0}', space=vmem, size = 0x800, scoped, tag = 'input window, operand 7, single buffered']
    #allocation12 [shape = 's32[1]{0}', space=sflag, size = 0x4, scoped, tag = 'scoped memory for gearnet_forward.8']
    %13 = vsyncpa [#allocation4], 0
    %s14 = scalar_lea.sflag [#allocation4], 1
    %15 = vsyncpa %s14, 0
    %16 = vsyncpa [#allocation6], 0
    %17 = vsyncpa [#allocation9], 0
    %18 = vsyncpa [#allocation12], 0
    loop: start=0, step=1, limit=8
    $region2: #{gearnet_forward.8} parent=1 // loop_pre_header
      _
    $region3: #{gearnet_forward.8} parent=1 // loop_header
      %s20 = sphi 0, %s24
      %p21 = scmp.ge.s32.totalorder %s20, 8
      %s27 = sphi 0, %s39
      %s28 = sphi 0, %s35
      %s29 = sphi 0, %s27
      %s30 = sphi 0, %s28
      %s31 = sphi 0, %s29
      %s32 = sphi 0, %s30
      %s44 = sphi 0, %s46
      %s47 = sphi 0, %s44
      %s48 = sphi 0, %s47
      %s64 = sphi 0, %s48
      %s68 = sphi 0, %s68
      %s70 = sphi 0, %s68
      %s71 = sphi 0, %s70
      %s85 = sphi 0, %s71
      %s91 = sphi 0, %s93
      %s94 = sphi 0, %s91
      %s95 = sphi 0, %s94
      %s111 = sphi 0, %s95
      %s115 = sphi 0, %s115
      %s117 = sphi 0, %s115
      %s118 = sphi 0, %s117
      %s132 = sphi 0, %s118
      %s136 = sphi 0, %s136
      %s138 = sphi 0, %s136
      %s139 = sphi 0, %s138
      %s153 = sphi 0, %s139
      %s157 = sphi 0, %s157
      %s159 = sphi 0, %s157
      %s160 = sphi 0, %s159
      %s174 = sphi 0, %s160
      %s178 = sphi 0, %s178
      %s180 = sphi 0, %s178
      %s181 = sphi 0, %s180
      %s195 = sphi 0, %s181
      %s199 = sphi 0, %s199
      %s201 = sphi 0, %s199
      %s202 = sphi 0, %s201
      %s216 = sphi 0, %s202
      %s222 = sphi 0, %s224
      %s225 = sphi 0, %s222
      %s226 = sphi 0, %s225
      %s242 = sphi 0, %s226
    $region4: #{gearnet_forward.8} parent=1 // loop_header_branch
      %23 = sbr.rel (%p21) target = $region8
    $region5: #{gearnet_forward.8} parent=1 // loop_body
      %s25 = ssub.s32 %s20, 1
      %s26 = ssub.s32 %s20, 2
      %s33 = sadd.s32 1, %s28
      %p34 = scmp.ge.s32.totalorder %s33, 3
      %s35 = scalar_select %p34, 0, %s33
      %s36 = sadd.s32 1, %s27
      %s37 = scalar_select %p34, %s36, %s27
      %p38 = scmp.ge.s32.totalorder %s37, 2
      %s39 = scalar_select %p38, 0, %s37
      %s40 = ssub.s32 %s28, %s35
      %s41 = ssub.s32 %s27, %s39
      %s42 = sor.u32 %s40, %s41
      %p43 = scmp.eq.s32.totalorder %s42, 0
      %s45 = sadd.s32 %s44, 1
      %s46 = scalar_select %p43, %s44, %s45
      %p49 = pneg %p43
      %p50 = scmp.eq.s32.totalorder %s20, 5
      %p51 = por %p49, %p50
      %p52 = scmp.ne.s32.totalorder %s44, %s47
      %p53 = scmp.eq.s32.totalorder %s20, 0
      %p54 = por %p52, %p53
      %p55 = scmp.ne.s32.totalorder %s44, %s47
      %p56 = scmp.eq.s32.totalorder %s25, 5
      %p57 = por %p55, %p56
      %p58 = scmp.ne.s32.totalorder %s47, %s48
      %p59 = scmp.eq.s32.totalorder %s25, 0
      %p60 = por %p58, %p59
      %p61 = scmp.ne.s32.totalorder %s47, %s48
      %p62 = scmp.eq.s32.totalorder %s26, 5
      %p63 = por %p61, %p62
      %p65 = scmp.ne.s32.totalorder %s48, %s64
      %p66 = scmp.eq.s32.totalorder %s26, 0
      %p67 = por %p65, %p66
      %s69 = sadd.s32 %s68, 1
      %p72 = scmp.eq.s32.totalorder %s20, 5
      %p73 = scmp.ne.s32.totalorder %s68, %s70
      %p74 = scmp.eq.s32.totalorder %s20, 0
      %p75 = por %p73, %p74
      %p76 = scmp.ne.s32.totalorder %s68, %s70
      %p77 = scmp.eq.s32.totalorder %s25, 5
      %p78 = por %p76, %p77
      %p79 = scmp.ne.s32.totalorder %s70, %s71
      %p80 = scmp.eq.s32.totalorder %s25, 0
      %p81 = por %p79, %p80
      %p82 = scmp.ne.s32.totalorder %s70, %s71
      %p83 = scmp.eq.s32.totalorder %s26, 5
      %p84 = por %p82, %p83
      %p86 = scmp.ne.s32.totalorder %s71, %s85
      %p87 = scmp.eq.s32.totalorder %s26, 0
      %p88 = por %p86, %p87
      %s89 = ssub.s32 %s27, %s39
      %p90 = scmp.eq.s32.totalorder %s89, 0
      %s92 = sadd.s32 %s91, 1
      %s93 = scalar_select %p90, %s91, %s92
      %p96 = pneg %p90
      %p97 = scmp.eq.s32.totalorder %s20, 5
      %p98 = por %p96, %p97
      %p99 = scmp.ne.s32.totalorder %s91, %s94
      %p100 = scmp.eq.s32.totalorder %s20, 0
      %p101 = por %p99, %p100
      %p102 = scmp.ne.s32.totalorder %s91, %s94
      %p103 = scmp.eq.s32.totalorder %s25, 5
      %p104 = por %p102, %p103
      %p105 = scmp.ne.s32.totalorder %s94, %s95
      %p106 = scmp.eq.s32.totalorder %s25, 0
      %p107 = por %p105, %p106
      %p108 = scmp.ne.s32.totalorder %s94, %s95
      %p109 = scmp.eq.s32.totalorder %s26, 5
      %p110 = por %p108, %p109
      %p112 = scmp.ne.s32.totalorder %s95, %s111
      %p113 = scmp.eq.s32.totalorder %s26, 0
      %p114 = por %p112, %p113
      %s116 = sadd.s32 %s115, 1
      %p119 = scmp.eq.s32.totalorder %s20, 5
      %p120 = scmp.ne.s32.totalorder %s115, %s117
      %p121 = scmp.eq.s32.totalorder %s20, 0
      %p122 = por %p120, %p121
      %p123 = scmp.ne.s32.totalorder %s115, %s117
      %p124 = scmp.eq.s32.totalorder %s25, 5
      %p125 = por %p123, %p124
      %p126 = scmp.ne.s32.totalorder %s117, %s118
      %p127 = scmp.eq.s32.totalorder %s25, 0
      %p128 = por %p126, %p127
      %p129 = scmp.ne.s32.totalorder %s117, %s118
      %p130 = scmp.eq.s32.totalorder %s26, 5
      %p131 = por %p129, %p130
      %p133 = scmp.ne.s32.totalorder %s118, %s132
      %p134 = scmp.eq.s32.totalorder %s26, 0
      %p135 = por %p133, %p134
      %s137 = sadd.s32 %s136, 1
      %p140 = scmp.eq.s32.totalorder %s20, 5
      %p141 = scmp.ne.s32.totalorder %s136, %s138
      %p142 = scmp.eq.s32.totalorder %s20, 0
      %p143 = por %p141, %p142
      %p144 = scmp.ne.s32.totalorder %s136, %s138
      %p145 = scmp.eq.s32.totalorder %s25, 5
      %p146 = por %p144, %p145
      %p147 = scmp.ne.s32.totalorder %s138, %s139
      %p148 = scmp.eq.s32.totalorder %s25, 0
      %p149 = por %p147, %p148
      %p150 = scmp.ne.s32.totalorder %s138, %s139
      %p151 = scmp.eq.s32.totalorder %s26, 5
      %p152 = por %p150, %p151
      %p154 = scmp.ne.s32.totalorder %s139, %s153
      %p155 = scmp.eq.s32.totalorder %s26, 0
      %p156 = por %p154, %p155
      %s158 = sadd.s32 %s157, 1
      %p161 = scmp.eq.s32.totalorder %s20, 5
      %p162 = scmp.ne.s32.totalorder %s157, %s159
      %p163 = scmp.eq.s32.totalorder %s20, 0
      %p164 = por %p162, %p163
      %p165 = scmp.ne.s32.totalorder %s157, %s159
      %p166 = scmp.eq.s32.totalorder %s25, 5
      %p167 = por %p165, %p166
      %p168 = scmp.ne.s32.totalorder %s159, %s160
      %p169 = scmp.eq.s32.totalorder %s25, 0
      %p170 = por %p168, %p169
      %p171 = scmp.ne.s32.totalorder %s159, %s160
      %p172 = scmp.eq.s32.totalorder %s26, 5
      %p173 = por %p171, %p172
      %p175 = scmp.ne.s32.totalorder %s160, %s174
      %p176 = scmp.eq.s32.totalorder %s26, 0
      %p177 = por %p175, %p176
      %s179 = sadd.s32 %s178, 1
      %p182 = scmp.eq.s32.totalorder %s20, 5
      %p183 = scmp.ne.s32.totalorder %s178, %s180
      %p184 = scmp.eq.s32.totalorder %s20, 0
      %p185 = por %p183, %p184
      %p186 = scmp.ne.s32.totalorder %s178, %s180
      %p187 = scmp.eq.s32.totalorder %s25, 5
      %p188 = por %p186, %p187
      %p189 = scmp.ne.s32.totalorder %s180, %s181
      %p190 = scmp.eq.s32.totalorder %s25, 0
      %p191 = por %p189, %p190
      %p192 = scmp.ne.s32.totalorder %s180, %s181
      %p193 = scmp.eq.s32.totalorder %s26, 5
      %p194 = por %p192, %p193
      %p196 = scmp.ne.s32.totalorder %s181, %s195
      %p197 = scmp.eq.s32.totalorder %s26, 0
      %p198 = por %p196, %p197
      %s200 = sadd.s32 %s199, 1
      %p203 = scmp.eq.s32.totalorder %s20, 5
      %p204 = scmp.ne.s32.totalorder %s199, %s201
      %p205 = scmp.eq.s32.totalorder %s20, 0
      %p206 = por %p204, %p205
      %p207 = scmp.ne.s32.totalorder %s199, %s201
      %p208 = scmp.eq.s32.totalorder %s25, 5
      %p209 = por %p207, %p208
      %p210 = scmp.ne.s32.totalorder %s201, %s202
      %p211 = scmp.eq.s32.totalorder %s25, 0
      %p212 = por %p210, %p211
      %p213 = scmp.ne.s32.totalorder %s201, %s202
      %p214 = scmp.eq.s32.totalorder %s26, 5
      %p215 = por %p213, %p214
      %p217 = scmp.ne.s32.totalorder %s202, %s216
      %p218 = scmp.eq.s32.totalorder %s26, 0
      %p219 = por %p217, %p218
      %s220 = ssub.s32 %s27, %s39
      %p221 = scmp.eq.s32.totalorder %s220, 0
      %s223 = sadd.s32 %s222, 1
      %s224 = scalar_select %p221, %s222, %s223
      %p227 = pneg %p221
      %p228 = scmp.eq.s32.totalorder %s20, 5
      %p229 = por %p227, %p228
      %p230 = scmp.ne.s32.totalorder %s222, %s225
      %p231 = scmp.eq.s32.totalorder %s20, 0
      %p232 = por %p230, %p231
      %p233 = scmp.ne.s32.totalorder %s222, %s225
      %p234 = scmp.eq.s32.totalorder %s25, 5
      %p235 = por %p233, %p234
      %p236 = scmp.ne.s32.totalorder %s225, %s226
      %p237 = scmp.eq.s32.totalorder %s25, 0
      %p238 = por %p236, %p237
      %p239 = scmp.ne.s32.totalorder %s225, %s226
      %p240 = scmp.eq.s32.totalorder %s26, 5
      %p241 = por %p239, %p240
      %p243 = scmp.ne.s32.totalorder %s226, %s242
      %p244 = scmp.eq.s32.totalorder %s26, 0
      %p245 = por %p243, %p244
      %p246 = scmp.le.s32.totalorder 1, %s20
      %p247 = scmp.lt.s32.totalorder %s20, 7
      %p248 = pnand %p246, %p247
      %p249 = pneg %p248
      // Predicated region
      $region9: #{gearnet_forward.8} parent=5 // pred_check
        _
      $region10: #{gearnet_forward.8} parent=5 // pred_check_branch
        %251 = sbr.rel (%p248) target = $region12
      $region11: #{gearnet_forward.8} parent=5 // pred_region
        %s252 = ssub.s32 %s20, 1
        // Predicated region
        $region13: #{gearnet_forward.8} parent=11 // pred_check
          %p253 = pneg %p81
        $region14: #{gearnet_forward.8} parent=11 // pred_check_branch
          %255 = sbr.rel (%p253) target = $region16
        $region15: #{gearnet_forward.8} parent=11 // pred_region
          _
        $region16: #{gearnet_forward.8} parent=11 // pred_fallthru
          _
        // Predicated region
        $region17: #{gearnet_forward.8} parent=11 // pred_check
          %p256 = pneg %p128
        $region18: #{gearnet_forward.8} parent=11 // pred_check_branch
          %258 = sbr.rel (%p256) target = $region20
        $region19: #{gearnet_forward.8} parent=11 // pred_region
          %s260 = ssub.s32 49152, 49152
          %261 = vsyncadd [#allocation6], %s260
          %s262 = sshll.u32 [#allocation5], 4
          %s263 = int_to_ptr.vmem [resolvable:$true] %s262
          %268 = dma.hbm_to_vmem [thread:$0]  %s3, 49152, %s263, [#allocation6], 256, 256, 16
        $region20: #{gearnet_forward.8} parent=11 // pred_fallthru
          _
        // Predicated region
        $region21: #{gearnet_forward.8} parent=11 // pred_check
          %p269 = pneg %p149
        $region22: #{gearnet_forward.8} parent=11 // pred_check_branch
          %271 = sbr.rel (%p269) target = $region24
        $region23: #{gearnet_forward.8} parent=11 // pred_region
          %s273 = ssub.s32 16384, 16384
          %274 = vsyncadd [#allocation6], %s273
          %s275 = sshll.u32 [#allocation7], 4
          %s276 = int_to_ptr.vmem [resolvable:$true] %s275
          %281 = dma.hbm_to_vmem [thread:$0]  %s4, 16384, %s276, [#allocation6], 256, 256, 16
        $region24: #{gearnet_forward.8} parent=11 // pred_fallthru
          _
        // Predicated region
        $region25: #{gearnet_forward.8} parent=11 // pred_check
          %p282 = pneg %p170
        $region26: #{gearnet_forward.8} parent=11 // pred_check_branch
          %284 = sbr.rel (%p282) target = $region28
        $region27: #{gearnet_forward.8} parent=11 // pred_region
          %s286 = ssub.s32 64, 64
          %287 = vsyncadd [#allocation9], %s286
          %s289 = sshll.u32 [#allocation8], 4
          %s290 = int_to_ptr.vmem [resolvable:$true] %s289
          %292 = dma.hbm_to_vmem [thread:$0]  %s5, 64, %s290, [#allocation9]
        $region28: #{gearnet_forward.8} parent=11 // pred_fallthru
          _
        // Predicated region
        $region29: #{gearnet_forward.8} parent=11 // pred_check
          %p293 = pneg %p191
        $region30: #{gearnet_forward.8} parent=11 // pred_check_branch
          %295 = sbr.rel (%p293) target = $region32
        $region31: #{gearnet_forward.8} parent=11 // pred_region
          %s297 = ssub.s32 64, 64
          %298 = vsyncadd [#allocation9], %s297
          %s300 = sshll.u32 [#allocation10], 4
          %s301 = int_to_ptr.vmem [resolvable:$true] %s300
          %303 = dma.hbm_to_vmem [thread:$0]  %s6, 64, %s301, [#allocation9]
        $region32: #{gearnet_forward.8} parent=11 // pred_fallthru
          _
        // Predicated region
        $region33: #{gearnet_forward.8} parent=11 // pred_check
          %p304 = pneg %p212
        $region34: #{gearnet_forward.8} parent=11 // pred_check_branch
          %306 = sbr.rel (%p304) target = $region36
        $region35: #{gearnet_forward.8} parent=11 // pred_region
          %s308 = ssub.s32 64, 64
          %309 = vsyncadd [#allocation12], %s308
          %s311 = sshll.u32 [#allocation11], 4
          %s312 = int_to_ptr.vmem [resolvable:$true] %s311
          %314 = dma.hbm_to_vmem [thread:$0]  %s7, 64, %s312, [#allocation12]
        $region36: #{gearnet_forward.8} parent=11 // pred_fallthru
          _
      $region12: #{gearnet_forward.8} parent=5 // pred_fallthru
        _
      %p315 = scmp.lt.s32.totalorder %s20, 6
      // Predicated region
      $region37: #{gearnet_forward.8} parent=5 // pred_check
        %p316 = pneg %p315
      $region38: #{gearnet_forward.8} parent=5 // pred_check_branch
        %318 = sbr.rel (%p316) target = $region40
      $region39: #{gearnet_forward.8} parent=5 // pred_region
        // Predicated region
        $region41: #{gearnet_forward.8} parent=39 // pred_check
          %p319 = pneg %p54
        $region42: #{gearnet_forward.8} parent=39 // pred_check_branch
          %321 = sbr.rel (%p319) target = $region44
        $region43: #{gearnet_forward.8} parent=39 // pred_region
          %s322 = sand.u32 %s44, 1
          %s323 = scalar_lea.sflag [#allocation4], %s322
          %s324 = sand.u32 %s44, 1
          %s325 = smul.addr %s324, 4
          %s326 = scalar_lea.vmem [#allocation3], %s325
          %s328 = ssub.s32 64, 64
          %329 = vsyncadd %s323, %s328
          %s330 = smul.addr %s28, 2
          %s331 = sadd.s32 %s27, %s330
          %s332 = smul.addr %s331, 64
          %s333 = scalar_lea.hbm %s0, %s332
          %s335 = sshll.u32 %s326, 4
          %s336 = int_to_ptr.vmem [resolvable:$true] %s335
          %338 = dma.hbm_to_vmem [thread:$0]  %s333, 64, %s336, %s323
        $region44: #{gearnet_forward.8} parent=39 // pred_fallthru
          _
        // Predicated region
        $region45: #{gearnet_forward.8} parent=39 // pred_check
          %p339 = pneg %p101
        $region46: #{gearnet_forward.8} parent=39 // pred_check_branch
          %341 = sbr.rel (%p339) target = $region48
        $region47: #{gearnet_forward.8} parent=39 // pred_region
          %p342 = scmp.lt.s32.totalorder %s27, 1
          %s343 = scalar_select %p342, %s27, 1
          %s344 = smul.addr %s343, 4
          %s345 = smul.addr %s344, 4
          %s346 = scalar_lea.vmem %s2, %s345
        $region48: #{gearnet_forward.8} parent=39 // pred_fallthru
          _
      $region40: #{gearnet_forward.8} parent=5 // pred_fallthru
        _
      %p347 = scmp.le.s32.totalorder 1, %s20
      %p348 = scmp.lt.s32.totalorder %s20, 7
      %p349 = pnand %p347, %p348
      %p350 = pneg %p349
      // Predicated region
      $region49: #{gearnet_forward.8} parent=5 // pred_check
        _
      $region50: #{gearnet_forward.8} parent=5 // pred_check_branch
        %352 = sbr.rel (%p349) target = $region52
      $region51: #{gearnet_forward.8} parent=5 // pred_region
        %s353 = ssub.s32 %s20, 1
        %s354 = sand.u32 %s47, 1
        %s355 = scalar_lea.sflag [#allocation4], %s354
        %s356 = sand.u32 %s47, 1
        %s357 = smul.addr %s356, 4
        %s358 = scalar_lea.vmem [#allocation3], %s357
        // Predicated region
        $region53: #{gearnet_forward.8} parent=51 // pred_check
          %p359 = pneg %p60
        $region54: #{gearnet_forward.8} parent=51 // pred_check_branch
          %361 = sbr.rel (%p359) target = $region56
        $region55: #{gearnet_forward.8} parent=51 // pred_region
          %362 = dma.done %s355, 64
        $region56: #{gearnet_forward.8} parent=51 // pred_fallthru
          _
        // Predicated region
        $region57: #{gearnet_forward.8} parent=51 // pred_check
          %p363 = pneg %p128
        $region58: #{gearnet_forward.8} parent=51 // pred_check_branch
          %365 = sbr.rel (%p363) target = $region60
        $region59: #{gearnet_forward.8} parent=51 // pred_region
          %366 = dma.done [#allocation6], 49152
        $region60: #{gearnet_forward.8} parent=51 // pred_fallthru
          _
        // Predicated region
        $region61: #{gearnet_forward.8} parent=51 // pred_check
          %p367 = pneg %p149
        $region62: #{gearnet_forward.8} parent=51 // pred_check_branch
          %369 = sbr.rel (%p367) target = $region64
        $region63: #{gearnet_forward.8} parent=51 // pred_region
          %370 = dma.done [#allocation6], 16384
        $region64: #{gearnet_forward.8} parent=51 // pred_fallthru
          _
        // Predicated region
        $region65: #{gearnet_forward.8} parent=51 // pred_check
          %p371 = pneg %p170
        $region66: #{gearnet_forward.8} parent=51 // pred_check_branch
          %373 = sbr.rel (%p371) target = $region68
        $region67: #{gearnet_forward.8} parent=51 // pred_region
          %374 = dma.done [#allocation9], 64
        $region68: #{gearnet_forward.8} parent=51 // pred_fallthru
          _
        // Predicated region
        $region69: #{gearnet_forward.8} parent=51 // pred_check
          %p375 = pneg %p191
        $region70: #{gearnet_forward.8} parent=51 // pred_check_branch
          %377 = sbr.rel (%p375) target = $region72
        $region71: #{gearnet_forward.8} parent=51 // pred_region
          %378 = dma.done [#allocation9], 64
        $region72: #{gearnet_forward.8} parent=51 // pred_fallthru
          _
        // Predicated region
        $region73: #{gearnet_forward.8} parent=51 // pred_check
          %p379 = pneg %p212
        $region74: #{gearnet_forward.8} parent=51 // pred_check_branch
          %381 = sbr.rel (%p379) target = $region76
        $region75: #{gearnet_forward.8} parent=51 // pred_region
          %382 = dma.done [#allocation12], 64
        $region76: #{gearnet_forward.8} parent=51 // pred_fallthru
          _
        %s383 = sand.u32 %s47, 1
        %s384 = scalar_lea.sflag [#allocation4], %s383
        %s385 = sand.u32 %s47, 1
        %s386 = smul.addr %s385, 4
        %s387 = scalar_lea.vmem [#allocation3], %s386
        %p388 = pneg %p60
        %p389 = pneg %p57
        %p390 = pneg %p81
        %p391 = pneg %p78
        %p392 = scmp.lt.s32.totalorder %s29, 1
        %s393 = scalar_select %p392, %s29, 1
        %s394 = smul.addr %s393, 4
        %s395 = smul.addr %s394, 4
        %s396 = scalar_lea.vmem %s2, %s395
        %p397 = pneg %p107
        %p398 = pneg %p104
        %p399 = pneg %p128
        %p400 = pneg %p125
        %p401 = pneg %p149
        %p402 = pneg %p146
        %p403 = pneg %p170
        %p404 = pneg %p167
        %p405 = pneg %p191
        %p406 = pneg %p188
        %p407 = pneg %p212
        %p408 = pneg %p209
        %p409 = pneg %p238
        %p410 = pneg %p235
        %p411 = scmp.lt.s32.totalorder %s29, 1
        %s412 = scalar_select %p411, %s29, 1
        %s413 = smul.addr %s412, 4
        %s414 = smul.addr %s413, 4
        %s415 = scalar_lea.vmem %s8, %s414
        %p416 = scmp.lt.s32.totalorder %s29, 1
        %s417 = scalar_select %p416, %s29, 1
        %s418 = smul.addr %s417, 4
        %s419 = smul.addr %s418, 4
        %s420 = scalar_lea.vmem %s2, %s419
        %p421 = scmp.lt.s32.totalorder %s29, 1
        %s422 = scalar_select %p421, %s29, 1
        %s423 = smul.addr %s422, 4
        %s424 = smul.addr %s423, 4
        %s425 = scalar_lea.vmem %s8, %s424
        %p427 = scmp.eq.s32.totalorder %s30, 0
        // Predicated region
        $region77: #{gearnet_forward.8} parent=51 // pred_check
          %p428 = pneg %p427
        $region78: #{gearnet_forward.8} parent=51 // pred_check_branch
          %430 = sbr.rel (%p428) target = $region80
        $region79: #{gearnet_forward.8} parent=51 // pred_region
          %v431 = vld [vmem:[%s420] sm:$0xff]
          %v432 = vld [vmem:[%s420 + $0x8] sm:$0xff]
          %v433 = vld [vmem:[#allocation7] sm:$0xff]
          %v434 = vld [vmem:[#allocation7 + $0x8] sm:$0xff]
          %v435 = vld [vmem:[#allocation7 + $0x10] sm:$0xff]
          %v436 = vld [vmem:[#allocation7 + $0x18] sm:$0xff]
          %v437 = vld [vmem:[#allocation7 + $0x20] sm:$0xff]
          %v438 = vld [vmem:[#allocation7 + $0x28] sm:$0xff]
          %v439 = vld [vmem:[#allocation7 + $0x30] sm:$0xff]
          %v440 = vld [vmem:[#allocation7 + $0x38] sm:$0xff]
          %v441 = vld [vmem:[#allocation7 + $0x40] sm:$0xff]
          %v442 = vld [vmem:[#allocation7 + $0x48] sm:$0xff]
          %v443 = vld [vmem:[#allocation7 + $0x50] sm:$0xff]
          %v444 = vld [vmem:[#allocation7 + $0x58] sm:$0xff]
          %v445 = vld [vmem:[#allocation7 + $0x60] sm:$0xff]
          %v446 = vld [vmem:[#allocation7 + $0x68] sm:$0xff]
          %v447 = vld [vmem:[#allocation7 + $0x70] sm:$0xff]
          %v448 = vld [vmem:[#allocation7 + $0x78] sm:$0xff]
          %v449 = vld [vmem:[#allocation7 + $0x80] sm:$0xff]
          %v450 = vld [vmem:[#allocation7 + $0x88] sm:$0xff]
          %v451 = vld [vmem:[#allocation7 + $0x90] sm:$0xff]
          %v452 = vld [vmem:[#allocation7 + $0x98] sm:$0xff]
          %v453 = vld [vmem:[#allocation7 + $0xa0] sm:$0xff]
          %v454 = vld [vmem:[#allocation7 + $0xa8] sm:$0xff]
          %v455 = vld [vmem:[#allocation7 + $0xb0] sm:$0xff]
          %v456 = vld [vmem:[#allocation7 + $0xb8] sm:$0xff]
          %v457 = vld [vmem:[#allocation7 + $0xc0] sm:$0xff]
          %v458 = vld [vmem:[#allocation7 + $0xc8] sm:$0xff]
          %v459 = vld [vmem:[#allocation7 + $0xd0] sm:$0xff]
          %v460 = vld [vmem:[#allocation7 + $0xd8] sm:$0xff]
          %v461 = vld [vmem:[#allocation7 + $0xe0] sm:$0xff]
          %v462 = vld [vmem:[#allocation7 + $0xe8] sm:$0xff]
          %v463 = vld [vmem:[#allocation7 + $0xf0] sm:$0xff]
          %v464 = vld [vmem:[#allocation7 + $0xf8] sm:$0xff]
          %v465 = vld [vmem:[#allocation7 + $0x100] sm:$0xff]
          %v466 = vld [vmem:[#allocation7 + $0x108] sm:$0xff]
          %v467 = vld [vmem:[#allocation7 + $0x110] sm:$0xff]
          %v468 = vld [vmem:[#allocation7 + $0x118] sm:$0xff]
          %v469 = vld [vmem:[#allocation7 + $0x120] sm:$0xff]
          %v470 = vld [vmem:[#allocation7 + $0x128] sm:$0xff]
          %v471 = vld [vmem:[#allocation7 + $0x130] sm:$0xff]
          %v472 = vld [vmem:[#allocation7 + $0x138] sm:$0xff]
          %v473 = vld [vmem:[#allocation7 + $0x140] sm:$0xff]
          %v474 = vld [vmem:[#allocation7 + $0x148] sm:$0xff]
          %v475 = vld [vmem:[#allocation7 + $0x150] sm:$0xff]
          %v476 = vld [vmem:[#allocation7 + $0x158] sm:$0xff]
          %v477 = vld [vmem:[#allocation7 + $0x160] sm:$0xff]
          %v478 = vld [vmem:[#allocation7 + $0x168] sm:$0xff]
          %v479 = vld [vmem:[#allocation7 + $0x170] sm:$0xff]
          %v480 = vld [vmem:[#allocation7 + $0x178] sm:$0xff]
          %v481 = vld [vmem:[#allocation7 + $0x180] sm:$0xff]
          %v482 = vld [vmem:[#allocation7 + $0x188] sm:$0xff]
          %v483 = vld [vmem:[#allocation7 + $0x190] sm:$0xff]
          %v484 = vld [vmem:[#allocation7 + $0x198] sm:$0xff]
          %v485 = vld [vmem:[#allocation7 + $0x1a0] sm:$0xff]
          %v486 = vld [vmem:[#allocation7 + $0x1a8] sm:$0xff]
          %v487 = vld [vmem:[#allocation7 + $0x1b0] sm:$0xff]
          %v488 = vld [vmem:[#allocation7 + $0x1b8] sm:$0xff]
          %v489 = vld [vmem:[#allocation7 + $0x1c0] sm:$0xff]
          %v490 = vld [vmem:[#allocation7 + $0x1c8] sm:$0xff]
          %v491 = vld [vmem:[#allocation7 + $0x1d0] sm:$0xff]
          %v492 = vld [vmem:[#allocation7 + $0x1d8] sm:$0xff]
          %v493 = vld [vmem:[#allocation7 + $0x1e0] sm:$0xff]
          %v494 = vld [vmem:[#allocation7 + $0x1e8] sm:$0xff]
          %v495 = vld [vmem:[#allocation7 + $0x1f0] sm:$0xff]
          %v496 = vld [vmem:[#allocation7 + $0x1f8] sm:$0xff]
          %v497 = vld [vmem:[#allocation7 + $0x200] sm:$0xff]
          %v498 = vld [vmem:[#allocation7 + $0x208] sm:$0xff]
          %v499 = vld [vmem:[#allocation7 + $0x210] sm:$0xff]
          %v500 = vld [vmem:[#allocation7 + $0x218] sm:$0xff]
          %v501 = vld [vmem:[#allocation7 + $0x220] sm:$0xff]
          %v502 = vld [vmem:[#allocation7 + $0x228] sm:$0xff]
          %v503 = vld [vmem:[#allocation7 + $0x230] sm:$0xff]
          %v504 = vld [vmem:[#allocation7 + $0x238] sm:$0xff]
          %v505 = vld [vmem:[#allocation7 + $0x240] sm:$0xff]
          %v506 = vld [vmem:[#allocation7 + $0x248] sm:$0xff]
          %v507 = vld [vmem:[#allocation7 + $0x250] sm:$0xff]
          %v508 = vld [vmem:[#allocation7 + $0x258] sm:$0xff]
          %v509 = vld [vmem:[#allocation7 + $0x260] sm:$0xff]
          %v510 = vld [vmem:[#allocation7 + $0x268] sm:$0xff]
          %v511 = vld [vmem:[#allocation7 + $0x270] sm:$0xff]
          %v512 = vld [vmem:[#allocation7 + $0x278] sm:$0xff]
          %v513 = vld [vmem:[#allocation7 + $0x280] sm:$0xff]
          %v514 = vld [vmem:[#allocation7 + $0x288] sm:$0xff]
          %v515 = vld [vmem:[#allocation7 + $0x290] sm:$0xff]
          %v516 = vld [vmem:[#allocation7 + $0x298] sm:$0xff]
          %v517 = vld [vmem:[#allocation7 + $0x2a0] sm:$0xff]
          %v518 = vld [vmem:[#allocation7 + $0x2a8] sm:$0xff]
          %v519 = vld [vmem:[#allocation7 + $0x2b0] sm:$0xff]
          %v520 = vld [vmem:[#allocation7 + $0x2b8] sm:$0xff]
          %v521 = vld [vmem:[#allocation7 + $0x2c0] sm:$0xff]
          %v522 = vld [vmem:[#allocation7 + $0x2c8] sm:$0xff]
          %v523 = vld [vmem:[#allocation7 + $0x2d0] sm:$0xff]
          %v524 = vld [vmem:[#allocation7 + $0x2d8] sm:$0xff]
          %v525 = vld [vmem:[#allocation7 + $0x2e0] sm:$0xff]
          %v526 = vld [vmem:[#allocation7 + $0x2e8] sm:$0xff]
          %v527 = vld [vmem:[#allocation7 + $0x2f0] sm:$0xff]
          %v528 = vld [vmem:[#allocation7 + $0x2f8] sm:$0xff]
          %v529 = vld [vmem:[#allocation7 + $0x300] sm:$0xff]
          %v530 = vld [vmem:[#allocation7 + $0x308] sm:$0xff]
          %v531 = vld [vmem:[#allocation7 + $0x310] sm:$0xff]
          %v532 = vld [vmem:[#allocation7 + $0x318] sm:$0xff]
          %v533 = vld [vmem:[#allocation7 + $0x320] sm:$0xff]
          %v534 = vld [vmem:[#allocation7 + $0x328] sm:$0xff]
          %v535 = vld [vmem:[#allocation7 + $0x330] sm:$0xff]
          %v536 = vld [vmem:[#allocation7 + $0x338] sm:$0xff]
          %v537 = vld [vmem:[#allocation7 + $0x340] sm:$0xff]
          %v538 = vld [vmem:[#allocation7 + $0x348] sm:$0xff]
          %v539 = vld [vmem:[#allocation7 + $0x350] sm:$0xff]
          %v540 = vld [vmem:[#allocation7 + $0x358] sm:$0xff]
          %v541 = vld [vmem:[#allocation7 + $0x360] sm:$0xff]
          %v542 = vld [vmem:[#allocation7 + $0x368] sm:$0xff]
          %v543 = vld [vmem:[#allocation7 + $0x370] sm:$0xff]
          %v544 = vld [vmem:[#allocation7 + $0x378] sm:$0xff]
          %v545 = vld [vmem:[#allocation7 + $0x380] sm:$0xff]
          %v546 = vld [vmem:[#allocation7 + $0x388] sm:$0xff]
          %v547 = vld [vmem:[#allocation7 + $0x390] sm:$0xff]
          %v548 = vld [vmem:[#allocation7 + $0x398] sm:$0xff]
          %v549 = vld [vmem:[#allocation7 + $0x3a0] sm:$0xff]
          %v550 = vld [vmem:[#allocation7 + $0x3a8] sm:$0xff]
          %v551 = vld [vmem:[#allocation7 + $0x3b0] sm:$0xff]
          %v552 = vld [vmem:[#allocation7 + $0x3b8] sm:$0xff]
          %v553 = vld [vmem:[#allocation7 + $0x3c0] sm:$0xff]
          %v554 = vld [vmem:[#allocation7 + $0x3c8] sm:$0xff]
          %v555 = vld [vmem:[#allocation7 + $0x3d0] sm:$0xff]
          %v556 = vld [vmem:[#allocation7 + $0x3d8] sm:$0xff]
          %v557 = vld [vmem:[#allocation7 + $0x3e0] sm:$0xff]
          %v558 = vld [vmem:[#allocation7 + $0x3e8] sm:$0xff]
          %v559 = vld [vmem:[#allocation7 + $0x3f0] sm:$0xff]
          %v560 = vld [vmem:[#allocation7 + $0x3f8] sm:$0xff]
          %v561 = vld [vmem:[#allocation8] sm:$0xf]
          %v563 = vlaneseq
          %v564 = vshrl.u32 %v563, 7
          %v565 = vsub.s32 0, %v564
          %v566 = vrot.slane %v561, %v565
          %v567 = vlaneseq
          %v568 = vshrl.u32 %v567, 7
          %v569 = vsub.s32 1, %v568
          %v570 = vrot.slane %v561, %v569
          %v571 = vlaneseq
          %v572 = vshrl.u32 %v571, 7
          %v573 = vsub.s32 2, %v572
          %v574 = vrot.slane %v561, %v573
          %v575 = vlaneseq
          %v576 = vshrl.u32 %v575, 7
          %v577 = vsub.s32 3, %v576
          %v578 = vrot.slane %v561, %v577
          %v585 = vunpack.c.l.b16 %v431
          %v586 = vunpack.c.h.b16 %v431
          %v587 = vunpack.c.l.b16 %v432
          %v588 = vunpack.c.h.b16 %v432
          %v589 = vpack.c.b16 %v585, %v585
          %v590 = vpack.c.b16 %v586, %v586
          %v591 = vpack.c.b16 %v587, %v587
          %v592 = vpack.c.b16 %v588, %v588
          %v725 = vunpack.c.l.b16 %v433
          %v726 = vunpack.c.h.b16 %v433
          %v727 = vunpack.c.l.b16 %v434
          %v728 = vunpack.c.h.b16 %v434
          %v729 = vunpack.c.l.b16 %v435
          %v730 = vunpack.c.h.b16 %v435
          %v731 = vunpack.c.l.b16 %v436
          %v732 = vunpack.c.h.b16 %v436
          %v733 = vunpack.c.l.b16 %v437
          %v734 = vunpack.c.h.b16 %v437
          %v735 = vunpack.c.l.b16 %v438
          %v736 = vunpack.c.h.b16 %v438
          %v737 = vunpack.c.l.b16 %v439
          %v738 = vunpack.c.h.b16 %v439
          %v739 = vunpack.c.l.b16 %v440
          %v740 = vunpack.c.h.b16 %v440
          %v741 = vunpack.c.l.b16 %v441
          %v742 = vunpack.c.h.b16 %v441
          %v743 = vunpack.c.l.b16 %v442
          %v744 = vunpack.c.h.b16 %v442
          %v745 = vunpack.c.l.b16 %v443
          %v746 = vunpack.c.h.b16 %v443
          %v747 = vunpack.c.l.b16 %v444
          %v748 = vunpack.c.h.b16 %v444
          %v749 = vunpack.c.l.b16 %v445
          %v750 = vunpack.c.h.b16 %v445
          %v751 = vunpack.c.l.b16 %v446
          %v752 = vunpack.c.h.b16 %v446
          %v753 = vunpack.c.l.b16 %v447
          %v754 = vunpack.c.h.b16 %v447
          %v755 = vunpack.c.l.b16 %v448
          %v756 = vunpack.c.h.b16 %v448
          %v757 = vunpack.c.l.b16 %v449
          %v758 = vunpack.c.h.b16 %v449
          %v759 = vunpack.c.l.b16 %v450
          %v760 = vunpack.c.h.b16 %v450
          %v761 = vunpack.c.l.b16 %v451
          %v762 = vunpack.c.h.b16 %v451
          %v763 = vunpack.c.l.b16 %v452
          %v764 = vunpack.c.h.b16 %v452
          %v765 = vunpack.c.l.b16 %v453
          %v766 = vunpack.c.h.b16 %v453
          %v767 = vunpack.c.l.b16 %v454
          %v768 = vunpack.c.h.b16 %v454
          %v769 = vunpack.c.l.b16 %v455
          %v770 = vunpack.c.h.b16 %v455
          %v771 = vunpack.c.l.b16 %v456
          %v772 = vunpack.c.h.b16 %v456
          %v773 = vunpack.c.l.b16 %v457
          %v774 = vunpack.c.h.b16 %v457
          %v775 = vunpack.c.l.b16 %v458
          %v776 = vunpack.c.h.b16 %v458
          %v777 = vunpack.c.l.b16 %v459
          %v778 = vunpack.c.h.b16 %v459
          %v779 = vunpack.c.l.b16 %v460
          %v780 = vunpack.c.h.b16 %v460
          %v781 = vunpack.c.l.b16 %v461
          %v782 = vunpack.c.h.b16 %v461
          %v783 = vunpack.c.l.b16 %v462
          %v784 = vunpack.c.h.b16 %v462
          %v785 = vunpack.c.l.b16 %v463
          %v786 = vunpack.c.h.b16 %v463
          %v787 = vunpack.c.l.b16 %v464
          %v788 = vunpack.c.h.b16 %v464
          %v789 = vunpack.c.l.b16 %v465
          %v790 = vunpack.c.h.b16 %v465
          %v791 = vunpack.c.l.b16 %v466
          %v792 = vunpack.c.h.b16 %v466
          %v793 = vunpack.c.l.b16 %v467
          %v794 = vunpack.c.h.b16 %v467
          %v795 = vunpack.c.l.b16 %v468
          %v796 = vunpack.c.h.b16 %v468
          %v797 = vunpack.c.l.b16 %v469
          %v798 = vunpack.c.h.b16 %v469
          %v799 = vunpack.c.l.b16 %v470
          %v800 = vunpack.c.h.b16 %v470
          %v801 = vunpack.c.l.b16 %v471
          %v802 = vunpack.c.h.b16 %v471
          %v803 = vunpack.c.l.b16 %v472
          %v804 = vunpack.c.h.b16 %v472
          %v805 = vunpack.c.l.b16 %v473
          %v806 = vunpack.c.h.b16 %v473
          %v807 = vunpack.c.l.b16 %v474
          %v808 = vunpack.c.h.b16 %v474
          %v809 = vunpack.c.l.b16 %v475
          %v810 = vunpack.c.h.b16 %v475
          %v811 = vunpack.c.l.b16 %v476
          %v812 = vunpack.c.h.b16 %v476
          %v813 = vunpack.c.l.b16 %v477
          %v814 = vunpack.c.h.b16 %v477
          %v815 = vunpack.c.l.b16 %v478
          %v816 = vunpack.c.h.b16 %v478
          %v817 = vunpack.c.l.b16 %v479
          %v818 = vunpack.c.h.b16 %v479
          %v819 = vunpack.c.l.b16 %v480
          %v820 = vunpack.c.h.b16 %v480
          %v821 = vunpack.c.l.b16 %v481
          %v822 = vunpack.c.h.b16 %v481
          %v823 = vunpack.c.l.b16 %v482
          %v824 = vunpack.c.h.b16 %v482
          %v825 = vunpack.c.l.b16 %v483
          %v826 = vunpack.c.h.b16 %v483
          %v827 = vunpack.c.l.b16 %v484
          %v828 = vunpack.c.h.b16 %v484
          %v829 = vunpack.c.l.b16 %v485
          %v830 = vunpack.c.h.b16 %v485
          %v831 = vunpack.c.l.b16 %v486
          %v832 = vunpack.c.h.b16 %v486
          %v833 = vunpack.c.l.b16 %v487
          %v834 = vunpack.c.h.b16 %v487
          %v835 = vunpack.c.l.b16 %v488
          %v836 = vunpack.c.h.b16 %v488
          %v837 = vunpack.c.l.b16 %v489
          %v838 = vunpack.c.h.b16 %v489
          %v839 = vunpack.c.l.b16 %v490
          %v840 = vunpack.c.h.b16 %v490
          %v841 = vunpack.c.l.b16 %v491
          %v842 = vunpack.c.h.b16 %v491
          %v843 = vunpack.c.l.b16 %v492
          %v844 = vunpack.c.h.b16 %v492
          %v845 = vunpack.c.l.b16 %v493
          %v846 = vunpack.c.h.b16 %v493
          %v847 = vunpack.c.l.b16 %v494
          %v848 = vunpack.c.h.b16 %v494
          %v849 = vunpack.c.l.b16 %v495
          %v850 = vunpack.c.h.b16 %v495
          %v851 = vunpack.c.l.b16 %v496
          %v852 = vunpack.c.h.b16 %v496
          %v853 = vunpack.c.l.b16 %v497
          %v854 = vunpack.c.h.b16 %v497
          %v855 = vunpack.c.l.b16 %v498
          %v856 = vunpack.c.h.b16 %v498
          %v857 = vunpack.c.l.b16 %v499
          %v858 = vunpack.c.h.b16 %v499
          %v859 = vunpack.c.l.b16 %v500
          %v860 = vunpack.c.h.b16 %v500
          %v861 = vunpack.c.l.b16 %v501
          %v862 = vunpack.c.h.b16 %v501
          %v863 = vunpack.c.l.b16 %v502
          %v864 = vunpack.c.h.b16 %v502
          %v865 = vunpack.c.l.b16 %v503
          %v866 = vunpack.c.h.b16 %v503
          %v867 = vunpack.c.l.b16 %v504
          %v868 = vunpack.c.h.b16 %v504
          %v869 = vunpack.c.l.b16 %v505
          %v870 = vunpack.c.h.b16 %v505
          %v871 = vunpack.c.l.b16 %v506
          %v872 = vunpack.c.h.b16 %v506
          %v873 = vunpack.c.l.b16 %v507
          %v874 = vunpack.c.h.b16 %v507
          %v875 = vunpack.c.l.b16 %v508
          %v876 = vunpack.c.h.b16 %v508
          %v877 = vunpack.c.l.b16 %v509
          %v878 = vunpack.c.h.b16 %v509
          %v879 = vunpack.c.l.b16 %v510
          %v880 = vunpack.c.h.b16 %v510
          %v881 = vunpack.c.l.b16 %v511
          %v882 = vunpack.c.h.b16 %v511
          %v883 = vunpack.c.l.b16 %v512
          %v884 = vunpack.c.h.b16 %v512
          %v885 = vunpack.c.l.b16 %v513
          %v886 = vunpack.c.h.b16 %v513
          %v887 = vunpack.c.l.b16 %v514
          %v888 = vunpack.c.h.b16 %v514
          %v889 = vunpack.c.l.b16 %v515
          %v890 = vunpack.c.h.b16 %v515
          %v891 = vunpack.c.l.b16 %v516
          %v892 = vunpack.c.h.b16 %v516
          %v893 = vunpack.c.l.b16 %v517
          %v894 = vunpack.c.h.b16 %v517
          %v895 = vunpack.c.l.b16 %v518
          %v896 = vunpack.c.h.b16 %v518
          %v897 = vunpack.c.l.b16 %v519
          %v898 = vunpack.c.h.b16 %v519
          %v899 = vunpack.c.l.b16 %v520
          %v900 = vunpack.c.h.b16 %v520
          %v901 = vunpack.c.l.b16 %v521
          %v902 = vunpack.c.h.b16 %v521
          %v903 = vunpack.c.l.b16 %v522
          %v904 = vunpack.c.h.b16 %v522
          %v905 = vunpack.c.l.b16 %v523
          %v906 = vunpack.c.h.b16 %v523
          %v907 = vunpack.c.l.b16 %v524
          %v908 = vunpack.c.h.b16 %v524
          %v909 = vunpack.c.l.b16 %v525
          %v910 = vunpack.c.h.b16 %v525
          %v911 = vunpack.c.l.b16 %v526
          %v912 = vunpack.c.h.b16 %v526
          %v913 = vunpack.c.l.b16 %v527
          %v914 = vunpack.c.h.b16 %v527
          %v915 = vunpack.c.l.b16 %v528
          %v916 = vunpack.c.h.b16 %v528
          %v917 = vunpack.c.l.b16 %v529
          %v918 = vunpack.c.h.b16 %v529
          %v919 = vunpack.c.l.b16 %v530
          %v920 = vunpack.c.h.b16 %v530
          %v921 = vunpack.c.l.b16 %v531
          %v922 = vunpack.c.h.b16 %v531
          %v923 = vunpack.c.l.b16 %v532
          %v924 = vunpack.c.h.b16 %v532
          %v925 = vunpack.c.l.b16 %v533
          %v926 = vunpack.c.h.b16 %v533
          %v927 = vunpack.c.l.b16 %v534
          %v928 = vunpack.c.h.b16 %v534
          %v929 = vunpack.c.l.b16 %v535
          %v930 = vunpack.c.h.b16 %v535
          %v931 = vunpack.c.l.b16 %v536
          %v932 = vunpack.c.h.b16 %v536
          %v933 = vunpack.c.l.b16 %v537
          %v934 = vunpack.c.h.b16 %v537
          %v935 = vunpack.c.l.b16 %v538
          %v936 = vunpack.c.h.b16 %v538
          %v937 = vunpack.c.l.b16 %v539
          %v938 = vunpack.c.h.b16 %v539
          %v939 = vunpack.c.l.b16 %v540
          %v940 = vunpack.c.h.b16 %v540
          %v941 = vunpack.c.l.b16 %v541
          %v942 = vunpack.c.h.b16 %v541
          %v943 = vunpack.c.l.b16 %v542
          %v944 = vunpack.c.h.b16 %v542
          %v945 = vunpack.c.l.b16 %v543
          %v946 = vunpack.c.h.b16 %v543
          %v947 = vunpack.c.l.b16 %v544
          %v948 = vunpack.c.h.b16 %v544
          %v949 = vunpack.c.l.b16 %v545
          %v950 = vunpack.c.h.b16 %v545
          %v951 = vunpack.c.l.b16 %v546
          %v952 = vunpack.c.h.b16 %v546
          %v953 = vunpack.c.l.b16 %v547
          %v954 = vunpack.c.h.b16 %v547
          %v955 = vunpack.c.l.b16 %v548
          %v956 = vunpack.c.h.b16 %v548
          %v957 = vunpack.c.l.b16 %v549
          %v958 = vunpack.c.h.b16 %v549
          %v959 = vunpack.c.l.b16 %v550
          %v960 = vunpack.c.h.b16 %v550
          %v961 = vunpack.c.l.b16 %v551
          %v962 = vunpack.c.h.b16 %v551
          %v963 = vunpack.c.l.b16 %v552
          %v964 = vunpack.c.h.b16 %v552
          %v965 = vunpack.c.l.b16 %v553
          %v966 = vunpack.c.h.b16 %v553
          %v967 = vunpack.c.l.b16 %v554
          %v968 = vunpack.c.h.b16 %v554
          %v969 = vunpack.c.l.b16 %v555
          %v970 = vunpack.c.h.b16 %v555
          %v971 = vunpack.c.l.b16 %v556
          %v972 = vunpack.c.h.b16 %v556
          %v973 = vunpack.c.l.b16 %v557
          %v974 = vunpack.c.h.b16 %v557
          %v975 = vunpack.c.l.b16 %v558
          %v976 = vunpack.c.h.b16 %v558
          %v977 = vunpack.c.l.b16 %v559
          %v978 = vunpack.c.h.b16 %v559
          %v979 = vunpack.c.l.b16 %v560
          %v980 = vunpack.c.h.b16 %v560
          %v981 = vpack.c.b16 %v729, %v725
          %v982 = vpack.c.b16 %v730, %v726
          %v983 = vpack.c.b16 %v731, %v727
          %v984 = vpack.c.b16 %v732, %v728
          %v985 = vpack.c.b16 %v737, %v733
          %v986 = vpack.c.b16 %v738, %v734
          %v987 = vpack.c.b16 %v739, %v735
          %v988 = vpack.c.b16 %v740, %v736
          %v989 = vpack.c.b16 %v745, %v741
          %v990 = vpack.c.b16 %v746, %v742
          %v991 = vpack.c.b16 %v747, %v743
          %v992 = vpack.c.b16 %v748, %v744
          %v993 = vpack.c.b16 %v753, %v749
          %v994 = vpack.c.b16 %v754, %v750
          %v995 = vpack.c.b16 %v755, %v751
          %v996 = vpack.c.b16 %v756, %v752
          %v997 = vpack.c.b16 %v761, %v757
          %v998 = vpack.c.b16 %v762, %v758
          %v999 = vpack.c.b16 %v763, %v759
          %v1000 = vpack.c.b16 %v764, %v760
          %v1001 = vpack.c.b16 %v769, %v765
          %v1002 = vpack.c.b16 %v770, %v766
          %v1003 = vpack.c.b16 %v771, %v767
          %v1004 = vpack.c.b16 %v772, %v768
          %v1005 = vpack.c.b16 %v777, %v773
          %v1006 = vpack.c.b16 %v778, %v774
          %v1007 = vpack.c.b16 %v779, %v775
          %v1008 = vpack.c.b16 %v780, %v776
          %v1009 = vpack.c.b16 %v785, %v781
          %v1010 = vpack.c.b16 %v786, %v782
          %v1011 = vpack.c.b16 %v787, %v783
          %v1012 = vpack.c.b16 %v788, %v784
          %v1013 = vpack.c.b16 %v793, %v789
          %v1014 = vpack.c.b16 %v794, %v790
          %v1015 = vpack.c.b16 %v795, %v791
          %v1016 = vpack.c.b16 %v796, %v792
          %v1017 = vpack.c.b16 %v801, %v797
          %v1018 = vpack.c.b16 %v802, %v798
          %v1019 = vpack.c.b16 %v803, %v799
          %v1020 = vpack.c.b16 %v804, %v800
          %v1021 = vpack.c.b16 %v809, %v805
          %v1022 = vpack.c.b16 %v810, %v806
          %v1023 = vpack.c.b16 %v811, %v807
          %v1024 = vpack.c.b16 %v812, %v808
          %v1025 = vpack.c.b16 %v817, %v813
          %v1026 = vpack.c.b16 %v818, %v814
          %v1027 = vpack.c.b16 %v819, %v815
          %v1028 = vpack.c.b16 %v820, %v816
          %v1029 = vpack.c.b16 %v825, %v821
          %v1030 = vpack.c.b16 %v826, %v822
          %v1031 = vpack.c.b16 %v827, %v823
          %v1032 = vpack.c.b16 %v828, %v824
          %v1033 = vpack.c.b16 %v833, %v829
          %v1034 = vpack.c.b16 %v834, %v830
          %v1035 = vpack.c.b16 %v835, %v831
          %v1036 = vpack.c.b16 %v836, %v832
          %v1037 = vpack.c.b16 %v841, %v837
          %v1038 = vpack.c.b16 %v842, %v838
          %v1039 = vpack.c.b16 %v843, %v839
          %v1040 = vpack.c.b16 %v844, %v840
          %v1041 = vpack.c.b16 %v849, %v845
          %v1042 = vpack.c.b16 %v850, %v846
          %v1043 = vpack.c.b16 %v851, %v847
          %v1044 = vpack.c.b16 %v852, %v848
          %v1045 = vpack.c.b16 %v857, %v853
          %v1046 = vpack.c.b16 %v858, %v854
          %v1047 = vpack.c.b16 %v859, %v855
          %v1048 = vpack.c.b16 %v860, %v856
          %v1049 = vpack.c.b16 %v865, %v861
          %v1050 = vpack.c.b16 %v866, %v862
          %v1051 = vpack.c.b16 %v867, %v863
          %v1052 = vpack.c.b16 %v868, %v864
          %v1053 = vpack.c.b16 %v873, %v869
          %v1054 = vpack.c.b16 %v874, %v870
          %v1055 = vpack.c.b16 %v875, %v871
          %v1056 = vpack.c.b16 %v876, %v872
          %v1057 = vpack.c.b16 %v881, %v877
          %v1058 = vpack.c.b16 %v882, %v878
          %v1059 = vpack.c.b16 %v883, %v879
          %v1060 = vpack.c.b16 %v884, %v880
          %v1061 = vpack.c.b16 %v889, %v885
          %v1062 = vpack.c.b16 %v890, %v886
          %v1063 = vpack.c.b16 %v891, %v887
          %v1064 = vpack.c.b16 %v892, %v888
          %v1065 = vpack.c.b16 %v897, %v893
          %v1066 = vpack.c.b16 %v898, %v894
          %v1067 = vpack.c.b16 %v899, %v895
          %v1068 = vpack.c.b16 %v900, %v896
          %v1069 = vpack.c.b16 %v905, %v901
          %v1070 = vpack.c.b16 %v906, %v902
          %v1071 = vpack.c.b16 %v907, %v903
          %v1072 = vpack.c.b16 %v908, %v904
          %v1073 = vpack.c.b16 %v913, %v909
          %v1074 = vpack.c.b16 %v914, %v910
          %v1075 = vpack.c.b16 %v915, %v911
          %v1076 = vpack.c.b16 %v916, %v912
          %v1077 = vpack.c.b16 %v921, %v917
          %v1078 = vpack.c.b16 %v922, %v918
          %v1079 = vpack.c.b16 %v923, %v919
          %v1080 = vpack.c.b16 %v924, %v920
          %v1081 = vpack.c.b16 %v929, %v925
          %v1082 = vpack.c.b16 %v930, %v926
          %v1083 = vpack.c.b16 %v931, %v927
          %v1084 = vpack.c.b16 %v932, %v928
          %v1085 = vpack.c.b16 %v937, %v933
          %v1086 = vpack.c.b16 %v938, %v934
          %v1087 = vpack.c.b16 %v939, %v935
          %v1088 = vpack.c.b16 %v940, %v936
          %v1089 = vpack.c.b16 %v945, %v941
          %v1090 = vpack.c.b16 %v946, %v942
          %v1091 = vpack.c.b16 %v947, %v943
          %v1092 = vpack.c.b16 %v948, %v944
          %v1093 = vpack.c.b16 %v953, %v949
          %v1094 = vpack.c.b16 %v954, %v950
          %v1095 = vpack.c.b16 %v955, %v951
          %v1096 = vpack.c.b16 %v956, %v952
          %v1097 = vpack.c.b16 %v961, %v957
          %v1098 = vpack.c.b16 %v962, %v958
          %v1099 = vpack.c.b16 %v963, %v959
          %v1100 = vpack.c.b16 %v964, %v960
          %v1101 = vpack.c.b16 %v969, %v965
          %v1102 = vpack.c.b16 %v970, %v966
          %v1103 = vpack.c.b16 %v971, %v967
          %v1104 = vpack.c.b16 %v972, %v968
          %v1105 = vpack.c.b16 %v977, %v973
          %v1106 = vpack.c.b16 %v978, %v974
          %v1107 = vpack.c.b16 %v979, %v975
          %v1108 = vpack.c.b16 %v980, %v976
          %1237 = vmatprep.subr.bf16.mxu0 %v1010
          %1238 = vmatpush1.bf16.msra.mxu0 %v1009
          %1239 = vmatprep.subr.bf16.mxu0 %v1006
          %1240 = vmatpush1.bf16.msra.mxu0 %v1005
          %1241 = vmatprep.subr.bf16.mxu0 %v1002
          %1242 = vmatpush1.bf16.msra.mxu0 %v1001
          %1243 = vmatprep.subr.bf16.mxu0 %v998
          %1244 = vmatpush1.bf16.msra.mxu0 %v997
          %1245 = vmatprep.subr.bf16.mxu0 %v994
          %1246 = vmatpush1.bf16.msra.mxu0 %v993
          %1247 = vmatprep.subr.bf16.mxu0 %v990
          %1248 = vmatpush1.bf16.msra.mxu0 %v989
          %1249 = vmatprep.subr.bf16.mxu0 %v986
          %1250 = vmatpush1.bf16.msra.mxu0 %v985
          %1251 = vmatprep.subr.bf16.mxu0 %v982
          %1252 = vmatpush1.bf16.msra.mxu0 %v981
          %1253 = vmatprep.subr.bf16.mxu0 %v1042
          %1254 = vmatpush2.bf16.msra.mxu0 %v1041
          %1255 = vmatprep.subr.bf16.mxu0 %v1038
          %1256 = vmatpush2.bf16.msra.mxu0 %v1037
          %1257 = vmatprep.subr.bf16.mxu0 %v1034
          %1258 = vmatpush2.bf16.msra.mxu0 %v1033
          %1259 = vmatprep.subr.bf16.mxu0 %v1030
          %1260 = vmatpush2.bf16.msra.mxu0 %v1029
          %1261 = vmatprep.subr.bf16.mxu0 %v1026
          %1262 = vmatpush2.bf16.msra.mxu0 %v1025
          %1263 = vmatprep.subr.bf16.mxu0 %v1022
          %1264 = vmatpush2.bf16.msra.mxu0 %v1021
          %1265 = vmatprep.subr.bf16.mxu0 %v1018
          %1266 = vmatpush2.bf16.msra.mxu0 %v1017
          %1267 = vmatprep.subr.bf16.mxu0 %v1014
          %1268 = vmatpush2.bf16.msra.mxu0 %v1013
          %1269 = vmatprep.mubr.bf16.mxu0 %v590
          %1270 = vmatmul.mubr.bf16.gmra.mxu0 %v589
          %v1271 = vpop.f32.mrf.mxu0
          %v1272 = vadd.f32 %v566, %v1271
          %v1273 = vpop.f32.mrf.mxu0
          %v1274 = vadd.f32 %v570, %v1273
          %v1275 = vpop.f32.mrf.mxu0
          %v1276 = vpop.f32.mrf.mxu0
          %1277 = vdwg.mxu0
          %1278 = vmatprep.subr.bf16.mxu0 %v1074
          %1279 = vmatpush1.bf16.msra.mxu0 %v1073
          %1280 = vmatprep.subr.bf16.mxu0 %v1070
          %1281 = vmatpush1.bf16.msra.mxu0 %v1069
          %1282 = vmatprep.subr.bf16.mxu0 %v1066
          %1283 = vmatpush1.bf16.msra.mxu0 %v1065
          %1284 = vmatprep.subr.bf16.mxu0 %v1062
          %1285 = vmatpush1.bf16.msra.mxu0 %v1061
          %1286 = vmatprep.subr.bf16.mxu0 %v1058
          %1287 = vmatpush1.bf16.msra.mxu0 %v1057
          %1288 = vmatprep.subr.bf16.mxu0 %v1054
          %1289 = vmatpush1.bf16.msra.mxu0 %v1053
          %1290 = vmatprep.subr.bf16.mxu0 %v1050
          %1291 = vmatpush1.bf16.msra.mxu0 %v1049
          %1292 = vmatprep.subr.bf16.mxu0 %v1046
          %1293 = vmatpush1.bf16.msra.mxu0 %v1045
          %1294 = vmatprep.subr.bf16.mxu0 %v1106
          %1295 = vmatpush2.bf16.msra.mxu0 %v1105
          %1296 = vmatprep.subr.bf16.mxu0 %v1102
          %1297 = vmatpush2.bf16.msra.mxu0 %v1101
          %1298 = vmatprep.subr.bf16.mxu0 %v1098
          %1299 = vmatpush2.bf16.msra.mxu0 %v1097
          %1300 = vmatprep.subr.bf16.mxu0 %v1094
          %1301 = vmatpush2.bf16.msra.mxu0 %v1093
          %1302 = vmatprep.subr.bf16.mxu0 %v1090
          %1303 = vmatpush2.bf16.msra.mxu0 %v1089
          %1304 = vmatprep.subr.bf16.mxu0 %v1086
          %1305 = vmatpush2.bf16.msra.mxu0 %v1085
          %1306 = vmatprep.subr.bf16.mxu0 %v1082
          %1307 = vmatpush2.bf16.msra.mxu0 %v1081
          %1308 = vmatprep.subr.bf16.mxu0 %v1078
          %1309 = vmatpush2.bf16.msra.mxu0 %v1077
          %1310 = vmatprep.mubr.bf16.mxu0 %v592
          %1311 = vmatmul.mubr.bf16.gmra.mxu0 %v591
          %v1312 = vpop.f32.mrf.mxu0
          %v1313 = vadd.f32 %v1272, %v1312
          %v1314 = vpop.f32.mrf.mxu0
          %v1315 = vadd.f32 %v1274, %v1314
          %v1316 = vpop.f32.mrf.mxu0
          %v1317 = vpop.f32.mrf.mxu0
          %1318 = vdwg.mxu0
          %1319 = vmatprep.subr.bf16.mxu0 %v1012
          %1320 = vmatpush1.bf16.msra.mxu0 %v1011
          %1321 = vmatprep.subr.bf16.mxu0 %v1008
          %1322 = vmatpush1.bf16.msra.mxu0 %v1007
          %1323 = vmatprep.subr.bf16.mxu0 %v1004
          %1324 = vmatpush1.bf16.msra.mxu0 %v1003
          %1325 = vmatprep.subr.bf16.mxu0 %v1000
          %1326 = vmatpush1.bf16.msra.mxu0 %v999
          %1327 = vmatprep.subr.bf16.mxu0 %v996
          %1328 = vmatpush1.bf16.msra.mxu0 %v995
          %1329 = vmatprep.subr.bf16.mxu0 %v992
          %1330 = vmatpush1.bf16.msra.mxu0 %v991
          %1331 = vmatprep.subr.bf16.mxu0 %v988
          %1332 = vmatpush1.bf16.msra.mxu0 %v987
          %1333 = vmatprep.subr.bf16.mxu0 %v984
          %1334 = vmatpush1.bf16.msra.mxu0 %v983
          %1335 = vmatprep.subr.bf16.mxu0 %v1044
          %1336 = vmatpush2.bf16.msra.mxu0 %v1043
          %1337 = vmatprep.subr.bf16.mxu0 %v1040
          %1338 = vmatpush2.bf16.msra.mxu0 %v1039
          %1339 = vmatprep.subr.bf16.mxu0 %v1036
          %1340 = vmatpush2.bf16.msra.mxu0 %v1035
          %1341 = vmatprep.subr.bf16.mxu0 %v1032
          %1342 = vmatpush2.bf16.msra.mxu0 %v1031
          %1343 = vmatprep.subr.bf16.mxu0 %v1028
          %1344 = vmatpush2.bf16.msra.mxu0 %v1027
          %1345 = vmatprep.subr.bf16.mxu0 %v1024
          %1346 = vmatpush2.bf16.msra.mxu0 %v1023
          %1347 = vmatprep.subr.bf16.mxu0 %v1020
          %1348 = vmatpush2.bf16.msra.mxu0 %v1019
          %1349 = vmatprep.subr.bf16.mxu0 %v1016
          %1350 = vmatpush2.bf16.msra.mxu0 %v1015
          %1351 = vmatprep.mubr.bf16.mxu0 %v590
          %1352 = vmatmul.mubr.bf16.gmra.mxu0 %v589
          %v1353 = vpop.f32.mrf.mxu0
          %v1354 = vadd.f32 %v574, %v1353
          %v1355 = vpop.f32.mrf.mxu0
          %v1356 = vadd.f32 %v578, %v1355
          %v1357 = vpop.f32.mrf.mxu0
          %v1358 = vpop.f32.mrf.mxu0
          %1359 = vdwg.mxu0
          %1360 = vmatprep.subr.bf16.mxu0 %v1076
          %1361 = vmatpush1.bf16.msra.mxu0 %v1075
          %1362 = vmatprep.subr.bf16.mxu0 %v1072
          %1363 = vmatpush1.bf16.msra.mxu0 %v1071
          %1364 = vmatprep.subr.bf16.mxu0 %v1068
          %1365 = vmatpush1.bf16.msra.mxu0 %v1067
          %1366 = vmatprep.subr.bf16.mxu0 %v1064
          %1367 = vmatpush1.bf16.msra.mxu0 %v1063
          %1368 = vmatprep.subr.bf16.mxu0 %v1060
          %1369 = vmatpush1.bf16.msra.mxu0 %v1059
          %1370 = vmatprep.subr.bf16.mxu0 %v1056
          %1371 = vmatpush1.bf16.msra.mxu0 %v1055
          %1372 = vmatprep.subr.bf16.mxu0 %v1052
          %1373 = vmatpush1.bf16.msra.mxu0 %v1051
          %1374 = vmatprep.subr.bf16.mxu0 %v1048
          %1375 = vmatpush1.bf16.msra.mxu0 %v1047
          %1376 = vmatprep.subr.bf16.mxu0 %v1108
          %1377 = vmatpush2.bf16.msra.mxu0 %v1107
          %1378 = vmatprep.subr.bf16.mxu0 %v1104
          %1379 = vmatpush2.bf16.msra.mxu0 %v1103
          %1380 = vmatprep.subr.bf16.mxu0 %v1100
          %1381 = vmatpush2.bf16.msra.mxu0 %v1099
          %1382 = vmatprep.subr.bf16.mxu0 %v1096
          %1383 = vmatpush2.bf16.msra.mxu0 %v1095
          %1384 = vmatprep.subr.bf16.mxu0 %v1092
          %1385 = vmatpush2.bf16.msra.mxu0 %v1091
          %1386 = vmatprep.subr.bf16.mxu0 %v1088
          %1387 = vmatpush2.bf16.msra.mxu0 %v1087
          %1388 = vmatprep.subr.bf16.mxu0 %v1084
          %1389 = vmatpush2.bf16.msra.mxu0 %v1083
          %1390 = vmatprep.subr.bf16.mxu0 %v1080
          %1391 = vmatpush2.bf16.msra.mxu0 %v1079
          %1392 = vmatprep.mubr.bf16.mxu0 %v592
          %1393 = vmatmul.mubr.bf16.gmra.mxu0 %v591
          %v1394 = vpop.f32.mrf.mxu0
          %v1395 = vadd.f32 %v1354, %v1394
          %v1396 = vpop.f32.mrf.mxu0
          %v1397 = vadd.f32 %v1356, %v1396
          %v1398 = vpop.f32.mrf.mxu0
          %v1399 = vpop.f32.mrf.mxu0
          %1400 = vdwg.mxu0
          %1401 = vst [vmem:[#allocation2] sm:$0xff] %v1313
          %1402 = vst [vmem:[#allocation2 + $0x8] sm:$0xff] %v1315
          %1403 = vst [vmem:[#allocation2 + $0x10] sm:$0xff] %v1395
          %1404 = vst [vmem:[#allocation2 + $0x18] sm:$0xff] %v1397
        $region80: #{gearnet_forward.8} parent=51 // pred_fallthru
          _
        %v1405 = vld [vmem:[%s358] sm:$0xf]
        %v1406 = vld [vmem:[%s1] sm:$0xff]
        %v1407 = vld [vmem:[%s1 + $0x8] sm:$0xff]
        %v1408 = vld [vmem:[%s1 + $0x10] sm:$0xff]
        %v1409 = vld [vmem:[%s1 + $0x18] sm:$0xff]
        %v1414 = vunpack.c.l.b16 %v1406
        %v1415 = vunpack.c.h.b16 %v1406
        %v1416 = vunpack.c.l.b16 %v1407
        %v1417 = vunpack.c.h.b16 %v1407
        %v1418 = vunpack.c.l.b16 %v1408
        %v1419 = vunpack.c.h.b16 %v1408
        %v1420 = vunpack.c.l.b16 %v1409
        %v1421 = vunpack.c.h.b16 %v1409
        %v1422 = vpack.c.b16 %v1418, %v1414
        %v1423 = vpack.c.b16 %v1419, %v1415
        %v1424 = vpack.c.b16 %v1420, %v1416
        %v1425 = vpack.c.b16 %v1421, %v1417
        %vm1430 = vcmask 130048
        %v1432 = vsel %vm1430, %v1405, 0
        %1434 = vmatprep.subr.bf16.mxu0 0
        %1435 = vmatpush1.bf16.msra.mxu0 0
        %1436 = vmatprep.subr.bf16.mxu0 0
        %1437 = vmatpush1.bf16.msra.mxu0 0
        %1438 = vmatprep.subr.bf16.mxu0 0
        %1439 = vmatpush1.bf16.msra.mxu0 0
        %1440 = vmatprep.subr.bf16.mxu0 0
        %1441 = vmatpush1.bf16.msra.mxu0 0
        %1442 = vmatprep.subr.bf16.mxu0 0
        %1443 = vmatpush1.bf16.msra.mxu0 0
        %1444 = vmatprep.subr.bf16.mxu0 0
        %1445 = vmatpush1.bf16.msra.mxu0 0
        %1446 = vmatprep.subr.bf16.mxu0 0
        %1447 = vmatpush1.bf16.msra.mxu0 0
        %1448 = vmatprep.subr.bf16.mxu0 %v1423
        %1449 = vmatpush1.bf16.msra.mxu0 %v1422
        %1450 = vmatprep.subr.bf16.mxu0 0
        %1451 = vmatpush2.bf16.msra.mxu0 0
        %1452 = vmatprep.subr.bf16.mxu0 0
        %1453 = vmatpush2.bf16.msra.mxu0 0
        %1454 = vmatprep.subr.bf16.mxu0 0
        %1455 = vmatpush2.bf16.msra.mxu0 0
        %1456 = vmatprep.subr.bf16.mxu0 0
        %1457 = vmatpush2.bf16.msra.mxu0 0
        %1458 = vmatprep.subr.bf16.mxu0 0
        %1459 = vmatpush2.bf16.msra.mxu0 0
        %1460 = vmatprep.subr.bf16.mxu0 0
        %1461 = vmatpush2.bf16.msra.mxu0 0
        %1462 = vmatprep.subr.bf16.mxu0 0
        %1463 = vmatpush2.bf16.msra.mxu0 0
        %1464 = vmatprep.subr.bf16.mxu0 0
        %1465 = vmatpush2.bf16.msra.mxu0 0
        %1466 = vmatprep.mubr.bf16.mxu0 0
        %1467 = vmatmul.mubr.bf16.gmra.mxu0 %v1432
        %v1468 = vpop.f32.mrf.mxu0
        %v1469 = vadd.f32 0.0, %v1468
        %v1470 = vpop.f32.mrf.mxu0
        %v1471 = vadd.f32 0.0, %v1470
        %v1472 = vpop.f32.mrf.mxu0
        %v1473 = vpop.f32.mrf.mxu0
        %1474 = vdwg.mxu0
        %1475 = vmatprep.subr.bf16.mxu0 0
        %1476 = vmatpush1.bf16.msra.mxu0 0
        %1477 = vmatprep.subr.bf16.mxu0 0
        %1478 = vmatpush1.bf16.msra.mxu0 0
        %1479 = vmatprep.subr.bf16.mxu0 0
        %1480 = vmatpush1.bf16.msra.mxu0 0
        %1481 = vmatprep.subr.bf16.mxu0 0
        %1482 = vmatpush1.bf16.msra.mxu0 0
        %1483 = vmatprep.subr.bf16.mxu0 0
        %1484 = vmatpush1.bf16.msra.mxu0 0
        %1485 = vmatprep.subr.bf16.mxu0 0
        %1486 = vmatpush1.bf16.msra.mxu0 0
        %1487 = vmatprep.subr.bf16.mxu0 0
        %1488 = vmatpush1.bf16.msra.mxu0 0
        %1489 = vmatprep.subr.bf16.mxu0 %v1425
        %1490 = vmatpush1.bf16.msra.mxu0 %v1424
        %1491 = vmatprep.subr.bf16.mxu0 0
        %1492 = vmatpush2.bf16.msra.mxu0 0
        %1493 = vmatprep.subr.bf16.mxu0 0
        %1494 = vmatpush2.bf16.msra.mxu0 0
        %1495 = vmatprep.subr.bf16.mxu0 0
        %1496 = vmatpush2.bf16.msra.mxu0 0
        %1497 = vmatprep.subr.bf16.mxu0 0
        %1498 = vmatpush2.bf16.msra.mxu0 0
        %1499 = vmatprep.subr.bf16.mxu0 0
        %1500 = vmatpush2.bf16.msra.mxu0 0
        %1501 = vmatprep.subr.bf16.mxu0 0
        %1502 = vmatpush2.bf16.msra.mxu0 0
        %1503 = vmatprep.subr.bf16.mxu0 0
        %1504 = vmatpush2.bf16.msra.mxu0 0
        %1505 = vmatprep.subr.bf16.mxu0 0
        %1506 = vmatpush2.bf16.msra.mxu0 0
        %1507 = vmatprep.mubr.bf16.mxu0 0
        %1508 = vmatmul.mubr.bf16.gmra.mxu0 %v1432
        %v1509 = vpop.f32.mrf.mxu0
        %v1510 = vadd.f32 0.0, %v1509
        %v1511 = vpop.f32.mrf.mxu0
        %v1512 = vadd.f32 0.0, %v1511
        %v1513 = vpop.f32.mrf.mxu0
        %v1514 = vpop.f32.mrf.mxu0
        %1515 = vdwg.mxu0
        %v1516 = vld [vmem:[#allocation2] sm:$0xff]
        %v1517 = vld [vmem:[#allocation2 + $0x8] sm:$0xff]
        %v1518 = vld [vmem:[#allocation2 + $0x10] sm:$0xff]
        %v1519 = vld [vmem:[#allocation2 + $0x18] sm:$0xff]
        %v1520 = vpack.c.bf16 %v1469, %v1469
        %v1521 = vpack.c.bf16 %v1471, %v1471
        %v1522 = vpack.c.bf16 %v1510, %v1510
        %v1523 = vpack.c.bf16 %v1512, %v1512
        %s1524 = smul.u32 %s30, 256
        %s1525 = smul.addr %s1524, 4
        %s1526 = scalar_lea.vmem [#allocation5], %s1525
        %v1527 = vld [vmem:[%s1526] sm:$0xff]
        %v1528 = vld [vmem:[%s1526 + $0x8] sm:$0xff]
        %v1529 = vld [vmem:[%s1526 + $0x10] sm:$0xff]
        %v1530 = vld [vmem:[%s1526 + $0x18] sm:$0xff]
        %v1531 = vld [vmem:[%s1526 + $0x20] sm:$0xff]
        %v1532 = vld [vmem:[%s1526 + $0x28] sm:$0xff]
        %v1533 = vld [vmem:[%s1526 + $0x30] sm:$0xff]
        %v1534 = vld [vmem:[%s1526 + $0x38] sm:$0xff]
        %v1535 = vld [vmem:[%s1526 + $0x40] sm:$0xff]
        %v1536 = vld [vmem:[%s1526 + $0x48] sm:$0xff]
        %v1537 = vld [vmem:[%s1526 + $0x50] sm:$0xff]
        %v1538 = vld [vmem:[%s1526 + $0x58] sm:$0xff]
        %v1539 = vld [vmem:[%s1526 + $0x60] sm:$0xff]
        %v1540 = vld [vmem:[%s1526 + $0x68] sm:$0xff]
        %v1541 = vld [vmem:[%s1526 + $0x70] sm:$0xff]
        %v1542 = vld [vmem:[%s1526 + $0x78] sm:$0xff]
        %v1543 = vld [vmem:[%s1526 + $0x80] sm:$0xff]
        %v1544 = vld [vmem:[%s1526 + $0x88] sm:$0xff]
        %v1545 = vld [vmem:[%s1526 + $0x90] sm:$0xff]
        %v1546 = vld [vmem:[%s1526 + $0x98] sm:$0xff]
        %v1547 = vld [vmem:[%s1526 + $0xa0] sm:$0xff]
        %v1548 = vld [vmem:[%s1526 + $0xa8] sm:$0xff]
        %v1549 = vld [vmem:[%s1526 + $0xb0] sm:$0xff]
        %v1550 = vld [vmem:[%s1526 + $0xb8] sm:$0xff]
        %v1551 = vld [vmem:[%s1526 + $0xc0] sm:$0xff]
        %v1552 = vld [vmem:[%s1526 + $0xc8] sm:$0xff]
        %v1553 = vld [vmem:[%s1526 + $0xd0] sm:$0xff]
        %v1554 = vld [vmem:[%s1526 + $0xd8] sm:$0xff]
        %v1555 = vld [vmem:[%s1526 + $0xe0] sm:$0xff]
        %v1556 = vld [vmem:[%s1526 + $0xe8] sm:$0xff]
        %v1557 = vld [vmem:[%s1526 + $0xf0] sm:$0xff]
        %v1558 = vld [vmem:[%s1526 + $0xf8] sm:$0xff]
        %v1559 = vld [vmem:[%s1526 + $0x100] sm:$0xff]
        %v1560 = vld [vmem:[%s1526 + $0x108] sm:$0xff]
        %v1561 = vld [vmem:[%s1526 + $0x110] sm:$0xff]
        %v1562 = vld [vmem:[%s1526 + $0x118] sm:$0xff]
        %v1563 = vld [vmem:[%s1526 + $0x120] sm:$0xff]
        %v1564 = vld [vmem:[%s1526 + $0x128] sm:$0xff]
        %v1565 = vld [vmem:[%s1526 + $0x130] sm:$0xff]
        %v1566 = vld [vmem:[%s1526 + $0x138] sm:$0xff]
        %v1567 = vld [vmem:[%s1526 + $0x140] sm:$0xff]
        %v1568 = vld [vmem:[%s1526 + $0x148] sm:$0xff]
        %v1569 = vld [vmem:[%s1526 + $0x150] sm:$0xff]
        %v1570 = vld [vmem:[%s1526 + $0x158] sm:$0xff]
        %v1571 = vld [vmem:[%s1526 + $0x160] sm:$0xff]
        %v1572 = vld [vmem:[%s1526 + $0x168] sm:$0xff]
        %v1573 = vld [vmem:[%s1526 + $0x170] sm:$0xff]
        %v1574 = vld [vmem:[%s1526 + $0x178] sm:$0xff]
        %v1575 = vld [vmem:[%s1526 + $0x180] sm:$0xff]
        %v1576 = vld [vmem:[%s1526 + $0x188] sm:$0xff]
        %v1577 = vld [vmem:[%s1526 + $0x190] sm:$0xff]
        %v1578 = vld [vmem:[%s1526 + $0x198] sm:$0xff]
        %v1579 = vld [vmem:[%s1526 + $0x1a0] sm:$0xff]
        %v1580 = vld [vmem:[%s1526 + $0x1a8] sm:$0xff]
        %v1581 = vld [vmem:[%s1526 + $0x1b0] sm:$0xff]
        %v1582 = vld [vmem:[%s1526 + $0x1b8] sm:$0xff]
        %v1583 = vld [vmem:[%s1526 + $0x1c0] sm:$0xff]
        %v1584 = vld [vmem:[%s1526 + $0x1c8] sm:$0xff]
        %v1585 = vld [vmem:[%s1526 + $0x1d0] sm:$0xff]
        %v1586 = vld [vmem:[%s1526 + $0x1d8] sm:$0xff]
        %v1587 = vld [vmem:[%s1526 + $0x1e0] sm:$0xff]
        %v1588 = vld [vmem:[%s1526 + $0x1e8] sm:$0xff]
        %v1589 = vld [vmem:[%s1526 + $0x1f0] sm:$0xff]
        %v1590 = vld [vmem:[%s1526 + $0x1f8] sm:$0xff]
        %v1591 = vld [vmem:[%s1526 + $0x200] sm:$0xff]
        %v1592 = vld [vmem:[%s1526 + $0x208] sm:$0xff]
        %v1593 = vld [vmem:[%s1526 + $0x210] sm:$0xff]
        %v1594 = vld [vmem:[%s1526 + $0x218] sm:$0xff]
        %v1595 = vld [vmem:[%s1526 + $0x220] sm:$0xff]
        %v1596 = vld [vmem:[%s1526 + $0x228] sm:$0xff]
        %v1597 = vld [vmem:[%s1526 + $0x230] sm:$0xff]
        %v1598 = vld [vmem:[%s1526 + $0x238] sm:$0xff]
        %v1599 = vld [vmem:[%s1526 + $0x240] sm:$0xff]
        %v1600 = vld [vmem:[%s1526 + $0x248] sm:$0xff]
        %v1601 = vld [vmem:[%s1526 + $0x250] sm:$0xff]
        %v1602 = vld [vmem:[%s1526 + $0x258] sm:$0xff]
        %v1603 = vld [vmem:[%s1526 + $0x260] sm:$0xff]
        %v1604 = vld [vmem:[%s1526 + $0x268] sm:$0xff]
        %v1605 = vld [vmem:[%s1526 + $0x270] sm:$0xff]
        %v1606 = vld [vmem:[%s1526 + $0x278] sm:$0xff]
        %v1607 = vld [vmem:[%s1526 + $0x280] sm:$0xff]
        %v1608 = vld [vmem:[%s1526 + $0x288] sm:$0xff]
        %v1609 = vld [vmem:[%s1526 + $0x290] sm:$0xff]
        %v1610 = vld [vmem:[%s1526 + $0x298] sm:$0xff]
        %v1611 = vld [vmem:[%s1526 + $0x2a0] sm:$0xff]
        %v1612 = vld [vmem:[%s1526 + $0x2a8] sm:$0xff]
        %v1613 = vld [vmem:[%s1526 + $0x2b0] sm:$0xff]
        %v1614 = vld [vmem:[%s1526 + $0x2b8] sm:$0xff]
        %v1615 = vld [vmem:[%s1526 + $0x2c0] sm:$0xff]
        %v1616 = vld [vmem:[%s1526 + $0x2c8] sm:$0xff]
        %v1617 = vld [vmem:[%s1526 + $0x2d0] sm:$0xff]
        %v1618 = vld [vmem:[%s1526 + $0x2d8] sm:$0xff]
        %v1619 = vld [vmem:[%s1526 + $0x2e0] sm:$0xff]
        %v1620 = vld [vmem:[%s1526 + $0x2e8] sm:$0xff]
        %v1621 = vld [vmem:[%s1526 + $0x2f0] sm:$0xff]
        %v1622 = vld [vmem:[%s1526 + $0x2f8] sm:$0xff]
        %v1623 = vld [vmem:[%s1526 + $0x300] sm:$0xff]
        %v1624 = vld [vmem:[%s1526 + $0x308] sm:$0xff]
        %v1625 = vld [vmem:[%s1526 + $0x310] sm:$0xff]
        %v1626 = vld [vmem:[%s1526 + $0x318] sm:$0xff]
        %v1627 = vld [vmem:[%s1526 + $0x320] sm:$0xff]
        %v1628 = vld [vmem:[%s1526 + $0x328] sm:$0xff]
        %v1629 = vld [vmem:[%s1526 + $0x330] sm:$0xff]
        %v1630 = vld [vmem:[%s1526 + $0x338] sm:$0xff]
        %v1631 = vld [vmem:[%s1526 + $0x340] sm:$0xff]
        %v1632 = vld [vmem:[%s1526 + $0x348] sm:$0xff]
        %v1633 = vld [vmem:[%s1526 + $0x350] sm:$0xff]
        %v1634 = vld [vmem:[%s1526 + $0x358] sm:$0xff]
        %v1635 = vld [vmem:[%s1526 + $0x360] sm:$0xff]
        %v1636 = vld [vmem:[%s1526 + $0x368] sm:$0xff]
        %v1637 = vld [vmem:[%s1526 + $0x370] sm:$0xff]
        %v1638 = vld [vmem:[%s1526 + $0x378] sm:$0xff]
        %v1639 = vld [vmem:[%s1526 + $0x380] sm:$0xff]
        %v1640 = vld [vmem:[%s1526 + $0x388] sm:$0xff]
        %v1641 = vld [vmem:[%s1526 + $0x390] sm:$0xff]
        %v1642 = vld [vmem:[%s1526 + $0x398] sm:$0xff]
        %v1643 = vld [vmem:[%s1526 + $0x3a0] sm:$0xff]
        %v1644 = vld [vmem:[%s1526 + $0x3a8] sm:$0xff]
        %v1645 = vld [vmem:[%s1526 + $0x3b0] sm:$0xff]
        %v1646 = vld [vmem:[%s1526 + $0x3b8] sm:$0xff]
        %v1647 = vld [vmem:[%s1526 + $0x3c0] sm:$0xff]
        %v1648 = vld [vmem:[%s1526 + $0x3c8] sm:$0xff]
        %v1649 = vld [vmem:[%s1526 + $0x3d0] sm:$0xff]
        %v1650 = vld [vmem:[%s1526 + $0x3d8] sm:$0xff]
        %v1651 = vld [vmem:[%s1526 + $0x3e0] sm:$0xff]
        %v1652 = vld [vmem:[%s1526 + $0x3e8] sm:$0xff]
        %v1653 = vld [vmem:[%s1526 + $0x3f0] sm:$0xff]
        %v1654 = vld [vmem:[%s1526 + $0x3f8] sm:$0xff]
        %v1783 = vunpack.c.l.b16 %v1527
        %v1784 = vunpack.c.h.b16 %v1527
        %v1785 = vunpack.c.l.b16 %v1528
        %v1786 = vunpack.c.h.b16 %v1528
        %v1787 = vunpack.c.l.b16 %v1529
        %v1788 = vunpack.c.h.b16 %v1529
        %v1789 = vunpack.c.l.b16 %v1530
        %v1790 = vunpack.c.h.b16 %v1530
        %v1791 = vunpack.c.l.b16 %v1531
        %v1792 = vunpack.c.h.b16 %v1531
        %v1793 = vunpack.c.l.b16 %v1532
        %v1794 = vunpack.c.h.b16 %v1532
        %v1795 = vunpack.c.l.b16 %v1533
        %v1796 = vunpack.c.h.b16 %v1533
        %v1797 = vunpack.c.l.b16 %v1534
        %v1798 = vunpack.c.h.b16 %v1534
        %v1799 = vunpack.c.l.b16 %v1535
        %v1800 = vunpack.c.h.b16 %v1535
        %v1801 = vunpack.c.l.b16 %v1536
        %v1802 = vunpack.c.h.b16 %v1536
        %v1803 = vunpack.c.l.b16 %v1537
        %v1804 = vunpack.c.h.b16 %v1537
        %v1805 = vunpack.c.l.b16 %v1538
        %v1806 = vunpack.c.h.b16 %v1538
        %v1807 = vunpack.c.l.b16 %v1539
        %v1808 = vunpack.c.h.b16 %v1539
        %v1809 = vunpack.c.l.b16 %v1540
        %v1810 = vunpack.c.h.b16 %v1540
        %v1811 = vunpack.c.l.b16 %v1541
        %v1812 = vunpack.c.h.b16 %v1541
        %v1813 = vunpack.c.l.b16 %v1542
        %v1814 = vunpack.c.h.b16 %v1542
        %v1815 = vunpack.c.l.b16 %v1543
        %v1816 = vunpack.c.h.b16 %v1543
        %v1817 = vunpack.c.l.b16 %v1544
        %v1818 = vunpack.c.h.b16 %v1544
        %v1819 = vunpack.c.l.b16 %v1545
        %v1820 = vunpack.c.h.b16 %v1545
        %v1821 = vunpack.c.l.b16 %v1546
        %v1822 = vunpack.c.h.b16 %v1546
        %v1823 = vunpack.c.l.b16 %v1547
        %v1824 = vunpack.c.h.b16 %v1547
        %v1825 = vunpack.c.l.b16 %v1548
        %v1826 = vunpack.c.h.b16 %v1548
        %v1827 = vunpack.c.l.b16 %v1549
        %v1828 = vunpack.c.h.b16 %v1549
        %v1829 = vunpack.c.l.b16 %v1550
        %v1830 = vunpack.c.h.b16 %v1550
        %v1831 = vunpack.c.l.b16 %v1551
        %v1832 = vunpack.c.h.b16 %v1551
        %v1833 = vunpack.c.l.b16 %v1552
        %v1834 = vunpack.c.h.b16 %v1552
        %v1835 = vunpack.c.l.b16 %v1553
        %v1836 = vunpack.c.h.b16 %v1553
        %v1837 = vunpack.c.l.b16 %v1554
        %v1838 = vunpack.c.h.b16 %v1554
        %v1839 = vunpack.c.l.b16 %v1555
        %v1840 = vunpack.c.h.b16 %v1555
        %v1841 = vunpack.c.l.b16 %v1556
        %v1842 = vunpack.c.h.b16 %v1556
        %v1843 = vunpack.c.l.b16 %v1557
        %v1844 = vunpack.c.h.b16 %v1557
        %v1845 = vunpack.c.l.b16 %v1558
        %v1846 = vunpack.c.h.b16 %v1558
        %v1847 = vunpack.c.l.b16 %v1559
        %v1848 = vunpack.c.h.b16 %v1559
        %v1849 = vunpack.c.l.b16 %v1560
        %v1850 = vunpack.c.h.b16 %v1560
        %v1851 = vunpack.c.l.b16 %v1561
        %v1852 = vunpack.c.h.b16 %v1561
        %v1853 = vunpack.c.l.b16 %v1562
        %v1854 = vunpack.c.h.b16 %v1562
        %v1855 = vunpack.c.l.b16 %v1563
        %v1856 = vunpack.c.h.b16 %v1563
        %v1857 = vunpack.c.l.b16 %v1564
        %v1858 = vunpack.c.h.b16 %v1564
        %v1859 = vunpack.c.l.b16 %v1565
        %v1860 = vunpack.c.h.b16 %v1565
        %v1861 = vunpack.c.l.b16 %v1566
        %v1862 = vunpack.c.h.b16 %v1566
        %v1863 = vunpack.c.l.b16 %v1567
        %v1864 = vunpack.c.h.b16 %v1567
        %v1865 = vunpack.c.l.b16 %v1568
        %v1866 = vunpack.c.h.b16 %v1568
        %v1867 = vunpack.c.l.b16 %v1569
        %v1868 = vunpack.c.h.b16 %v1569
        %v1869 = vunpack.c.l.b16 %v1570
        %v1870 = vunpack.c.h.b16 %v1570
        %v1871 = vunpack.c.l.b16 %v1571
        %v1872 = vunpack.c.h.b16 %v1571
        %v1873 = vunpack.c.l.b16 %v1572
        %v1874 = vunpack.c.h.b16 %v1572
        %v1875 = vunpack.c.l.b16 %v1573
        %v1876 = vunpack.c.h.b16 %v1573
        %v1877 = vunpack.c.l.b16 %v1574
        %v1878 = vunpack.c.h.b16 %v1574
        %v1879 = vunpack.c.l.b16 %v1575
        %v1880 = vunpack.c.h.b16 %v1575
        %v1881 = vunpack.c.l.b16 %v1576
        %v1882 = vunpack.c.h.b16 %v1576
        %v1883 = vunpack.c.l.b16 %v1577
        %v1884 = vunpack.c.h.b16 %v1577
        %v1885 = vunpack.c.l.b16 %v1578
        %v1886 = vunpack.c.h.b16 %v1578
        %v1887 = vunpack.c.l.b16 %v1579
        %v1888 = vunpack.c.h.b16 %v1579
        %v1889 = vunpack.c.l.b16 %v1580
        %v1890 = vunpack.c.h.b16 %v1580
        %v1891 = vunpack.c.l.b16 %v1581
        %v1892 = vunpack.c.h.b16 %v1581
        %v1893 = vunpack.c.l.b16 %v1582
        %v1894 = vunpack.c.h.b16 %v1582
        %v1895 = vunpack.c.l.b16 %v1583
        %v1896 = vunpack.c.h.b16 %v1583
        %v1897 = vunpack.c.l.b16 %v1584
        %v1898 = vunpack.c.h.b16 %v1584
        %v1899 = vunpack.c.l.b16 %v1585
        %v1900 = vunpack.c.h.b16 %v1585
        %v1901 = vunpack.c.l.b16 %v1586
        %v1902 = vunpack.c.h.b16 %v1586
        %v1903 = vunpack.c.l.b16 %v1587
        %v1904 = vunpack.c.h.b16 %v1587
        %v1905 = vunpack.c.l.b16 %v1588
        %v1906 = vunpack.c.h.b16 %v1588
        %v1907 = vunpack.c.l.b16 %v1589
        %v1908 = vunpack.c.h.b16 %v1589
        %v1909 = vunpack.c.l.b16 %v1590
        %v1910 = vunpack.c.h.b16 %v1590
        %v1911 = vunpack.c.l.b16 %v1591
        %v1912 = vunpack.c.h.b16 %v1591
        %v1913 = vunpack.c.l.b16 %v1592
        %v1914 = vunpack.c.h.b16 %v1592
        %v1915 = vunpack.c.l.b16 %v1593
        %v1916 = vunpack.c.h.b16 %v1593
        %v1917 = vunpack.c.l.b16 %v1594
        %v1918 = vunpack.c.h.b16 %v1594
        %v1919 = vunpack.c.l.b16 %v1595
        %v1920 = vunpack.c.h.b16 %v1595
        %v1921 = vunpack.c.l.b16 %v1596
        %v1922 = vunpack.c.h.b16 %v1596
        %v1923 = vunpack.c.l.b16 %v1597
        %v1924 = vunpack.c.h.b16 %v1597
        %v1925 = vunpack.c.l.b16 %v1598
        %v1926 = vunpack.c.h.b16 %v1598
        %v1927 = vunpack.c.l.b16 %v1599
        %v1928 = vunpack.c.h.b16 %v1599
        %v1929 = vunpack.c.l.b16 %v1600
        %v1930 = vunpack.c.h.b16 %v1600
        %v1931 = vunpack.c.l.b16 %v1601
        %v1932 = vunpack.c.h.b16 %v1601
        %v1933 = vunpack.c.l.b16 %v1602
        %v1934 = vunpack.c.h.b16 %v1602
        %v1935 = vunpack.c.l.b16 %v1603
        %v1936 = vunpack.c.h.b16 %v1603
        %v1937 = vunpack.c.l.b16 %v1604
        %v1938 = vunpack.c.h.b16 %v1604
        %v1939 = vunpack.c.l.b16 %v1605
        %v1940 = vunpack.c.h.b16 %v1605
        %v1941 = vunpack.c.l.b16 %v1606
        %v1942 = vunpack.c.h.b16 %v1606
        %v1943 = vunpack.c.l.b16 %v1607
        %v1944 = vunpack.c.h.b16 %v1607
        %v1945 = vunpack.c.l.b16 %v1608
        %v1946 = vunpack.c.h.b16 %v1608
        %v1947 = vunpack.c.l.b16 %v1609
        %v1948 = vunpack.c.h.b16 %v1609
        %v1949 = vunpack.c.l.b16 %v1610
        %v1950 = vunpack.c.h.b16 %v1610
        %v1951 = vunpack.c.l.b16 %v1611
        %v1952 = vunpack.c.h.b16 %v1611
        %v1953 = vunpack.c.l.b16 %v1612
        %v1954 = vunpack.c.h.b16 %v1612
        %v1955 = vunpack.c.l.b16 %v1613
        %v1956 = vunpack.c.h.b16 %v1613
        %v1957 = vunpack.c.l.b16 %v1614
        %v1958 = vunpack.c.h.b16 %v1614
        %v1959 = vunpack.c.l.b16 %v1615
        %v1960 = vunpack.c.h.b16 %v1615
        %v1961 = vunpack.c.l.b16 %v1616
        %v1962 = vunpack.c.h.b16 %v1616
        %v1963 = vunpack.c.l.b16 %v1617
        %v1964 = vunpack.c.h.b16 %v1617
        %v1965 = vunpack.c.l.b16 %v1618
        %v1966 = vunpack.c.h.b16 %v1618
        %v1967 = vunpack.c.l.b16 %v1619
        %v1968 = vunpack.c.h.b16 %v1619
        %v1969 = vunpack.c.l.b16 %v1620
        %v1970 = vunpack.c.h.b16 %v1620
        %v1971 = vunpack.c.l.b16 %v1621
        %v1972 = vunpack.c.h.b16 %v1621
        %v1973 = vunpack.c.l.b16 %v1622
        %v1974 = vunpack.c.h.b16 %v1622
        %v1975 = vunpack.c.l.b16 %v1623
        %v1976 = vunpack.c.h.b16 %v1623
        %v1977 = vunpack.c.l.b16 %v1624
        %v1978 = vunpack.c.h.b16 %v1624
        %v1979 = vunpack.c.l.b16 %v1625
        %v1980 = vunpack.c.h.b16 %v1625
        %v1981 = vunpack.c.l.b16 %v1626
        %v1982 = vunpack.c.h.b16 %v1626
        %v1983 = vunpack.c.l.b16 %v1627
        %v1984 = vunpack.c.h.b16 %v1627
        %v1985 = vunpack.c.l.b16 %v1628
        %v1986 = vunpack.c.h.b16 %v1628
        %v1987 = vunpack.c.l.b16 %v1629
        %v1988 = vunpack.c.h.b16 %v1629
        %v1989 = vunpack.c.l.b16 %v1630
        %v1990 = vunpack.c.h.b16 %v1630
        %v1991 = vunpack.c.l.b16 %v1631
        %v1992 = vunpack.c.h.b16 %v1631
        %v1993 = vunpack.c.l.b16 %v1632
        %v1994 = vunpack.c.h.b16 %v1632
        %v1995 = vunpack.c.l.b16 %v1633
        %v1996 = vunpack.c.h.b16 %v1633
        %v1997 = vunpack.c.l.b16 %v1634
        %v1998 = vunpack.c.h.b16 %v1634
        %v1999 = vunpack.c.l.b16 %v1635
        %v2000 = vunpack.c.h.b16 %v1635
        %v2001 = vunpack.c.l.b16 %v1636
        %v2002 = vunpack.c.h.b16 %v1636
        %v2003 = vunpack.c.l.b16 %v1637
        %v2004 = vunpack.c.h.b16 %v1637
        %v2005 = vunpack.c.l.b16 %v1638
        %v2006 = vunpack.c.h.b16 %v1638
        %v2007 = vunpack.c.l.b16 %v1639
        %v2008 = vunpack.c.h.b16 %v1639
        %v2009 = vunpack.c.l.b16 %v1640
        %v2010 = vunpack.c.h.b16 %v1640
        %v2011 = vunpack.c.l.b16 %v1641
        %v2012 = vunpack.c.h.b16 %v1641
        %v2013 = vunpack.c.l.b16 %v1642
        %v2014 = vunpack.c.h.b16 %v1642
        %v2015 = vunpack.c.l.b16 %v1643
        %v2016 = vunpack.c.h.b16 %v1643
        %v2017 = vunpack.c.l.b16 %v1644
        %v2018 = vunpack.c.h.b16 %v1644
        %v2019 = vunpack.c.l.b16 %v1645
        %v2020 = vunpack.c.h.b16 %v1645
        %v2021 = vunpack.c.l.b16 %v1646
        %v2022 = vunpack.c.h.b16 %v1646
        %v2023 = vunpack.c.l.b16 %v1647
        %v2024 = vunpack.c.h.b16 %v1647
        %v2025 = vunpack.c.l.b16 %v1648
        %v2026 = vunpack.c.h.b16 %v1648
        %v2027 = vunpack.c.l.b16 %v1649
        %v2028 = vunpack.c.h.b16 %v1649
        %v2029 = vunpack.c.l.b16 %v1650
        %v2030 = vunpack.c.h.b16 %v1650
        %v2031 = vunpack.c.l.b16 %v1651
        %v2032 = vunpack.c.h.b16 %v1651
        %v2033 = vunpack.c.l.b16 %v1652
        %v2034 = vunpack.c.h.b16 %v1652
        %v2035 = vunpack.c.l.b16 %v1653
        %v2036 = vunpack.c.h.b16 %v1653
        %v2037 = vunpack.c.l.b16 %v1654
        %v2038 = vunpack.c.h.b16 %v1654
        %v2039 = vpack.c.b16 %v1787, %v1783
        %v2040 = vpack.c.b16 %v1788, %v1784
        %v2041 = vpack.c.b16 %v1789, %v1785
        %v2042 = vpack.c.b16 %v1790, %v1786
        %v2043 = vpack.c.b16 %v1795, %v1791
        %v2044 = vpack.c.b16 %v1796, %v1792
        %v2045 = vpack.c.b16 %v1797, %v1793
        %v2046 = vpack.c.b16 %v1798, %v1794
        %v2047 = vpack.c.b16 %v1803, %v1799
        %v2048 = vpack.c.b16 %v1804, %v1800
        %v2049 = vpack.c.b16 %v1805, %v1801
        %v2050 = vpack.c.b16 %v1806, %v1802
        %v2051 = vpack.c.b16 %v1811, %v1807
        %v2052 = vpack.c.b16 %v1812, %v1808
        %v2053 = vpack.c.b16 %v1813, %v1809
        %v2054 = vpack.c.b16 %v1814, %v1810
        %v2055 = vpack.c.b16 %v1819, %v1815
        %v2056 = vpack.c.b16 %v1820, %v1816
        %v2057 = vpack.c.b16 %v1821, %v1817
        %v2058 = vpack.c.b16 %v1822, %v1818
        %v2059 = vpack.c.b16 %v1827, %v1823
        %v2060 = vpack.c.b16 %v1828, %v1824
        %v2061 = vpack.c.b16 %v1829, %v1825
        %v2062 = vpack.c.b16 %v1830, %v1826
        %v2063 = vpack.c.b16 %v1835, %v1831
        %v2064 = vpack.c.b16 %v1836, %v1832
        %v2065 = vpack.c.b16 %v1837, %v1833
        %v2066 = vpack.c.b16 %v1838, %v1834
        %v2067 = vpack.c.b16 %v1843, %v1839
        %v2068 = vpack.c.b16 %v1844, %v1840
        %v2069 = vpack.c.b16 %v1845, %v1841
        %v2070 = vpack.c.b16 %v1846, %v1842
        %v2071 = vpack.c.b16 %v1851, %v1847
        %v2072 = vpack.c.b16 %v1852, %v1848
        %v2073 = vpack.c.b16 %v1853, %v1849
        %v2074 = vpack.c.b16 %v1854, %v1850
        %v2075 = vpack.c.b16 %v1859, %v1855
        %v2076 = vpack.c.b16 %v1860, %v1856
        %v2077 = vpack.c.b16 %v1861, %v1857
        %v2078 = vpack.c.b16 %v1862, %v1858
        %v2079 = vpack.c.b16 %v1867, %v1863
        %v2080 = vpack.c.b16 %v1868, %v1864
        %v2081 = vpack.c.b16 %v1869, %v1865
        %v2082 = vpack.c.b16 %v1870, %v1866
        %v2083 = vpack.c.b16 %v1875, %v1871
        %v2084 = vpack.c.b16 %v1876, %v1872
        %v2085 = vpack.c.b16 %v1877, %v1873
        %v2086 = vpack.c.b16 %v1878, %v1874
        %v2087 = vpack.c.b16 %v1883, %v1879
        %v2088 = vpack.c.b16 %v1884, %v1880
        %v2089 = vpack.c.b16 %v1885, %v1881
        %v2090 = vpack.c.b16 %v1886, %v1882
        %v2091 = vpack.c.b16 %v1891, %v1887
        %v2092 = vpack.c.b16 %v1892, %v1888
        %v2093 = vpack.c.b16 %v1893, %v1889
        %v2094 = vpack.c.b16 %v1894, %v1890
        %v2095 = vpack.c.b16 %v1899, %v1895
        %v2096 = vpack.c.b16 %v1900, %v1896
        %v2097 = vpack.c.b16 %v1901, %v1897
        %v2098 = vpack.c.b16 %v1902, %v1898
        %v2099 = vpack.c.b16 %v1907, %v1903
        %v2100 = vpack.c.b16 %v1908, %v1904
        %v2101 = vpack.c.b16 %v1909, %v1905
        %v2102 = vpack.c.b16 %v1910, %v1906
        %v2103 = vpack.c.b16 %v1915, %v1911
        %v2104 = vpack.c.b16 %v1916, %v1912
        %v2105 = vpack.c.b16 %v1917, %v1913
        %v2106 = vpack.c.b16 %v1918, %v1914
        %v2107 = vpack.c.b16 %v1923, %v1919
        %v2108 = vpack.c.b16 %v1924, %v1920
        %v2109 = vpack.c.b16 %v1925, %v1921
        %v2110 = vpack.c.b16 %v1926, %v1922
        %v2111 = vpack.c.b16 %v1931, %v1927
        %v2112 = vpack.c.b16 %v1932, %v1928
        %v2113 = vpack.c.b16 %v1933, %v1929
        %v2114 = vpack.c.b16 %v1934, %v1930
        %v2115 = vpack.c.b16 %v1939, %v1935
        %v2116 = vpack.c.b16 %v1940, %v1936
        %v2117 = vpack.c.b16 %v1941, %v1937
        %v2118 = vpack.c.b16 %v1942, %v1938
        %v2119 = vpack.c.b16 %v1947, %v1943
        %v2120 = vpack.c.b16 %v1948, %v1944
        %v2121 = vpack.c.b16 %v1949, %v1945
        %v2122 = vpack.c.b16 %v1950, %v1946
        %v2123 = vpack.c.b16 %v1955, %v1951
        %v2124 = vpack.c.b16 %v1956, %v1952
        %v2125 = vpack.c.b16 %v1957, %v1953
        %v2126 = vpack.c.b16 %v1958, %v1954
        %v2127 = vpack.c.b16 %v1963, %v1959
        %v2128 = vpack.c.b16 %v1964, %v1960
        %v2129 = vpack.c.b16 %v1965, %v1961
        %v2130 = vpack.c.b16 %v1966, %v1962
        %v2131 = vpack.c.b16 %v1971, %v1967
        %v2132 = vpack.c.b16 %v1972, %v1968
        %v2133 = vpack.c.b16 %v1973, %v1969
        %v2134 = vpack.c.b16 %v1974, %v1970
        %v2135 = vpack.c.b16 %v1979, %v1975
        %v2136 = vpack.c.b16 %v1980, %v1976
        %v2137 = vpack.c.b16 %v1981, %v1977
        %v2138 = vpack.c.b16 %v1982, %v1978
        %v2139 = vpack.c.b16 %v1987, %v1983
        %v2140 = vpack.c.b16 %v1988, %v1984
        %v2141 = vpack.c.b16 %v1989, %v1985
        %v2142 = vpack.c.b16 %v1990, %v1986
        %v2143 = vpack.c.b16 %v1995, %v1991
        %v2144 = vpack.c.b16 %v1996, %v1992
        %v2145 = vpack.c.b16 %v1997, %v1993
        %v2146 = vpack.c.b16 %v1998, %v1994
        %v2147 = vpack.c.b16 %v2003, %v1999
        %v2148 = vpack.c.b16 %v2004, %v2000
        %v2149 = vpack.c.b16 %v2005, %v2001
        %v2150 = vpack.c.b16 %v2006, %v2002
        %v2151 = vpack.c.b16 %v2011, %v2007
        %v2152 = vpack.c.b16 %v2012, %v2008
        %v2153 = vpack.c.b16 %v2013, %v2009
        %v2154 = vpack.c.b16 %v2014, %v2010
        %v2155 = vpack.c.b16 %v2019, %v2015
        %v2156 = vpack.c.b16 %v2020, %v2016
        %v2157 = vpack.c.b16 %v2021, %v2017
        %v2158 = vpack.c.b16 %v2022, %v2018
        %v2159 = vpack.c.b16 %v2027, %v2023
        %v2160 = vpack.c.b16 %v2028, %v2024
        %v2161 = vpack.c.b16 %v2029, %v2025
        %v2162 = vpack.c.b16 %v2030, %v2026
        %v2163 = vpack.c.b16 %v2035, %v2031
        %v2164 = vpack.c.b16 %v2036, %v2032
        %v2165 = vpack.c.b16 %v2037, %v2033
        %v2166 = vpack.c.b16 %v2038, %v2034
        %2295 = vmatprep.subr.bf16.mxu0 %v2068
        %2296 = vmatpush1.bf16.msra.mxu0 %v2067
        %2297 = vmatprep.subr.bf16.mxu0 %v2064
        %2298 = vmatpush1.bf16.msra.mxu0 %v2063
        %2299 = vmatprep.subr.bf16.mxu0 %v2060
        %2300 = vmatpush1.bf16.msra.mxu0 %v2059
        %2301 = vmatprep.subr.bf16.mxu0 %v2056
        %2302 = vmatpush1.bf16.msra.mxu0 %v2055
        %2303 = vmatprep.subr.bf16.mxu0 %v2052
        %2304 = vmatpush1.bf16.msra.mxu0 %v2051
        %2305 = vmatprep.subr.bf16.mxu0 %v2048
        %2306 = vmatpush1.bf16.msra.mxu0 %v2047
        %2307 = vmatprep.subr.bf16.mxu0 %v2044
        %2308 = vmatpush1.bf16.msra.mxu0 %v2043
        %2309 = vmatprep.subr.bf16.mxu0 %v2040
        %2310 = vmatpush1.bf16.msra.mxu0 %v2039
        %2311 = vmatprep.subr.bf16.mxu0 %v2100
        %2312 = vmatpush2.bf16.msra.mxu0 %v2099
        %2313 = vmatprep.subr.bf16.mxu0 %v2096
        %2314 = vmatpush2.bf16.msra.mxu0 %v2095
        %2315 = vmatprep.subr.bf16.mxu0 %v2092
        %2316 = vmatpush2.bf16.msra.mxu0 %v2091
        %2317 = vmatprep.subr.bf16.mxu0 %v2088
        %2318 = vmatpush2.bf16.msra.mxu0 %v2087
        %2319 = vmatprep.subr.bf16.mxu0 %v2084
        %2320 = vmatpush2.bf16.msra.mxu0 %v2083
        %2321 = vmatprep.subr.bf16.mxu0 %v2080
        %2322 = vmatpush2.bf16.msra.mxu0 %v2079
        %2323 = vmatprep.subr.bf16.mxu0 %v2076
        %2324 = vmatpush2.bf16.msra.mxu0 %v2075
        %2325 = vmatprep.subr.bf16.mxu0 %v2072
        %2326 = vmatpush2.bf16.msra.mxu0 %v2071
        %2327 = vmatprep.mubr.bf16.mxu0 %v1521
        %2328 = vmatmul.mubr.bf16.gmra.mxu0 %v1520
        %v2329 = vpop.f32.mrf.mxu0
        %v2330 = vadd.f32 0.0, %v2329
        %v2331 = vpop.f32.mrf.mxu0
        %v2332 = vadd.f32 0.0, %v2331
        %v2333 = vpop.f32.mrf.mxu0
        %v2334 = vpop.f32.mrf.mxu0
        %2335 = vdwg.mxu0
        %2336 = vmatprep.subr.bf16.mxu0 %v2132
        %2337 = vmatpush1.bf16.msra.mxu0 %v2131
        %2338 = vmatprep.subr.bf16.mxu0 %v2128
        %2339 = vmatpush1.bf16.msra.mxu0 %v2127
        %2340 = vmatprep.subr.bf16.mxu0 %v2124
        %2341 = vmatpush1.bf16.msra.mxu0 %v2123
        %2342 = vmatprep.subr.bf16.mxu0 %v2120
        %2343 = vmatpush1.bf16.msra.mxu0 %v2119
        %2344 = vmatprep.subr.bf16.mxu0 %v2116
        %2345 = vmatpush1.bf16.msra.mxu0 %v2115
        %2346 = vmatprep.subr.bf16.mxu0 %v2112
        %2347 = vmatpush1.bf16.msra.mxu0 %v2111
        %2348 = vmatprep.subr.bf16.mxu0 %v2108
        %2349 = vmatpush1.bf16.msra.mxu0 %v2107
        %2350 = vmatprep.subr.bf16.mxu0 %v2104
        %2351 = vmatpush1.bf16.msra.mxu0 %v2103
        %2352 = vmatprep.subr.bf16.mxu0 %v2164
        %2353 = vmatpush2.bf16.msra.mxu0 %v2163
        %2354 = vmatprep.subr.bf16.mxu0 %v2160
        %2355 = vmatpush2.bf16.msra.mxu0 %v2159
        %2356 = vmatprep.subr.bf16.mxu0 %v2156
        %2357 = vmatpush2.bf16.msra.mxu0 %v2155
        %2358 = vmatprep.subr.bf16.mxu0 %v2152
        %2359 = vmatpush2.bf16.msra.mxu0 %v2151
        %2360 = vmatprep.subr.bf16.mxu0 %v2148
        %2361 = vmatpush2.bf16.msra.mxu0 %v2147
        %2362 = vmatprep.subr.bf16.mxu0 %v2144
        %2363 = vmatpush2.bf16.msra.mxu0 %v2143
        %2364 = vmatprep.subr.bf16.mxu0 %v2140
        %2365 = vmatpush2.bf16.msra.mxu0 %v2139
        %2366 = vmatprep.subr.bf16.mxu0 %v2136
        %2367 = vmatpush2.bf16.msra.mxu0 %v2135
        %2368 = vmatprep.mubr.bf16.mxu0 %v1523
        %2369 = vmatmul.mubr.bf16.gmra.mxu0 %v1522
        %v2370 = vpop.f32.mrf.mxu0
        %v2371 = vadd.f32 %v2330, %v2370
        %v2372 = vpop.f32.mrf.mxu0
        %v2373 = vadd.f32 %v2332, %v2372
        %v2374 = vpop.f32.mrf.mxu0
        %v2375 = vpop.f32.mrf.mxu0
        %2376 = vdwg.mxu0
        %2377 = vmatprep.subr.bf16.mxu0 %v2070
        %2378 = vmatpush1.bf16.msra.mxu0 %v2069
        %2379 = vmatprep.subr.bf16.mxu0 %v2066
        %2380 = vmatpush1.bf16.msra.mxu0 %v2065
        %2381 = vmatprep.subr.bf16.mxu0 %v2062
        %2382 = vmatpush1.bf16.msra.mxu0 %v2061
        %2383 = vmatprep.subr.bf16.mxu0 %v2058
        %2384 = vmatpush1.bf16.msra.mxu0 %v2057
        %2385 = vmatprep.subr.bf16.mxu0 %v2054
        %2386 = vmatpush1.bf16.msra.mxu0 %v2053
        %2387 = vmatprep.subr.bf16.mxu0 %v2050
        %2388 = vmatpush1.bf16.msra.mxu0 %v2049
        %2389 = vmatprep.subr.bf16.mxu0 %v2046
        %2390 = vmatpush1.bf16.msra.mxu0 %v2045
        %2391 = vmatprep.subr.bf16.mxu0 %v2042
        %2392 = vmatpush1.bf16.msra.mxu0 %v2041
        %2393 = vmatprep.subr.bf16.mxu0 %v2102
        %2394 = vmatpush2.bf16.msra.mxu0 %v2101
        %2395 = vmatprep.subr.bf16.mxu0 %v2098
        %2396 = vmatpush2.bf16.msra.mxu0 %v2097
        %2397 = vmatprep.subr.bf16.mxu0 %v2094
        %2398 = vmatpush2.bf16.msra.mxu0 %v2093
        %2399 = vmatprep.subr.bf16.mxu0 %v2090
        %2400 = vmatpush2.bf16.msra.mxu0 %v2089
        %2401 = vmatprep.subr.bf16.mxu0 %v2086
        %2402 = vmatpush2.bf16.msra.mxu0 %v2085
        %2403 = vmatprep.subr.bf16.mxu0 %v2082
        %2404 = vmatpush2.bf16.msra.mxu0 %v2081
        %2405 = vmatprep.subr.bf16.mxu0 %v2078
        %2406 = vmatpush2.bf16.msra.mxu0 %v2077
        %2407 = vmatprep.subr.bf16.mxu0 %v2074
        %2408 = vmatpush2.bf16.msra.mxu0 %v2073
        %2409 = vmatprep.mubr.bf16.mxu0 %v1521
        %2410 = vmatmul.mubr.bf16.gmra.mxu0 %v1520
        %v2411 = vpop.f32.mrf.mxu0
        %v2412 = vadd.f32 0.0, %v2411
        %v2413 = vpop.f32.mrf.mxu0
        %v2414 = vadd.f32 0.0, %v2413
        %v2415 = vpop.f32.mrf.mxu0
        %v2416 = vpop.f32.mrf.mxu0
        %2417 = vdwg.mxu0
        %2418 = vmatprep.subr.bf16.mxu0 %v2134
        %2419 = vmatpush1.bf16.msra.mxu0 %v2133
        %2420 = vmatprep.subr.bf16.mxu0 %v2130
        %2421 = vmatpush1.bf16.msra.mxu0 %v2129
        %2422 = vmatprep.subr.bf16.mxu0 %v2126
        %2423 = vmatpush1.bf16.msra.mxu0 %v2125
        %2424 = vmatprep.subr.bf16.mxu0 %v2122
        %2425 = vmatpush1.bf16.msra.mxu0 %v2121
        %2426 = vmatprep.subr.bf16.mxu0 %v2118
        %2427 = vmatpush1.bf16.msra.mxu0 %v2117
        %2428 = vmatprep.subr.bf16.mxu0 %v2114
        %2429 = vmatpush1.bf16.msra.mxu0 %v2113
        %2430 = vmatprep.subr.bf16.mxu0 %v2110
        %2431 = vmatpush1.bf16.msra.mxu0 %v2109
        %2432 = vmatprep.subr.bf16.mxu0 %v2106
        %2433 = vmatpush1.bf16.msra.mxu0 %v2105
        %2434 = vmatprep.subr.bf16.mxu0 %v2166
        %2435 = vmatpush2.bf16.msra.mxu0 %v2165
        %2436 = vmatprep.subr.bf16.mxu0 %v2162
        %2437 = vmatpush2.bf16.msra.mxu0 %v2161
        %2438 = vmatprep.subr.bf16.mxu0 %v2158
        %2439 = vmatpush2.bf16.msra.mxu0 %v2157
        %2440 = vmatprep.subr.bf16.mxu0 %v2154
        %2441 = vmatpush2.bf16.msra.mxu0 %v2153
        %2442 = vmatprep.subr.bf16.mxu0 %v2150
        %2443 = vmatpush2.bf16.msra.mxu0 %v2149
        %2444 = vmatprep.subr.bf16.mxu0 %v2146
        %2445 = vmatpush2.bf16.msra.mxu0 %v2145
        %2446 = vmatprep.subr.bf16.mxu0 %v2142
        %2447 = vmatpush2.bf16.msra.mxu0 %v2141
        %2448 = vmatprep.subr.bf16.mxu0 %v2138
        %2449 = vmatpush2.bf16.msra.mxu0 %v2137
        %2450 = vmatprep.mubr.bf16.mxu0 %v1523
        %2451 = vmatmul.mubr.bf16.gmra.mxu0 %v1522
        %v2452 = vpop.f32.mrf.mxu0
        %v2453 = vadd.f32 %v2412, %v2452
        %v2454 = vpop.f32.mrf.mxu0
        %v2455 = vadd.f32 %v2414, %v2454
        %v2456 = vpop.f32.mrf.mxu0
        %v2457 = vpop.f32.mrf.mxu0
        %2458 = vdwg.mxu0
        %v2459 = vadd.f32 %v1516, %v2371
        %v2460 = vadd.f32 %v1517, %v2373
        %v2461 = vadd.f32 %v1518, %v2453
        %v2462 = vadd.f32 %v1519, %v2455
        %2463 = vst [vmem:[#allocation2] sm:$0xff] %v2459
        %2464 = vst [vmem:[#allocation2 + $0x8] sm:$0xff] %v2460
        %2465 = vst [vmem:[#allocation2 + $0x10] sm:$0xff] %v2461
        %2466 = vst [vmem:[#allocation2 + $0x18] sm:$0xff] %v2462
        %p2467 = scmp.eq.s32.totalorder %s30, 2
        // Predicated region
        $region81: #{gearnet_forward.8} parent=51 // pred_check
          %p2468 = pneg %p2467
        $region82: #{gearnet_forward.8} parent=51 // pred_check_branch
          %2470 = sbr.rel (%p2468) target = $region84
        $region83: #{gearnet_forward.8} parent=51 // pred_region
          %v2471 = vld [vmem:[#allocation2] sm:$0xff]
          %v2472 = vld [vmem:[#allocation2 + $0x8] sm:$0xff]
          %v2473 = vld [vmem:[#allocation2 + $0x10] sm:$0xff]
          %v2474 = vld [vmem:[#allocation2 + $0x18] sm:$0xff]
          %v2475 = vld [vmem:[#allocation10] sm:$0xf]
          %v2477 = vlaneseq
          %v2478 = vshrl.u32 %v2477, 7
          %v2479 = vsub.s32 0, %v2478
          %v2480 = vrot.slane %v2475, %v2479
          %v2481 = vlaneseq
          %v2482 = vshrl.u32 %v2481, 7
          %v2483 = vsub.s32 1, %v2482
          %v2484 = vrot.slane %v2475, %v2483
          %v2485 = vlaneseq
          %v2486 = vshrl.u32 %v2485, 7
          %v2487 = vsub.s32 2, %v2486
          %v2488 = vrot.slane %v2475, %v2487
          %v2489 = vlaneseq
          %v2490 = vshrl.u32 %v2489, 7
          %v2491 = vsub.s32 3, %v2490
          %v2492 = vrot.slane %v2475, %v2491
          %v2497 = vmul.f32 %v2471, %v2480
          %v2498 = vmul.f32 %v2472, %v2484
          %v2499 = vmul.f32 %v2473, %v2488
          %v2500 = vmul.f32 %v2474, %v2492
          %v2501 = vld [vmem:[#allocation11] sm:$0xf]
          %v2503 = vlaneseq
          %v2504 = vshrl.u32 %v2503, 7
          %v2505 = vsub.s32 0, %v2504
          %v2506 = vrot.slane %v2501, %v2505
          %v2507 = vlaneseq
          %v2508 = vshrl.u32 %v2507, 7
          %v2509 = vsub.s32 1, %v2508
          %v2510 = vrot.slane %v2501, %v2509
          %v2511 = vlaneseq
          %v2512 = vshrl.u32 %v2511, 7
          %v2513 = vsub.s32 2, %v2512
          %v2514 = vrot.slane %v2501, %v2513
          %v2515 = vlaneseq
          %v2516 = vshrl.u32 %v2515, 7
          %v2517 = vsub.s32 3, %v2516
          %v2518 = vrot.slane %v2501, %v2517
          %v2523 = vadd.f32 %v2497, %v2506
          %v2524 = vadd.f32 %v2498, %v2510
          %v2525 = vadd.f32 %v2499, %v2514
          %v2526 = vadd.f32 %v2500, %v2518
          %v2527 = vmax.f32 %v2523, 0.0
          %v2528 = vmax.f32 %v2524, 0.0
          %v2529 = vmax.f32 %v2525, 0.0
          %v2530 = vmax.f32 %v2526, 0.0
          %v2531 = vpack.c.bf16 %v2527, %v2527
          %v2532 = vpack.c.bf16 %v2528, %v2528
          %v2533 = vpack.c.bf16 %v2529, %v2529
          %v2534 = vpack.c.bf16 %v2530, %v2530
          %v2539 = vunpack.c.l.b16 %v2531
          %v2540 = vunpack.c.l.b16 %v2532
          %v2541 = vunpack.c.l.b16 %v2533
          %v2542 = vunpack.c.l.b16 %v2534
          %v2543 = vpack.c.b16 %v2540, %v2539
          %v2544 = vpack.c.b16 %v2542, %v2541
          %2547 = vst [vmem:[%s425] sm:$0xff] %v2543
          %2548 = vst [vmem:[%s425 + $0x8] sm:$0xff] %v2544
        $region84: #{gearnet_forward.8} parent=51 // pred_fallthru
          _
        %p2549 = scmp.lt.s32.totalorder %s29, 1
        %s2550 = scalar_select %p2549, %s29, 1
        %s2551 = smul.addr %s2550, 4
        %s2552 = smul.addr %s2551, 4
        %s2553 = scalar_lea.vmem %s8, %s2552
        // Predicated region
        $region85: #{gearnet_forward.8} parent=51 // pred_check
          %p2554 = pneg %p235
        $region86: #{gearnet_forward.8} parent=51 // pred_check_branch
          %2556 = sbr.rel (%p2554) target = $region88
        $region87: #{gearnet_forward.8} parent=51 // pred_region
          _
        $region88: #{gearnet_forward.8} parent=51 // pred_fallthru
          _
      $region52: #{gearnet_forward.8} parent=5 // pred_fallthru
        _
      %p2557 = scmp.le.s32.totalorder 2, %s20
      // Predicated region
      $region89: #{gearnet_forward.8} parent=5 // pred_check
        %p2558 = pneg %p2557
      $region90: #{gearnet_forward.8} parent=5 // pred_check_branch
        %2560 = sbr.rel (%p2558) target = $region92
      $region91: #{gearnet_forward.8} parent=5 // pred_region
        %s2561 = ssub.s32 %s20, 2
        // Predicated region
        $region93: #{gearnet_forward.8} parent=91 // pred_check
          %p2562 = pneg %p241
        $region94: #{gearnet_forward.8} parent=91 // pred_check_branch
          %2564 = sbr.rel (%p2562) target = $region96
        $region95: #{gearnet_forward.8} parent=91 // pred_region
          %p2565 = scmp.lt.s32.totalorder %s31, 1
          %s2566 = scalar_select %p2565, %s31, 1
          %s2567 = smul.addr %s2566, 4
          %s2568 = smul.addr %s2567, 4
          %s2569 = scalar_lea.vmem %s8, %s2568
        $region96: #{gearnet_forward.8} parent=91 // pred_fallthru
          _
      $region92: #{gearnet_forward.8} parent=5 // pred_fallthru
        _
    $region6: #{gearnet_forward.8} parent=1 // loop_footer
      %s24 = sadd.s32 1, %s20
    $region7: #{gearnet_forward.8} parent=1 // loop_footer_branch
      %19 = sbr.rel target = $region3
    $region8: #{gearnet_forward.8} parent=1 // loop_exit
      _
    %2570 = vsyncpa [#allocation4], 1
    %s2571 = scalar_lea.sflag [#allocation4], 1
    %2572 = vsyncpa %s2571, 1
    %2573 = vsyncpa [#allocation6], 1
    %2574 = vsyncpa [#allocation9], 1
    %2575 = vsyncpa [#allocation12], 1

// kernel: gearnet_forward.9
$region0: #{gearnet_forward.9}
  #allocation0 [shape = 'u32[]', space=smem, size = 0x4, offset = 0x4, fixed_abs, tag = 'smem constant byte address 0x4 - core index']
  #allocation1 [shape = 'u32[144,128]{1,0:T(1,128)}', space=vmem, size = 0x12000, scoped, tag = 'internal scratch']
  #allocation2 [shape = 'f32[8,512]{1,0:T(8,128)}', space=vmem, size = 0x4000, scoped, tag = 'scratch operand']
  %s0 = inlined_call_operand.vmem [shape: bf16[3,16,16], index: 0, kind: input, shape index: {}]
  %s1 = inlined_call_operand.vmem [shape: bf16[16,512], index: 1, kind: input, shape index: {}, may-alias: {1,2}]
  %s2 = inlined_call_operand.vmem [shape: bf16[16,512], index: 2, kind: input, shape index: {}, may-alias: {1,2}]
  %s3 = inlined_call_operand.vmem [shape: bf16[3,512,512], index: 3, kind: input, shape index: {}]
  %s4 = inlined_call_operand.vmem [shape: bf16[512,512], index: 4, kind: input, shape index: {}]
  %s5 = inlined_call_operand.vmem [shape: f32[1,512], index: 5, kind: input, shape index: {}]
  %s6 = inlined_call_operand.vmem [shape: f32[1,512], index: 6, kind: input, shape index: {}]
  %s7 = inlined_call_operand.vmem [shape: f32[1,512], index: 7, kind: input, shape index: {}]
  %s8 = inlined_call_operand.vmem [shape: bf16[16,512], index: 8, kind: output, shape index: {}]
  %s9 = sld [smem:[#allocation0]]
  $region73: #{gearnet_forward.9} parent=0
    _
  %s11 = ssub.s32 1, %s9
  %s12 = scalar_select 0, %s11, %s9
  loop: start=0, step=1, limit=8
  $region2: #{gearnet_forward.9} parent=0 // loop_pre_header
    _
  $region3: #{gearnet_forward.9} parent=0 // loop_header
    %s14 = sphi 0, %s18
    %p15 = scmp.ge.s32.totalorder %s14, 8
    %s21 = sphi 0, %s33
    %s22 = sphi 0, %s29
    %s23 = sphi 0, %s21
    %s24 = sphi 0, %s22
    %s25 = sphi 0, %s23
    %s26 = sphi 0, %s24
    %s38 = sphi 0, %s40
    %s41 = sphi 0, %s38
    %s42 = sphi 0, %s41
    %s58 = sphi 0, %s42
    %s62 = sphi 0, %s62
    %s64 = sphi 0, %s62
    %s65 = sphi 0, %s64
    %s79 = sphi 0, %s65
    %s85 = sphi 0, %s87
    %s88 = sphi 0, %s85
    %s89 = sphi 0, %s88
    %s105 = sphi 0, %s89
    %s109 = sphi 0, %s109
    %s111 = sphi 0, %s109
    %s112 = sphi 0, %s111
    %s126 = sphi 0, %s112
    %s130 = sphi 0, %s130
    %s132 = sphi 0, %s130
    %s133 = sphi 0, %s132
    %s147 = sphi 0, %s133
    %s151 = sphi 0, %s151
    %s153 = sphi 0, %s151
    %s154 = sphi 0, %s153
    %s168 = sphi 0, %s154
    %s172 = sphi 0, %s172
    %s174 = sphi 0, %s172
    %s175 = sphi 0, %s174
    %s189 = sphi 0, %s175
    %s193 = sphi 0, %s193
    %s195 = sphi 0, %s193
    %s196 = sphi 0, %s195
    %s210 = sphi 0, %s196
    %s216 = sphi 0, %s218
    %s219 = sphi 0, %s216
    %s220 = sphi 0, %s219
    %s236 = sphi 0, %s220
  $region4: #{gearnet_forward.9} parent=0 // loop_header_branch
    %17 = sbr.rel (%p15) target = $region8
  $region5: #{gearnet_forward.9} parent=0 // loop_body
    %s19 = ssub.s32 %s14, 1
    %s20 = ssub.s32 %s14, 2
    %s27 = sadd.s32 1, %s22
    %p28 = scmp.ge.s32.totalorder %s27, 3
    %s29 = scalar_select %p28, 0, %s27
    %s30 = sadd.s32 1, %s21
    %s31 = scalar_select %p28, %s30, %s21
    %p32 = scmp.ge.s32.totalorder %s31, 2
    %s33 = scalar_select %p32, 0, %s31
    %s34 = ssub.s32 %s22, %s29
    %s35 = ssub.s32 %s21, %s33
    %s36 = sor.u32 %s34, %s35
    %p37 = scmp.eq.s32.totalorder %s36, 0
    %s39 = sadd.s32 %s38, 1
    %s40 = scalar_select %p37, %s38, %s39
    %p43 = pneg %p37
    %p44 = scmp.eq.s32.totalorder %s14, 5
    %p45 = por %p43, %p44
    %p46 = scmp.ne.s32.totalorder %s38, %s41
    %p47 = scmp.eq.s32.totalorder %s14, 0
    %p48 = por %p46, %p47
    %p49 = scmp.ne.s32.totalorder %s38, %s41
    %p50 = scmp.eq.s32.totalorder %s19, 5
    %p51 = por %p49, %p50
    %p52 = scmp.ne.s32.totalorder %s41, %s42
    %p53 = scmp.eq.s32.totalorder %s19, 0
    %p54 = por %p52, %p53
    %p55 = scmp.ne.s32.totalorder %s41, %s42
    %p56 = scmp.eq.s32.totalorder %s20, 5
    %p57 = por %p55, %p56
    %p59 = scmp.ne.s32.totalorder %s42, %s58
    %p60 = scmp.eq.s32.totalorder %s20, 0
    %p61 = por %p59, %p60
    %s63 = sadd.s32 %s62, 1
    %p66 = scmp.eq.s32.totalorder %s14, 5
    %p67 = scmp.ne.s32.totalorder %s62, %s64
    %p68 = scmp.eq.s32.totalorder %s14, 0
    %p69 = por %p67, %p68
    %p70 = scmp.ne.s32.totalorder %s62, %s64
    %p71 = scmp.eq.s32.totalorder %s19, 5
    %p72 = por %p70, %p71
    %p73 = scmp.ne.s32.totalorder %s64, %s65
    %p74 = scmp.eq.s32.totalorder %s19, 0
    %p75 = por %p73, %p74
    %p76 = scmp.ne.s32.totalorder %s64, %s65
    %p77 = scmp.eq.s32.totalorder %s20, 5
    %p78 = por %p76, %p77
    %p80 = scmp.ne.s32.totalorder %s65, %s79
    %p81 = scmp.eq.s32.totalorder %s20, 0
    %p82 = por %p80, %p81
    %s83 = ssub.s32 %s21, %s33
    %p84 = scmp.eq.s32.totalorder %s83, 0
    %s86 = sadd.s32 %s85, 1
    %s87 = scalar_select %p84, %s85, %s86
    %p90 = pneg %p84
    %p91 = scmp.eq.s32.totalorder %s14, 5
    %p92 = por %p90, %p91
    %p93 = scmp.ne.s32.totalorder %s85, %s88
    %p94 = scmp.eq.s32.totalorder %s14, 0
    %p95 = por %p93, %p94
    %p96 = scmp.ne.s32.totalorder %s85, %s88
    %p97 = scmp.eq.s32.totalorder %s19, 5
    %p98 = por %p96, %p97
    %p99 = scmp.ne.s32.totalorder %s88, %s89
    %p100 = scmp.eq.s32.totalorder %s19, 0
    %p101 = por %p99, %p100
    %p102 = scmp.ne.s32.totalorder %s88, %s89
    %p103 = scmp.eq.s32.totalorder %s20, 5
    %p104 = por %p102, %p103
    %p106 = scmp.ne.s32.totalorder %s89, %s105
    %p107 = scmp.eq.s32.totalorder %s20, 0
    %p108 = por %p106, %p107
    %s110 = sadd.s32 %s109, 1
    %p113 = scmp.eq.s32.totalorder %s14, 5
    %p114 = scmp.ne.s32.totalorder %s109, %s111
    %p115 = scmp.eq.s32.totalorder %s14, 0
    %p116 = por %p114, %p115
    %p117 = scmp.ne.s32.totalorder %s109, %s111
    %p118 = scmp.eq.s32.totalorder %s19, 5
    %p119 = por %p117, %p118
    %p120 = scmp.ne.s32.totalorder %s111, %s112
    %p121 = scmp.eq.s32.totalorder %s19, 0
    %p122 = por %p120, %p121
    %p123 = scmp.ne.s32.totalorder %s111, %s112
    %p124 = scmp.eq.s32.totalorder %s20, 5
    %p125 = por %p123, %p124
    %p127 = scmp.ne.s32.totalorder %s112, %s126
    %p128 = scmp.eq.s32.totalorder %s20, 0
    %p129 = por %p127, %p128
    %s131 = sadd.s32 %s130, 1
    %p134 = scmp.eq.s32.totalorder %s14, 5
    %p135 = scmp.ne.s32.totalorder %s130, %s132
    %p136 = scmp.eq.s32.totalorder %s14, 0
    %p137 = por %p135, %p136
    %p138 = scmp.ne.s32.totalorder %s130, %s132
    %p139 = scmp.eq.s32.totalorder %s19, 5
    %p140 = por %p138, %p139
    %p141 = scmp.ne.s32.totalorder %s132, %s133
    %p142 = scmp.eq.s32.totalorder %s19, 0
    %p143 = por %p141, %p142
    %p144 = scmp.ne.s32.totalorder %s132, %s133
    %p145 = scmp.eq.s32.totalorder %s20, 5
    %p146 = por %p144, %p145
    %p148 = scmp.ne.s32.totalorder %s133, %s147
    %p149 = scmp.eq.s32.totalorder %s20, 0
    %p150 = por %p148, %p149
    %s152 = sadd.s32 %s151, 1
    %p155 = scmp.eq.s32.totalorder %s14, 5
    %p156 = scmp.ne.s32.totalorder %s151, %s153
    %p157 = scmp.eq.s32.totalorder %s14, 0
    %p158 = por %p156, %p157
    %p159 = scmp.ne.s32.totalorder %s151, %s153
    %p160 = scmp.eq.s32.totalorder %s19, 5
    %p161 = por %p159, %p160
    %p162 = scmp.ne.s32.totalorder %s153, %s154
    %p163 = scmp.eq.s32.totalorder %s19, 0
    %p164 = por %p162, %p163
    %p165 = scmp.ne.s32.totalorder %s153, %s154
    %p166 = scmp.eq.s32.totalorder %s20, 5
    %p167 = por %p165, %p166
    %p169 = scmp.ne.s32.totalorder %s154, %s168
    %p170 = scmp.eq.s32.totalorder %s20, 0
    %p171 = por %p169, %p170
    %s173 = sadd.s32 %s172, 1
    %p176 = scmp.eq.s32.totalorder %s14, 5
    %p177 = scmp.ne.s32.totalorder %s172, %s174
    %p178 = scmp.eq.s32.totalorder %s14, 0
    %p179 = por %p177, %p178
    %p180 = scmp.ne.s32.totalorder %s172, %s174
    %p181 = scmp.eq.s32.totalorder %s19, 5
    %p182 = por %p180, %p181
    %p183 = scmp.ne.s32.totalorder %s174, %s175
    %p184 = scmp.eq.s32.totalorder %s19, 0
    %p185 = por %p183, %p184
    %p186 = scmp.ne.s32.totalorder %s174, %s175
    %p187 = scmp.eq.s32.totalorder %s20, 5
    %p188 = por %p186, %p187
    %p190 = scmp.ne.s32.totalorder %s175, %s189
    %p191 = scmp.eq.s32.totalorder %s20, 0
    %p192 = por %p190, %p191
    %s194 = sadd.s32 %s193, 1
    %p197 = scmp.eq.s32.totalorder %s14, 5
    %p198 = scmp.ne.s32.totalorder %s193, %s195
    %p199 = scmp.eq.s32.totalorder %s14, 0
    %p200 = por %p198, %p199
    %p201 = scmp.ne.s32.totalorder %s193, %s195
    %p202 = scmp.eq.s32.totalorder %s19, 5
    %p203 = por %p201, %p202
    %p204 = scmp.ne.s32.totalorder %s195, %s196
    %p205 = scmp.eq.s32.totalorder %s19, 0
    %p206 = por %p204, %p205
    %p207 = scmp.ne.s32.totalorder %s195, %s196
    %p208 = scmp.eq.s32.totalorder %s20, 5
    %p209 = por %p207, %p208
    %p211 = scmp.ne.s32.totalorder %s196, %s210
    %p212 = scmp.eq.s32.totalorder %s20, 0
    %p213 = por %p211, %p212
    %s214 = ssub.s32 %s21, %s33
    %p215 = scmp.eq.s32.totalorder %s214, 0
    %s217 = sadd.s32 %s216, 1
    %s218 = scalar_select %p215, %s216, %s217
    %p221 = pneg %p215
    %p222 = scmp.eq.s32.totalorder %s14, 5
    %p223 = por %p221, %p222
    %p224 = scmp.ne.s32.totalorder %s216, %s219
    %p225 = scmp.eq.s32.totalorder %s14, 0
    %p226 = por %p224, %p225
    %p227 = scmp.ne.s32.totalorder %s216, %s219
    %p228 = scmp.eq.s32.totalorder %s19, 5
    %p229 = por %p227, %p228
    %p230 = scmp.ne.s32.totalorder %s219, %s220
    %p231 = scmp.eq.s32.totalorder %s19, 0
    %p232 = por %p230, %p231
    %p233 = scmp.ne.s32.totalorder %s219, %s220
    %p234 = scmp.eq.s32.totalorder %s20, 5
    %p235 = por %p233, %p234
    %p237 = scmp.ne.s32.totalorder %s220, %s236
    %p238 = scmp.eq.s32.totalorder %s20, 0
    %p239 = por %p237, %p238
    %p240 = scmp.le.s32.totalorder 1, %s14
    %p241 = scmp.lt.s32.totalorder %s14, 7
    %p242 = pnand %p240, %p241
    %p243 = pneg %p242
    // Predicated region
    $region9: #{gearnet_forward.9} parent=5 // pred_check
      _
    $region10: #{gearnet_forward.9} parent=5 // pred_check_branch
      %245 = sbr.rel (%p242) target = $region12
    $region11: #{gearnet_forward.9} parent=5 // pred_region
      %s246 = ssub.s32 %s14, 1
      // Predicated region
      $region13: #{gearnet_forward.9} parent=11 // pred_check
        %p247 = pneg %p75
      $region14: #{gearnet_forward.9} parent=11 // pred_check_branch
        %249 = sbr.rel (%p247) target = $region16
      $region15: #{gearnet_forward.9} parent=11 // pred_region
        _
      $region16: #{gearnet_forward.9} parent=11 // pred_fallthru
        _
      // Predicated region
      $region17: #{gearnet_forward.9} parent=11 // pred_check
        %p250 = pneg %p122
      $region18: #{gearnet_forward.9} parent=11 // pred_check_branch
        %252 = sbr.rel (%p250) target = $region20
      $region19: #{gearnet_forward.9} parent=11 // pred_region
        _
      $region20: #{gearnet_forward.9} parent=11 // pred_fallthru
        _
      // Predicated region
      $region21: #{gearnet_forward.9} parent=11 // pred_check
        %p253 = pneg %p143
      $region22: #{gearnet_forward.9} parent=11 // pred_check_branch
        %255 = sbr.rel (%p253) target = $region24
      $region23: #{gearnet_forward.9} parent=11 // pred_region
        _
      $region24: #{gearnet_forward.9} parent=11 // pred_fallthru
        _
      // Predicated region
      $region25: #{gearnet_forward.9} parent=11 // pred_check
        %p256 = pneg %p164
      $region26: #{gearnet_forward.9} parent=11 // pred_check_branch
        %258 = sbr.rel (%p256) target = $region28
      $region27: #{gearnet_forward.9} parent=11 // pred_region
        _
      $region28: #{gearnet_forward.9} parent=11 // pred_fallthru
        _
      // Predicated region
      $region29: #{gearnet_forward.9} parent=11 // pred_check
        %p259 = pneg %p185
      $region30: #{gearnet_forward.9} parent=11 // pred_check_branch
        %261 = sbr.rel (%p259) target = $region32
      $region31: #{gearnet_forward.9} parent=11 // pred_region
        _
      $region32: #{gearnet_forward.9} parent=11 // pred_fallthru
        _
      // Predicated region
      $region33: #{gearnet_forward.9} parent=11 // pred_check
        %p262 = pneg %p206
      $region34: #{gearnet_forward.9} parent=11 // pred_check_branch
        %264 = sbr.rel (%p262) target = $region36
      $region35: #{gearnet_forward.9} parent=11 // pred_region
        _
      $region36: #{gearnet_forward.9} parent=11 // pred_fallthru
        _
    $region12: #{gearnet_forward.9} parent=5 // pred_fallthru
      _
    %p265 = scmp.lt.s32.totalorder %s14, 6
    // Predicated region
    $region37: #{gearnet_forward.9} parent=5 // pred_check
      %p266 = pneg %p265
    $region38: #{gearnet_forward.9} parent=5 // pred_check_branch
      %268 = sbr.rel (%p266) target = $region40
    $region39: #{gearnet_forward.9} parent=5 // pred_region
      // Predicated region
      $region41: #{gearnet_forward.9} parent=39 // pred_check
        %p269 = pneg %p48
      $region42: #{gearnet_forward.9} parent=39 // pred_check_branch
        %271 = sbr.rel (%p269) target = $region44
      $region43: #{gearnet_forward.9} parent=39 // pred_region
        %p272 = scmp.lt.s32.totalorder %s22, 2
        %s273 = scalar_select %p272, %s22, 2
        %p274 = scmp.lt.s32.totalorder %s21, 1
        %s275 = scalar_select %p274, %s21, 1
        %s276 = smul.addr %s273, 2
        %s277 = sadd.s32 %s275, %s276
        %s278 = smul.addr %s277, 4
        %s279 = scalar_lea.vmem %s0, %s278
      $region44: #{gearnet_forward.9} parent=39 // pred_fallthru
        _
      // Predicated region
      $region45: #{gearnet_forward.9} parent=39 // pred_check
        %p280 = pneg %p95
      $region46: #{gearnet_forward.9} parent=39 // pred_check_branch
        %282 = sbr.rel (%p280) target = $region48
      $region47: #{gearnet_forward.9} parent=39 // pred_region
        %p283 = scmp.lt.s32.totalorder %s21, 1
        %s284 = scalar_select %p283, %s21, 1
        %s285 = smul.addr %s284, 4
        %s286 = smul.addr %s285, 4
        %s287 = scalar_lea.vmem %s2, %s286
      $region48: #{gearnet_forward.9} parent=39 // pred_fallthru
        _
    $region40: #{gearnet_forward.9} parent=5 // pred_fallthru
      _
    %p288 = scmp.le.s32.totalorder 1, %s14
    %p289 = scmp.lt.s32.totalorder %s14, 7
    %p290 = pnand %p288, %p289
    %p291 = pneg %p290
    // Predicated region
    $region49: #{gearnet_forward.9} parent=5 // pred_check
      _
    $region50: #{gearnet_forward.9} parent=5 // pred_check_branch
      %293 = sbr.rel (%p290) target = $region52
    $region51: #{gearnet_forward.9} parent=5 // pred_region
      %s294 = ssub.s32 %s14, 1
      %p295 = scmp.lt.s32.totalorder %s24, 2
      %s296 = scalar_select %p295, %s24, 2
      %p297 = scmp.lt.s32.totalorder %s23, 1
      %s298 = scalar_select %p297, %s23, 1
      %s299 = smul.addr %s296, 2
      %s300 = sadd.s32 %s298, %s299
      %s301 = smul.addr %s300, 4
      %s302 = scalar_lea.vmem %s0, %s301
      %p303 = pneg %p54
      %p304 = pneg %p51
      %p305 = pneg %p75
      %p306 = pneg %p72
      %p307 = scmp.lt.s32.totalorder %s23, 1
      %s308 = scalar_select %p307, %s23, 1
      %s309 = smul.addr %s308, 4
      %s310 = smul.addr %s309, 4
      %s311 = scalar_lea.vmem %s2, %s310
      %p312 = pneg %p101
      %p313 = pneg %p98
      %p314 = pneg %p122
      %p315 = pneg %p119
      %p316 = pneg %p143
      %p317 = pneg %p140
      %p318 = pneg %p164
      %p319 = pneg %p161
      %p320 = pneg %p185
      %p321 = pneg %p182
      %p322 = pneg %p206
      %p323 = pneg %p203
      %p324 = pneg %p232
      %p325 = pneg %p229
      %p326 = scmp.lt.s32.totalorder %s23, 1
      %s327 = scalar_select %p326, %s23, 1
      %s328 = smul.addr %s327, 4
      %s329 = smul.addr %s328, 4
      %s330 = scalar_lea.vmem %s8, %s329
      %p331 = scmp.lt.s32.totalorder %s24, 2
      %s332 = scalar_select %p331, %s24, 2
      %p333 = scmp.lt.s32.totalorder %s23, 1
      %s334 = scalar_select %p333, %s23, 1
      %s335 = smul.addr %s332, 2
      %s336 = sadd.s32 %s334, %s335
      %s337 = smul.addr %s336, 4
      %s338 = scalar_lea.vmem %s0, %s337
      %p339 = scmp.lt.s32.totalorder %s23, 1
      %s340 = scalar_select %p339, %s23, 1
      %s341 = smul.addr %s340, 4
      %s342 = smul.addr %s341, 4
      %s343 = scalar_lea.vmem %s2, %s342
      %p344 = scmp.lt.s32.totalorder %s23, 1
      %s345 = scalar_select %p344, %s23, 1
      %s346 = smul.addr %s345, 4
      %s347 = smul.addr %s346, 4
      %s348 = scalar_lea.vmem %s8, %s347
      %p350 = scmp.eq.s32.totalorder %s24, 0
      // Predicated region
      $region53: #{gearnet_forward.9} parent=51 // pred_check
        %p351 = pneg %p350
      $region54: #{gearnet_forward.9} parent=51 // pred_check_branch
        %353 = sbr.rel (%p351) target = $region56
      $region55: #{gearnet_forward.9} parent=51 // pred_region
        %v354 = vld [vmem:[%s343] sm:$0xff]
        %v355 = vld [vmem:[%s343 + $0x8] sm:$0xff]
        %v356 = vld [vmem:[%s4] sm:$0xff]
        %v357 = vld [vmem:[%s4 + $0x8] sm:$0xff]
        %v358 = vld [vmem:[%s4 + $0x10] sm:$0xff]
        %v359 = vld [vmem:[%s4 + $0x18] sm:$0xff]
        %v360 = vld [vmem:[%s4 + $0x20] sm:$0xff]
        %v361 = vld [vmem:[%s4 + $0x28] sm:$0xff]
        %v362 = vld [vmem:[%s4 + $0x30] sm:$0xff]
        %v363 = vld [vmem:[%s4 + $0x38] sm:$0xff]
        %v364 = vld [vmem:[%s4 + $0x40] sm:$0xff]
        %v365 = vld [vmem:[%s4 + $0x48] sm:$0xff]
        %v366 = vld [vmem:[%s4 + $0x50] sm:$0xff]
        %v367 = vld [vmem:[%s4 + $0x58] sm:$0xff]
        %v368 = vld [vmem:[%s4 + $0x60] sm:$0xff]
        %v369 = vld [vmem:[%s4 + $0x68] sm:$0xff]
        %v370 = vld [vmem:[%s4 + $0x70] sm:$0xff]
        %v371 = vld [vmem:[%s4 + $0x78] sm:$0xff]
        %v372 = vld [vmem:[%s4 + $0x80] sm:$0xff]
        %v373 = vld [vmem:[%s4 + $0x88] sm:$0xff]
        %v374 = vld [vmem:[%s4 + $0x90] sm:$0xff]
        %v375 = vld [vmem:[%s4 + $0x98] sm:$0xff]
        %v376 = vld [vmem:[%s4 + $0xa0] sm:$0xff]
        %v377 = vld [vmem:[%s4 + $0xa8] sm:$0xff]
        %v378 = vld [vmem:[%s4 + $0xb0] sm:$0xff]
        %v379 = vld [vmem:[%s4 + $0xb8] sm:$0xff]
        %v380 = vld [vmem:[%s4 + $0xc0] sm:$0xff]
        %v381 = vld [vmem:[%s4 + $0xc8] sm:$0xff]
        %v382 = vld [vmem:[%s4 + $0xd0] sm:$0xff]
        %v383 = vld [vmem:[%s4 + $0xd8] sm:$0xff]
        %v384 = vld [vmem:[%s4 + $0xe0] sm:$0xff]
        %v385 = vld [vmem:[%s4 + $0xe8] sm:$0xff]
        %v386 = vld [vmem:[%s4 + $0xf0] sm:$0xff]
        %v387 = vld [vmem:[%s4 + $0xf8] sm:$0xff]
        %v388 = vld [vmem:[%s4 + $0x100] sm:$0xff]
        %v389 = vld [vmem:[%s4 + $0x108] sm:$0xff]
        %v390 = vld [vmem:[%s4 + $0x110] sm:$0xff]
        %v391 = vld [vmem:[%s4 + $0x118] sm:$0xff]
        %v392 = vld [vmem:[%s4 + $0x120] sm:$0xff]
        %v393 = vld [vmem:[%s4 + $0x128] sm:$0xff]
        %v394 = vld [vmem:[%s4 + $0x130] sm:$0xff]
        %v395 = vld [vmem:[%s4 + $0x138] sm:$0xff]
        %v396 = vld [vmem:[%s4 + $0x140] sm:$0xff]
        %v397 = vld [vmem:[%s4 + $0x148] sm:$0xff]
        %v398 = vld [vmem:[%s4 + $0x150] sm:$0xff]
        %v399 = vld [vmem:[%s4 + $0x158] sm:$0xff]
        %v400 = vld [vmem:[%s4 + $0x160] sm:$0xff]
        %v401 = vld [vmem:[%s4 + $0x168] sm:$0xff]
        %v402 = vld [vmem:[%s4 + $0x170] sm:$0xff]
        %v403 = vld [vmem:[%s4 + $0x178] sm:$0xff]
        %v404 = vld [vmem:[%s4 + $0x180] sm:$0xff]
        %v405 = vld [vmem:[%s4 + $0x188] sm:$0xff]
        %v406 = vld [vmem:[%s4 + $0x190] sm:$0xff]
        %v407 = vld [vmem:[%s4 + $0x198] sm:$0xff]
        %v408 = vld [vmem:[%s4 + $0x1a0] sm:$0xff]
        %v409 = vld [vmem:[%s4 + $0x1a8] sm:$0xff]
        %v410 = vld [vmem:[%s4 + $0x1b0] sm:$0xff]
        %v411 = vld [vmem:[%s4 + $0x1b8] sm:$0xff]
        %v412 = vld [vmem:[%s4 + $0x1c0] sm:$0xff]
        %v413 = vld [vmem:[%s4 + $0x1c8] sm:$0xff]
        %v414 = vld [vmem:[%s4 + $0x1d0] sm:$0xff]
        %v415 = vld [vmem:[%s4 + $0x1d8] sm:$0xff]
        %v416 = vld [vmem:[%s4 + $0x1e0] sm:$0xff]
        %v417 = vld [vmem:[%s4 + $0x1e8] sm:$0xff]
        %v418 = vld [vmem:[%s4 + $0x1f0] sm:$0xff]
        %v419 = vld [vmem:[%s4 + $0x1f8] sm:$0xff]
        %v420 = vld [vmem:[%s4 + $0x200] sm:$0xff]
        %v421 = vld [vmem:[%s4 + $0x208] sm:$0xff]
        %v422 = vld [vmem:[%s4 + $0x210] sm:$0xff]
        %v423 = vld [vmem:[%s4 + $0x218] sm:$0xff]
        %v424 = vld [vmem:[%s4 + $0x220] sm:$0xff]
        %v425 = vld [vmem:[%s4 + $0x228] sm:$0xff]
        %v426 = vld [vmem:[%s4 + $0x230] sm:$0xff]
        %v427 = vld [vmem:[%s4 + $0x238] sm:$0xff]
        %v428 = vld [vmem:[%s4 + $0x240] sm:$0xff]
        %v429 = vld [vmem:[%s4 + $0x248] sm:$0xff]
        %v430 = vld [vmem:[%s4 + $0x250] sm:$0xff]
        %v431 = vld [vmem:[%s4 + $0x258] sm:$0xff]
        %v432 = vld [vmem:[%s4 + $0x260] sm:$0xff]
        %v433 = vld [vmem:[%s4 + $0x268] sm:$0xff]
        %v434 = vld [vmem:[%s4 + $0x270] sm:$0xff]
        %v435 = vld [vmem:[%s4 + $0x278] sm:$0xff]
        %v436 = vld [vmem:[%s4 + $0x280] sm:$0xff]
        %v437 = vld [vmem:[%s4 + $0x288] sm:$0xff]
        %v438 = vld [vmem:[%s4 + $0x290] sm:$0xff]
        %v439 = vld [vmem:[%s4 + $0x298] sm:$0xff]
        %v440 = vld [vmem:[%s4 + $0x2a0] sm:$0xff]
        %v441 = vld [vmem:[%s4 + $0x2a8] sm:$0xff]
        %v442 = vld [vmem:[%s4 + $0x2b0] sm:$0xff]
        %v443 = vld [vmem:[%s4 + $0x2b8] sm:$0xff]
        %v444 = vld [vmem:[%s4 + $0x2c0] sm:$0xff]
        %v445 = vld [vmem:[%s4 + $0x2c8] sm:$0xff]
        %v446 = vld [vmem:[%s4 + $0x2d0] sm:$0xff]
        %v447 = vld [vmem:[%s4 + $0x2d8] sm:$0xff]
        %v448 = vld [vmem:[%s4 + $0x2e0] sm:$0xff]
        %v449 = vld [vmem:[%s4 + $0x2e8] sm:$0xff]
        %v450 = vld [vmem:[%s4 + $0x2f0] sm:$0xff]
        %v451 = vld [vmem:[%s4 + $0x2f8] sm:$0xff]
        %v452 = vld [vmem:[%s4 + $0x300] sm:$0xff]
        %v453 = vld [vmem:[%s4 + $0x308] sm:$0xff]
        %v454 = vld [vmem:[%s4 + $0x310] sm:$0xff]
        %v455 = vld [vmem:[%s4 + $0x318] sm:$0xff]
        %v456 = vld [vmem:[%s4 + $0x320] sm:$0xff]
        %v457 = vld [vmem:[%s4 + $0x328] sm:$0xff]
        %v458 = vld [vmem:[%s4 + $0x330] sm:$0xff]
        %v459 = vld [vmem:[%s4 + $0x338] sm:$0xff]
        %v460 = vld [vmem:[%s4 + $0x340] sm:$0xff]
        %v461 = vld [vmem:[%s4 + $0x348] sm:$0xff]
        %v462 = vld [vmem:[%s4 + $0x350] sm:$0xff]
        %v463 = vld [vmem:[%s4 + $0x358] sm:$0xff]
        %v464 = vld [vmem:[%s4 + $0x360] sm:$0xff]
        %v465 = vld [vmem:[%s4 + $0x368] sm:$0xff]
        %v466 = vld [vmem:[%s4 + $0x370] sm:$0xff]
        %v467 = vld [vmem:[%s4 + $0x378] sm:$0xff]
        %v468 = vld [vmem:[%s4 + $0x380] sm:$0xff]
        %v469 = vld [vmem:[%s4 + $0x388] sm:$0xff]
        %v470 = vld [vmem:[%s4 + $0x390] sm:$0xff]
        %v471 = vld [vmem:[%s4 + $0x398] sm:$0xff]
        %v472 = vld [vmem:[%s4 + $0x3a0] sm:$0xff]
        %v473 = vld [vmem:[%s4 + $0x3a8] sm:$0xff]
        %v474 = vld [vmem:[%s4 + $0x3b0] sm:$0xff]
        %v475 = vld [vmem:[%s4 + $0x3b8] sm:$0xff]
        %v476 = vld [vmem:[%s4 + $0x3c0] sm:$0xff]
        %v477 = vld [vmem:[%s4 + $0x3c8] sm:$0xff]
        %v478 = vld [vmem:[%s4 + $0x3d0] sm:$0xff]
        %v479 = vld [vmem:[%s4 + $0x3d8] sm:$0xff]
        %v480 = vld [vmem:[%s4 + $0x3e0] sm:$0xff]
        %v481 = vld [vmem:[%s4 + $0x3e8] sm:$0xff]
        %v482 = vld [vmem:[%s4 + $0x3f0] sm:$0xff]
        %v483 = vld [vmem:[%s4 + $0x3f8] sm:$0xff]
        %v484 = vld [vmem:[%s5] sm:$0xf]
        %v486 = vlaneseq
        %v487 = vshrl.u32 %v486, 7
        %v488 = vsub.s32 0, %v487
        %v489 = vrot.slane %v484, %v488
        %v490 = vlaneseq
        %v491 = vshrl.u32 %v490, 7
        %v492 = vsub.s32 1, %v491
        %v493 = vrot.slane %v484, %v492
        %v494 = vlaneseq
        %v495 = vshrl.u32 %v494, 7
        %v496 = vsub.s32 2, %v495
        %v497 = vrot.slane %v484, %v496
        %v498 = vlaneseq
        %v499 = vshrl.u32 %v498, 7
        %v500 = vsub.s32 3, %v499
        %v501 = vrot.slane %v484, %v500
        %v508 = vunpack.c.l.b16 %v354
        %v509 = vunpack.c.h.b16 %v354
        %v510 = vunpack.c.l.b16 %v355
        %v511 = vunpack.c.h.b16 %v355
        %v512 = vpack.c.b16 %v508, %v508
        %v513 = vpack.c.b16 %v509, %v509
        %v514 = vpack.c.b16 %v510, %v510
        %v515 = vpack.c.b16 %v511, %v511
        %v648 = vunpack.c.l.b16 %v356
        %v649 = vunpack.c.h.b16 %v356
        %v650 = vunpack.c.l.b16 %v357
        %v651 = vunpack.c.h.b16 %v357
        %v652 = vunpack.c.l.b16 %v358
        %v653 = vunpack.c.h.b16 %v358
        %v654 = vunpack.c.l.b16 %v359
        %v655 = vunpack.c.h.b16 %v359
        %v656 = vunpack.c.l.b16 %v360
        %v657 = vunpack.c.h.b16 %v360
        %v658 = vunpack.c.l.b16 %v361
        %v659 = vunpack.c.h.b16 %v361
        %v660 = vunpack.c.l.b16 %v362
        %v661 = vunpack.c.h.b16 %v362
        %v662 = vunpack.c.l.b16 %v363
        %v663 = vunpack.c.h.b16 %v363
        %v664 = vunpack.c.l.b16 %v364
        %v665 = vunpack.c.h.b16 %v364
        %v666 = vunpack.c.l.b16 %v365
        %v667 = vunpack.c.h.b16 %v365
        %v668 = vunpack.c.l.b16 %v366
        %v669 = vunpack.c.h.b16 %v366
        %v670 = vunpack.c.l.b16 %v367
        %v671 = vunpack.c.h.b16 %v367
        %v672 = vunpack.c.l.b16 %v368
        %v673 = vunpack.c.h.b16 %v368
        %v674 = vunpack.c.l.b16 %v369
        %v675 = vunpack.c.h.b16 %v369
        %v676 = vunpack.c.l.b16 %v370
        %v677 = vunpack.c.h.b16 %v370
        %v678 = vunpack.c.l.b16 %v371
        %v679 = vunpack.c.h.b16 %v371
        %v680 = vunpack.c.l.b16 %v372
        %v681 = vunpack.c.h.b16 %v372
        %v682 = vunpack.c.l.b16 %v373
        %v683 = vunpack.c.h.b16 %v373
        %v684 = vunpack.c.l.b16 %v374
        %v685 = vunpack.c.h.b16 %v374
        %v686 = vunpack.c.l.b16 %v375
        %v687 = vunpack.c.h.b16 %v375
        %v688 = vunpack.c.l.b16 %v376
        %v689 = vunpack.c.h.b16 %v376
        %v690 = vunpack.c.l.b16 %v377
        %v691 = vunpack.c.h.b16 %v377
        %v692 = vunpack.c.l.b16 %v378
        %v693 = vunpack.c.h.b16 %v378
        %v694 = vunpack.c.l.b16 %v379
        %v695 = vunpack.c.h.b16 %v379
        %v696 = vunpack.c.l.b16 %v380
        %v697 = vunpack.c.h.b16 %v380
        %v698 = vunpack.c.l.b16 %v381
        %v699 = vunpack.c.h.b16 %v381
        %v700 = vunpack.c.l.b16 %v382
        %v701 = vunpack.c.h.b16 %v382
        %v702 = vunpack.c.l.b16 %v383
        %v703 = vunpack.c.h.b16 %v383
        %v704 = vunpack.c.l.b16 %v384
        %v705 = vunpack.c.h.b16 %v384
        %v706 = vunpack.c.l.b16 %v385
        %v707 = vunpack.c.h.b16 %v385
        %v708 = vunpack.c.l.b16 %v386
        %v709 = vunpack.c.h.b16 %v386
        %v710 = vunpack.c.l.b16 %v387
        %v711 = vunpack.c.h.b16 %v387
        %v712 = vunpack.c.l.b16 %v388
        %v713 = vunpack.c.h.b16 %v388
        %v714 = vunpack.c.l.b16 %v389
        %v715 = vunpack.c.h.b16 %v389
        %v716 = vunpack.c.l.b16 %v390
        %v717 = vunpack.c.h.b16 %v390
        %v718 = vunpack.c.l.b16 %v391
        %v719 = vunpack.c.h.b16 %v391
        %v720 = vunpack.c.l.b16 %v392
        %v721 = vunpack.c.h.b16 %v392
        %v722 = vunpack.c.l.b16 %v393
        %v723 = vunpack.c.h.b16 %v393
        %v724 = vunpack.c.l.b16 %v394
        %v725 = vunpack.c.h.b16 %v394
        %v726 = vunpack.c.l.b16 %v395
        %v727 = vunpack.c.h.b16 %v395
        %v728 = vunpack.c.l.b16 %v396
        %v729 = vunpack.c.h.b16 %v396
        %v730 = vunpack.c.l.b16 %v397
        %v731 = vunpack.c.h.b16 %v397
        %v732 = vunpack.c.l.b16 %v398
        %v733 = vunpack.c.h.b16 %v398
        %v734 = vunpack.c.l.b16 %v399
        %v735 = vunpack.c.h.b16 %v399
        %v736 = vunpack.c.l.b16 %v400
        %v737 = vunpack.c.h.b16 %v400
        %v738 = vunpack.c.l.b16 %v401
        %v739 = vunpack.c.h.b16 %v401
        %v740 = vunpack.c.l.b16 %v402
        %v741 = vunpack.c.h.b16 %v402
        %v742 = vunpack.c.l.b16 %v403
        %v743 = vunpack.c.h.b16 %v403
        %v744 = vunpack.c.l.b16 %v404
        %v745 = vunpack.c.h.b16 %v404
        %v746 = vunpack.c.l.b16 %v405
        %v747 = vunpack.c.h.b16 %v405
        %v748 = vunpack.c.l.b16 %v406
        %v749 = vunpack.c.h.b16 %v406
        %v750 = vunpack.c.l.b16 %v407
        %v751 = vunpack.c.h.b16 %v407
        %v752 = vunpack.c.l.b16 %v408
        %v753 = vunpack.c.h.b16 %v408
        %v754 = vunpack.c.l.b16 %v409
        %v755 = vunpack.c.h.b16 %v409
        %v756 = vunpack.c.l.b16 %v410
        %v757 = vunpack.c.h.b16 %v410
        %v758 = vunpack.c.l.b16 %v411
        %v759 = vunpack.c.h.b16 %v411
        %v760 = vunpack.c.l.b16 %v412
        %v761 = vunpack.c.h.b16 %v412
        %v762 = vunpack.c.l.b16 %v413
        %v763 = vunpack.c.h.b16 %v413
        %v764 = vunpack.c.l.b16 %v414
        %v765 = vunpack.c.h.b16 %v414
        %v766 = vunpack.c.l.b16 %v415
        %v767 = vunpack.c.h.b16 %v415
        %v768 = vunpack.c.l.b16 %v416
        %v769 = vunpack.c.h.b16 %v416
        %v770 = vunpack.c.l.b16 %v417
        %v771 = vunpack.c.h.b16 %v417
        %v772 = vunpack.c.l.b16 %v418
        %v773 = vunpack.c.h.b16 %v418
        %v774 = vunpack.c.l.b16 %v419
        %v775 = vunpack.c.h.b16 %v419
        %v776 = vunpack.c.l.b16 %v420
        %v777 = vunpack.c.h.b16 %v420
        %v778 = vunpack.c.l.b16 %v421
        %v779 = vunpack.c.h.b16 %v421
        %v780 = vunpack.c.l.b16 %v422
        %v781 = vunpack.c.h.b16 %v422
        %v782 = vunpack.c.l.b16 %v423
        %v783 = vunpack.c.h.b16 %v423
        %v784 = vunpack.c.l.b16 %v424
        %v785 = vunpack.c.h.b16 %v424
        %v786 = vunpack.c.l.b16 %v425
        %v787 = vunpack.c.h.b16 %v425
        %v788 = vunpack.c.l.b16 %v426
        %v789 = vunpack.c.h.b16 %v426
        %v790 = vunpack.c.l.b16 %v427
        %v791 = vunpack.c.h.b16 %v427
        %v792 = vunpack.c.l.b16 %v428
        %v793 = vunpack.c.h.b16 %v428
        %v794 = vunpack.c.l.b16 %v429
        %v795 = vunpack.c.h.b16 %v429
        %v796 = vunpack.c.l.b16 %v430
        %v797 = vunpack.c.h.b16 %v430
        %v798 = vunpack.c.l.b16 %v431
        %v799 = vunpack.c.h.b16 %v431
        %v800 = vunpack.c.l.b16 %v432
        %v801 = vunpack.c.h.b16 %v432
        %v802 = vunpack.c.l.b16 %v433
        %v803 = vunpack.c.h.b16 %v433
        %v804 = vunpack.c.l.b16 %v434
        %v805 = vunpack.c.h.b16 %v434
        %v806 = vunpack.c.l.b16 %v435
        %v807 = vunpack.c.h.b16 %v435
        %v808 = vunpack.c.l.b16 %v436
        %v809 = vunpack.c.h.b16 %v436
        %v810 = vunpack.c.l.b16 %v437
        %v811 = vunpack.c.h.b16 %v437
        %v812 = vunpack.c.l.b16 %v438
        %v813 = vunpack.c.h.b16 %v438
        %v814 = vunpack.c.l.b16 %v439
        %v815 = vunpack.c.h.b16 %v439
        %v816 = vunpack.c.l.b16 %v440
        %v817 = vunpack.c.h.b16 %v440
        %v818 = vunpack.c.l.b16 %v441
        %v819 = vunpack.c.h.b16 %v441
        %v820 = vunpack.c.l.b16 %v442
        %v821 = vunpack.c.h.b16 %v442
        %v822 = vunpack.c.l.b16 %v443
        %v823 = vunpack.c.h.b16 %v443
        %v824 = vunpack.c.l.b16 %v444
        %v825 = vunpack.c.h.b16 %v444
        %v826 = vunpack.c.l.b16 %v445
        %v827 = vunpack.c.h.b16 %v445
        %v828 = vunpack.c.l.b16 %v446
        %v829 = vunpack.c.h.b16 %v446
        %v830 = vunpack.c.l.b16 %v447
        %v831 = vunpack.c.h.b16 %v447
        %v832 = vunpack.c.l.b16 %v448
        %v833 = vunpack.c.h.b16 %v448
        %v834 = vunpack.c.l.b16 %v449
        %v835 = vunpack.c.h.b16 %v449
        %v836 = vunpack.c.l.b16 %v450
        %v837 = vunpack.c.h.b16 %v450
        %v838 = vunpack.c.l.b16 %v451
        %v839 = vunpack.c.h.b16 %v451
        %v840 = vunpack.c.l.b16 %v452
        %v841 = vunpack.c.h.b16 %v452
        %v842 = vunpack.c.l.b16 %v453
        %v843 = vunpack.c.h.b16 %v453
        %v844 = vunpack.c.l.b16 %v454
        %v845 = vunpack.c.h.b16 %v454
        %v846 = vunpack.c.l.b16 %v455
        %v847 = vunpack.c.h.b16 %v455
        %v848 = vunpack.c.l.b16 %v456
        %v849 = vunpack.c.h.b16 %v456
        %v850 = vunpack.c.l.b16 %v457
        %v851 = vunpack.c.h.b16 %v457
        %v852 = vunpack.c.l.b16 %v458
        %v853 = vunpack.c.h.b16 %v458
        %v854 = vunpack.c.l.b16 %v459
        %v855 = vunpack.c.h.b16 %v459
        %v856 = vunpack.c.l.b16 %v460
        %v857 = vunpack.c.h.b16 %v460
        %v858 = vunpack.c.l.b16 %v461
        %v859 = vunpack.c.h.b16 %v461
        %v860 = vunpack.c.l.b16 %v462
        %v861 = vunpack.c.h.b16 %v462
        %v862 = vunpack.c.l.b16 %v463
        %v863 = vunpack.c.h.b16 %v463
        %v864 = vunpack.c.l.b16 %v464
        %v865 = vunpack.c.h.b16 %v464
        %v866 = vunpack.c.l.b16 %v465
        %v867 = vunpack.c.h.b16 %v465
        %v868 = vunpack.c.l.b16 %v466
        %v869 = vunpack.c.h.b16 %v466
        %v870 = vunpack.c.l.b16 %v467
        %v871 = vunpack.c.h.b16 %v467
        %v872 = vunpack.c.l.b16 %v468
        %v873 = vunpack.c.h.b16 %v468
        %v874 = vunpack.c.l.b16 %v469
        %v875 = vunpack.c.h.b16 %v469
        %v876 = vunpack.c.l.b16 %v470
        %v877 = vunpack.c.h.b16 %v470
        %v878 = vunpack.c.l.b16 %v471
        %v879 = vunpack.c.h.b16 %v471
        %v880 = vunpack.c.l.b16 %v472
        %v881 = vunpack.c.h.b16 %v472
        %v882 = vunpack.c.l.b16 %v473
        %v883 = vunpack.c.h.b16 %v473
        %v884 = vunpack.c.l.b16 %v474
        %v885 = vunpack.c.h.b16 %v474
        %v886 = vunpack.c.l.b16 %v475
        %v887 = vunpack.c.h.b16 %v475
        %v888 = vunpack.c.l.b16 %v476
        %v889 = vunpack.c.h.b16 %v476
        %v890 = vunpack.c.l.b16 %v477
        %v891 = vunpack.c.h.b16 %v477
        %v892 = vunpack.c.l.b16 %v478
        %v893 = vunpack.c.h.b16 %v478
        %v894 = vunpack.c.l.b16 %v479
        %v895 = vunpack.c.h.b16 %v479
        %v896 = vunpack.c.l.b16 %v480
        %v897 = vunpack.c.h.b16 %v480
        %v898 = vunpack.c.l.b16 %v481
        %v899 = vunpack.c.h.b16 %v481
        %v900 = vunpack.c.l.b16 %v482
        %v901 = vunpack.c.h.b16 %v482
        %v902 = vunpack.c.l.b16 %v483
        %v903 = vunpack.c.h.b16 %v483
        %v904 = vpack.c.b16 %v652, %v648
        %v905 = vpack.c.b16 %v653, %v649
        %v906 = vpack.c.b16 %v654, %v650
        %v907 = vpack.c.b16 %v655, %v651
        %v908 = vpack.c.b16 %v660, %v656
        %v909 = vpack.c.b16 %v661, %v657
        %v910 = vpack.c.b16 %v662, %v658
        %v911 = vpack.c.b16 %v663, %v659
        %v912 = vpack.c.b16 %v668, %v664
        %v913 = vpack.c.b16 %v669, %v665
        %v914 = vpack.c.b16 %v670, %v666
        %v915 = vpack.c.b16 %v671, %v667
        %v916 = vpack.c.b16 %v676, %v672
        %v917 = vpack.c.b16 %v677, %v673
        %v918 = vpack.c.b16 %v678, %v674
        %v919 = vpack.c.b16 %v679, %v675
        %v920 = vpack.c.b16 %v684, %v680
        %v921 = vpack.c.b16 %v685, %v681
        %v922 = vpack.c.b16 %v686, %v682
        %v923 = vpack.c.b16 %v687, %v683
        %v924 = vpack.c.b16 %v692, %v688
        %v925 = vpack.c.b16 %v693, %v689
        %v926 = vpack.c.b16 %v694, %v690
        %v927 = vpack.c.b16 %v695, %v691
        %v928 = vpack.c.b16 %v700, %v696
        %v929 = vpack.c.b16 %v701, %v697
        %v930 = vpack.c.b16 %v702, %v698
        %v931 = vpack.c.b16 %v703, %v699
        %v932 = vpack.c.b16 %v708, %v704
        %v933 = vpack.c.b16 %v709, %v705
        %v934 = vpack.c.b16 %v710, %v706
        %v935 = vpack.c.b16 %v711, %v707
        %v936 = vpack.c.b16 %v716, %v712
        %v937 = vpack.c.b16 %v717, %v713
        %v938 = vpack.c.b16 %v718, %v714
        %v939 = vpack.c.b16 %v719, %v715
        %v940 = vpack.c.b16 %v724, %v720
        %v941 = vpack.c.b16 %v725, %v721
        %v942 = vpack.c.b16 %v726, %v722
        %v943 = vpack.c.b16 %v727, %v723
        %v944 = vpack.c.b16 %v732, %v728
        %v945 = vpack.c.b16 %v733, %v729
        %v946 = vpack.c.b16 %v734, %v730
        %v947 = vpack.c.b16 %v735, %v731
        %v948 = vpack.c.b16 %v740, %v736
        %v949 = vpack.c.b16 %v741, %v737
        %v950 = vpack.c.b16 %v742, %v738
        %v951 = vpack.c.b16 %v743, %v739
        %v952 = vpack.c.b16 %v748, %v744
        %v953 = vpack.c.b16 %v749, %v745
        %v954 = vpack.c.b16 %v750, %v746
        %v955 = vpack.c.b16 %v751, %v747
        %v956 = vpack.c.b16 %v756, %v752
        %v957 = vpack.c.b16 %v757, %v753
        %v958 = vpack.c.b16 %v758, %v754
        %v959 = vpack.c.b16 %v759, %v755
        %v960 = vpack.c.b16 %v764, %v760
        %v961 = vpack.c.b16 %v765, %v761
        %v962 = vpack.c.b16 %v766, %v762
        %v963 = vpack.c.b16 %v767, %v763
        %v964 = vpack.c.b16 %v772, %v768
        %v965 = vpack.c.b16 %v773, %v769
        %v966 = vpack.c.b16 %v774, %v770
        %v967 = vpack.c.b16 %v775, %v771
        %v968 = vpack.c.b16 %v780, %v776
        %v969 = vpack.c.b16 %v781, %v777
        %v970 = vpack.c.b16 %v782, %v778
        %v971 = vpack.c.b16 %v783, %v779
        %v972 = vpack.c.b16 %v788, %v784
        %v973 = vpack.c.b16 %v789, %v785
        %v974 = vpack.c.b16 %v790, %v786
        %v975 = vpack.c.b16 %v791, %v787
        %v976 = vpack.c.b16 %v796, %v792
        %v977 = vpack.c.b16 %v797, %v793
        %v978 = vpack.c.b16 %v798, %v794
        %v979 = vpack.c.b16 %v799, %v795
        %v980 = vpack.c.b16 %v804, %v800
        %v981 = vpack.c.b16 %v805, %v801
        %v982 = vpack.c.b16 %v806, %v802
        %v983 = vpack.c.b16 %v807, %v803
        %v984 = vpack.c.b16 %v812, %v808
        %v985 = vpack.c.b16 %v813, %v809
        %v986 = vpack.c.b16 %v814, %v810
        %v987 = vpack.c.b16 %v815, %v811
        %v988 = vpack.c.b16 %v820, %v816
        %v989 = vpack.c.b16 %v821, %v817
        %v990 = vpack.c.b16 %v822, %v818
        %v991 = vpack.c.b16 %v823, %v819
        %v992 = vpack.c.b16 %v828, %v824
        %v993 = vpack.c.b16 %v829, %v825
        %v994 = vpack.c.b16 %v830, %v826
        %v995 = vpack.c.b16 %v831, %v827
        %v996 = vpack.c.b16 %v836, %v832
        %v997 = vpack.c.b16 %v837, %v833
        %v998 = vpack.c.b16 %v838, %v834
        %v999 = vpack.c.b16 %v839, %v835
        %v1000 = vpack.c.b16 %v844, %v840
        %v1001 = vpack.c.b16 %v845, %v841
        %v1002 = vpack.c.b16 %v846, %v842
        %v1003 = vpack.c.b16 %v847, %v843
        %v1004 = vpack.c.b16 %v852, %v848
        %v1005 = vpack.c.b16 %v853, %v849
        %v1006 = vpack.c.b16 %v854, %v850
        %v1007 = vpack.c.b16 %v855, %v851
        %v1008 = vpack.c.b16 %v860, %v856
        %v1009 = vpack.c.b16 %v861, %v857
        %v1010 = vpack.c.b16 %v862, %v858
        %v1011 = vpack.c.b16 %v863, %v859
        %v1012 = vpack.c.b16 %v868, %v864
        %v1013 = vpack.c.b16 %v869, %v865
        %v1014 = vpack.c.b16 %v870, %v866
        %v1015 = vpack.c.b16 %v871, %v867
        %v1016 = vpack.c.b16 %v876, %v872
        %v1017 = vpack.c.b16 %v877, %v873
        %v1018 = vpack.c.b16 %v878, %v874
        %v1019 = vpack.c.b16 %v879, %v875
        %v1020 = vpack.c.b16 %v884, %v880
        %v1021 = vpack.c.b16 %v885, %v881
        %v1022 = vpack.c.b16 %v886, %v882
        %v1023 = vpack.c.b16 %v887, %v883
        %v1024 = vpack.c.b16 %v892, %v888
        %v1025 = vpack.c.b16 %v893, %v889
        %v1026 = vpack.c.b16 %v894, %v890
        %v1027 = vpack.c.b16 %v895, %v891
        %v1028 = vpack.c.b16 %v900, %v896
        %v1029 = vpack.c.b16 %v901, %v897
        %v1030 = vpack.c.b16 %v902, %v898
        %v1031 = vpack.c.b16 %v903, %v899
        %1160 = vmatprep.subr.bf16.mxu0 %v933
        %1161 = vmatpush1.bf16.msra.mxu0 %v932
        %1162 = vmatprep.subr.bf16.mxu0 %v929
        %1163 = vmatpush1.bf16.msra.mxu0 %v928
        %1164 = vmatprep.subr.bf16.mxu0 %v925
        %1165 = vmatpush1.bf16.msra.mxu0 %v924
        %1166 = vmatprep.subr.bf16.mxu0 %v921
        %1167 = vmatpush1.bf16.msra.mxu0 %v920
        %1168 = vmatprep.subr.bf16.mxu0 %v917
        %1169 = vmatpush1.bf16.msra.mxu0 %v916
        %1170 = vmatprep.subr.bf16.mxu0 %v913
        %1171 = vmatpush1.bf16.msra.mxu0 %v912
        %1172 = vmatprep.subr.bf16.mxu0 %v909
        %1173 = vmatpush1.bf16.msra.mxu0 %v908
        %1174 = vmatprep.subr.bf16.mxu0 %v905
        %1175 = vmatpush1.bf16.msra.mxu0 %v904
        %1176 = vmatprep.subr.bf16.mxu0 %v965
        %1177 = vmatpush2.bf16.msra.mxu0 %v964
        %1178 = vmatprep.subr.bf16.mxu0 %v961
        %1179 = vmatpush2.bf16.msra.mxu0 %v960
        %1180 = vmatprep.subr.bf16.mxu0 %v957
        %1181 = vmatpush2.bf16.msra.mxu0 %v956
        %1182 = vmatprep.subr.bf16.mxu0 %v953
        %1183 = vmatpush2.bf16.msra.mxu0 %v952
        %1184 = vmatprep.subr.bf16.mxu0 %v949
        %1185 = vmatpush2.bf16.msra.mxu0 %v948
        %1186 = vmatprep.subr.bf16.mxu0 %v945
        %1187 = vmatpush2.bf16.msra.mxu0 %v944
        %1188 = vmatprep.subr.bf16.mxu0 %v941
        %1189 = vmatpush2.bf16.msra.mxu0 %v940
        %1190 = vmatprep.subr.bf16.mxu0 %v937
        %1191 = vmatpush2.bf16.msra.mxu0 %v936
        %1192 = vmatprep.mubr.bf16.mxu0 %v513
        %1193 = vmatmul.mubr.bf16.gmra.mxu0 %v512
        %v1194 = vpop.f32.mrf.mxu0
        %v1195 = vadd.f32 %v489, %v1194
        %v1196 = vpop.f32.mrf.mxu0
        %v1197 = vadd.f32 %v493, %v1196
        %v1198 = vpop.f32.mrf.mxu0
        %v1199 = vpop.f32.mrf.mxu0
        %1200 = vdwg.mxu0
        %1201 = vmatprep.subr.bf16.mxu0 %v997
        %1202 = vmatpush1.bf16.msra.mxu0 %v996
        %1203 = vmatprep.subr.bf16.mxu0 %v993
        %1204 = vmatpush1.bf16.msra.mxu0 %v992
        %1205 = vmatprep.subr.bf16.mxu0 %v989
        %1206 = vmatpush1.bf16.msra.mxu0 %v988
        %1207 = vmatprep.subr.bf16.mxu0 %v985
        %1208 = vmatpush1.bf16.msra.mxu0 %v984
        %1209 = vmatprep.subr.bf16.mxu0 %v981
        %1210 = vmatpush1.bf16.msra.mxu0 %v980
        %1211 = vmatprep.subr.bf16.mxu0 %v977
        %1212 = vmatpush1.bf16.msra.mxu0 %v976
        %1213 = vmatprep.subr.bf16.mxu0 %v973
        %1214 = vmatpush1.bf16.msra.mxu0 %v972
        %1215 = vmatprep.subr.bf16.mxu0 %v969
        %1216 = vmatpush1.bf16.msra.mxu0 %v968
        %1217 = vmatprep.subr.bf16.mxu0 %v1029
        %1218 = vmatpush2.bf16.msra.mxu0 %v1028
        %1219 = vmatprep.subr.bf16.mxu0 %v1025
        %1220 = vmatpush2.bf16.msra.mxu0 %v1024
        %1221 = vmatprep.subr.bf16.mxu0 %v1021
        %1222 = vmatpush2.bf16.msra.mxu0 %v1020
        %1223 = vmatprep.subr.bf16.mxu0 %v1017
        %1224 = vmatpush2.bf16.msra.mxu0 %v1016
        %1225 = vmatprep.subr.bf16.mxu0 %v1013
        %1226 = vmatpush2.bf16.msra.mxu0 %v1012
        %1227 = vmatprep.subr.bf16.mxu0 %v1009
        %1228 = vmatpush2.bf16.msra.mxu0 %v1008
        %1229 = vmatprep.subr.bf16.mxu0 %v1005
        %1230 = vmatpush2.bf16.msra.mxu0 %v1004
        %1231 = vmatprep.subr.bf16.mxu0 %v1001
        %1232 = vmatpush2.bf16.msra.mxu0 %v1000
        %1233 = vmatprep.mubr.bf16.mxu0 %v515
        %1234 = vmatmul.mubr.bf16.gmra.mxu0 %v514
        %v1235 = vpop.f32.mrf.mxu0
        %v1236 = vadd.f32 %v1195, %v1235
        %v1237 = vpop.f32.mrf.mxu0
        %v1238 = vadd.f32 %v1197, %v1237
        %v1239 = vpop.f32.mrf.mxu0
        %v1240 = vpop.f32.mrf.mxu0
        %1241 = vdwg.mxu0
        %1242 = vmatprep.subr.bf16.mxu0 %v935
        %1243 = vmatpush1.bf16.msra.mxu0 %v934
        %1244 = vmatprep.subr.bf16.mxu0 %v931
        %1245 = vmatpush1.bf16.msra.mxu0 %v930
        %1246 = vmatprep.subr.bf16.mxu0 %v927
        %1247 = vmatpush1.bf16.msra.mxu0 %v926
        %1248 = vmatprep.subr.bf16.mxu0 %v923
        %1249 = vmatpush1.bf16.msra.mxu0 %v922
        %1250 = vmatprep.subr.bf16.mxu0 %v919
        %1251 = vmatpush1.bf16.msra.mxu0 %v918
        %1252 = vmatprep.subr.bf16.mxu0 %v915
        %1253 = vmatpush1.bf16.msra.mxu0 %v914
        %1254 = vmatprep.subr.bf16.mxu0 %v911
        %1255 = vmatpush1.bf16.msra.mxu0 %v910
        %1256 = vmatprep.subr.bf16.mxu0 %v907
        %1257 = vmatpush1.bf16.msra.mxu0 %v906
        %1258 = vmatprep.subr.bf16.mxu0 %v967
        %1259 = vmatpush2.bf16.msra.mxu0 %v966
        %1260 = vmatprep.subr.bf16.mxu0 %v963
        %1261 = vmatpush2.bf16.msra.mxu0 %v962
        %1262 = vmatprep.subr.bf16.mxu0 %v959
        %1263 = vmatpush2.bf16.msra.mxu0 %v958
        %1264 = vmatprep.subr.bf16.mxu0 %v955
        %1265 = vmatpush2.bf16.msra.mxu0 %v954
        %1266 = vmatprep.subr.bf16.mxu0 %v951
        %1267 = vmatpush2.bf16.msra.mxu0 %v950
        %1268 = vmatprep.subr.bf16.mxu0 %v947
        %1269 = vmatpush2.bf16.msra.mxu0 %v946
        %1270 = vmatprep.subr.bf16.mxu0 %v943
        %1271 = vmatpush2.bf16.msra.mxu0 %v942
        %1272 = vmatprep.subr.bf16.mxu0 %v939
        %1273 = vmatpush2.bf16.msra.mxu0 %v938
        %1274 = vmatprep.mubr.bf16.mxu0 %v513
        %1275 = vmatmul.mubr.bf16.gmra.mxu0 %v512
        %v1276 = vpop.f32.mrf.mxu0
        %v1277 = vadd.f32 %v497, %v1276
        %v1278 = vpop.f32.mrf.mxu0
        %v1279 = vadd.f32 %v501, %v1278
        %v1280 = vpop.f32.mrf.mxu0
        %v1281 = vpop.f32.mrf.mxu0
        %1282 = vdwg.mxu0
        %1283 = vmatprep.subr.bf16.mxu0 %v999
        %1284 = vmatpush1.bf16.msra.mxu0 %v998
        %1285 = vmatprep.subr.bf16.mxu0 %v995
        %1286 = vmatpush1.bf16.msra.mxu0 %v994
        %1287 = vmatprep.subr.bf16.mxu0 %v991
        %1288 = vmatpush1.bf16.msra.mxu0 %v990
        %1289 = vmatprep.subr.bf16.mxu0 %v987
        %1290 = vmatpush1.bf16.msra.mxu0 %v986
        %1291 = vmatprep.subr.bf16.mxu0 %v983
        %1292 = vmatpush1.bf16.msra.mxu0 %v982
        %1293 = vmatprep.subr.bf16.mxu0 %v979
        %1294 = vmatpush1.bf16.msra.mxu0 %v978
        %1295 = vmatprep.subr.bf16.mxu0 %v975
        %1296 = vmatpush1.bf16.msra.mxu0 %v974
        %1297 = vmatprep.subr.bf16.mxu0 %v971
        %1298 = vmatpush1.bf16.msra.mxu0 %v970
        %1299 = vmatprep.subr.bf16.mxu0 %v1031
        %1300 = vmatpush2.bf16.msra.mxu0 %v1030
        %1301 = vmatprep.subr.bf16.mxu0 %v1027
        %1302 = vmatpush2.bf16.msra.mxu0 %v1026
        %1303 = vmatprep.subr.bf16.mxu0 %v1023
        %1304 = vmatpush2.bf16.msra.mxu0 %v1022
        %1305 = vmatprep.subr.bf16.mxu0 %v1019
        %1306 = vmatpush2.bf16.msra.mxu0 %v1018
        %1307 = vmatprep.subr.bf16.mxu0 %v1015
        %1308 = vmatpush2.bf16.msra.mxu0 %v1014
        %1309 = vmatprep.subr.bf16.mxu0 %v1011
        %1310 = vmatpush2.bf16.msra.mxu0 %v1010
        %1311 = vmatprep.subr.bf16.mxu0 %v1007
        %1312 = vmatpush2.bf16.msra.mxu0 %v1006
        %1313 = vmatprep.subr.bf16.mxu0 %v1003
        %1314 = vmatpush2.bf16.msra.mxu0 %v1002
        %1315 = vmatprep.mubr.bf16.mxu0 %v515
        %1316 = vmatmul.mubr.bf16.gmra.mxu0 %v514
        %v1317 = vpop.f32.mrf.mxu0
        %v1318 = vadd.f32 %v1277, %v1317
        %v1319 = vpop.f32.mrf.mxu0
        %v1320 = vadd.f32 %v1279, %v1319
        %v1321 = vpop.f32.mrf.mxu0
        %v1322 = vpop.f32.mrf.mxu0
        %1323 = vdwg.mxu0
        %1324 = vst [vmem:[#allocation2] sm:$0xff] %v1236
        %1325 = vst [vmem:[#allocation2 + $0x8] sm:$0xff] %v1238
        %1326 = vst [vmem:[#allocation2 + $0x10] sm:$0xff] %v1318
        %1327 = vst [vmem:[#allocation2 + $0x18] sm:$0xff] %v1320
      $region56: #{gearnet_forward.9} parent=51 // pred_fallthru
        _
      %v1328 = vld [vmem:[%s338] sm:$0xf]
      %v1329 = vld [vmem:[%s1] sm:$0xff]
      %v1330 = vld [vmem:[%s1 + $0x8] sm:$0xff]
      %v1331 = vld [vmem:[%s1 + $0x10] sm:$0xff]
      %v1332 = vld [vmem:[%s1 + $0x18] sm:$0xff]
      %v1337 = vunpack.c.l.b16 %v1329
      %v1338 = vunpack.c.h.b16 %v1329
      %v1339 = vunpack.c.l.b16 %v1330
      %v1340 = vunpack.c.h.b16 %v1330
      %v1341 = vunpack.c.l.b16 %v1331
      %v1342 = vunpack.c.h.b16 %v1331
      %v1343 = vunpack.c.l.b16 %v1332
      %v1344 = vunpack.c.h.b16 %v1332
      %v1345 = vpack.c.b16 %v1341, %v1337
      %v1346 = vpack.c.b16 %v1342, %v1338
      %v1347 = vpack.c.b16 %v1343, %v1339
      %v1348 = vpack.c.b16 %v1344, %v1340
      %vm1353 = vcmask 130048
      %v1355 = vsel %vm1353, %v1328, 0
      %1357 = vmatprep.subr.bf16.mxu0 0
      %1358 = vmatpush1.bf16.msra.mxu0 0
      %1359 = vmatprep.subr.bf16.mxu0 0
      %1360 = vmatpush1.bf16.msra.mxu0 0
      %1361 = vmatprep.subr.bf16.mxu0 0
      %1362 = vmatpush1.bf16.msra.mxu0 0
      %1363 = vmatprep.subr.bf16.mxu0 0
      %1364 = vmatpush1.bf16.msra.mxu0 0
      %1365 = vmatprep.subr.bf16.mxu0 0
      %1366 = vmatpush1.bf16.msra.mxu0 0
      %1367 = vmatprep.subr.bf16.mxu0 0
      %1368 = vmatpush1.bf16.msra.mxu0 0
      %1369 = vmatprep.subr.bf16.mxu0 0
      %1370 = vmatpush1.bf16.msra.mxu0 0
      %1371 = vmatprep.subr.bf16.mxu0 %v1346
      %1372 = vmatpush1.bf16.msra.mxu0 %v1345
      %1373 = vmatprep.subr.bf16.mxu0 0
      %1374 = vmatpush2.bf16.msra.mxu0 0
      %1375 = vmatprep.subr.bf16.mxu0 0
      %1376 = vmatpush2.bf16.msra.mxu0 0
      %1377 = vmatprep.subr.bf16.mxu0 0
      %1378 = vmatpush2.bf16.msra.mxu0 0
      %1379 = vmatprep.subr.bf16.mxu0 0
      %1380 = vmatpush2.bf16.msra.mxu0 0
      %1381 = vmatprep.subr.bf16.mxu0 0
      %1382 = vmatpush2.bf16.msra.mxu0 0
      %1383 = vmatprep.subr.bf16.mxu0 0
      %1384 = vmatpush2.bf16.msra.mxu0 0
      %1385 = vmatprep.subr.bf16.mxu0 0
      %1386 = vmatpush2.bf16.msra.mxu0 0
      %1387 = vmatprep.subr.bf16.mxu0 0
      %1388 = vmatpush2.bf16.msra.mxu0 0
      %1389 = vmatprep.mubr.bf16.mxu0 0
      %1390 = vmatmul.mubr.bf16.gmra.mxu0 %v1355
      %v1391 = vpop.f32.mrf.mxu0
      %v1392 = vadd.f32 0.0, %v1391
      %v1393 = vpop.f32.mrf.mxu0
      %v1394 = vadd.f32 0.0, %v1393
      %v1395 = vpop.f32.mrf.mxu0
      %v1396 = vpop.f32.mrf.mxu0
      %1397 = vdwg.mxu0
      %1398 = vmatprep.subr.bf16.mxu0 0
      %1399 = vmatpush1.bf16.msra.mxu0 0
      %1400 = vmatprep.subr.bf16.mxu0 0
      %1401 = vmatpush1.bf16.msra.mxu0 0
      %1402 = vmatprep.subr.bf16.mxu0 0
      %1403 = vmatpush1.bf16.msra.mxu0 0
      %1404 = vmatprep.subr.bf16.mxu0 0
      %1405 = vmatpush1.bf16.msra.mxu0 0
      %1406 = vmatprep.subr.bf16.mxu0 0
      %1407 = vmatpush1.bf16.msra.mxu0 0
      %1408 = vmatprep.subr.bf16.mxu0 0
      %1409 = vmatpush1.bf16.msra.mxu0 0
      %1410 = vmatprep.subr.bf16.mxu0 0
      %1411 = vmatpush1.bf16.msra.mxu0 0
      %1412 = vmatprep.subr.bf16.mxu0 %v1348
      %1413 = vmatpush1.bf16.msra.mxu0 %v1347
      %1414 = vmatprep.subr.bf16.mxu0 0
      %1415 = vmatpush2.bf16.msra.mxu0 0
      %1416 = vmatprep.subr.bf16.mxu0 0
      %1417 = vmatpush2.bf16.msra.mxu0 0
      %1418 = vmatprep.subr.bf16.mxu0 0
      %1419 = vmatpush2.bf16.msra.mxu0 0
      %1420 = vmatprep.subr.bf16.mxu0 0
      %1421 = vmatpush2.bf16.msra.mxu0 0
      %1422 = vmatprep.subr.bf16.mxu0 0
      %1423 = vmatpush2.bf16.msra.mxu0 0
      %1424 = vmatprep.subr.bf16.mxu0 0
      %1425 = vmatpush2.bf16.msra.mxu0 0
      %1426 = vmatprep.subr.bf16.mxu0 0
      %1427 = vmatpush2.bf16.msra.mxu0 0
      %1428 = vmatprep.subr.bf16.mxu0 0
      %1429 = vmatpush2.bf16.msra.mxu0 0
      %1430 = vmatprep.mubr.bf16.mxu0 0
      %1431 = vmatmul.mubr.bf16.gmra.mxu0 %v1355
      %v1432 = vpop.f32.mrf.mxu0
      %v1433 = vadd.f32 0.0, %v1432
      %v1434 = vpop.f32.mrf.mxu0
      %v1435 = vadd.f32 0.0, %v1434
      %v1436 = vpop.f32.mrf.mxu0
      %v1437 = vpop.f32.mrf.mxu0
      %1438 = vdwg.mxu0
      %v1439 = vld [vmem:[#allocation2] sm:$0xff]
      %v1440 = vld [vmem:[#allocation2 + $0x8] sm:$0xff]
      %v1441 = vld [vmem:[#allocation2 + $0x10] sm:$0xff]
      %v1442 = vld [vmem:[#allocation2 + $0x18] sm:$0xff]
      %v1443 = vpack.c.bf16 %v1392, %v1392
      %v1444 = vpack.c.bf16 %v1394, %v1394
      %v1445 = vpack.c.bf16 %v1433, %v1433
      %v1446 = vpack.c.bf16 %v1435, %v1435
      %s1447 = smul.u32 %s24, 256
      %s1448 = smul.addr %s1447, 4
      %s1449 = scalar_lea.vmem %s3, %s1448
      %v1450 = vld [vmem:[%s1449] sm:$0xff]
      %v1451 = vld [vmem:[%s1449 + $0x8] sm:$0xff]
      %v1452 = vld [vmem:[%s1449 + $0x10] sm:$0xff]
      %v1453 = vld [vmem:[%s1449 + $0x18] sm:$0xff]
      %v1454 = vld [vmem:[%s1449 + $0x20] sm:$0xff]
      %v1455 = vld [vmem:[%s1449 + $0x28] sm:$0xff]
      %v1456 = vld [vmem:[%s1449 + $0x30] sm:$0xff]
      %v1457 = vld [vmem:[%s1449 + $0x38] sm:$0xff]
      %v1458 = vld [vmem:[%s1449 + $0x40] sm:$0xff]
      %v1459 = vld [vmem:[%s1449 + $0x48] sm:$0xff]
      %v1460 = vld [vmem:[%s1449 + $0x50] sm:$0xff]
      %v1461 = vld [vmem:[%s1449 + $0x58] sm:$0xff]
      %v1462 = vld [vmem:[%s1449 + $0x60] sm:$0xff]
      %v1463 = vld [vmem:[%s1449 + $0x68] sm:$0xff]
      %v1464 = vld [vmem:[%s1449 + $0x70] sm:$0xff]
      %v1465 = vld [vmem:[%s1449 + $0x78] sm:$0xff]
      %v1466 = vld [vmem:[%s1449 + $0x80] sm:$0xff]
      %v1467 = vld [vmem:[%s1449 + $0x88] sm:$0xff]
      %v1468 = vld [vmem:[%s1449 + $0x90] sm:$0xff]
      %v1469 = vld [vmem:[%s1449 + $0x98] sm:$0xff]
      %v1470 = vld [vmem:[%s1449 + $0xa0] sm:$0xff]
      %v1471 = vld [vmem:[%s1449 + $0xa8] sm:$0xff]
      %v1472 = vld [vmem:[%s1449 + $0xb0] sm:$0xff]
      %v1473 = vld [vmem:[%s1449 + $0xb8] sm:$0xff]
      %v1474 = vld [vmem:[%s1449 + $0xc0] sm:$0xff]
      %v1475 = vld [vmem:[%s1449 + $0xc8] sm:$0xff]
      %v1476 = vld [vmem:[%s1449 + $0xd0] sm:$0xff]
      %v1477 = vld [vmem:[%s1449 + $0xd8] sm:$0xff]
      %v1478 = vld [vmem:[%s1449 + $0xe0] sm:$0xff]
      %v1479 = vld [vmem:[%s1449 + $0xe8] sm:$0xff]
      %v1480 = vld [vmem:[%s1449 + $0xf0] sm:$0xff]
      %v1481 = vld [vmem:[%s1449 + $0xf8] sm:$0xff]
      %v1482 = vld [vmem:[%s1449 + $0x100] sm:$0xff]
      %v1483 = vld [vmem:[%s1449 + $0x108] sm:$0xff]
      %v1484 = vld [vmem:[%s1449 + $0x110] sm:$0xff]
      %v1485 = vld [vmem:[%s1449 + $0x118] sm:$0xff]
      %v1486 = vld [vmem:[%s1449 + $0x120] sm:$0xff]
      %v1487 = vld [vmem:[%s1449 + $0x128] sm:$0xff]
      %v1488 = vld [vmem:[%s1449 + $0x130] sm:$0xff]
      %v1489 = vld [vmem:[%s1449 + $0x138] sm:$0xff]
      %v1490 = vld [vmem:[%s1449 + $0x140] sm:$0xff]
      %v1491 = vld [vmem:[%s1449 + $0x148] sm:$0xff]
      %v1492 = vld [vmem:[%s1449 + $0x150] sm:$0xff]
      %v1493 = vld [vmem:[%s1449 + $0x158] sm:$0xff]
      %v1494 = vld [vmem:[%s1449 + $0x160] sm:$0xff]
      %v1495 = vld [vmem:[%s1449 + $0x168] sm:$0xff]
      %v1496 = vld [vmem:[%s1449 + $0x170] sm:$0xff]
      %v1497 = vld [vmem:[%s1449 + $0x178] sm:$0xff]
      %v1498 = vld [vmem:[%s1449 + $0x180] sm:$0xff]
      %v1499 = vld [vmem:[%s1449 + $0x188] sm:$0xff]
      %v1500 = vld [vmem:[%s1449 + $0x190] sm:$0xff]
      %v1501 = vld [vmem:[%s1449 + $0x198] sm:$0xff]
      %v1502 = vld [vmem:[%s1449 + $0x1a0] sm:$0xff]
      %v1503 = vld [vmem:[%s1449 + $0x1a8] sm:$0xff]
      %v1504 = vld [vmem:[%s1449 + $0x1b0] sm:$0xff]
      %v1505 = vld [vmem:[%s1449 + $0x1b8] sm:$0xff]
      %v1506 = vld [vmem:[%s1449 + $0x1c0] sm:$0xff]
      %v1507 = vld [vmem:[%s1449 + $0x1c8] sm:$0xff]
      %v1508 = vld [vmem:[%s1449 + $0x1d0] sm:$0xff]
      %v1509 = vld [vmem:[%s1449 + $0x1d8] sm:$0xff]
      %v1510 = vld [vmem:[%s1449 + $0x1e0] sm:$0xff]
      %v1511 = vld [vmem:[%s1449 + $0x1e8] sm:$0xff]
      %v1512 = vld [vmem:[%s1449 + $0x1f0] sm:$0xff]
      %v1513 = vld [vmem:[%s1449 + $0x1f8] sm:$0xff]
      %v1514 = vld [vmem:[%s1449 + $0x200] sm:$0xff]
      %v1515 = vld [vmem:[%s1449 + $0x208] sm:$0xff]
      %v1516 = vld [vmem:[%s1449 + $0x210] sm:$0xff]
      %v1517 = vld [vmem:[%s1449 + $0x218] sm:$0xff]
      %v1518 = vld [vmem:[%s1449 + $0x220] sm:$0xff]
      %v1519 = vld [vmem:[%s1449 + $0x228] sm:$0xff]
      %v1520 = vld [vmem:[%s1449 + $0x230] sm:$0xff]
      %v1521 = vld [vmem:[%s1449 + $0x238] sm:$0xff]
      %v1522 = vld [vmem:[%s1449 + $0x240] sm:$0xff]
      %v1523 = vld [vmem:[%s1449 + $0x248] sm:$0xff]
      %v1524 = vld [vmem:[%s1449 + $0x250] sm:$0xff]
      %v1525 = vld [vmem:[%s1449 + $0x258] sm:$0xff]
      %v1526 = vld [vmem:[%s1449 + $0x260] sm:$0xff]
      %v1527 = vld [vmem:[%s1449 + $0x268] sm:$0xff]
      %v1528 = vld [vmem:[%s1449 + $0x270] sm:$0xff]
      %v1529 = vld [vmem:[%s1449 + $0x278] sm:$0xff]
      %v1530 = vld [vmem:[%s1449 + $0x280] sm:$0xff]
      %v1531 = vld [vmem:[%s1449 + $0x288] sm:$0xff]
      %v1532 = vld [vmem:[%s1449 + $0x290] sm:$0xff]
      %v1533 = vld [vmem:[%s1449 + $0x298] sm:$0xff]
      %v1534 = vld [vmem:[%s1449 + $0x2a0] sm:$0xff]
      %v1535 = vld [vmem:[%s1449 + $0x2a8] sm:$0xff]
      %v1536 = vld [vmem:[%s1449 + $0x2b0] sm:$0xff]
      %v1537 = vld [vmem:[%s1449 + $0x2b8] sm:$0xff]
      %v1538 = vld [vmem:[%s1449 + $0x2c0] sm:$0xff]
      %v1539 = vld [vmem:[%s1449 + $0x2c8] sm:$0xff]
      %v1540 = vld [vmem:[%s1449 + $0x2d0] sm:$0xff]
      %v1541 = vld [vmem:[%s1449 + $0x2d8] sm:$0xff]
      %v1542 = vld [vmem:[%s1449 + $0x2e0] sm:$0xff]
      %v1543 = vld [vmem:[%s1449 + $0x2e8] sm:$0xff]
      %v1544 = vld [vmem:[%s1449 + $0x2f0] sm:$0xff]
      %v1545 = vld [vmem:[%s1449 + $0x2f8] sm:$0xff]
      %v1546 = vld [vmem:[%s1449 + $0x300] sm:$0xff]
      %v1547 = vld [vmem:[%s1449 + $0x308] sm:$0xff]
      %v1548 = vld [vmem:[%s1449 + $0x310] sm:$0xff]
      %v1549 = vld [vmem:[%s1449 + $0x318] sm:$0xff]
      %v1550 = vld [vmem:[%s1449 + $0x320] sm:$0xff]
      %v1551 = vld [vmem:[%s1449 + $0x328] sm:$0xff]
      %v1552 = vld [vmem:[%s1449 + $0x330] sm:$0xff]
      %v1553 = vld [vmem:[%s1449 + $0x338] sm:$0xff]
      %v1554 = vld [vmem:[%s1449 + $0x340] sm:$0xff]
      %v1555 = vld [vmem:[%s1449 + $0x348] sm:$0xff]
      %v1556 = vld [vmem:[%s1449 + $0x350] sm:$0xff]
      %v1557 = vld [vmem:[%s1449 + $0x358] sm:$0xff]
      %v1558 = vld [vmem:[%s1449 + $0x360] sm:$0xff]
      %v1559 = vld [vmem:[%s1449 + $0x368] sm:$0xff]
      %v1560 = vld [vmem:[%s1449 + $0x370] sm:$0xff]
      %v1561 = vld [vmem:[%s1449 + $0x378] sm:$0xff]
      %v1562 = vld [vmem:[%s1449 + $0x380] sm:$0xff]
      %v1563 = vld [vmem:[%s1449 + $0x388] sm:$0xff]
      %v1564 = vld [vmem:[%s1449 + $0x390] sm:$0xff]
      %v1565 = vld [vmem:[%s1449 + $0x398] sm:$0xff]
      %v1566 = vld [vmem:[%s1449 + $0x3a0] sm:$0xff]
      %v1567 = vld [vmem:[%s1449 + $0x3a8] sm:$0xff]
      %v1568 = vld [vmem:[%s1449 + $0x3b0] sm:$0xff]
      %v1569 = vld [vmem:[%s1449 + $0x3b8] sm:$0xff]
      %v1570 = vld [vmem:[%s1449 + $0x3c0] sm:$0xff]
      %v1571 = vld [vmem:[%s1449 + $0x3c8] sm:$0xff]
      %v1572 = vld [vmem:[%s1449 + $0x3d0] sm:$0xff]
      %v1573 = vld [vmem:[%s1449 + $0x3d8] sm:$0xff]
      %v1574 = vld [vmem:[%s1449 + $0x3e0] sm:$0xff]
      %v1575 = vld [vmem:[%s1449 + $0x3e8] sm:$0xff]
      %v1576 = vld [vmem:[%s1449 + $0x3f0] sm:$0xff]
      %v1577 = vld [vmem:[%s1449 + $0x3f8] sm:$0xff]
      %v1706 = vunpack.c.l.b16 %v1450
      %v1707 = vunpack.c.h.b16 %v1450
      %v1708 = vunpack.c.l.b16 %v1451
      %v1709 = vunpack.c.h.b16 %v1451
      %v1710 = vunpack.c.l.b16 %v1452
      %v1711 = vunpack.c.h.b16 %v1452
      %v1712 = vunpack.c.l.b16 %v1453
      %v1713 = vunpack.c.h.b16 %v1453
      %v1714 = vunpack.c.l.b16 %v1454
      %v1715 = vunpack.c.h.b16 %v1454
      %v1716 = vunpack.c.l.b16 %v1455
      %v1717 = vunpack.c.h.b16 %v1455
      %v1718 = vunpack.c.l.b16 %v1456
      %v1719 = vunpack.c.h.b16 %v1456
      %v1720 = vunpack.c.l.b16 %v1457
      %v1721 = vunpack.c.h.b16 %v1457
      %v1722 = vunpack.c.l.b16 %v1458
      %v1723 = vunpack.c.h.b16 %v1458
      %v1724 = vunpack.c.l.b16 %v1459
      %v1725 = vunpack.c.h.b16 %v1459
      %v1726 = vunpack.c.l.b16 %v1460
      %v1727 = vunpack.c.h.b16 %v1460
      %v1728 = vunpack.c.l.b16 %v1461
      %v1729 = vunpack.c.h.b16 %v1461
      %v1730 = vunpack.c.l.b16 %v1462
      %v1731 = vunpack.c.h.b16 %v1462
      %v1732 = vunpack.c.l.b16 %v1463
      %v1733 = vunpack.c.h.b16 %v1463
      %v1734 = vunpack.c.l.b16 %v1464
      %v1735 = vunpack.c.h.b16 %v1464
      %v1736 = vunpack.c.l.b16 %v1465
      %v1737 = vunpack.c.h.b16 %v1465
      %v1738 = vunpack.c.l.b16 %v1466
      %v1739 = vunpack.c.h.b16 %v1466
      %v1740 = vunpack.c.l.b16 %v1467
      %v1741 = vunpack.c.h.b16 %v1467
      %v1742 = vunpack.c.l.b16 %v1468
      %v1743 = vunpack.c.h.b16 %v1468
      %v1744 = vunpack.c.l.b16 %v1469
      %v1745 = vunpack.c.h.b16 %v1469
      %v1746 = vunpack.c.l.b16 %v1470
      %v1747 = vunpack.c.h.b16 %v1470
      %v1748 = vunpack.c.l.b16 %v1471
      %v1749 = vunpack.c.h.b16 %v1471
      %v1750 = vunpack.c.l.b16 %v1472
      %v1751 = vunpack.c.h.b16 %v1472
      %v1752 = vunpack.c.l.b16 %v1473
      %v1753 = vunpack.c.h.b16 %v1473
      %v1754 = vunpack.c.l.b16 %v1474
      %v1755 = vunpack.c.h.b16 %v1474
      %v1756 = vunpack.c.l.b16 %v1475
      %v1757 = vunpack.c.h.b16 %v1475
      %v1758 = vunpack.c.l.b16 %v1476
      %v1759 = vunpack.c.h.b16 %v1476
      %v1760 = vunpack.c.l.b16 %v1477
      %v1761 = vunpack.c.h.b16 %v1477
      %v1762 = vunpack.c.l.b16 %v1478
      %v1763 = vunpack.c.h.b16 %v1478
      %v1764 = vunpack.c.l.b16 %v1479
      %v1765 = vunpack.c.h.b16 %v1479
      %v1766 = vunpack.c.l.b16 %v1480
      %v1767 = vunpack.c.h.b16 %v1480
      %v1768 = vunpack.c.l.b16 %v1481
      %v1769 = vunpack.c.h.b16 %v1481
      %v1770 = vunpack.c.l.b16 %v1482
      %v1771 = vunpack.c.h.b16 %v1482
      %v1772 = vunpack.c.l.b16 %v1483
      %v1773 = vunpack.c.h.b16 %v1483
      %v1774 = vunpack.c.l.b16 %v1484
      %v1775 = vunpack.c.h.b16 %v1484
      %v1776 = vunpack.c.l.b16 %v1485
      %v1777 = vunpack.c.h.b16 %v1485
      %v1778 = vunpack.c.l.b16 %v1486
      %v1779 = vunpack.c.h.b16 %v1486
      %v1780 = vunpack.c.l.b16 %v1487
      %v1781 = vunpack.c.h.b16 %v1487
      %v1782 = vunpack.c.l.b16 %v1488
      %v1783 = vunpack.c.h.b16 %v1488
      %v1784 = vunpack.c.l.b16 %v1489
      %v1785 = vunpack.c.h.b16 %v1489
      %v1786 = vunpack.c.l.b16 %v1490
      %v1787 = vunpack.c.h.b16 %v1490
      %v1788 = vunpack.c.l.b16 %v1491
      %v1789 = vunpack.c.h.b16 %v1491
      %v1790 = vunpack.c.l.b16 %v1492
      %v1791 = vunpack.c.h.b16 %v1492
      %v1792 = vunpack.c.l.b16 %v1493
      %v1793 = vunpack.c.h.b16 %v1493
      %v1794 = vunpack.c.l.b16 %v1494
      %v1795 = vunpack.c.h.b16 %v1494
      %v1796 = vunpack.c.l.b16 %v1495
      %v1797 = vunpack.c.h.b16 %v1495
      %v1798 = vunpack.c.l.b16 %v1496
      %v1799 = vunpack.c.h.b16 %v1496
      %v1800 = vunpack.c.l.b16 %v1497
      %v1801 = vunpack.c.h.b16 %v1497
      %v1802 = vunpack.c.l.b16 %v1498
      %v1803 = vunpack.c.h.b16 %v1498
      %v1804 = vunpack.c.l.b16 %v1499
      %v1805 = vunpack.c.h.b16 %v1499
      %v1806 = vunpack.c.l.b16 %v1500
      %v1807 = vunpack.c.h.b16 %v1500
      %v1808 = vunpack.c.l.b16 %v1501
      %v1809 = vunpack.c.h.b16 %v1501
      %v1810 = vunpack.c.l.b16 %v1502
      %v1811 = vunpack.c.h.b16 %v1502
      %v1812 = vunpack.c.l.b16 %v1503
      %v1813 = vunpack.c.h.b16 %v1503
      %v1814 = vunpack.c.l.b16 %v1504
      %v1815 = vunpack.c.h.b16 %v1504
      %v1816 = vunpack.c.l.b16 %v1505
      %v1817 = vunpack.c.h.b16 %v1505
      %v1818 = vunpack.c.l.b16 %v1506
      %v1819 = vunpack.c.h.b16 %v1506
      %v1820 = vunpack.c.l.b16 %v1507
      %v1821 = vunpack.c.h.b16 %v1507
      %v1822 = vunpack.c.l.b16 %v1508
      %v1823 = vunpack.c.h.b16 %v1508
      %v1824 = vunpack.c.l.b16 %v1509
      %v1825 = vunpack.c.h.b16 %v1509
      %v1826 = vunpack.c.l.b16 %v1510
      %v1827 = vunpack.c.h.b16 %v1510
      %v1828 = vunpack.c.l.b16 %v1511
      %v1829 = vunpack.c.h.b16 %v1511
      %v1830 = vunpack.c.l.b16 %v1512
      %v1831 = vunpack.c.h.b16 %v1512
      %v1832 = vunpack.c.l.b16 %v1513
      %v1833 = vunpack.c.h.b16 %v1513
      %v1834 = vunpack.c.l.b16 %v1514
      %v1835 = vunpack.c.h.b16 %v1514
      %v1836 = vunpack.c.l.b16 %v1515
      %v1837 = vunpack.c.h.b16 %v1515
      %v1838 = vunpack.c.l.b16 %v1516
      %v1839 = vunpack.c.h.b16 %v1516
      %v1840 = vunpack.c.l.b16 %v1517
      %v1841 = vunpack.c.h.b16 %v1517
      %v1842 = vunpack.c.l.b16 %v1518
      %v1843 = vunpack.c.h.b16 %v1518
      %v1844 = vunpack.c.l.b16 %v1519
      %v1845 = vunpack.c.h.b16 %v1519
      %v1846 = vunpack.c.l.b16 %v1520
      %v1847 = vunpack.c.h.b16 %v1520
      %v1848 = vunpack.c.l.b16 %v1521
      %v1849 = vunpack.c.h.b16 %v1521
      %v1850 = vunpack.c.l.b16 %v1522
      %v1851 = vunpack.c.h.b16 %v1522
      %v1852 = vunpack.c.l.b16 %v1523
      %v1853 = vunpack.c.h.b16 %v1523
      %v1854 = vunpack.c.l.b16 %v1524
      %v1855 = vunpack.c.h.b16 %v1524
      %v1856 = vunpack.c.l.b16 %v1525
      %v1857 = vunpack.c.h.b16 %v1525
      %v1858 = vunpack.c.l.b16 %v1526
      %v1859 = vunpack.c.h.b16 %v1526
      %v1860 = vunpack.c.l.b16 %v1527
      %v1861 = vunpack.c.h.b16 %v1527
      %v1862 = vunpack.c.l.b16 %v1528
      %v1863 = vunpack.c.h.b16 %v1528
      %v1864 = vunpack.c.l.b16 %v1529
      %v1865 = vunpack.c.h.b16 %v1529
      %v1866 = vunpack.c.l.b16 %v1530
      %v1867 = vunpack.c.h.b16 %v1530
      %v1868 = vunpack.c.l.b16 %v1531
      %v1869 = vunpack.c.h.b16 %v1531
      %v1870 = vunpack.c.l.b16 %v1532
      %v1871 = vunpack.c.h.b16 %v1532
      %v1872 = vunpack.c.l.b16 %v1533
      %v1873 = vunpack.c.h.b16 %v1533
      %v1874 = vunpack.c.l.b16 %v1534
      %v1875 = vunpack.c.h.b16 %v1534
      %v1876 = vunpack.c.l.b16 %v1535
      %v1877 = vunpack.c.h.b16 %v1535
      %v1878 = vunpack.c.l.b16 %v1536
      %v1879 = vunpack.c.h.b16 %v1536
      %v1880 = vunpack.c.l.b16 %v1537
      %v1881 = vunpack.c.h.b16 %v1537
      %v1882 = vunpack.c.l.b16 %v1538
      %v1883 = vunpack.c.h.b16 %v1538
      %v1884 = vunpack.c.l.b16 %v1539
      %v1885 = vunpack.c.h.b16 %v1539
      %v1886 = vunpack.c.l.b16 %v1540
      %v1887 = vunpack.c.h.b16 %v1540
      %v1888 = vunpack.c.l.b16 %v1541
      %v1889 = vunpack.c.h.b16 %v1541
      %v1890 = vunpack.c.l.b16 %v1542
      %v1891 = vunpack.c.h.b16 %v1542
      %v1892 = vunpack.c.l.b16 %v1543
      %v1893 = vunpack.c.h.b16 %v1543
      %v1894 = vunpack.c.l.b16 %v1544
      %v1895 = vunpack.c.h.b16 %v1544
      %v1896 = vunpack.c.l.b16 %v1545
      %v1897 = vunpack.c.h.b16 %v1545
      %v1898 = vunpack.c.l.b16 %v1546
      %v1899 = vunpack.c.h.b16 %v1546
      %v1900 = vunpack.c.l.b16 %v1547
      %v1901 = vunpack.c.h.b16 %v1547
      %v1902 = vunpack.c.l.b16 %v1548
      %v1903 = vunpack.c.h.b16 %v1548
      %v1904 = vunpack.c.l.b16 %v1549
      %v1905 = vunpack.c.h.b16 %v1549
      %v1906 = vunpack.c.l.b16 %v1550
      %v1907 = vunpack.c.h.b16 %v1550
      %v1908 = vunpack.c.l.b16 %v1551
      %v1909 = vunpack.c.h.b16 %v1551
      %v1910 = vunpack.c.l.b16 %v1552
      %v1911 = vunpack.c.h.b16 %v1552
      %v1912 = vunpack.c.l.b16 %v1553
      %v1913 = vunpack.c.h.b16 %v1553
      %v1914 = vunpack.c.l.b16 %v1554
      %v1915 = vunpack.c.h.b16 %v1554
      %v1916 = vunpack.c.l.b16 %v1555
      %v1917 = vunpack.c.h.b16 %v1555
      %v1918 = vunpack.c.l.b16 %v1556
      %v1919 = vunpack.c.h.b16 %v1556
      %v1920 = vunpack.c.l.b16 %v1557
      %v1921 = vunpack.c.h.b16 %v1557
      %v1922 = vunpack.c.l.b16 %v1558
      %v1923 = vunpack.c.h.b16 %v1558
      %v1924 = vunpack.c.l.b16 %v1559
      %v1925 = vunpack.c.h.b16 %v1559
      %v1926 = vunpack.c.l.b16 %v1560
      %v1927 = vunpack.c.h.b16 %v1560
      %v1928 = vunpack.c.l.b16 %v1561
      %v1929 = vunpack.c.h.b16 %v1561
      %v1930 = vunpack.c.l.b16 %v1562
      %v1931 = vunpack.c.h.b16 %v1562
      %v1932 = vunpack.c.l.b16 %v1563
      %v1933 = vunpack.c.h.b16 %v1563
      %v1934 = vunpack.c.l.b16 %v1564
      %v1935 = vunpack.c.h.b16 %v1564
      %v1936 = vunpack.c.l.b16 %v1565
      %v1937 = vunpack.c.h.b16 %v1565
      %v1938 = vunpack.c.l.b16 %v1566
      %v1939 = vunpack.c.h.b16 %v1566
      %v1940 = vunpack.c.l.b16 %v1567
      %v1941 = vunpack.c.h.b16 %v1567
      %v1942 = vunpack.c.l.b16 %v1568
      %v1943 = vunpack.c.h.b16 %v1568
      %v1944 = vunpack.c.l.b16 %v1569
      %v1945 = vunpack.c.h.b16 %v1569
      %v1946 = vunpack.c.l.b16 %v1570
      %v1947 = vunpack.c.h.b16 %v1570
      %v1948 = vunpack.c.l.b16 %v1571
      %v1949 = vunpack.c.h.b16 %v1571
      %v1950 = vunpack.c.l.b16 %v1572
      %v1951 = vunpack.c.h.b16 %v1572
      %v1952 = vunpack.c.l.b16 %v1573
      %v1953 = vunpack.c.h.b16 %v1573
      %v1954 = vunpack.c.l.b16 %v1574
      %v1955 = vunpack.c.h.b16 %v1574
      %v1956 = vunpack.c.l.b16 %v1575
      %v1957 = vunpack.c.h.b16 %v1575
      %v1958 = vunpack.c.l.b16 %v1576
      %v1959 = vunpack.c.h.b16 %v1576
      %v1960 = vunpack.c.l.b16 %v1577
      %v1961 = vunpack.c.h.b16 %v1577
      %v1962 = vpack.c.b16 %v1710, %v1706
      %v1963 = vpack.c.b16 %v1711, %v1707
      %v1964 = vpack.c.b16 %v1712, %v1708
      %v1965 = vpack.c.b16 %v1713, %v1709
      %v1966 = vpack.c.b16 %v1718, %v1714
      %v1967 = vpack.c.b16 %v1719, %v1715
      %v1968 = vpack.c.b16 %v1720, %v1716
      %v1969 = vpack.c.b16 %v1721, %v1717
      %v1970 = vpack.c.b16 %v1726, %v1722
      %v1971 = vpack.c.b16 %v1727, %v1723
      %v1972 = vpack.c.b16 %v1728, %v1724
      %v1973 = vpack.c.b16 %v1729, %v1725
      %v1974 = vpack.c.b16 %v1734, %v1730
      %v1975 = vpack.c.b16 %v1735, %v1731
      %v1976 = vpack.c.b16 %v1736, %v1732
      %v1977 = vpack.c.b16 %v1737, %v1733
      %v1978 = vpack.c.b16 %v1742, %v1738
      %v1979 = vpack.c.b16 %v1743, %v1739
      %v1980 = vpack.c.b16 %v1744, %v1740
      %v1981 = vpack.c.b16 %v1745, %v1741
      %v1982 = vpack.c.b16 %v1750, %v1746
      %v1983 = vpack.c.b16 %v1751, %v1747
      %v1984 = vpack.c.b16 %v1752, %v1748
      %v1985 = vpack.c.b16 %v1753, %v1749
      %v1986 = vpack.c.b16 %v1758, %v1754
      %v1987 = vpack.c.b16 %v1759, %v1755
      %v1988 = vpack.c.b16 %v1760, %v1756
      %v1989 = vpack.c.b16 %v1761, %v1757
      %v1990 = vpack.c.b16 %v1766, %v1762
      %v1991 = vpack.c.b16 %v1767, %v1763
      %v1992 = vpack.c.b16 %v1768, %v1764
      %v1993 = vpack.c.b16 %v1769, %v1765
      %v1994 = vpack.c.b16 %v1774, %v1770
      %v1995 = vpack.c.b16 %v1775, %v1771
      %v1996 = vpack.c.b16 %v1776, %v1772
      %v1997 = vpack.c.b16 %v1777, %v1773
      %v1998 = vpack.c.b16 %v1782, %v1778
      %v1999 = vpack.c.b16 %v1783, %v1779
      %v2000 = vpack.c.b16 %v1784, %v1780
      %v2001 = vpack.c.b16 %v1785, %v1781
      %v2002 = vpack.c.b16 %v1790, %v1786
      %v2003 = vpack.c.b16 %v1791, %v1787
      %v2004 = vpack.c.b16 %v1792, %v1788
      %v2005 = vpack.c.b16 %v1793, %v1789
      %v2006 = vpack.c.b16 %v1798, %v1794
      %v2007 = vpack.c.b16 %v1799, %v1795
      %v2008 = vpack.c.b16 %v1800, %v1796
      %v2009 = vpack.c.b16 %v1801, %v1797
      %v2010 = vpack.c.b16 %v1806, %v1802
      %v2011 = vpack.c.b16 %v1807, %v1803
      %v2012 = vpack.c.b16 %v1808, %v1804
      %v2013 = vpack.c.b16 %v1809, %v1805
      %v2014 = vpack.c.b16 %v1814, %v1810
      %v2015 = vpack.c.b16 %v1815, %v1811
      %v2016 = vpack.c.b16 %v1816, %v1812
      %v2017 = vpack.c.b16 %v1817, %v1813
      %v2018 = vpack.c.b16 %v1822, %v1818
      %v2019 = vpack.c.b16 %v1823, %v1819
      %v2020 = vpack.c.b16 %v1824, %v1820
      %v2021 = vpack.c.b16 %v1825, %v1821
      %v2022 = vpack.c.b16 %v1830, %v1826
      %v2023 = vpack.c.b16 %v1831, %v1827
      %v2024 = vpack.c.b16 %v1832, %v1828
      %v2025 = vpack.c.b16 %v1833, %v1829
      %v2026 = vpack.c.b16 %v1838, %v1834
      %v2027 = vpack.c.b16 %v1839, %v1835
      %v2028 = vpack.c.b16 %v1840, %v1836
      %v2029 = vpack.c.b16 %v1841, %v1837
      %v2030 = vpack.c.b16 %v1846, %v1842
      %v2031 = vpack.c.b16 %v1847, %v1843
      %v2032 = vpack.c.b16 %v1848, %v1844
      %v2033 = vpack.c.b16 %v1849, %v1845
      %v2034 = vpack.c.b16 %v1854, %v1850
      %v2035 = vpack.c.b16 %v1855, %v1851
      %v2036 = vpack.c.b16 %v1856, %v1852
      %v2037 = vpack.c.b16 %v1857, %v1853
      %v2038 = vpack.c.b16 %v1862, %v1858
      %v2039 = vpack.c.b16 %v1863, %v1859
      %v2040 = vpack.c.b16 %v1864, %v1860
      %v2041 = vpack.c.b16 %v1865, %v1861
      %v2042 = vpack.c.b16 %v1870, %v1866
      %v2043 = vpack.c.b16 %v1871, %v1867
      %v2044 = vpack.c.b16 %v1872, %v1868
      %v2045 = vpack.c.b16 %v1873, %v1869
      %v2046 = vpack.c.b16 %v1878, %v1874
      %v2047 = vpack.c.b16 %v1879, %v1875
      %v2048 = vpack.c.b16 %v1880, %v1876
      %v2049 = vpack.c.b16 %v1881, %v1877
      %v2050 = vpack.c.b16 %v1886, %v1882
      %v2051 = vpack.c.b16 %v1887, %v1883
      %v2052 = vpack.c.b16 %v1888, %v1884
      %v2053 = vpack.c.b16 %v1889, %v1885
      %v2054 = vpack.c.b16 %v1894, %v1890
      %v2055 = vpack.c.b16 %v1895, %v1891
      %v2056 = vpack.c.b16 %v1896, %v1892
      %v2057 = vpack.c.b16 %v1897, %v1893
      %v2058 = vpack.c.b16 %v1902, %v1898
      %v2059 = vpack.c.b16 %v1903, %v1899
      %v2060 = vpack.c.b16 %v1904, %v1900
      %v2061 = vpack.c.b16 %v1905, %v1901
      %v2062 = vpack.c.b16 %v1910, %v1906
      %v2063 = vpack.c.b16 %v1911, %v1907
      %v2064 = vpack.c.b16 %v1912, %v1908
      %v2065 = vpack.c.b16 %v1913, %v1909
      %v2066 = vpack.c.b16 %v1918, %v1914
      %v2067 = vpack.c.b16 %v1919, %v1915
      %v2068 = vpack.c.b16 %v1920, %v1916
      %v2069 = vpack.c.b16 %v1921, %v1917
      %v2070 = vpack.c.b16 %v1926, %v1922
      %v2071 = vpack.c.b16 %v1927, %v1923
      %v2072 = vpack.c.b16 %v1928, %v1924
      %v2073 = vpack.c.b16 %v1929, %v1925
      %v2074 = vpack.c.b16 %v1934, %v1930
      %v2075 = vpack.c.b16 %v1935, %v1931
      %v2076 = vpack.c.b16 %v1936, %v1932
      %v2077 = vpack.c.b16 %v1937, %v1933
      %v2078 = vpack.c.b16 %v1942, %v1938
      %v2079 = vpack.c.b16 %v1943, %v1939
      %v2080 = vpack.c.b16 %v1944, %v1940
      %v2081 = vpack.c.b16 %v1945, %v1941
      %v2082 = vpack.c.b16 %v1950, %v1946
      %v2083 = vpack.c.b16 %v1951, %v1947
      %v2084 = vpack.c.b16 %v1952, %v1948
      %v2085 = vpack.c.b16 %v1953, %v1949
      %v2086 = vpack.c.b16 %v1958, %v1954
      %v2087 = vpack.c.b16 %v1959, %v1955
      %v2088 = vpack.c.b16 %v1960, %v1956
      %v2089 = vpack.c.b16 %v1961, %v1957
      %2218 = vmatprep.subr.bf16.mxu0 %v1991
      %2219 = vmatpush1.bf16.msra.mxu0 %v1990
      %2220 = vmatprep.subr.bf16.mxu0 %v1987
      %2221 = vmatpush1.bf16.msra.mxu0 %v1986
      %2222 = vmatprep.subr.bf16.mxu0 %v1983
      %2223 = vmatpush1.bf16.msra.mxu0 %v1982
      %2224 = vmatprep.subr.bf16.mxu0 %v1979
      %2225 = vmatpush1.bf16.msra.mxu0 %v1978
      %2226 = vmatprep.subr.bf16.mxu0 %v1975
      %2227 = vmatpush1.bf16.msra.mxu0 %v1974
      %2228 = vmatprep.subr.bf16.mxu0 %v1971
      %2229 = vmatpush1.bf16.msra.mxu0 %v1970
      %2230 = vmatprep.subr.bf16.mxu0 %v1967
      %2231 = vmatpush1.bf16.msra.mxu0 %v1966
      %2232 = vmatprep.subr.bf16.mxu0 %v1963
      %2233 = vmatpush1.bf16.msra.mxu0 %v1962
      %2234 = vmatprep.subr.bf16.mxu0 %v2023
      %2235 = vmatpush2.bf16.msra.mxu0 %v2022
      %2236 = vmatprep.subr.bf16.mxu0 %v2019
      %2237 = vmatpush2.bf16.msra.mxu0 %v2018
      %2238 = vmatprep.subr.bf16.mxu0 %v2015
      %2239 = vmatpush2.bf16.msra.mxu0 %v2014
      %2240 = vmatprep.subr.bf16.mxu0 %v2011
      %2241 = vmatpush2.bf16.msra.mxu0 %v2010
      %2242 = vmatprep.subr.bf16.mxu0 %v2007
      %2243 = vmatpush2.bf16.msra.mxu0 %v2006
      %2244 = vmatprep.subr.bf16.mxu0 %v2003
      %2245 = vmatpush2.bf16.msra.mxu0 %v2002
      %2246 = vmatprep.subr.bf16.mxu0 %v1999
      %2247 = vmatpush2.bf16.msra.mxu0 %v1998
      %2248 = vmatprep.subr.bf16.mxu0 %v1995
      %2249 = vmatpush2.bf16.msra.mxu0 %v1994
      %2250 = vmatprep.mubr.bf16.mxu0 %v1444
      %2251 = vmatmul.mubr.bf16.gmra.mxu0 %v1443
      %v2252 = vpop.f32.mrf.mxu0
      %v2253 = vadd.f32 0.0, %v2252
      %v2254 = vpop.f32.mrf.mxu0
      %v2255 = vadd.f32 0.0, %v2254
      %v2256 = vpop.f32.mrf.mxu0
      %v2257 = vpop.f32.mrf.mxu0
      %2258 = vdwg.mxu0
      %2259 = vmatprep.subr.bf16.mxu0 %v2055
      %2260 = vmatpush1.bf16.msra.mxu0 %v2054
      %2261 = vmatprep.subr.bf16.mxu0 %v2051
      %2262 = vmatpush1.bf16.msra.mxu0 %v2050
      %2263 = vmatprep.subr.bf16.mxu0 %v2047
      %2264 = vmatpush1.bf16.msra.mxu0 %v2046
      %2265 = vmatprep.subr.bf16.mxu0 %v2043
      %2266 = vmatpush1.bf16.msra.mxu0 %v2042
      %2267 = vmatprep.subr.bf16.mxu0 %v2039
      %2268 = vmatpush1.bf16.msra.mxu0 %v2038
      %2269 = vmatprep.subr.bf16.mxu0 %v2035
      %2270 = vmatpush1.bf16.msra.mxu0 %v2034
      %2271 = vmatprep.subr.bf16.mxu0 %v2031
      %2272 = vmatpush1.bf16.msra.mxu0 %v2030
      %2273 = vmatprep.subr.bf16.mxu0 %v2027
      %2274 = vmatpush1.bf16.msra.mxu0 %v2026
      %2275 = vmatprep.subr.bf16.mxu0 %v2087
      %2276 = vmatpush2.bf16.msra.mxu0 %v2086
      %2277 = vmatprep.subr.bf16.mxu0 %v2083
      %2278 = vmatpush2.bf16.msra.mxu0 %v2082
      %2279 = vmatprep.subr.bf16.mxu0 %v2079
      %2280 = vmatpush2.bf16.msra.mxu0 %v2078
      %2281 = vmatprep.subr.bf16.mxu0 %v2075
      %2282 = vmatpush2.bf16.msra.mxu0 %v2074
      %2283 = vmatprep.subr.bf16.mxu0 %v2071
      %2284 = vmatpush2.bf16.msra.mxu0 %v2070
      %2285 = vmatprep.subr.bf16.mxu0 %v2067
      %2286 = vmatpush2.bf16.msra.mxu0 %v2066
      %2287 = vmatprep.subr.bf16.mxu0 %v2063
      %2288 = vmatpush2.bf16.msra.mxu0 %v2062
      %2289 = vmatprep.subr.bf16.mxu0 %v2059
      %2290 = vmatpush2.bf16.msra.mxu0 %v2058
      %2291 = vmatprep.mubr.bf16.mxu0 %v1446
      %2292 = vmatmul.mubr.bf16.gmra.mxu0 %v1445
      %v2293 = vpop.f32.mrf.mxu0
      %v2294 = vadd.f32 %v2253, %v2293
      %v2295 = vpop.f32.mrf.mxu0
      %v2296 = vadd.f32 %v2255, %v2295
      %v2297 = vpop.f32.mrf.mxu0
      %v2298 = vpop.f32.mrf.mxu0
      %2299 = vdwg.mxu0
      %2300 = vmatprep.subr.bf16.mxu0 %v1993
      %2301 = vmatpush1.bf16.msra.mxu0 %v1992
      %2302 = vmatprep.subr.bf16.mxu0 %v1989
      %2303 = vmatpush1.bf16.msra.mxu0 %v1988
      %2304 = vmatprep.subr.bf16.mxu0 %v1985
      %2305 = vmatpush1.bf16.msra.mxu0 %v1984
      %2306 = vmatprep.subr.bf16.mxu0 %v1981
      %2307 = vmatpush1.bf16.msra.mxu0 %v1980
      %2308 = vmatprep.subr.bf16.mxu0 %v1977
      %2309 = vmatpush1.bf16.msra.mxu0 %v1976
      %2310 = vmatprep.subr.bf16.mxu0 %v1973
      %2311 = vmatpush1.bf16.msra.mxu0 %v1972
      %2312 = vmatprep.subr.bf16.mxu0 %v1969
      %2313 = vmatpush1.bf16.msra.mxu0 %v1968
      %2314 = vmatprep.subr.bf16.mxu0 %v1965
      %2315 = vmatpush1.bf16.msra.mxu0 %v1964
      %2316 = vmatprep.subr.bf16.mxu0 %v2025
      %2317 = vmatpush2.bf16.msra.mxu0 %v2024
      %2318 = vmatprep.subr.bf16.mxu0 %v2021
      %2319 = vmatpush2.bf16.msra.mxu0 %v2020
      %2320 = vmatprep.subr.bf16.mxu0 %v2017
      %2321 = vmatpush2.bf16.msra.mxu0 %v2016
      %2322 = vmatprep.subr.bf16.mxu0 %v2013
      %2323 = vmatpush2.bf16.msra.mxu0 %v2012
      %2324 = vmatprep.subr.bf16.mxu0 %v2009
      %2325 = vmatpush2.bf16.msra.mxu0 %v2008
      %2326 = vmatprep.subr.bf16.mxu0 %v2005
      %2327 = vmatpush2.bf16.msra.mxu0 %v2004
      %2328 = vmatprep.subr.bf16.mxu0 %v2001
      %2329 = vmatpush2.bf16.msra.mxu0 %v2000
      %2330 = vmatprep.subr.bf16.mxu0 %v1997
      %2331 = vmatpush2.bf16.msra.mxu0 %v1996
      %2332 = vmatprep.mubr.bf16.mxu0 %v1444
      %2333 = vmatmul.mubr.bf16.gmra.mxu0 %v1443
      %v2334 = vpop.f32.mrf.mxu0
      %v2335 = vadd.f32 0.0, %v2334
      %v2336 = vpop.f32.mrf.mxu0
      %v2337 = vadd.f32 0.0, %v2336
      %v2338 = vpop.f32.mrf.mxu0
      %v2339 = vpop.f32.mrf.mxu0
      %2340 = vdwg.mxu0
      %2341 = vmatprep.subr.bf16.mxu0 %v2057
      %2342 = vmatpush1.bf16.msra.mxu0 %v2056
      %2343 = vmatprep.subr.bf16.mxu0 %v2053
      %2344 = vmatpush1.bf16.msra.mxu0 %v2052
      %2345 = vmatprep.subr.bf16.mxu0 %v2049
      %2346 = vmatpush1.bf16.msra.mxu0 %v2048
      %2347 = vmatprep.subr.bf16.mxu0 %v2045
      %2348 = vmatpush1.bf16.msra.mxu0 %v2044
      %2349 = vmatprep.subr.bf16.mxu0 %v2041
      %2350 = vmatpush1.bf16.msra.mxu0 %v2040
      %2351 = vmatprep.subr.bf16.mxu0 %v2037
      %2352 = vmatpush1.bf16.msra.mxu0 %v2036
      %2353 = vmatprep.subr.bf16.mxu0 %v2033
      %2354 = vmatpush1.bf16.msra.mxu0 %v2032
      %2355 = vmatprep.subr.bf16.mxu0 %v2029
      %2356 = vmatpush1.bf16.msra.mxu0 %v2028
      %2357 = vmatprep.subr.bf16.mxu0 %v2089
      %2358 = vmatpush2.bf16.msra.mxu0 %v2088
      %2359 = vmatprep.subr.bf16.mxu0 %v2085
      %2360 = vmatpush2.bf16.msra.mxu0 %v2084
      %2361 = vmatprep.subr.bf16.mxu0 %v2081
      %2362 = vmatpush2.bf16.msra.mxu0 %v2080
      %2363 = vmatprep.subr.bf16.mxu0 %v2077
      %2364 = vmatpush2.bf16.msra.mxu0 %v2076
      %2365 = vmatprep.subr.bf16.mxu0 %v2073
      %2366 = vmatpush2.bf16.msra.mxu0 %v2072
      %2367 = vmatprep.subr.bf16.mxu0 %v2069
      %2368 = vmatpush2.bf16.msra.mxu0 %v2068
      %2369 = vmatprep.subr.bf16.mxu0 %v2065
      %2370 = vmatpush2.bf16.msra.mxu0 %v2064
      %2371 = vmatprep.subr.bf16.mxu0 %v2061
      %2372 = vmatpush2.bf16.msra.mxu0 %v2060
      %2373 = vmatprep.mubr.bf16.mxu0 %v1446
      %2374 = vmatmul.mubr.bf16.gmra.mxu0 %v1445
      %v2375 = vpop.f32.mrf.mxu0
      %v2376 = vadd.f32 %v2335, %v2375
      %v2377 = vpop.f32.mrf.mxu0
      %v2378 = vadd.f32 %v2337, %v2377
      %v2379 = vpop.f32.mrf.mxu0
      %v2380 = vpop.f32.mrf.mxu0
      %2381 = vdwg.mxu0
      %v2382 = vadd.f32 %v1439, %v2294
      %v2383 = vadd.f32 %v1440, %v2296
      %v2384 = vadd.f32 %v1441, %v2376
      %v2385 = vadd.f32 %v1442, %v2378
      %2386 = vst [vmem:[#allocation2] sm:$0xff] %v2382
      %2387 = vst [vmem:[#allocation2 + $0x8] sm:$0xff] %v2383
      %2388 = vst [vmem:[#allocation2 + $0x10] sm:$0xff] %v2384
      %2389 = vst [vmem:[#allocation2 + $0x18] sm:$0xff] %v2385
      %p2390 = scmp.eq.s32.totalorder %s24, 2
      // Predicated region
      $region57: #{gearnet_forward.9} parent=51 // pred_check
        %p2391 = pneg %p2390
      $region58: #{gearnet_forward.9} parent=51 // pred_check_branch
        %2393 = sbr.rel (%p2391) target = $region60
      $region59: #{gearnet_forward.9} parent=51 // pred_region
        %v2394 = vld [vmem:[#allocation2] sm:$0xff]
        %v2395 = vld [vmem:[#allocation2 + $0x8] sm:$0xff]
        %v2396 = vld [vmem:[#allocation2 + $0x10] sm:$0xff]
        %v2397 = vld [vmem:[#allocation2 + $0x18] sm:$0xff]
        %v2398 = vld [vmem:[%s6] sm:$0xf]
        %v2400 = vlaneseq
        %v2401 = vshrl.u32 %v2400, 7
        %v2402 = vsub.s32 0, %v2401
        %v2403 = vrot.slane %v2398, %v2402
        %v2404 = vlaneseq
        %v2405 = vshrl.u32 %v2404, 7
        %v2406 = vsub.s32 1, %v2405
        %v2407 = vrot.slane %v2398, %v2406
        %v2408 = vlaneseq
        %v2409 = vshrl.u32 %v2408, 7
        %v2410 = vsub.s32 2, %v2409
        %v2411 = vrot.slane %v2398, %v2410
        %v2412 = vlaneseq
        %v2413 = vshrl.u32 %v2412, 7
        %v2414 = vsub.s32 3, %v2413
        %v2415 = vrot.slane %v2398, %v2414
        %v2420 = vmul.f32 %v2394, %v2403
        %v2421 = vmul.f32 %v2395, %v2407
        %v2422 = vmul.f32 %v2396, %v2411
        %v2423 = vmul.f32 %v2397, %v2415
        %v2424 = vld [vmem:[%s7] sm:$0xf]
        %v2426 = vlaneseq
        %v2427 = vshrl.u32 %v2426, 7
        %v2428 = vsub.s32 0, %v2427
        %v2429 = vrot.slane %v2424, %v2428
        %v2430 = vlaneseq
        %v2431 = vshrl.u32 %v2430, 7
        %v2432 = vsub.s32 1, %v2431
        %v2433 = vrot.slane %v2424, %v2432
        %v2434 = vlaneseq
        %v2435 = vshrl.u32 %v2434, 7
        %v2436 = vsub.s32 2, %v2435
        %v2437 = vrot.slane %v2424, %v2436
        %v2438 = vlaneseq
        %v2439 = vshrl.u32 %v2438, 7
        %v2440 = vsub.s32 3, %v2439
        %v2441 = vrot.slane %v2424, %v2440
        %v2446 = vadd.f32 %v2420, %v2429
        %v2447 = vadd.f32 %v2421, %v2433
        %v2448 = vadd.f32 %v2422, %v2437
        %v2449 = vadd.f32 %v2423, %v2441
        %v2450 = vmax.f32 %v2446, 0.0
        %v2451 = vmax.f32 %v2447, 0.0
        %v2452 = vmax.f32 %v2448, 0.0
        %v2453 = vmax.f32 %v2449, 0.0
        %v2454 = vpack.c.bf16 %v2450, %v2450
        %v2455 = vpack.c.bf16 %v2451, %v2451
        %v2456 = vpack.c.bf16 %v2452, %v2452
        %v2457 = vpack.c.bf16 %v2453, %v2453
        %v2462 = vunpack.c.l.b16 %v2454
        %v2463 = vunpack.c.l.b16 %v2455
        %v2464 = vunpack.c.l.b16 %v2456
        %v2465 = vunpack.c.l.b16 %v2457
        %v2466 = vpack.c.b16 %v2463, %v2462
        %v2467 = vpack.c.b16 %v2465, %v2464
        %2470 = vst [vmem:[%s348] sm:$0xff] %v2466
        %2471 = vst [vmem:[%s348 + $0x8] sm:$0xff] %v2467
      $region60: #{gearnet_forward.9} parent=51 // pred_fallthru
        _
      %p2472 = scmp.lt.s32.totalorder %s23, 1
      %s2473 = scalar_select %p2472, %s23, 1
      %s2474 = smul.addr %s2473, 4
      %s2475 = smul.addr %s2474, 4
      %s2476 = scalar_lea.vmem %s8, %s2475
      // Predicated region
      $region61: #{gearnet_forward.9} parent=51 // pred_check
        %p2477 = pneg %p229
      $region62: #{gearnet_forward.9} parent=51 // pred_check_branch
        %2479 = sbr.rel (%p2477) target = $region64
      $region63: #{gearnet_forward.9} parent=51 // pred_region
        _
      $region64: #{gearnet_forward.9} parent=51 // pred_fallthru
        _
    $region52: #{gearnet_forward.9} parent=5 // pred_fallthru
      _
    %p2480 = scmp.le.s32.totalorder 2, %s14
    // Predicated region
    $region65: #{gearnet_forward.9} parent=5 // pred_check
      %p2481 = pneg %p2480
    $region66: #{gearnet_forward.9} parent=5 // pred_check_branch
      %2483 = sbr.rel (%p2481) target = $region68
    $region67: #{gearnet_forward.9} parent=5 // pred_region
      %s2484 = ssub.s32 %s14, 2
      // Predicated region
      $region69: #{gearnet_forward.9} parent=67 // pred_check
        %p2485 = pneg %p235
      $region70: #{gearnet_forward.9} parent=67 // pred_check_branch
        %2487 = sbr.rel (%p2485) target = $region72
      $region71: #{gearnet_forward.9} parent=67 // pred_region
        %p2488 = scmp.lt.s32.totalorder %s25, 1
        %s2489 = scalar_select %p2488, %s25, 1
        %s2490 = smul.addr %s2489, 4
        %s2491 = smul.addr %s2490, 4
        %s2492 = scalar_lea.vmem %s8, %s2491
      $region72: #{gearnet_forward.9} parent=67 // pred_fallthru
        _
    $region68: #{gearnet_forward.9} parent=5 // pred_fallthru
      _
  $region6: #{gearnet_forward.9} parent=0 // loop_footer
    %s18 = sadd.s32 1, %s14
  $region7: #{gearnet_forward.9} parent=0 // loop_footer_branch
    %13 = sbr.rel target = $region3
  $region8: #{gearnet_forward.9} parent=0 // loop_exit
    _

// kernel: gearnet_forward.12
$region0: #{gearnet_forward.12}
  #allocation0 [shape = 'u32[]', space=smem, size = 0x4, offset = 0x4, fixed_abs, tag = 'smem constant byte address 0x4 - core index']
  #allocation1 [shape = 'u32[144,128]{1,0:T(1,128)}', space=vmem, size = 0x12000, scoped, tag = 'internal scratch']
  #allocation2 [shape = 'f32[8,512]{1,0:T(8,128)}', space=vmem, size = 0x4000, scoped, tag = 'scratch operand']
  %s0 = inlined_call_operand.vmem [shape: bf16[3,16,16], index: 0, kind: input, shape index: {}]
  %s1 = inlined_call_operand.vmem [shape: bf16[16,512], index: 1, kind: input, shape index: {}, may-alias: {1,2}]
  %s2 = inlined_call_operand.vmem [shape: bf16[16,512], index: 2, kind: input, shape index: {}, may-alias: {1,2}]
  %s3 = inlined_call_operand.vmem [shape: bf16[3,512,512], index: 3, kind: input, shape index: {}]
  %s4 = inlined_call_operand.vmem [shape: bf16[512,512], index: 4, kind: input, shape index: {}]
  %s5 = inlined_call_operand.vmem [shape: f32[1,512], index: 5, kind: input, shape index: {}]
  %s6 = inlined_call_operand.vmem [shape: f32[1,512], index: 6, kind: input, shape index: {}]
  %s7 = inlined_call_operand.vmem [shape: f32[1,512], index: 7, kind: input, shape index: {}]
  %s8 = inlined_call_operand.vmem [shape: bf16[16,512], index: 8, kind: output, shape index: {}]
  %s9 = sld [smem:[#allocation0]]
  $region73: #{gearnet_forward.12} parent=0
    _
  %s11 = ssub.s32 1, %s9
  %s12 = scalar_select 0, %s11, %s9
  loop: start=0, step=1, limit=8
  $region2: #{gearnet_forward.12} parent=0 // loop_pre_header
    _
  $region3: #{gearnet_forward.12} parent=0 // loop_header
    %s14 = sphi 0, %s18
    %p15 = scmp.ge.s32.totalorder %s14, 8
    %s21 = sphi 0, %s33
    %s22 = sphi 0, %s29
    %s23 = sphi 0, %s21
    %s24 = sphi 0, %s22
    %s25 = sphi 0, %s23
    %s26 = sphi 0, %s24
    %s38 = sphi 0, %s40
    %s41 = sphi 0, %s38
    %s42 = sphi 0, %s41
    %s58 = sphi 0, %s42
    %s62 = sphi 0, %s62
    %s64 = sphi 0, %s62
    %s65 = sphi 0, %s64
    %s79 = sphi 0, %s65
    %s85 = sphi 0, %s87
    %s88 = sphi 0, %s85
    %s89 = sphi 0, %s88
    %s105 = sphi 0, %s89
    %s109 = sphi 0, %s109
    %s111 = sphi 0, %s109
    %s112 = sphi 0, %s111
    %s126 = sphi 0, %s112
    %s130 = sphi 0, %s130
    %s132 = sphi 0, %s130
    %s133 = sphi 0, %s132
    %s147 = sphi 0, %s133
    %s151 = sphi 0, %s151
    %s153 = sphi 0, %s151
    %s154 = sphi 0, %s153
    %s168 = sphi 0, %s154
    %s172 = sphi 0, %s172
    %s174 = sphi 0, %s172
    %s175 = sphi 0, %s174
    %s189 = sphi 0, %s175
    %s193 = sphi 0, %s193
    %s195 = sphi 0, %s193
    %s196 = sphi 0, %s195
    %s210 = sphi 0, %s196
    %s216 = sphi 0, %s218
    %s219 = sphi 0, %s216
    %s220 = sphi 0, %s219
    %s236 = sphi 0, %s220
  $region4: #{gearnet_forward.12} parent=0 // loop_header_branch
    %17 = sbr.rel (%p15) target = $region8
  $region5: #{gearnet_forward.12} parent=0 // loop_body
    %s19 = ssub.s32 %s14, 1
    %s20 = ssub.s32 %s14, 2
    %s27 = sadd.s32 1, %s22
    %p28 = scmp.ge.s32.totalorder %s27, 3
    %s29 = scalar_select %p28, 0, %s27
    %s30 = sadd.s32 1, %s21
    %s31 = scalar_select %p28, %s30, %s21
    %p32 = scmp.ge.s32.totalorder %s31, 2
    %s33 = scalar_select %p32, 0, %s31
    %s34 = ssub.s32 %s22, %s29
    %s35 = ssub.s32 %s21, %s33
    %s36 = sor.u32 %s34, %s35
    %p37 = scmp.eq.s32.totalorder %s36, 0
    %s39 = sadd.s32 %s38, 1
    %s40 = scalar_select %p37, %s38, %s39
    %p43 = pneg %p37
    %p44 = scmp.eq.s32.totalorder %s14, 5
    %p45 = por %p43, %p44
    %p46 = scmp.ne.s32.totalorder %s38, %s41
    %p47 = scmp.eq.s32.totalorder %s14, 0
    %p48 = por %p46, %p47
    %p49 = scmp.ne.s32.totalorder %s38, %s41
    %p50 = scmp.eq.s32.totalorder %s19, 5
    %p51 = por %p49, %p50
    %p52 = scmp.ne.s32.totalorder %s41, %s42
    %p53 = scmp.eq.s32.totalorder %s19, 0
    %p54 = por %p52, %p53
    %p55 = scmp.ne.s32.totalorder %s41, %s42
    %p56 = scmp.eq.s32.totalorder %s20, 5
    %p57 = por %p55, %p56
    %p59 = scmp.ne.s32.totalorder %s42, %s58
    %p60 = scmp.eq.s32.totalorder %s20, 0
    %p61 = por %p59, %p60
    %s63 = sadd.s32 %s62, 1
    %p66 = scmp.eq.s32.totalorder %s14, 5
    %p67 = scmp.ne.s32.totalorder %s62, %s64
    %p68 = scmp.eq.s32.totalorder %s14, 0
    %p69 = por %p67, %p68
    %p70 = scmp.ne.s32.totalorder %s62, %s64
    %p71 = scmp.eq.s32.totalorder %s19, 5
    %p72 = por %p70, %p71
    %p73 = scmp.ne.s32.totalorder %s64, %s65
    %p74 = scmp.eq.s32.totalorder %s19, 0
    %p75 = por %p73, %p74
    %p76 = scmp.ne.s32.totalorder %s64, %s65
    %p77 = scmp.eq.s32.totalorder %s20, 5
    %p78 = por %p76, %p77
    %p80 = scmp.ne.s32.totalorder %s65, %s79
    %p81 = scmp.eq.s32.totalorder %s20, 0
    %p82 = por %p80, %p81
    %s83 = ssub.s32 %s21, %s33
    %p84 = scmp.eq.s32.totalorder %s83, 0
    %s86 = sadd.s32 %s85, 1
    %s87 = scalar_select %p84, %s85, %s86
    %p90 = pneg %p84
    %p91 = scmp.eq.s32.totalorder %s14, 5
    %p92 = por %p90, %p91
    %p93 = scmp.ne.s32.totalorder %s85, %s88
    %p94 = scmp.eq.s32.totalorder %s14, 0
    %p95 = por %p93, %p94
    %p96 = scmp.ne.s32.totalorder %s85, %s88
    %p97 = scmp.eq.s32.totalorder %s19, 5
    %p98 = por %p96, %p97
    %p99 = scmp.ne.s32.totalorder %s88, %s89
    %p100 = scmp.eq.s32.totalorder %s19, 0
    %p101 = por %p99, %p100
    %p102 = scmp.ne.s32.totalorder %s88, %s89
    %p103 = scmp.eq.s32.totalorder %s20, 5
    %p104 = por %p102, %p103
    %p106 = scmp.ne.s32.totalorder %s89, %s105
    %p107 = scmp.eq.s32.totalorder %s20, 0
    %p108 = por %p106, %p107
    %s110 = sadd.s32 %s109, 1
    %p113 = scmp.eq.s32.totalorder %s14, 5
    %p114 = scmp.ne.s32.totalorder %s109, %s111
    %p115 = scmp.eq.s32.totalorder %s14, 0
    %p116 = por %p114, %p115
    %p117 = scmp.ne.s32.totalorder %s109, %s111
    %p118 = scmp.eq.s32.totalorder %s19, 5
    %p119 = por %p117, %p118
    %p120 = scmp.ne.s32.totalorder %s111, %s112
    %p121 = scmp.eq.s32.totalorder %s19, 0
    %p122 = por %p120, %p121
    %p123 = scmp.ne.s32.totalorder %s111, %s112
    %p124 = scmp.eq.s32.totalorder %s20, 5
    %p125 = por %p123, %p124
    %p127 = scmp.ne.s32.totalorder %s112, %s126
    %p128 = scmp.eq.s32.totalorder %s20, 0
    %p129 = por %p127, %p128
    %s131 = sadd.s32 %s130, 1
    %p134 = scmp.eq.s32.totalorder %s14, 5
    %p135 = scmp.ne.s32.totalorder %s130, %s132
    %p136 = scmp.eq.s32.totalorder %s14, 0
    %p137 = por %p135, %p136
    %p138 = scmp.ne.s32.totalorder %s130, %s132
    %p139 = scmp.eq.s32.totalorder %s19, 5
    %p140 = por %p138, %p139
    %p141 = scmp.ne.s32.totalorder %s132, %s133
    %p142 = scmp.eq.s32.totalorder %s19, 0
    %p143 = por %p141, %p142
    %p144 = scmp.ne.s32.totalorder %s132, %s133
    %p145 = scmp.eq.s32.totalorder %s20, 5
    %p146 = por %p144, %p145
    %p148 = scmp.ne.s32.totalorder %s133, %s147
    %p149 = scmp.eq.s32.totalorder %s20, 0
    %p150 = por %p148, %p149
    %s152 = sadd.s32 %s151, 1
    %p155 = scmp.eq.s32.totalorder %s14, 5
    %p156 = scmp.ne.s32.totalorder %s151, %s153
    %p157 = scmp.eq.s32.totalorder %s14, 0
    %p158 = por %p156, %p157
    %p159 = scmp.ne.s32.totalorder %s151, %s153
    %p160 = scmp.eq.s32.totalorder %s19, 5
    %p161 = por %p159, %p160
    %p162 = scmp.ne.s32.totalorder %s153, %s154
    %p163 = scmp.eq.s32.totalorder %s19, 0
    %p164 = por %p162, %p163
    %p165 = scmp.ne.s32.totalorder %s153, %s154
    %p166 = scmp.eq.s32.totalorder %s20, 5
    %p167 = por %p165, %p166
    %p169 = scmp.ne.s32.totalorder %s154, %s168
    %p170 = scmp.eq.s32.totalorder %s20, 0
    %p171 = por %p169, %p170
    %s173 = sadd.s32 %s172, 1
    %p176 = scmp.eq.s32.totalorder %s14, 5
    %p177 = scmp.ne.s32.totalorder %s172, %s174
    %p178 = scmp.eq.s32.totalorder %s14, 0
    %p179 = por %p177, %p178
    %p180 = scmp.ne.s32.totalorder %s172, %s174
    %p181 = scmp.eq.s32.totalorder %s19, 5
    %p182 = por %p180, %p181
    %p183 = scmp.ne.s32.totalorder %s174, %s175
    %p184 = scmp.eq.s32.totalorder %s19, 0
    %p185 = por %p183, %p184
    %p186 = scmp.ne.s32.totalorder %s174, %s175
    %p187 = scmp.eq.s32.totalorder %s20, 5
    %p188 = por %p186, %p187
    %p190 = scmp.ne.s32.totalorder %s175, %s189
    %p191 = scmp.eq.s32.totalorder %s20, 0
    %p192 = por %p190, %p191
    %s194 = sadd.s32 %s193, 1
    %p197 = scmp.eq.s32.totalorder %s14, 5
    %p198 = scmp.ne.s32.totalorder %s193, %s195
    %p199 = scmp.eq.s32.totalorder %s14, 0
    %p200 = por %p198, %p199
    %p201 = scmp.ne.s32.totalorder %s193, %s195
    %p202 = scmp.eq.s32.totalorder %s19, 5
    %p203 = por %p201, %p202
    %p204 = scmp.ne.s32.totalorder %s195, %s196
    %p205 = scmp.eq.s32.totalorder %s19, 0
    %p206 = por %p204, %p205
    %p207 = scmp.ne.s32.totalorder %s195, %s196
    %p208 = scmp.eq.s32.totalorder %s20, 5
    %p209 = por %p207, %p208
    %p211 = scmp.ne.s32.totalorder %s196, %s210
    %p212 = scmp.eq.s32.totalorder %s20, 0
    %p213 = por %p211, %p212
    %s214 = ssub.s32 %s21, %s33
    %p215 = scmp.eq.s32.totalorder %s214, 0
    %s217 = sadd.s32 %s216, 1
    %s218 = scalar_select %p215, %s216, %s217
    %p221 = pneg %p215
    %p222 = scmp.eq.s32.totalorder %s14, 5
    %p223 = por %p221, %p222
    %p224 = scmp.ne.s32.totalorder %s216, %s219
    %p225 = scmp.eq.s32.totalorder %s14, 0
    %p226 = por %p224, %p225
    %p227 = scmp.ne.s32.totalorder %s216, %s219
    %p228 = scmp.eq.s32.totalorder %s19, 5
    %p229 = por %p227, %p228
    %p230 = scmp.ne.s32.totalorder %s219, %s220
    %p231 = scmp.eq.s32.totalorder %s19, 0
    %p232 = por %p230, %p231
    %p233 = scmp.ne.s32.totalorder %s219, %s220
    %p234 = scmp.eq.s32.totalorder %s20, 5
    %p235 = por %p233, %p234
    %p237 = scmp.ne.s32.totalorder %s220, %s236
    %p238 = scmp.eq.s32.totalorder %s20, 0
    %p239 = por %p237, %p238
    %p240 = scmp.le.s32.totalorder 1, %s14
    %p241 = scmp.lt.s32.totalorder %s14, 7
    %p242 = pnand %p240, %p241
    %p243 = pneg %p242
    // Predicated region
    $region9: #{gearnet_forward.12} parent=5 // pred_check
      _
    $region10: #{gearnet_forward.12} parent=5 // pred_check_branch
      %245 = sbr.rel (%p242) target = $region12
    $region11: #{gearnet_forward.12} parent=5 // pred_region
      %s246 = ssub.s32 %s14, 1
      // Predicated region
      $region13: #{gearnet_forward.12} parent=11 // pred_check
        %p247 = pneg %p75
      $region14: #{gearnet_forward.12} parent=11 // pred_check_branch
        %249 = sbr.rel (%p247) target = $region16
      $region15: #{gearnet_forward.12} parent=11 // pred_region
        _
      $region16: #{gearnet_forward.12} parent=11 // pred_fallthru
        _
      // Predicated region
      $region17: #{gearnet_forward.12} parent=11 // pred_check
        %p250 = pneg %p122
      $region18: #{gearnet_forward.12} parent=11 // pred_check_branch
        %252 = sbr.rel (%p250) target = $region20
      $region19: #{gearnet_forward.12} parent=11 // pred_region
        _
      $region20: #{gearnet_forward.12} parent=11 // pred_fallthru
        _
      // Predicated region
      $region21: #{gearnet_forward.12} parent=11 // pred_check
        %p253 = pneg %p143
      $region22: #{gearnet_forward.12} parent=11 // pred_check_branch
        %255 = sbr.rel (%p253) target = $region24
      $region23: #{gearnet_forward.12} parent=11 // pred_region
        _
      $region24: #{gearnet_forward.12} parent=11 // pred_fallthru
        _
      // Predicated region
      $region25: #{gearnet_forward.12} parent=11 // pred_check
        %p256 = pneg %p164
      $region26: #{gearnet_forward.12} parent=11 // pred_check_branch
        %258 = sbr.rel (%p256) target = $region28
      $region27: #{gearnet_forward.12} parent=11 // pred_region
        _
      $region28: #{gearnet_forward.12} parent=11 // pred_fallthru
        _
      // Predicated region
      $region29: #{gearnet_forward.12} parent=11 // pred_check
        %p259 = pneg %p185
      $region30: #{gearnet_forward.12} parent=11 // pred_check_branch
        %261 = sbr.rel (%p259) target = $region32
      $region31: #{gearnet_forward.12} parent=11 // pred_region
        _
      $region32: #{gearnet_forward.12} parent=11 // pred_fallthru
        _
      // Predicated region
      $region33: #{gearnet_forward.12} parent=11 // pred_check
        %p262 = pneg %p206
      $region34: #{gearnet_forward.12} parent=11 // pred_check_branch
        %264 = sbr.rel (%p262) target = $region36
      $region35: #{gearnet_forward.12} parent=11 // pred_region
        _
      $region36: #{gearnet_forward.12} parent=11 // pred_fallthru
        _
    $region12: #{gearnet_forward.12} parent=5 // pred_fallthru
      _
    %p265 = scmp.lt.s32.totalorder %s14, 6
    // Predicated region
    $region37: #{gearnet_forward.12} parent=5 // pred_check
      %p266 = pneg %p265
    $region38: #{gearnet_forward.12} parent=5 // pred_check_branch
      %268 = sbr.rel (%p266) target = $region40
    $region39: #{gearnet_forward.12} parent=5 // pred_region
      // Predicated region
      $region41: #{gearnet_forward.12} parent=39 // pred_check
        %p269 = pneg %p48
      $region42: #{gearnet_forward.12} parent=39 // pred_check_branch
        %271 = sbr.rel (%p269) target = $region44
      $region43: #{gearnet_forward.12} parent=39 // pred_region
        %p272 = scmp.lt.s32.totalorder %s22, 2
        %s273 = scalar_select %p272, %s22, 2
        %p274 = scmp.lt.s32.totalorder %s21, 1
        %s275 = scalar_select %p274, %s21, 1
        %s276 = smul.addr %s273, 2
        %s277 = sadd.s32 %s275, %s276
        %s278 = smul.addr %s277, 4
        %s279 = scalar_lea.vmem %s0, %s278
      $region44: #{gearnet_forward.12} parent=39 // pred_fallthru
        _
      // Predicated region
      $region45: #{gearnet_forward.12} parent=39 // pred_check
        %p280 = pneg %p95
      $region46: #{gearnet_forward.12} parent=39 // pred_check_branch
        %282 = sbr.rel (%p280) target = $region48
      $region47: #{gearnet_forward.12} parent=39 // pred_region
        %p283 = scmp.lt.s32.totalorder %s21, 1
        %s284 = scalar_select %p283, %s21, 1
        %s285 = smul.addr %s284, 4
        %s286 = smul.addr %s285, 4
        %s287 = scalar_lea.vmem %s2, %s286
      $region48: #{gearnet_forward.12} parent=39 // pred_fallthru
        _
    $region40: #{gearnet_forward.12} parent=5 // pred_fallthru
      _
    %p288 = scmp.le.s32.totalorder 1, %s14
    %p289 = scmp.lt.s32.totalorder %s14, 7
    %p290 = pnand %p288, %p289
    %p291 = pneg %p290
    // Predicated region
    $region49: #{gearnet_forward.12} parent=5 // pred_check
      _
    $region50: #{gearnet_forward.12} parent=5 // pred_check_branch
      %293 = sbr.rel (%p290) target = $region52
    $region51: #{gearnet_forward.12} parent=5 // pred_region
      %s294 = ssub.s32 %s14, 1
      %p295 = scmp.lt.s32.totalorder %s24, 2
      %s296 = scalar_select %p295, %s24, 2
      %p297 = scmp.lt.s32.totalorder %s23, 1
      %s298 = scalar_select %p297, %s23, 1
      %s299 = smul.addr %s296, 2
      %s300 = sadd.s32 %s298, %s299
      %s301 = smul.addr %s300, 4
      %s302 = scalar_lea.vmem %s0, %s301
      %p303 = pneg %p54
      %p304 = pneg %p51
      %p305 = pneg %p75
      %p306 = pneg %p72
      %p307 = scmp.lt.s32.totalorder %s23, 1
      %s308 = scalar_select %p307, %s23, 1
      %s309 = smul.addr %s308, 4
      %s310 = smul.addr %s309, 4
      %s311 = scalar_lea.vmem %s2, %s310
      %p312 = pneg %p101
      %p313 = pneg %p98
      %p314 = pneg %p122
      %p315 = pneg %p119
      %p316 = pneg %p143
      %p317 = pneg %p140
      %p318 = pneg %p164
      %p319 = pneg %p161
      %p320 = pneg %p185
      %p321 = pneg %p182
      %p322 = pneg %p206
      %p323 = pneg %p203
      %p324 = pneg %p232
      %p325 = pneg %p229
      %p326 = scmp.lt.s32.totalorder %s23, 1
      %s327 = scalar_select %p326, %s23, 1
      %s328 = smul.addr %s327, 4
      %s329 = smul.addr %s328, 4
      %s330 = scalar_lea.vmem %s8, %s329
      %p331 = scmp.lt.s32.totalorder %s24, 2
      %s332 = scalar_select %p331, %s24, 2
      %p333 = scmp.lt.s32.totalorder %s23, 1
      %s334 = scalar_select %p333, %s23, 1
      %s335 = smul.addr %s332, 2
      %s336 = sadd.s32 %s334, %s335
      %s337 = smul.addr %s336, 4
      %s338 = scalar_lea.vmem %s0, %s337
      %p339 = scmp.lt.s32.totalorder %s23, 1
      %s340 = scalar_select %p339, %s23, 1
      %s341 = smul.addr %s340, 4
      %s342 = smul.addr %s341, 4
      %s343 = scalar_lea.vmem %s2, %s342
      %p344 = scmp.lt.s32.totalorder %s23, 1
      %s345 = scalar_select %p344, %s23, 1
      %s346 = smul.addr %s345, 4
      %s347 = smul.addr %s346, 4
      %s348 = scalar_lea.vmem %s8, %s347
      %p350 = scmp.eq.s32.totalorder %s24, 0
      // Predicated region
      $region53: #{gearnet_forward.12} parent=51 // pred_check
        %p351 = pneg %p350
      $region54: #{gearnet_forward.12} parent=51 // pred_check_branch
        %353 = sbr.rel (%p351) target = $region56
      $region55: #{gearnet_forward.12} parent=51 // pred_region
        %v354 = vld [vmem:[%s343] sm:$0xff]
        %v355 = vld [vmem:[%s343 + $0x8] sm:$0xff]
        %v356 = vld [vmem:[%s4] sm:$0xff]
        %v357 = vld [vmem:[%s4 + $0x8] sm:$0xff]
        %v358 = vld [vmem:[%s4 + $0x10] sm:$0xff]
        %v359 = vld [vmem:[%s4 + $0x18] sm:$0xff]
        %v360 = vld [vmem:[%s4 + $0x20] sm:$0xff]
        %v361 = vld [vmem:[%s4 + $0x28] sm:$0xff]
        %v362 = vld [vmem:[%s4 + $0x30] sm:$0xff]
        %v363 = vld [vmem:[%s4 + $0x38] sm:$0xff]
        %v364 = vld [vmem:[%s4 + $0x40] sm:$0xff]
        %v365 = vld [vmem:[%s4 + $0x48] sm:$0xff]
        %v366 = vld [vmem:[%s4 + $0x50] sm:$0xff]
        %v367 = vld [vmem:[%s4 + $0x58] sm:$0xff]
        %v368 = vld [vmem:[%s4 + $0x60] sm:$0xff]
        %v369 = vld [vmem:[%s4 + $0x68] sm:$0xff]
        %v370 = vld [vmem:[%s4 + $0x70] sm:$0xff]
        %v371 = vld [vmem:[%s4 + $0x78] sm:$0xff]
        %v372 = vld [vmem:[%s4 + $0x80] sm:$0xff]
        %v373 = vld [vmem:[%s4 + $0x88] sm:$0xff]
        %v374 = vld [vmem:[%s4 + $0x90] sm:$0xff]
        %v375 = vld [vmem:[%s4 + $0x98] sm:$0xff]
        %v376 = vld [vmem:[%s4 + $0xa0] sm:$0xff]
        %v377 = vld [vmem:[%s4 + $0xa8] sm:$0xff]
        %v378 = vld [vmem:[%s4 + $0xb0] sm:$0xff]
        %v379 = vld [vmem:[%s4 + $0xb8] sm:$0xff]
        %v380 = vld [vmem:[%s4 + $0xc0] sm:$0xff]
        %v381 = vld [vmem:[%s4 + $0xc8] sm:$0xff]
        %v382 = vld [vmem:[%s4 + $0xd0] sm:$0xff]
        %v383 = vld [vmem:[%s4 + $0xd8] sm:$0xff]
        %v384 = vld [vmem:[%s4 + $0xe0] sm:$0xff]
        %v385 = vld [vmem:[%s4 + $0xe8] sm:$0xff]
        %v386 = vld [vmem:[%s4 + $0xf0] sm:$0xff]
        %v387 = vld [vmem:[%s4 + $0xf8] sm:$0xff]
        %v388 = vld [vmem:[%s4 + $0x100] sm:$0xff]
        %v389 = vld [vmem:[%s4 + $0x108] sm:$0xff]
        %v390 = vld [vmem:[%s4 + $0x110] sm:$0xff]
        %v391 = vld [vmem:[%s4 + $0x118] sm:$0xff]
        %v392 = vld [vmem:[%s4 + $0x120] sm:$0xff]
        %v393 = vld [vmem:[%s4 + $0x128] sm:$0xff]
        %v394 = vld [vmem:[%s4 + $0x130] sm:$0xff]
        %v395 = vld [vmem:[%s4 + $0x138] sm:$0xff]
        %v396 = vld [vmem:[%s4 + $0x140] sm:$0xff]
        %v397 = vld [vmem:[%s4 + $0x148] sm:$0xff]
        %v398 = vld [vmem:[%s4 + $0x150] sm:$0xff]
        %v399 = vld [vmem:[%s4 + $0x158] sm:$0xff]
        %v400 = vld [vmem:[%s4 + $0x160] sm:$0xff]
        %v401 = vld [vmem:[%s4 + $0x168] sm:$0xff]
        %v402 = vld [vmem:[%s4 + $0x170] sm:$0xff]
        %v403 = vld [vmem:[%s4 + $0x178] sm:$0xff]
        %v404 = vld [vmem:[%s4 + $0x180] sm:$0xff]
        %v405 = vld [vmem:[%s4 + $0x188] sm:$0xff]
        %v406 = vld [vmem:[%s4 + $0x190] sm:$0xff]
        %v407 = vld [vmem:[%s4 + $0x198] sm:$0xff]
        %v408 = vld [vmem:[%s4 + $0x1a0] sm:$0xff]
        %v409 = vld [vmem:[%s4 + $0x1a8] sm:$0xff]
        %v410 = vld [vmem:[%s4 + $0x1b0] sm:$0xff]
        %v411 = vld [vmem:[%s4 + $0x1b8] sm:$0xff]
        %v412 = vld [vmem:[%s4 + $0x1c0] sm:$0xff]
        %v413 = vld [vmem:[%s4 + $0x1c8] sm:$0xff]
        %v414 = vld [vmem:[%s4 + $0x1d0] sm:$0xff]
        %v415 = vld [vmem:[%s4 + $0x1d8] sm:$0xff]
        %v416 = vld [vmem:[%s4 + $0x1e0] sm:$0xff]
        %v417 = vld [vmem:[%s4 + $0x1e8] sm:$0xff]
        %v418 = vld [vmem:[%s4 + $0x1f0] sm:$0xff]
        %v419 = vld [vmem:[%s4 + $0x1f8] sm:$0xff]
        %v420 = vld [vmem:[%s4 + $0x200] sm:$0xff]
        %v421 = vld [vmem:[%s4 + $0x208] sm:$0xff]
        %v422 = vld [vmem:[%s4 + $0x210] sm:$0xff]
        %v423 = vld [vmem:[%s4 + $0x218] sm:$0xff]
        %v424 = vld [vmem:[%s4 + $0x220] sm:$0xff]
        %v425 = vld [vmem:[%s4 + $0x228] sm:$0xff]
        %v426 = vld [vmem:[%s4 + $0x230] sm:$0xff]
        %v427 = vld [vmem:[%s4 + $0x238] sm:$0xff]
        %v428 = vld [vmem:[%s4 + $0x240] sm:$0xff]
        %v429 = vld [vmem:[%s4 + $0x248] sm:$0xff]
        %v430 = vld [vmem:[%s4 + $0x250] sm:$0xff]
        %v431 = vld [vmem:[%s4 + $0x258] sm:$0xff]
        %v432 = vld [vmem:[%s4 + $0x260] sm:$0xff]
        %v433 = vld [vmem:[%s4 + $0x268] sm:$0xff]
        %v434 = vld [vmem:[%s4 + $0x270] sm:$0xff]
        %v435 = vld [vmem:[%s4 + $0x278] sm:$0xff]
        %v436 = vld [vmem:[%s4 + $0x280] sm:$0xff]
        %v437 = vld [vmem:[%s4 + $0x288] sm:$0xff]
        %v438 = vld [vmem:[%s4 + $0x290] sm:$0xff]
        %v439 = vld [vmem:[%s4 + $0x298] sm:$0xff]
        %v440 = vld [vmem:[%s4 + $0x2a0] sm:$0xff]
        %v441 = vld [vmem:[%s4 + $0x2a8] sm:$0xff]
        %v442 = vld [vmem:[%s4 + $0x2b0] sm:$0xff]
        %v443 = vld [vmem:[%s4 + $0x2b8] sm:$0xff]
        %v444 = vld [vmem:[%s4 + $0x2c0] sm:$0xff]
        %v445 = vld [vmem:[%s4 + $0x2c8] sm:$0xff]
        %v446 = vld [vmem:[%s4 + $0x2d0] sm:$0xff]
        %v447 = vld [vmem:[%s4 + $0x2d8] sm:$0xff]
        %v448 = vld [vmem:[%s4 + $0x2e0] sm:$0xff]
        %v449 = vld [vmem:[%s4 + $0x2e8] sm:$0xff]
        %v450 = vld [vmem:[%s4 + $0x2f0] sm:$0xff]
        %v451 = vld [vmem:[%s4 + $0x2f8] sm:$0xff]
        %v452 = vld [vmem:[%s4 + $0x300] sm:$0xff]
        %v453 = vld [vmem:[%s4 + $0x308] sm:$0xff]
        %v454 = vld [vmem:[%s4 + $0x310] sm:$0xff]
        %v455 = vld [vmem:[%s4 + $0x318] sm:$0xff]
        %v456 = vld [vmem:[%s4 + $0x320] sm:$0xff]
        %v457 = vld [vmem:[%s4 + $0x328] sm:$0xff]
        %v458 = vld [vmem:[%s4 + $0x330] sm:$0xff]
        %v459 = vld [vmem:[%s4 + $0x338] sm:$0xff]
        %v460 = vld [vmem:[%s4 + $0x340] sm:$0xff]
        %v461 = vld [vmem:[%s4 + $0x348] sm:$0xff]
        %v462 = vld [vmem:[%s4 + $0x350] sm:$0xff]
        %v463 = vld [vmem:[%s4 + $0x358] sm:$0xff]
        %v464 = vld [vmem:[%s4 + $0x360] sm:$0xff]
        %v465 = vld [vmem:[%s4 + $0x368] sm:$0xff]
        %v466 = vld [vmem:[%s4 + $0x370] sm:$0xff]
        %v467 = vld [vmem:[%s4 + $0x378] sm:$0xff]
        %v468 = vld [vmem:[%s4 + $0x380] sm:$0xff]
        %v469 = vld [vmem:[%s4 + $0x388] sm:$0xff]
        %v470 = vld [vmem:[%s4 + $0x390] sm:$0xff]
        %v471 = vld [vmem:[%s4 + $0x398] sm:$0xff]
        %v472 = vld [vmem:[%s4 + $0x3a0] sm:$0xff]
        %v473 = vld [vmem:[%s4 + $0x3a8] sm:$0xff]
        %v474 = vld [vmem:[%s4 + $0x3b0] sm:$0xff]
        %v475 = vld [vmem:[%s4 + $0x3b8] sm:$0xff]
        %v476 = vld [vmem:[%s4 + $0x3c0] sm:$0xff]
        %v477 = vld [vmem:[%s4 + $0x3c8] sm:$0xff]
        %v478 = vld [vmem:[%s4 + $0x3d0] sm:$0xff]
        %v479 = vld [vmem:[%s4 + $0x3d8] sm:$0xff]
        %v480 = vld [vmem:[%s4 + $0x3e0] sm:$0xff]
        %v481 = vld [vmem:[%s4 + $0x3e8] sm:$0xff]
        %v482 = vld [vmem:[%s4 + $0x3f0] sm:$0xff]
        %v483 = vld [vmem:[%s4 + $0x3f8] sm:$0xff]
        %v484 = vld [vmem:[%s5] sm:$0xf]
        %v486 = vlaneseq
        %v487 = vshrl.u32 %v486, 7
        %v488 = vsub.s32 0, %v487
        %v489 = vrot.slane %v484, %v488
        %v490 = vlaneseq
        %v491 = vshrl.u32 %v490, 7
        %v492 = vsub.s32 1, %v491
        %v493 = vrot.slane %v484, %v492
        %v494 = vlaneseq
        %v495 = vshrl.u32 %v494, 7
        %v496 = vsub.s32 2, %v495
        %v497 = vrot.slane %v484, %v496
        %v498 = vlaneseq
        %v499 = vshrl.u32 %v498, 7
        %v500 = vsub.s32 3, %v499
        %v501 = vrot.slane %v484, %v500
        %v508 = vunpack.c.l.b16 %v354
        %v509 = vunpack.c.h.b16 %v354
        %v510 = vunpack.c.l.b16 %v355
        %v511 = vunpack.c.h.b16 %v355
        %v512 = vpack.c.b16 %v508, %v508
        %v513 = vpack.c.b16 %v509, %v509
        %v514 = vpack.c.b16 %v510, %v510
        %v515 = vpack.c.b16 %v511, %v511
        %v648 = vunpack.c.l.b16 %v356
        %v649 = vunpack.c.h.b16 %v356
        %v650 = vunpack.c.l.b16 %v357
        %v651 = vunpack.c.h.b16 %v357
        %v652 = vunpack.c.l.b16 %v358
        %v653 = vunpack.c.h.b16 %v358
        %v654 = vunpack.c.l.b16 %v359
        %v655 = vunpack.c.h.b16 %v359
        %v656 = vunpack.c.l.b16 %v360
        %v657 = vunpack.c.h.b16 %v360
        %v658 = vunpack.c.l.b16 %v361
        %v659 = vunpack.c.h.b16 %v361
        %v660 = vunpack.c.l.b16 %v362
        %v661 = vunpack.c.h.b16 %v362
        %v662 = vunpack.c.l.b16 %v363
        %v663 = vunpack.c.h.b16 %v363
        %v664 = vunpack.c.l.b16 %v364
        %v665 = vunpack.c.h.b16 %v364
        %v666 = vunpack.c.l.b16 %v365
        %v667 = vunpack.c.h.b16 %v365
        %v668 = vunpack.c.l.b16 %v366
        %v669 = vunpack.c.h.b16 %v366
        %v670 = vunpack.c.l.b16 %v367
        %v671 = vunpack.c.h.b16 %v367
        %v672 = vunpack.c.l.b16 %v368
        %v673 = vunpack.c.h.b16 %v368
        %v674 = vunpack.c.l.b16 %v369
        %v675 = vunpack.c.h.b16 %v369
        %v676 = vunpack.c.l.b16 %v370
        %v677 = vunpack.c.h.b16 %v370
        %v678 = vunpack.c.l.b16 %v371
        %v679 = vunpack.c.h.b16 %v371
        %v680 = vunpack.c.l.b16 %v372
        %v681 = vunpack.c.h.b16 %v372
        %v682 = vunpack.c.l.b16 %v373
        %v683 = vunpack.c.h.b16 %v373
        %v684 = vunpack.c.l.b16 %v374
        %v685 = vunpack.c.h.b16 %v374
        %v686 = vunpack.c.l.b16 %v375
        %v687 = vunpack.c.h.b16 %v375
        %v688 = vunpack.c.l.b16 %v376
        %v689 = vunpack.c.h.b16 %v376
        %v690 = vunpack.c.l.b16 %v377
        %v691 = vunpack.c.h.b16 %v377
        %v692 = vunpack.c.l.b16 %v378
        %v693 = vunpack.c.h.b16 %v378
        %v694 = vunpack.c.l.b16 %v379
        %v695 = vunpack.c.h.b16 %v379
        %v696 = vunpack.c.l.b16 %v380
        %v697 = vunpack.c.h.b16 %v380
        %v698 = vunpack.c.l.b16 %v381
        %v699 = vunpack.c.h.b16 %v381
        %v700 = vunpack.c.l.b16 %v382
        %v701 = vunpack.c.h.b16 %v382
        %v702 = vunpack.c.l.b16 %v383
        %v703 = vunpack.c.h.b16 %v383
        %v704 = vunpack.c.l.b16 %v384
        %v705 = vunpack.c.h.b16 %v384
        %v706 = vunpack.c.l.b16 %v385
        %v707 = vunpack.c.h.b16 %v385
        %v708 = vunpack.c.l.b16 %v386
        %v709 = vunpack.c.h.b16 %v386
        %v710 = vunpack.c.l.b16 %v387
        %v711 = vunpack.c.h.b16 %v387
        %v712 = vunpack.c.l.b16 %v388
        %v713 = vunpack.c.h.b16 %v388
        %v714 = vunpack.c.l.b16 %v389
        %v715 = vunpack.c.h.b16 %v389
        %v716 = vunpack.c.l.b16 %v390
        %v717 = vunpack.c.h.b16 %v390
        %v718 = vunpack.c.l.b16 %v391
        %v719 = vunpack.c.h.b16 %v391
        %v720 = vunpack.c.l.b16 %v392
        %v721 = vunpack.c.h.b16 %v392
        %v722 = vunpack.c.l.b16 %v393
        %v723 = vunpack.c.h.b16 %v393
        %v724 = vunpack.c.l.b16 %v394
        %v725 = vunpack.c.h.b16 %v394
        %v726 = vunpack.c.l.b16 %v395
        %v727 = vunpack.c.h.b16 %v395
        %v728 = vunpack.c.l.b16 %v396
        %v729 = vunpack.c.h.b16 %v396
        %v730 = vunpack.c.l.b16 %v397
        %v731 = vunpack.c.h.b16 %v397
        %v732 = vunpack.c.l.b16 %v398
        %v733 = vunpack.c.h.b16 %v398
        %v734 = vunpack.c.l.b16 %v399
        %v735 = vunpack.c.h.b16 %v399
        %v736 = vunpack.c.l.b16 %v400
        %v737 = vunpack.c.h.b16 %v400
        %v738 = vunpack.c.l.b16 %v401
        %v739 = vunpack.c.h.b16 %v401
        %v740 = vunpack.c.l.b16 %v402
        %v741 = vunpack.c.h.b16 %v402
        %v742 = vunpack.c.l.b16 %v403
        %v743 = vunpack.c.h.b16 %v403
        %v744 = vunpack.c.l.b16 %v404
        %v745 = vunpack.c.h.b16 %v404
        %v746 = vunpack.c.l.b16 %v405
        %v747 = vunpack.c.h.b16 %v405
        %v748 = vunpack.c.l.b16 %v406
        %v749 = vunpack.c.h.b16 %v406
        %v750 = vunpack.c.l.b16 %v407
        %v751 = vunpack.c.h.b16 %v407
        %v752 = vunpack.c.l.b16 %v408
        %v753 = vunpack.c.h.b16 %v408
        %v754 = vunpack.c.l.b16 %v409
        %v755 = vunpack.c.h.b16 %v409
        %v756 = vunpack.c.l.b16 %v410
        %v757 = vunpack.c.h.b16 %v410
        %v758 = vunpack.c.l.b16 %v411
        %v759 = vunpack.c.h.b16 %v411
        %v760 = vunpack.c.l.b16 %v412
        %v761 = vunpack.c.h.b16 %v412
        %v762 = vunpack.c.l.b16 %v413
        %v763 = vunpack.c.h.b16 %v413
        %v764 = vunpack.c.l.b16 %v414
        %v765 = vunpack.c.h.b16 %v414
        %v766 = vunpack.c.l.b16 %v415
        %v767 = vunpack.c.h.b16 %v415
        %v768 = vunpack.c.l.b16 %v416
        %v769 = vunpack.c.h.b16 %v416
        %v770 = vunpack.c.l.b16 %v417
        %v771 = vunpack.c.h.b16 %v417
        %v772 = vunpack.c.l.b16 %v418
        %v773 = vunpack.c.h.b16 %v418
        %v774 = vunpack.c.l.b16 %v419
        %v775 = vunpack.c.h.b16 %v419
        %v776 = vunpack.c.l.b16 %v420
        %v777 = vunpack.c.h.b16 %v420
        %v778 = vunpack.c.l.b16 %v421
        %v779 = vunpack.c.h.b16 %v421
        %v780 = vunpack.c.l.b16 %v422
        %v781 = vunpack.c.h.b16 %v422
        %v782 = vunpack.c.l.b16 %v423
        %v783 = vunpack.c.h.b16 %v423
        %v784 = vunpack.c.l.b16 %v424
        %v785 = vunpack.c.h.b16 %v424
        %v786 = vunpack.c.l.b16 %v425
        %v787 = vunpack.c.h.b16 %v425
        %v788 = vunpack.c.l.b16 %v426
        %v789 = vunpack.c.h.b16 %v426
        %v790 = vunpack.c.l.b16 %v427
        %v791 = vunpack.c.h.b16 %v427
        %v792 = vunpack.c.l.b16 %v428
        %v793 = vunpack.c.h.b16 %v428
        %v794 = vunpack.c.l.b16 %v429
        %v795 = vunpack.c.h.b16 %v429
        %v796 = vunpack.c.l.b16 %v430
        %v797 = vunpack.c.h.b16 %v430
        %v798 = vunpack.c.l.b16 %v431
        %v799 = vunpack.c.h.b16 %v431
        %v800 = vunpack.c.l.b16 %v432
        %v801 = vunpack.c.h.b16 %v432
        %v802 = vunpack.c.l.b16 %v433
        %v803 = vunpack.c.h.b16 %v433
        %v804 = vunpack.c.l.b16 %v434
        %v805 = vunpack.c.h.b16 %v434
        %v806 = vunpack.c.l.b16 %v435
        %v807 = vunpack.c.h.b16 %v435
        %v808 = vunpack.c.l.b16 %v436
        %v809 = vunpack.c.h.b16 %v436
        %v810 = vunpack.c.l.b16 %v437
        %v811 = vunpack.c.h.b16 %v437
        %v812 = vunpack.c.l.b16 %v438
        %v813 = vunpack.c.h.b16 %v438
        %v814 = vunpack.c.l.b16 %v439
        %v815 = vunpack.c.h.b16 %v439
        %v816 = vunpack.c.l.b16 %v440
        %v817 = vunpack.c.h.b16 %v440
        %v818 = vunpack.c.l.b16 %v441
        %v819 = vunpack.c.h.b16 %v441
        %v820 = vunpack.c.l.b16 %v442
        %v821 = vunpack.c.h.b16 %v442
        %v822 = vunpack.c.l.b16 %v443
        %v823 = vunpack.c.h.b16 %v443
        %v824 = vunpack.c.l.b16 %v444
        %v825 = vunpack.c.h.b16 %v444
        %v826 = vunpack.c.l.b16 %v445
        %v827 = vunpack.c.h.b16 %v445
        %v828 = vunpack.c.l.b16 %v446
        %v829 = vunpack.c.h.b16 %v446
        %v830 = vunpack.c.l.b16 %v447
        %v831 = vunpack.c.h.b16 %v447
        %v832 = vunpack.c.l.b16 %v448
        %v833 = vunpack.c.h.b16 %v448
        %v834 = vunpack.c.l.b16 %v449
        %v835 = vunpack.c.h.b16 %v449
        %v836 = vunpack.c.l.b16 %v450
        %v837 = vunpack.c.h.b16 %v450
        %v838 = vunpack.c.l.b16 %v451
        %v839 = vunpack.c.h.b16 %v451
        %v840 = vunpack.c.l.b16 %v452
        %v841 = vunpack.c.h.b16 %v452
        %v842 = vunpack.c.l.b16 %v453
        %v843 = vunpack.c.h.b16 %v453
        %v844 = vunpack.c.l.b16 %v454
        %v845 = vunpack.c.h.b16 %v454
        %v846 = vunpack.c.l.b16 %v455
        %v847 = vunpack.c.h.b16 %v455
        %v848 = vunpack.c.l.b16 %v456
        %v849 = vunpack.c.h.b16 %v456
        %v850 = vunpack.c.l.b16 %v457
        %v851 = vunpack.c.h.b16 %v457
        %v852 = vunpack.c.l.b16 %v458
        %v853 = vunpack.c.h.b16 %v458
        %v854 = vunpack.c.l.b16 %v459
        %v855 = vunpack.c.h.b16 %v459
        %v856 = vunpack.c.l.b16 %v460
        %v857 = vunpack.c.h.b16 %v460
        %v858 = vunpack.c.l.b16 %v461
        %v859 = vunpack.c.h.b16 %v461
        %v860 = vunpack.c.l.b16 %v462
        %v861 = vunpack.c.h.b16 %v462
        %v862 = vunpack.c.l.b16 %v463
        %v863 = vunpack.c.h.b16 %v463
        %v864 = vunpack.c.l.b16 %v464
        %v865 = vunpack.c.h.b16 %v464
        %v866 = vunpack.c.l.b16 %v465
        %v867 = vunpack.c.h.b16 %v465
        %v868 = vunpack.c.l.b16 %v466
        %v869 = vunpack.c.h.b16 %v466
        %v870 = vunpack.c.l.b16 %v467
        %v871 = vunpack.c.h.b16 %v467
        %v872 = vunpack.c.l.b16 %v468
        %v873 = vunpack.c.h.b16 %v468
        %v874 = vunpack.c.l.b16 %v469
        %v875 = vunpack.c.h.b16 %v469
        %v876 = vunpack.c.l.b16 %v470
        %v877 = vunpack.c.h.b16 %v470
        %v878 = vunpack.c.l.b16 %v471
        %v879 = vunpack.c.h.b16 %v471
        %v880 = vunpack.c.l.b16 %v472
        %v881 = vunpack.c.h.b16 %v472
        %v882 = vunpack.c.l.b16 %v473
        %v883 = vunpack.c.h.b16 %v473
        %v884 = vunpack.c.l.b16 %v474
        %v885 = vunpack.c.h.b16 %v474
        %v886 = vunpack.c.l.b16 %v475
        %v887 = vunpack.c.h.b16 %v475
        %v888 = vunpack.c.l.b16 %v476
        %v889 = vunpack.c.h.b16 %v476
        %v890 = vunpack.c.l.b16 %v477
        %v891 = vunpack.c.h.b16 %v477
        %v892 = vunpack.c.l.b16 %v478
        %v893 = vunpack.c.h.b16 %v478
        %v894 = vunpack.c.l.b16 %v479
        %v895 = vunpack.c.h.b16 %v479
        %v896 = vunpack.c.l.b16 %v480
        %v897 = vunpack.c.h.b16 %v480
        %v898 = vunpack.c.l.b16 %v481
        %v899 = vunpack.c.h.b16 %v481
        %v900 = vunpack.c.l.b16 %v482
        %v901 = vunpack.c.h.b16 %v482
        %v902 = vunpack.c.l.b16 %v483
        %v903 = vunpack.c.h.b16 %v483
        %v904 = vpack.c.b16 %v652, %v648
        %v905 = vpack.c.b16 %v653, %v649
        %v906 = vpack.c.b16 %v654, %v650
        %v907 = vpack.c.b16 %v655, %v651
        %v908 = vpack.c.b16 %v660, %v656
        %v909 = vpack.c.b16 %v661, %v657
        %v910 = vpack.c.b16 %v662, %v658
        %v911 = vpack.c.b16 %v663, %v659
        %v912 = vpack.c.b16 %v668, %v664
        %v913 = vpack.c.b16 %v669, %v665
        %v914 = vpack.c.b16 %v670, %v666
        %v915 = vpack.c.b16 %v671, %v667
        %v916 = vpack.c.b16 %v676, %v672
        %v917 = vpack.c.b16 %v677, %v673
        %v918 = vpack.c.b16 %v678, %v674
        %v919 = vpack.c.b16 %v679, %v675
        %v920 = vpack.c.b16 %v684, %v680
        %v921 = vpack.c.b16 %v685, %v681
        %v922 = vpack.c.b16 %v686, %v682
        %v923 = vpack.c.b16 %v687, %v683
        %v924 = vpack.c.b16 %v692, %v688
        %v925 = vpack.c.b16 %v693, %v689
        %v926 = vpack.c.b16 %v694, %v690
        %v927 = vpack.c.b16 %v695, %v691
        %v928 = vpack.c.b16 %v700, %v696
        %v929 = vpack.c.b16 %v701, %v697
        %v930 = vpack.c.b16 %v702, %v698
        %v931 = vpack.c.b16 %v703, %v699
        %v932 = vpack.c.b16 %v708, %v704
        %v933 = vpack.c.b16 %v709, %v705
        %v934 = vpack.c.b16 %v710, %v706
        %v935 = vpack.c.b16 %v711, %v707
        %v936 = vpack.c.b16 %v716, %v712
        %v937 = vpack.c.b16 %v717, %v713
        %v938 = vpack.c.b16 %v718, %v714
        %v939 = vpack.c.b16 %v719, %v715
        %v940 = vpack.c.b16 %v724, %v720
        %v941 = vpack.c.b16 %v725, %v721
        %v942 = vpack.c.b16 %v726, %v722
        %v943 = vpack.c.b16 %v727, %v723
        %v944 = vpack.c.b16 %v732, %v728
        %v945 = vpack.c.b16 %v733, %v729
        %v946 = vpack.c.b16 %v734, %v730
        %v947 = vpack.c.b16 %v735, %v731
        %v948 = vpack.c.b16 %v740, %v736
        %v949 = vpack.c.b16 %v741, %v737
        %v950 = vpack.c.b16 %v742, %v738
        %v951 = vpack.c.b16 %v743, %v739
        %v952 = vpack.c.b16 %v748, %v744
        %v953 = vpack.c.b16 %v749, %v745
        %v954 = vpack.c.b16 %v750, %v746
        %v955 = vpack.c.b16 %v751, %v747
        %v956 = vpack.c.b16 %v756, %v752
        %v957 = vpack.c.b16 %v757, %v753
        %v958 = vpack.c.b16 %v758, %v754
        %v959 = vpack.c.b16 %v759, %v755
        %v960 = vpack.c.b16 %v764, %v760
        %v961 = vpack.c.b16 %v765, %v761
        %v962 = vpack.c.b16 %v766, %v762
        %v963 = vpack.c.b16 %v767, %v763
        %v964 = vpack.c.b16 %v772, %v768
        %v965 = vpack.c.b16 %v773, %v769
        %v966 = vpack.c.b16 %v774, %v770
        %v967 = vpack.c.b16 %v775, %v771
        %v968 = vpack.c.b16 %v780, %v776
        %v969 = vpack.c.b16 %v781, %v777
        %v970 = vpack.c.b16 %v782, %v778
        %v971 = vpack.c.b16 %v783, %v779
        %v972 = vpack.c.b16 %v788, %v784
        %v973 = vpack.c.b16 %v789, %v785
        %v974 = vpack.c.b16 %v790, %v786
        %v975 = vpack.c.b16 %v791, %v787
        %v976 = vpack.c.b16 %v796, %v792
        %v977 = vpack.c.b16 %v797, %v793
        %v978 = vpack.c.b16 %v798, %v794
        %v979 = vpack.c.b16 %v799, %v795
        %v980 = vpack.c.b16 %v804, %v800
        %v981 = vpack.c.b16 %v805, %v801
        %v982 = vpack.c.b16 %v806, %v802
        %v983 = vpack.c.b16 %v807, %v803
        %v984 = vpack.c.b16 %v812, %v808
        %v985 = vpack.c.b16 %v813, %v809
        %v986 = vpack.c.b16 %v814, %v810
        %v987 = vpack.c.b16 %v815, %v811
        %v988 = vpack.c.b16 %v820, %v816
        %v989 = vpack.c.b16 %v821, %v817
        %v990 = vpack.c.b16 %v822, %v818
        %v991 = vpack.c.b16 %v823, %v819
        %v992 = vpack.c.b16 %v828, %v824
        %v993 = vpack.c.b16 %v829, %v825
        %v994 = vpack.c.b16 %v830, %v826
        %v995 = vpack.c.b16 %v831, %v827
        %v996 = vpack.c.b16 %v836, %v832
        %v997 = vpack.c.b16 %v837, %v833
        %v998 = vpack.c.b16 %v838, %v834
        %v999 = vpack.c.b16 %v839, %v835
        %v1000 = vpack.c.b16 %v844, %v840
        %v1001 = vpack.c.b16 %v845, %v841
        %v1002 = vpack.c.b16 %v846, %v842
        %v1003 = vpack.c.b16 %v847, %v843
        %v1004 = vpack.c.b16 %v852, %v848
        %v1005 = vpack.c.b16 %v853, %v849
        %v1006 = vpack.c.b16 %v854, %v850
        %v1007 = vpack.c.b16 %v855, %v851
        %v1008 = vpack.c.b16 %v860, %v856
        %v1009 = vpack.c.b16 %v861, %v857
        %v1010 = vpack.c.b16 %v862, %v858
        %v1011 = vpack.c.b16 %v863, %v859
        %v1012 = vpack.c.b16 %v868, %v864
        %v1013 = vpack.c.b16 %v869, %v865
        %v1014 = vpack.c.b16 %v870, %v866
        %v1015 = vpack.c.b16 %v871, %v867
        %v1016 = vpack.c.b16 %v876, %v872
        %v1017 = vpack.c.b16 %v877, %v873
        %v1018 = vpack.c.b16 %v878, %v874
        %v1019 = vpack.c.b16 %v879, %v875
        %v1020 = vpack.c.b16 %v884, %v880
        %v1021 = vpack.c.b16 %v885, %v881
        %v1022 = vpack.c.b16 %v886, %v882
        %v1023 = vpack.c.b16 %v887, %v883
        %v1024 = vpack.c.b16 %v892, %v888
        %v1025 = vpack.c.b16 %v893, %v889
        %v1026 = vpack.c.b16 %v894, %v890
        %v1027 = vpack.c.b16 %v895, %v891
        %v1028 = vpack.c.b16 %v900, %v896
        %v1029 = vpack.c.b16 %v901, %v897
        %v1030 = vpack.c.b16 %v902, %v898
        %v1031 = vpack.c.b16 %v903, %v899
        %1160 = vmatprep.subr.bf16.mxu0 %v933
        %1161 = vmatpush1.bf16.msra.mxu0 %v932
        %1162 = vmatprep.subr.bf16.mxu0 %v929
        %1163 = vmatpush1.bf16.msra.mxu0 %v928
        %1164 = vmatprep.subr.bf16.mxu0 %v925
        %1165 = vmatpush1.bf16.msra.mxu0 %v924
        %1166 = vmatprep.subr.bf16.mxu0 %v921
        %1167 = vmatpush1.bf16.msra.mxu0 %v920
        %1168 = vmatprep.subr.bf16.mxu0 %v917
        %1169 = vmatpush1.bf16.msra.mxu0 %v916
        %1170 = vmatprep.subr.bf16.mxu0 %v913
        %1171 = vmatpush1.bf16.msra.mxu0 %v912
        %1172 = vmatprep.subr.bf16.mxu0 %v909
        %1173 = vmatpush1.bf16.msra.mxu0 %v908
        %1174 = vmatprep.subr.bf16.mxu0 %v905
        %1175 = vmatpush1.bf16.msra.mxu0 %v904
        %1176 = vmatprep.subr.bf16.mxu0 %v965
        %1177 = vmatpush2.bf16.msra.mxu0 %v964
        %1178 = vmatprep.subr.bf16.mxu0 %v961
        %1179 = vmatpush2.bf16.msra.mxu0 %v960
        %1180 = vmatprep.subr.bf16.mxu0 %v957
        %1181 = vmatpush2.bf16.msra.mxu0 %v956
        %1182 = vmatprep.subr.bf16.mxu0 %v953
        %1183 = vmatpush2.bf16.msra.mxu0 %v952
        %1184 = vmatprep.subr.bf16.mxu0 %v949
        %1185 = vmatpush2.bf16.msra.mxu0 %v948
        %1186 = vmatprep.subr.bf16.mxu0 %v945
        %1187 = vmatpush2.bf16.msra.mxu0 %v944
        %1188 = vmatprep.subr.bf16.mxu0 %v941
        %1189 = vmatpush2.bf16.msra.mxu0 %v940
        %1190 = vmatprep.subr.bf16.mxu0 %v937
        %1191 = vmatpush2.bf16.msra.mxu0 %v936
        %1192 = vmatprep.mubr.bf16.mxu0 %v513
        %1193 = vmatmul.mubr.bf16.gmra.mxu0 %v512
        %v1194 = vpop.f32.mrf.mxu0
        %v1195 = vadd.f32 %v489, %v1194
        %v1196 = vpop.f32.mrf.mxu0
        %v1197 = vadd.f32 %v493, %v1196
        %v1198 = vpop.f32.mrf.mxu0
        %v1199 = vpop.f32.mrf.mxu0
        %1200 = vdwg.mxu0
        %1201 = vmatprep.subr.bf16.mxu0 %v997
        %1202 = vmatpush1.bf16.msra.mxu0 %v996
        %1203 = vmatprep.subr.bf16.mxu0 %v993
        %1204 = vmatpush1.bf16.msra.mxu0 %v992
        %1205 = vmatprep.subr.bf16.mxu0 %v989
        %1206 = vmatpush1.bf16.msra.mxu0 %v988
        %1207 = vmatprep.subr.bf16.mxu0 %v985
        %1208 = vmatpush1.bf16.msra.mxu0 %v984
        %1209 = vmatprep.subr.bf16.mxu0 %v981
        %1210 = vmatpush1.bf16.msra.mxu0 %v980
        %1211 = vmatprep.subr.bf16.mxu0 %v977
        %1212 = vmatpush1.bf16.msra.mxu0 %v976
        %1213 = vmatprep.subr.bf16.mxu0 %v973
        %1214 = vmatpush1.bf16.msra.mxu0 %v972
        %1215 = vmatprep.subr.bf16.mxu0 %v969
        %1216 = vmatpush1.bf16.msra.mxu0 %v968
        %1217 = vmatprep.subr.bf16.mxu0 %v1029
        %1218 = vmatpush2.bf16.msra.mxu0 %v1028
        %1219 = vmatprep.subr.bf16.mxu0 %v1025
        %1220 = vmatpush2.bf16.msra.mxu0 %v1024
        %1221 = vmatprep.subr.bf16.mxu0 %v1021
        %1222 = vmatpush2.bf16.msra.mxu0 %v1020
        %1223 = vmatprep.subr.bf16.mxu0 %v1017
        %1224 = vmatpush2.bf16.msra.mxu0 %v1016
        %1225 = vmatprep.subr.bf16.mxu0 %v1013
        %1226 = vmatpush2.bf16.msra.mxu0 %v1012
        %1227 = vmatprep.subr.bf16.mxu0 %v1009
        %1228 = vmatpush2.bf16.msra.mxu0 %v1008
        %1229 = vmatprep.subr.bf16.mxu0 %v1005
        %1230 = vmatpush2.bf16.msra.mxu0 %v1004
        %1231 = vmatprep.subr.bf16.mxu0 %v1001
        %1232 = vmatpush2.bf16.msra.mxu0 %v1000
        %1233 = vmatprep.mubr.bf16.mxu0 %v515
        %1234 = vmatmul.mubr.bf16.gmra.mxu0 %v514
        %v1235 = vpop.f32.mrf.mxu0
        %v1236 = vadd.f32 %v1195, %v1235
        %v1237 = vpop.f32.mrf.mxu0
        %v1238 = vadd.f32 %v1197, %v1237
        %v1239 = vpop.f32.mrf.mxu0
        %v1240 = vpop.f32.mrf.mxu0
        %1241 = vdwg.mxu0
        %1242 = vmatprep.subr.bf16.mxu0 %v935
        %1243 = vmatpush1.bf16.msra.mxu0 %v934
        %1244 = vmatprep.subr.bf16.mxu0 %v931
        %1245 = vmatpush1.bf16.msra.mxu0 %v930
        %1246 = vmatprep.subr.bf16.mxu0 %v927
        %1247 = vmatpush1.bf16.msra.mxu0 %v926
        %1248 = vmatprep.subr.bf16.mxu0 %v923
        %1249 = vmatpush1.bf16.msra.mxu0 %v922
        %1250 = vmatprep.subr.bf16.mxu0 %v919
        %1251 = vmatpush1.bf16.msra.mxu0 %v918
        %1252 = vmatprep.subr.bf16.mxu0 %v915
        %1253 = vmatpush1.bf16.msra.mxu0 %v914
        %1254 = vmatprep.subr.bf16.mxu0 %v911
        %1255 = vmatpush1.bf16.msra.mxu0 %v910
        %1256 = vmatprep.subr.bf16.mxu0 %v907
        %1257 = vmatpush1.bf16.msra.mxu0 %v906
        %1258 = vmatprep.subr.bf16.mxu0 %v967
        %1259 = vmatpush2.bf16.msra.mxu0 %v966
        %1260 = vmatprep.subr.bf16.mxu0 %v963
        %1261 = vmatpush2.bf16.msra.mxu0 %v962
        %1262 = vmatprep.subr.bf16.mxu0 %v959
        %1263 = vmatpush2.bf16.msra.mxu0 %v958
        %1264 = vmatprep.subr.bf16.mxu0 %v955
        %1265 = vmatpush2.bf16.msra.mxu0 %v954
        %1266 = vmatprep.subr.bf16.mxu0 %v951
        %1267 = vmatpush2.bf16.msra.mxu0 %v950
        %1268 = vmatprep.subr.bf16.mxu0 %v947
        %1269 = vmatpush2.bf16.msra.mxu0 %v946
        %1270 = vmatprep.subr.bf16.mxu0 %v943
        %1271 = vmatpush2.bf16.msra.mxu0 %v942
        %1272 = vmatprep.subr.bf16.mxu0 %v939
        %1273 = vmatpush2.bf16.msra.mxu0 %v938
        %1274 = vmatprep.mubr.bf16.mxu0 %v513
        %1275 = vmatmul.mubr.bf16.gmra.mxu0 %v512
        %v1276 = vpop.f32.mrf.mxu0
        %v1277 = vadd.f32 %v497, %v1276
        %v1278 = vpop.f32.mrf.mxu0
        %v1279 = vadd.f32 %v501, %v1278
        %v1280 = vpop.f32.mrf.mxu0
        %v1281 = vpop.f32.mrf.mxu0
        %1282 = vdwg.mxu0
        %1283 = vmatprep.subr.bf16.mxu0 %v999
        %1284 = vmatpush1.bf16.msra.mxu0 %v998
        %1285 = vmatprep.subr.bf16.mxu0 %v995
        %1286 = vmatpush1.bf16.msra.mxu0 %v994
        %1287 = vmatprep.subr.bf16.mxu0 %v991
        %1288 = vmatpush1.bf16.msra.mxu0 %v990
        %1289 = vmatprep.subr.bf16.mxu0 %v987
        %1290 = vmatpush1.bf16.msra.mxu0 %v986
        %1291 = vmatprep.subr.bf16.mxu0 %v983
        %1292 = vmatpush1.bf16.msra.mxu0 %v982
        %1293 = vmatprep.subr.bf16.mxu0 %v979
        %1294 = vmatpush1.bf16.msra.mxu0 %v978
        %1295 = vmatprep.subr.bf16.mxu0 %v975
        %1296 = vmatpush1.bf16.msra.mxu0 %v974
        %1297 = vmatprep.subr.bf16.mxu0 %v971
        %1298 = vmatpush1.bf16.msra.mxu0 %v970
        %1299 = vmatprep.subr.bf16.mxu0 %v1031
        %1300 = vmatpush2.bf16.msra.mxu0 %v1030
        %1301 = vmatprep.subr.bf16.mxu0 %v1027
        %1302 = vmatpush2.bf16.msra.mxu0 %v1026
        %1303 = vmatprep.subr.bf16.mxu0 %v1023
        %1304 = vmatpush2.bf16.msra.mxu0 %v1022
        %1305 = vmatprep.subr.bf16.mxu0 %v1019
        %1306 = vmatpush2.bf16.msra.mxu0 %v1018
        %1307 = vmatprep.subr.bf16.mxu0 %v1015
        %1308 = vmatpush2.bf16.msra.mxu0 %v1014
        %1309 = vmatprep.subr.bf16.mxu0 %v1011
        %1310 = vmatpush2.bf16.msra.mxu0 %v1010
        %1311 = vmatprep.subr.bf16.mxu0 %v1007
        %1312 = vmatpush2.bf16.msra.mxu0 %v1006
        %1313 = vmatprep.subr.bf16.mxu0 %v1003
        %1314 = vmatpush2.bf16.msra.mxu0 %v1002
        %1315 = vmatprep.mubr.bf16.mxu0 %v515
        %1316 = vmatmul.mubr.bf16.gmra.mxu0 %v514
        %v1317 = vpop.f32.mrf.mxu0
        %v1318 = vadd.f32 %v1277, %v1317
        %v1319 = vpop.f32.mrf.mxu0
        %v1320 = vadd.f32 %v1279, %v1319
        %v1321 = vpop.f32.mrf.mxu0
        %v1322 = vpop.f32.mrf.mxu0
        %1323 = vdwg.mxu0
        %1324 = vst [vmem:[#allocation2] sm:$0xff] %v1236
        %1325 = vst [vmem:[#allocation2 + $0x8] sm:$0xff] %v1238
        %1326 = vst [vmem:[#allocation2 + $0x10] sm:$0xff] %v1318
        %1327 = vst [vmem:[#allocation2 + $0x18] sm:$0xff] %v1320
      $region56: #{gearnet_forward.12} parent=51 // pred_fallthru
        _
      %v1328 = vld [vmem:[%s338] sm:$0xf]
      %v1329 = vld [vmem:[%s1] sm:$0xff]
      %v1330 = vld [vmem:[%s1 + $0x8] sm:$0xff]
      %v1331 = vld [vmem:[%s1 + $0x10] sm:$0xff]
      %v1332 = vld [vmem:[%s1 + $0x18] sm:$0xff]
      %v1337 = vunpack.c.l.b16 %v1329
      %v1338 = vunpack.c.h.b16 %v1329
      %v1339 = vunpack.c.l.b16 %v1330
      %v1340 = vunpack.c.h.b16 %v1330
      %v1341 = vunpack.c.l.b16 %v1331
      %v1342 = vunpack.c.h.b16 %v1331
      %v1343 = vunpack.c.l.b16 %v1332
      %v1344 = vunpack.c.h.b16 %v1332
      %v1345 = vpack.c.b16 %v1341, %v1337
      %v1346 = vpack.c.b16 %v1342, %v1338
      %v1347 = vpack.c.b16 %v1343, %v1339
      %v1348 = vpack.c.b16 %v1344, %v1340
      %vm1353 = vcmask 130048
      %v1355 = vsel %vm1353, %v1328, 0
      %1357 = vmatprep.subr.bf16.mxu0 0
      %1358 = vmatpush1.bf16.msra.mxu0 0
      %1359 = vmatprep.subr.bf16.mxu0 0
      %1360 = vmatpush1.bf16.msra.mxu0 0
      %1361 = vmatprep.subr.bf16.mxu0 0
      %1362 = vmatpush1.bf16.msra.mxu0 0
      %1363 = vmatprep.subr.bf16.mxu0 0
      %1364 = vmatpush1.bf16.msra.mxu0 0
      %1365 = vmatprep.subr.bf16.mxu0 0
      %1366 = vmatpush1.bf16.msra.mxu0 0
      %1367 = vmatprep.subr.bf16.mxu0 0
      %1368 = vmatpush1.bf16.msra.mxu0 0
      %1369 = vmatprep.subr.bf16.mxu0 0
      %1370 = vmatpush1.bf16.msra.mxu0 0
      %1371 = vmatprep.subr.bf16.mxu0 %v1346
      %1372 = vmatpush1.bf16.msra.mxu0 %v1345
      %1373 = vmatprep.subr.bf16.mxu0 0
      %1374 = vmatpush2.bf16.msra.mxu0 0
      %1375 = vmatprep.subr.bf16.mxu0 0
      %1376 = vmatpush2.bf16.msra.mxu0 0
      %1377 = vmatprep.subr.bf16.mxu0 0
      %1378 = vmatpush2.bf16.msra.mxu0 0
      %1379 = vmatprep.subr.bf16.mxu0 0
      %1380 = vmatpush2.bf16.msra.mxu0 0
      %1381 = vmatprep.subr.bf16.mxu0 0
      %1382 = vmatpush2.bf16.msra.mxu0 0
      %1383 = vmatprep.subr.bf16.mxu0 0
      %1384 = vmatpush2.bf16.msra.mxu0 0
      %1385 = vmatprep.subr.bf16.mxu0 0
      %1386 = vmatpush2.bf16.msra.mxu0 0
      %1387 = vmatprep.subr.bf16.mxu0 0
      %1388 = vmatpush2.bf16.msra.mxu0 0
      %1389 = vmatprep.mubr.bf16.mxu0 0
      %1390 = vmatmul.mubr.bf16.gmra.mxu0 %v1355
      %v1391 = vpop.f32.mrf.mxu0
      %v1392 = vadd.f32 0.0, %v1391
      %v1393 = vpop.f32.mrf.mxu0
      %v1394 = vadd.f32 0.0, %v1393
      %v1395 = vpop.f32.mrf.mxu0
      %v1396 = vpop.f32.mrf.mxu0
      %1397 = vdwg.mxu0
      %1398 = vmatprep.subr.bf16.mxu0 0
      %1399 = vmatpush1.bf16.msra.mxu0 0
      %1400 = vmatprep.subr.bf16.mxu0 0
      %1401 = vmatpush1.bf16.msra.mxu0 0
      %1402 = vmatprep.subr.bf16.mxu0 0
      %1403 = vmatpush1.bf16.msra.mxu0 0
      %1404 = vmatprep.subr.bf16.mxu0 0
      %1405 = vmatpush1.bf16.msra.mxu0 0
      %1406 = vmatprep.subr.bf16.mxu0 0
      %1407 = vmatpush1.bf16.msra.mxu0 0
      %1408 = vmatprep.subr.bf16.mxu0 0
      %1409 = vmatpush1.bf16.msra.mxu0 0
      %1410 = vmatprep.subr.bf16.mxu0 0
      %1411 = vmatpush1.bf16.msra.mxu0 0
      %1412 = vmatprep.subr.bf16.mxu0 %v1348
      %1413 = vmatpush1.bf16.msra.mxu0 %v1347
      %1414 = vmatprep.subr.bf16.mxu0 0
      %1415 = vmatpush2.bf16.msra.mxu0 0
      %1416 = vmatprep.subr.bf16.mxu0 0
      %1417 = vmatpush2.bf16.msra.mxu0 0
      %1418 = vmatprep.subr.bf16.mxu0 0
      %1419 = vmatpush2.bf16.msra.mxu0 0
      %1420 = vmatprep.subr.bf16.mxu0 0
      %1421 = vmatpush2.bf16.msra.mxu0 0
      %1422 = vmatprep.subr.bf16.mxu0 0
      %1423 = vmatpush2.bf16.msra.mxu0 0
      %1424 = vmatprep.subr.bf16.mxu0 0
      %1425 = vmatpush2.bf16.msra.mxu0 0
      %1426 = vmatprep.subr.bf16.mxu0 0
      %1427 = vmatpush2.bf16.msra.mxu0 0
      %1428 = vmatprep.subr.bf16.mxu0 0
      %1429 = vmatpush2.bf16.msra.mxu0 0
      %1430 = vmatprep.mubr.bf16.mxu0 0
      %1431 = vmatmul.mubr.bf16.gmra.mxu0 %v1355
      %v1432 = vpop.f32.mrf.mxu0
      %v1433 = vadd.f32 0.0, %v1432
      %v1434 = vpop.f32.mrf.mxu0
      %v1435 = vadd.f32 0.0, %v1434
      %v1436 = vpop.f32.mrf.mxu0
      %v1437 = vpop.f32.mrf.mxu0
      %1438 = vdwg.mxu0
      %v1439 = vld [vmem:[#allocation2] sm:$0xff]
      %v1440 = vld [vmem:[#allocation2 + $0x8] sm:$0xff]
      %v1441 = vld [vmem:[#allocation2 + $0x10] sm:$0xff]
      %v1442 = vld [vmem:[#allocation2 + $0x18] sm:$0xff]
      %v1443 = vpack.c.bf16 %v1392, %v1392
      %v1444 = vpack.c.bf16 %v1394, %v1394
      %v1445 = vpack.c.bf16 %v1433, %v1433
      %v1446 = vpack.c.bf16 %v1435, %v1435
      %s1447 = smul.u32 %s24, 256
      %s1448 = smul.addr %s1447, 4
      %s1449 = scalar_lea.vmem %s3, %s1448
      %v1450 = vld [vmem:[%s1449] sm:$0xff]
      %v1451 = vld [vmem:[%s1449 + $0x8] sm:$0xff]
      %v1452 = vld [vmem:[%s1449 + $0x10] sm:$0xff]
      %v1453 = vld [vmem:[%s1449 + $0x18] sm:$0xff]
      %v1454 = vld [vmem:[%s1449 + $0x20] sm:$0xff]
      %v1455 = vld [vmem:[%s1449 + $0x28] sm:$0xff]
      %v1456 = vld [vmem:[%s1449 + $0x30] sm:$0xff]
      %v1457 = vld [vmem:[%s1449 + $0x38] sm:$0xff]
      %v1458 = vld [vmem:[%s1449 + $0x40] sm:$0xff]
      %v1459 = vld [vmem:[%s1449 + $0x48] sm:$0xff]
      %v1460 = vld [vmem:[%s1449 + $0x50] sm:$0xff]
      %v1461 = vld [vmem:[%s1449 + $0x58] sm:$0xff]
      %v1462 = vld [vmem:[%s1449 + $0x60] sm:$0xff]
      %v1463 = vld [vmem:[%s1449 + $0x68] sm:$0xff]
      %v1464 = vld [vmem:[%s1449 + $0x70] sm:$0xff]
      %v1465 = vld [vmem:[%s1449 + $0x78] sm:$0xff]
      %v1466 = vld [vmem:[%s1449 + $0x80] sm:$0xff]
      %v1467 = vld [vmem:[%s1449 + $0x88] sm:$0xff]
      %v1468 = vld [vmem:[%s1449 + $0x90] sm:$0xff]
      %v1469 = vld [vmem:[%s1449 + $0x98] sm:$0xff]
      %v1470 = vld [vmem:[%s1449 + $0xa0] sm:$0xff]
      %v1471 = vld [vmem:[%s1449 + $0xa8] sm:$0xff]
      %v1472 = vld [vmem:[%s1449 + $0xb0] sm:$0xff]
      %v1473 = vld [vmem:[%s1449 + $0xb8] sm:$0xff]
      %v1474 = vld [vmem:[%s1449 + $0xc0] sm:$0xff]
      %v1475 = vld [vmem:[%s1449 + $0xc8] sm:$0xff]
      %v1476 = vld [vmem:[%s1449 + $0xd0] sm:$0xff]
      %v1477 = vld [vmem:[%s1449 + $0xd8] sm:$0xff]
      %v1478 = vld [vmem:[%s1449 + $0xe0] sm:$0xff]
      %v1479 = vld [vmem:[%s1449 + $0xe8] sm:$0xff]
      %v1480 = vld [vmem:[%s1449 + $0xf0] sm:$0xff]
      %v1481 = vld [vmem:[%s1449 + $0xf8] sm:$0xff]
      %v1482 = vld [vmem:[%s1449 + $0x100] sm:$0xff]
      %v1483 = vld [vmem:[%s1449 + $0x108] sm:$0xff]
      %v1484 = vld [vmem:[%s1449 + $0x110] sm:$0xff]
      %v1485 = vld [vmem:[%s1449 + $0x118] sm:$0xff]
      %v1486 = vld [vmem:[%s1449 + $0x120] sm:$0xff]
      %v1487 = vld [vmem:[%s1449 + $0x128] sm:$0xff]
      %v1488 = vld [vmem:[%s1449 + $0x130] sm:$0xff]
      %v1489 = vld [vmem:[%s1449 + $0x138] sm:$0xff]
      %v1490 = vld [vmem:[%s1449 + $0x140] sm:$0xff]
      %v1491 = vld [vmem:[%s1449 + $0x148] sm:$0xff]
      %v1492 = vld [vmem:[%s1449 + $0x150] sm:$0xff]
      %v1493 = vld [vmem:[%s1449 + $0x158] sm:$0xff]
      %v1494 = vld [vmem:[%s1449 + $0x160] sm:$0xff]
      %v1495 = vld [vmem:[%s1449 + $0x168] sm:$0xff]
      %v1496 = vld [vmem:[%s1449 + $0x170] sm:$0xff]
      %v1497 = vld [vmem:[%s1449 + $0x178] sm:$0xff]
      %v1498 = vld [vmem:[%s1449 + $0x180] sm:$0xff]
      %v1499 = vld [vmem:[%s1449 + $0x188] sm:$0xff]
      %v1500 = vld [vmem:[%s1449 + $0x190] sm:$0xff]
      %v1501 = vld [vmem:[%s1449 + $0x198] sm:$0xff]
      %v1502 = vld [vmem:[%s1449 + $0x1a0] sm:$0xff]
      %v1503 = vld [vmem:[%s1449 + $0x1a8] sm:$0xff]
      %v1504 = vld [vmem:[%s1449 + $0x1b0] sm:$0xff]
      %v1505 = vld [vmem:[%s1449 + $0x1b8] sm:$0xff]
      %v1506 = vld [vmem:[%s1449 + $0x1c0] sm:$0xff]
      %v1507 = vld [vmem:[%s1449 + $0x1c8] sm:$0xff]
      %v1508 = vld [vmem:[%s1449 + $0x1d0] sm:$0xff]
      %v1509 = vld [vmem:[%s1449 + $0x1d8] sm:$0xff]
      %v1510 = vld [vmem:[%s1449 + $0x1e0] sm:$0xff]
      %v1511 = vld [vmem:[%s1449 + $0x1e8] sm:$0xff]
      %v1512 = vld [vmem:[%s1449 + $0x1f0] sm:$0xff]
      %v1513 = vld [vmem:[%s1449 + $0x1f8] sm:$0xff]
      %v1514 = vld [vmem:[%s1449 + $0x200] sm:$0xff]
      %v1515 = vld [vmem:[%s1449 + $0x208] sm:$0xff]
      %v1516 = vld [vmem:[%s1449 + $0x210] sm:$0xff]
      %v1517 = vld [vmem:[%s1449 + $0x218] sm:$0xff]
      %v1518 = vld [vmem:[%s1449 + $0x220] sm:$0xff]
      %v1519 = vld [vmem:[%s1449 + $0x228] sm:$0xff]
      %v1520 = vld [vmem:[%s1449 + $0x230] sm:$0xff]
      %v1521 = vld [vmem:[%s1449 + $0x238] sm:$0xff]
      %v1522 = vld [vmem:[%s1449 + $0x240] sm:$0xff]
      %v1523 = vld [vmem:[%s1449 + $0x248] sm:$0xff]
      %v1524 = vld [vmem:[%s1449 + $0x250] sm:$0xff]
      %v1525 = vld [vmem:[%s1449 + $0x258] sm:$0xff]
      %v1526 = vld [vmem:[%s1449 + $0x260] sm:$0xff]
      %v1527 = vld [vmem:[%s1449 + $0x268] sm:$0xff]
      %v1528 = vld [vmem:[%s1449 + $0x270] sm:$0xff]
      %v1529 = vld [vmem:[%s1449 + $0x278] sm:$0xff]
      %v1530 = vld [vmem:[%s1449 + $0x280] sm:$0xff]
      %v1531 = vld [vmem:[%s1449 + $0x288] sm:$0xff]
      %v1532 = vld [vmem:[%s1449 + $0x290] sm:$0xff]
      %v1533 = vld [vmem:[%s1449 + $0x298] sm:$0xff]
      %v1534 = vld [vmem:[%s1449 + $0x2a0] sm:$0xff]
      %v1535 = vld [vmem:[%s1449 + $0x2a8] sm:$0xff]
      %v1536 = vld [vmem:[%s1449 + $0x2b0] sm:$0xff]
      %v1537 = vld [vmem:[%s1449 + $0x2b8] sm:$0xff]
      %v1538 = vld [vmem:[%s1449 + $0x2c0] sm:$0xff]
      %v1539 = vld [vmem:[%s1449 + $0x2c8] sm:$0xff]
      %v1540 = vld [vmem:[%s1449 + $0x2d0] sm:$0xff]
      %v1541 = vld [vmem:[%s1449 + $0x2d8] sm:$0xff]
      %v1542 = vld [vmem:[%s1449 + $0x2e0] sm:$0xff]
      %v1543 = vld [vmem:[%s1449 + $0x2e8] sm:$0xff]
      %v1544 = vld [vmem:[%s1449 + $0x2f0] sm:$0xff]
      %v1545 = vld [vmem:[%s1449 + $0x2f8] sm:$0xff]
      %v1546 = vld [vmem:[%s1449 + $0x300] sm:$0xff]
      %v1547 = vld [vmem:[%s1449 + $0x308] sm:$0xff]
      %v1548 = vld [vmem:[%s1449 + $0x310] sm:$0xff]
      %v1549 = vld [vmem:[%s1449 + $0x318] sm:$0xff]
      %v1550 = vld [vmem:[%s1449 + $0x320] sm:$0xff]
      %v1551 = vld [vmem:[%s1449 + $0x328] sm:$0xff]
      %v1552 = vld [vmem:[%s1449 + $0x330] sm:$0xff]
      %v1553 = vld [vmem:[%s1449 + $0x338] sm:$0xff]
      %v1554 = vld [vmem:[%s1449 + $0x340] sm:$0xff]
      %v1555 = vld [vmem:[%s1449 + $0x348] sm:$0xff]
      %v1556 = vld [vmem:[%s1449 + $0x350] sm:$0xff]
      %v1557 = vld [vmem:[%s1449 + $0x358] sm:$0xff]
      %v1558 = vld [vmem:[%s1449 + $0x360] sm:$0xff]
      %v1559 = vld [vmem:[%s1449 + $0x368] sm:$0xff]
      %v1560 = vld [vmem:[%s1449 + $0x370] sm:$0xff]
      %v1561 = vld [vmem:[%s1449 + $0x378] sm:$0xff]
      %v1562 = vld [vmem:[%s1449 + $0x380] sm:$0xff]
      %v1563 = vld [vmem:[%s1449 + $0x388] sm:$0xff]
      %v1564 = vld [vmem:[%s1449 + $0x390] sm:$0xff]
      %v1565 = vld [vmem:[%s1449 + $0x398] sm:$0xff]
      %v1566 = vld [vmem:[%s1449 + $0x3a0] sm:$0xff]
      %v1567 = vld [vmem:[%s1449 + $0x3a8] sm:$0xff]
      %v1568 = vld [vmem:[%s1449 + $0x3b0] sm:$0xff]
      %v1569 = vld [vmem:[%s1449 + $0x3b8] sm:$0xff]
      %v1570 = vld [vmem:[%s1449 + $0x3c0] sm:$0xff]
      %v1571 = vld [vmem:[%s1449 + $0x3c8] sm:$0xff]
      %v1572 = vld [vmem:[%s1449 + $0x3d0] sm:$0xff]
      %v1573 = vld [vmem:[%s1449 + $0x3d8] sm:$0xff]
      %v1574 = vld [vmem:[%s1449 + $0x3e0] sm:$0xff]
      %v1575 = vld [vmem:[%s1449 + $0x3e8] sm:$0xff]
      %v1576 = vld [vmem:[%s1449 + $0x3f0] sm:$0xff]
      %v1577 = vld [vmem:[%s1449 + $0x3f8] sm:$0xff]
      %v1706 = vunpack.c.l.b16 %v1450
      %v1707 = vunpack.c.h.b16 %v1450
      %v1708 = vunpack.c.l.b16 %v1451
      %v1709 = vunpack.c.h.b16 %v1451
      %v1710 = vunpack.c.l.b16 %v1452
      %v1711 = vunpack.c.h.b16 %v1452
      %v1712 = vunpack.c.l.b16 %v1453
      %v1713 = vunpack.c.h.b16 %v1453
      %v1714 = vunpack.c.l.b16 %v1454
      %v1715 = vunpack.c.h.b16 %v1454
      %v1716 = vunpack.c.l.b16 %v1455
      %v1717 = vunpack.c.h.b16 %v1455
      %v1718 = vunpack.c.l.b16 %v1456
      %v1719 = vunpack.c.h.b16 %v1456
      %v1720 = vunpack.c.l.b16 %v1457
      %v1721 = vunpack.c.h.b16 %v1457
      %v1722 = vunpack.c.l.b16 %v1458
      %v1723 = vunpack.c.h.b16 %v1458
      %v1724 = vunpack.c.l.b16 %v1459
      %v1725 = vunpack.c.h.b16 %v1459
      %v1726 = vunpack.c.l.b16 %v1460
      %v1727 = vunpack.c.h.b16 %v1460
      %v1728 = vunpack.c.l.b16 %v1461
      %v1729 = vunpack.c.h.b16 %v1461
      %v1730 = vunpack.c.l.b16 %v1462
      %v1731 = vunpack.c.h.b16 %v1462
      %v1732 = vunpack.c.l.b16 %v1463
      %v1733 = vunpack.c.h.b16 %v1463
      %v1734 = vunpack.c.l.b16 %v1464
      %v1735 = vunpack.c.h.b16 %v1464
      %v1736 = vunpack.c.l.b16 %v1465
      %v1737 = vunpack.c.h.b16 %v1465
      %v1738 = vunpack.c.l.b16 %v1466
      %v1739 = vunpack.c.h.b16 %v1466
      %v1740 = vunpack.c.l.b16 %v1467
      %v1741 = vunpack.c.h.b16 %v1467
      %v1742 = vunpack.c.l.b16 %v1468
      %v1743 = vunpack.c.h.b16 %v1468
      %v1744 = vunpack.c.l.b16 %v1469
      %v1745 = vunpack.c.h.b16 %v1469
      %v1746 = vunpack.c.l.b16 %v1470
      %v1747 = vunpack.c.h.b16 %v1470
      %v1748 = vunpack.c.l.b16 %v1471
      %v1749 = vunpack.c.h.b16 %v1471
      %v1750 = vunpack.c.l.b16 %v1472
      %v1751 = vunpack.c.h.b16 %v1472
      %v1752 = vunpack.c.l.b16 %v1473
      %v1753 = vunpack.c.h.b16 %v1473
      %v1754 = vunpack.c.l.b16 %v1474
      %v1755 = vunpack.c.h.b16 %v1474
      %v1756 = vunpack.c.l.b16 %v1475
      %v1757 = vunpack.c.h.b16 %v1475
      %v1758 = vunpack.c.l.b16 %v1476
      %v1759 = vunpack.c.h.b16 %v1476
      %v1760 = vunpack.c.l.b16 %v1477
      %v1761 = vunpack.c.h.b16 %v1477
      %v1762 = vunpack.c.l.b16 %v1478
      %v1763 = vunpack.c.h.b16 %v1478
      %v1764 = vunpack.c.l.b16 %v1479
      %v1765 = vunpack.c.h.b16 %v1479
      %v1766 = vunpack.c.l.b16 %v1480
      %v1767 = vunpack.c.h.b16 %v1480
      %v1768 = vunpack.c.l.b16 %v1481
      %v1769 = vunpack.c.h.b16 %v1481
      %v1770 = vunpack.c.l.b16 %v1482
      %v1771 = vunpack.c.h.b16 %v1482
      %v1772 = vunpack.c.l.b16 %v1483
      %v1773 = vunpack.c.h.b16 %v1483
      %v1774 = vunpack.c.l.b16 %v1484
      %v1775 = vunpack.c.h.b16 %v1484
      %v1776 = vunpack.c.l.b16 %v1485
      %v1777 = vunpack.c.h.b16 %v1485
      %v1778 = vunpack.c.l.b16 %v1486
      %v1779 = vunpack.c.h.b16 %v1486
      %v1780 = vunpack.c.l.b16 %v1487
      %v1781 = vunpack.c.h.b16 %v1487
      %v1782 = vunpack.c.l.b16 %v1488
      %v1783 = vunpack.c.h.b16 %v1488
      %v1784 = vunpack.c.l.b16 %v1489
      %v1785 = vunpack.c.h.b16 %v1489
      %v1786 = vunpack.c.l.b16 %v1490
      %v1787 = vunpack.c.h.b16 %v1490
      %v1788 = vunpack.c.l.b16 %v1491
      %v1789 = vunpack.c.h.b16 %v1491
      %v1790 = vunpack.c.l.b16 %v1492
      %v1791 = vunpack.c.h.b16 %v1492
      %v1792 = vunpack.c.l.b16 %v1493
      %v1793 = vunpack.c.h.b16 %v1493
      %v1794 = vunpack.c.l.b16 %v1494
      %v1795 = vunpack.c.h.b16 %v1494
      %v1796 = vunpack.c.l.b16 %v1495
      %v1797 = vunpack.c.h.b16 %v1495
      %v1798 = vunpack.c.l.b16 %v1496
      %v1799 = vunpack.c.h.b16 %v1496
      %v1800 = vunpack.c.l.b16 %v1497
      %v1801 = vunpack.c.h.b16 %v1497
      %v1802 = vunpack.c.l.b16 %v1498
      %v1803 = vunpack.c.h.b16 %v1498
      %v1804 = vunpack.c.l.b16 %v1499
      %v1805 = vunpack.c.h.b16 %v1499
      %v1806 = vunpack.c.l.b16 %v1500
      %v1807 = vunpack.c.h.b16 %v1500
      %v1808 = vunpack.c.l.b16 %v1501
      %v1809 = vunpack.c.h.b16 %v1501
      %v1810 = vunpack.c.l.b16 %v1502
      %v1811 = vunpack.c.h.b16 %v1502
      %v1812 = vunpack.c.l.b16 %v1503
      %v1813 = vunpack.c.h.b16 %v1503
      %v1814 = vunpack.c.l.b16 %v1504
      %v1815 = vunpack.c.h.b16 %v1504
      %v1816 = vunpack.c.l.b16 %v1505
      %v1817 = vunpack.c.h.b16 %v1505
      %v1818 = vunpack.c.l.b16 %v1506
      %v1819 = vunpack.c.h.b16 %v1506
      %v1820 = vunpack.c.l.b16 %v1507
      %v1821 = vunpack.c.h.b16 %v1507
      %v1822 = vunpack.c.l.b16 %v1508
      %v1823 = vunpack.c.h.b16 %v1508
      %v1824 = vunpack.c.l.b16 %v1509
      %v1825 = vunpack.c.h.b16 %v1509
      %v1826 = vunpack.c.l.b16 %v1510
      %v1827 = vunpack.c.h.b16 %v1510
      %v1828 = vunpack.c.l.b16 %v1511
      %v1829 = vunpack.c.h.b16 %v1511
      %v1830 = vunpack.c.l.b16 %v1512
      %v1831 = vunpack.c.h.b16 %v1512
      %v1832 = vunpack.c.l.b16 %v1513
      %v1833 = vunpack.c.h.b16 %v1513
      %v1834 = vunpack.c.l.b16 %v1514
      %v1835 = vunpack.c.h.b16 %v1514
      %v1836 = vunpack.c.l.b16 %v1515
      %v1837 = vunpack.c.h.b16 %v1515
      %v1838 = vunpack.c.l.b16 %v1516
      %v1839 = vunpack.c.h.b16 %v1516
      %v1840 = vunpack.c.l.b16 %v1517
      %v1841 = vunpack.c.h.b16 %v1517
      %v1842 = vunpack.c.l.b16 %v1518
      %v1843 = vunpack.c.h.b16 %v1518
      %v1844 = vunpack.c.l.b16 %v1519
      %v1845 = vunpack.c.h.b16 %v1519
      %v1846 = vunpack.c.l.b16 %v1520
      %v1847 = vunpack.c.h.b16 %v1520
      %v1848 = vunpack.c.l.b16 %v1521
      %v1849 = vunpack.c.h.b16 %v1521
      %v1850 = vunpack.c.l.b16 %v1522
      %v1851 = vunpack.c.h.b16 %v1522
      %v1852 = vunpack.c.l.b16 %v1523
      %v1853 = vunpack.c.h.b16 %v1523
      %v1854 = vunpack.c.l.b16 %v1524
      %v1855 = vunpack.c.h.b16 %v1524
      %v1856 = vunpack.c.l.b16 %v1525
      %v1857 = vunpack.c.h.b16 %v1525
      %v1858 = vunpack.c.l.b16 %v1526
      %v1859 = vunpack.c.h.b16 %v1526
      %v1860 = vunpack.c.l.b16 %v1527
      %v1861 = vunpack.c.h.b16 %v1527
      %v1862 = vunpack.c.l.b16 %v1528
      %v1863 = vunpack.c.h.b16 %v1528
      %v1864 = vunpack.c.l.b16 %v1529
      %v1865 = vunpack.c.h.b16 %v1529
      %v1866 = vunpack.c.l.b16 %v1530
      %v1867 = vunpack.c.h.b16 %v1530
      %v1868 = vunpack.c.l.b16 %v1531
      %v1869 = vunpack.c.h.b16 %v1531
      %v1870 = vunpack.c.l.b16 %v1532
      %v1871 = vunpack.c.h.b16 %v1532
      %v1872 = vunpack.c.l.b16 %v1533
      %v1873 = vunpack.c.h.b16 %v1533
      %v1874 = vunpack.c.l.b16 %v1534
      %v1875 = vunpack.c.h.b16 %v1534
      %v1876 = vunpack.c.l.b16 %v1535
      %v1877 = vunpack.c.h.b16 %v1535
      %v1878 = vunpack.c.l.b16 %v1536
      %v1879 = vunpack.c.h.b16 %v1536
      %v1880 = vunpack.c.l.b16 %v1537
      %v1881 = vunpack.c.h.b16 %v1537
      %v1882 = vunpack.c.l.b16 %v1538
      %v1883 = vunpack.c.h.b16 %v1538
      %v1884 = vunpack.c.l.b16 %v1539
      %v1885 = vunpack.c.h.b16 %v1539
      %v1886 = vunpack.c.l.b16 %v1540
      %v1887 = vunpack.c.h.b16 %v1540
      %v1888 = vunpack.c.l.b16 %v1541
      %v1889 = vunpack.c.h.b16 %v1541
      %v1890 = vunpack.c.l.b16 %v1542
      %v1891 = vunpack.c.h.b16 %v1542
      %v1892 = vunpack.c.l.b16 %v1543
      %v1893 = vunpack.c.h.b16 %v1543
      %v1894 = vunpack.c.l.b16 %v1544
      %v1895 = vunpack.c.h.b16 %v1544
      %v1896 = vunpack.c.l.b16 %v1545
      %v1897 = vunpack.c.h.b16 %v1545
      %v1898 = vunpack.c.l.b16 %v1546
      %v1899 = vunpack.c.h.b16 %v1546
      %v1900 = vunpack.c.l.b16 %v1547
      %v1901 = vunpack.c.h.b16 %v1547
      %v1902 = vunpack.c.l.b16 %v1548
      %v1903 = vunpack.c.h.b16 %v1548
      %v1904 = vunpack.c.l.b16 %v1549
      %v1905 = vunpack.c.h.b16 %v1549
      %v1906 = vunpack.c.l.b16 %v1550
      %v1907 = vunpack.c.h.b16 %v1550
      %v1908 = vunpack.c.l.b16 %v1551
      %v1909 = vunpack.c.h.b16 %v1551
      %v1910 = vunpack.c.l.b16 %v1552
      %v1911 = vunpack.c.h.b16 %v1552
      %v1912 = vunpack.c.l.b16 %v1553
      %v1913 = vunpack.c.h.b16 %v1553
      %v1914 = vunpack.c.l.b16 %v1554
      %v1915 = vunpack.c.h.b16 %v1554
      %v1916 = vunpack.c.l.b16 %v1555
      %v1917 = vunpack.c.h.b16 %v1555
      %v1918 = vunpack.c.l.b16 %v1556
      %v1919 = vunpack.c.h.b16 %v1556
      %v1920 = vunpack.c.l.b16 %v1557
      %v1921 = vunpack.c.h.b16 %v1557
      %v1922 = vunpack.c.l.b16 %v1558
      %v1923 = vunpack.c.h.b16 %v1558
      %v1924 = vunpack.c.l.b16 %v1559
      %v1925 = vunpack.c.h.b16 %v1559
      %v1926 = vunpack.c.l.b16 %v1560
      %v1927 = vunpack.c.h.b16 %v1560
      %v1928 = vunpack.c.l.b16 %v1561
      %v1929 = vunpack.c.h.b16 %v1561
      %v1930 = vunpack.c.l.b16 %v1562
      %v1931 = vunpack.c.h.b16 %v1562
      %v1932 = vunpack.c.l.b16 %v1563
      %v1933 = vunpack.c.h.b16 %v1563
      %v1934 = vunpack.c.l.b16 %v1564
      %v1935 = vunpack.c.h.b16 %v1564
      %v1936 = vunpack.c.l.b16 %v1565
      %v1937 = vunpack.c.h.b16 %v1565
      %v1938 = vunpack.c.l.b16 %v1566
      %v1939 = vunpack.c.h.b16 %v1566
      %v1940 = vunpack.c.l.b16 %v1567
      %v1941 = vunpack.c.h.b16 %v1567
      %v1942 = vunpack.c.l.b16 %v1568
      %v1943 = vunpack.c.h.b16 %v1568
      %v1944 = vunpack.c.l.b16 %v1569
      %v1945 = vunpack.c.h.b16 %v1569
      %v1946 = vunpack.c.l.b16 %v1570
      %v1947 = vunpack.c.h.b16 %v1570
      %v1948 = vunpack.c.l.b16 %v1571
      %v1949 = vunpack.c.h.b16 %v1571
      %v1950 = vunpack.c.l.b16 %v1572
      %v1951 = vunpack.c.h.b16 %v1572
      %v1952 = vunpack.c.l.b16 %v1573
      %v1953 = vunpack.c.h.b16 %v1573
      %v1954 = vunpack.c.l.b16 %v1574
      %v1955 = vunpack.c.h.b16 %v1574
      %v1956 = vunpack.c.l.b16 %v1575
      %v1957 = vunpack.c.h.b16 %v1575
      %v1958 = vunpack.c.l.b16 %v1576
      %v1959 = vunpack.c.h.b16 %v1576
      %v1960 = vunpack.c.l.b16 %v1577
      %v1961 = vunpack.c.h.b16 %v1577
      %v1962 = vpack.c.b16 %v1710, %v1706
      %v1963 = vpack.c.b16 %v1711, %v1707
      %v1964 = vpack.c.b16 %v1712, %v1708
      %v1965 = vpack.c.b16 %v1713, %v1709
      %v1966 = vpack.c.b16 %v1718, %v1714
      %v1967 = vpack.c.b16 %v1719, %v1715
      %v1968 = vpack.c.b16 %v1720, %v1716
      %v1969 = vpack.c.b16 %v1721, %v1717
      %v1970 = vpack.c.b16 %v1726, %v1722
      %v1971 = vpack.c.b16 %v1727, %v1723
      %v1972 = vpack.c.b16 %v1728, %v1724
      %v1973 = vpack.c.b16 %v1729, %v1725
      %v1974 = vpack.c.b16 %v1734, %v1730
      %v1975 = vpack.c.b16 %v1735, %v1731
      %v1976 = vpack.c.b16 %v1736, %v1732
      %v1977 = vpack.c.b16 %v1737, %v1733
      %v1978 = vpack.c.b16 %v1742, %v1738
      %v1979 = vpack.c.b16 %v1743, %v1739
      %v1980 = vpack.c.b16 %v1744, %v1740
      %v1981 = vpack.c.b16 %v1745, %v1741
      %v1982 = vpack.c.b16 %v1750, %v1746
      %v1983 = vpack.c.b16 %v1751, %v1747
      %v1984 = vpack.c.b16 %v1752, %v1748
      %v1985 = vpack.c.b16 %v1753, %v1749
      %v1986 = vpack.c.b16 %v1758, %v1754
      %v1987 = vpack.c.b16 %v1759, %v1755
      %v1988 = vpack.c.b16 %v1760, %v1756
      %v1989 = vpack.c.b16 %v1761, %v1757
      %v1990 = vpack.c.b16 %v1766, %v1762
      %v1991 = vpack.c.b16 %v1767, %v1763
      %v1992 = vpack.c.b16 %v1768, %v1764
      %v1993 = vpack.c.b16 %v1769, %v1765
      %v1994 = vpack.c.b16 %v1774, %v1770
      %v1995 = vpack.c.b16 %v1775, %v1771
      %v1996 = vpack.c.b16 %v1776, %v1772
      %v1997 = vpack.c.b16 %v1777, %v1773
      %v1998 = vpack.c.b16 %v1782, %v1778
      %v1999 = vpack.c.b16 %v1783, %v1779
      %v2000 = vpack.c.b16 %v1784, %v1780
      %v2001 = vpack.c.b16 %v1785, %v1781
      %v2002 = vpack.c.b16 %v1790, %v1786
      %v2003 = vpack.c.b16 %v1791, %v1787
      %v2004 = vpack.c.b16 %v1792, %v1788
      %v2005 = vpack.c.b16 %v1793, %v1789
      %v2006 = vpack.c.b16 %v1798, %v1794
      %v2007 = vpack.c.b16 %v1799, %v1795
      %v2008 = vpack.c.b16 %v1800, %v1796
      %v2009 = vpack.c.b16 %v1801, %v1797
      %v2010 = vpack.c.b16 %v1806, %v1802
      %v2011 = vpack.c.b16 %v1807, %v1803
      %v2012 = vpack.c.b16 %v1808, %v1804
      %v2013 = vpack.c.b16 %v1809, %v1805
      %v2014 = vpack.c.b16 %v1814, %v1810
      %v2015 = vpack.c.b16 %v1815, %v1811
      %v2016 = vpack.c.b16 %v1816, %v1812
      %v2017 = vpack.c.b16 %v1817, %v1813
      %v2018 = vpack.c.b16 %v1822, %v1818
      %v2019 = vpack.c.b16 %v1823, %v1819
      %v2020 = vpack.c.b16 %v1824, %v1820
      %v2021 = vpack.c.b16 %v1825, %v1821
      %v2022 = vpack.c.b16 %v1830, %v1826
      %v2023 = vpack.c.b16 %v1831, %v1827
      %v2024 = vpack.c.b16 %v1832, %v1828
      %v2025 = vpack.c.b16 %v1833, %v1829
      %v2026 = vpack.c.b16 %v1838, %v1834
      %v2027 = vpack.c.b16 %v1839, %v1835
      %v2028 = vpack.c.b16 %v1840, %v1836
      %v2029 = vpack.c.b16 %v1841, %v1837
      %v2030 = vpack.c.b16 %v1846, %v1842
      %v2031 = vpack.c.b16 %v1847, %v1843
      %v2032 = vpack.c.b16 %v1848, %v1844
      %v2033 = vpack.c.b16 %v1849, %v1845
      %v2034 = vpack.c.b16 %v1854, %v1850
      %v2035 = vpack.c.b16 %v1855, %v1851
      %v2036 = vpack.c.b16 %v1856, %v1852
      %v2037 = vpack.c.b16 %v1857, %v1853
      %v2038 = vpack.c.b16 %v1862, %v1858
      %v2039 = vpack.c.b16 %v1863, %v1859
      %v2040 = vpack.c.b16 %v1864, %v1860
      %v2041 = vpack.c.b16 %v1865, %v1861
      %v2042 = vpack.c.b16 %v1870, %v1866
      %v2043 = vpack.c.b16 %v1871, %v1867
      %v2044 = vpack.c.b16 %v1872, %v1868
      %v2045 = vpack.c.b16 %v1873, %v1869
      %v2046 = vpack.c.b16 %v1878, %v1874
      %v2047 = vpack.c.b16 %v1879, %v1875
      %v2048 = vpack.c.b16 %v1880, %v1876
      %v2049 = vpack.c.b16 %v1881, %v1877
      %v2050 = vpack.c.b16 %v1886, %v1882
      %v2051 = vpack.c.b16 %v1887, %v1883
      %v2052 = vpack.c.b16 %v1888, %v1884
      %v2053 = vpack.c.b16 %v1889, %v1885
      %v2054 = vpack.c.b16 %v1894, %v1890
      %v2055 = vpack.c.b16 %v1895, %v1891
      %v2056 = vpack.c.b16 %v1896, %v1892
      %v2057 = vpack.c.b16 %v1897, %v1893
      %v2058 = vpack.c.b16 %v1902, %v1898
      %v2059 = vpack.c.b16 %v1903, %v1899
      %v2060 = vpack.c.b16 %v1904, %v1900
      %v2061 = vpack.c.b16 %v1905, %v1901
      %v2062 = vpack.c.b16 %v1910, %v1906
      %v2063 = vpack.c.b16 %v1911, %v1907
      %v2064 = vpack.c.b16 %v1912, %v1908
      %v2065 = vpack.c.b16 %v1913, %v1909
      %v2066 = vpack.c.b16 %v1918, %v1914
      %v2067 = vpack.c.b16 %v1919, %v1915
      %v2068 = vpack.c.b16 %v1920, %v1916
      %v2069 = vpack.c.b16 %v1921, %v1917
      %v2070 = vpack.c.b16 %v1926, %v1922
      %v2071 = vpack.c.b16 %v1927, %v1923
      %v2072 = vpack.c.b16 %v1928, %v1924
      %v2073 = vpack.c.b16 %v1929, %v1925
      %v2074 = vpack.c.b16 %v1934, %v1930
      %v2075 = vpack.c.b16 %v1935, %v1931
      %v2076 = vpack.c.b16 %v1936, %v1932
      %v2077 = vpack.c.b16 %v1937, %v1933
      %v2078 = vpack.c.b16 %v1942, %v1938
      %v2079 = vpack.c.b16 %v1943, %v1939
      %v2080 = vpack.c.b16 %v1944, %v1940
      %v2081 = vpack.c.b16 %v1945, %v1941
      %v2082 = vpack.c.b16 %v1950, %v1946
      %v2083 = vpack.c.b16 %v1951, %v1947
      %v2084 = vpack.c.b16 %v1952, %v1948
      %v2085 = vpack.c.b16 %v1953, %v1949
      %v2086 = vpack.c.b16 %v1958, %v1954
      %v2087 = vpack.c.b16 %v1959, %v1955
      %v2088 = vpack.c.b16 %v1960, %v1956
      %v2089 = vpack.c.b16 %v1961, %v1957
      %2218 = vmatprep.subr.bf16.mxu0 %v1991
      %2219 = vmatpush1.bf16.msra.mxu0 %v1990
      %2220 = vmatprep.subr.bf16.mxu0 %v1987
      %2221 = vmatpush1.bf16.msra.mxu0 %v1986
      %2222 = vmatprep.subr.bf16.mxu0 %v1983
      %2223 = vmatpush1.bf16.msra.mxu0 %v1982
      %2224 = vmatprep.subr.bf16.mxu0 %v1979
      %2225 = vmatpush1.bf16.msra.mxu0 %v1978
      %2226 = vmatprep.subr.bf16.mxu0 %v1975
      %2227 = vmatpush1.bf16.msra.mxu0 %v1974
      %2228 = vmatprep.subr.bf16.mxu0 %v1971
      %2229 = vmatpush1.bf16.msra.mxu0 %v1970
      %2230 = vmatprep.subr.bf16.mxu0 %v1967
      %2231 = vmatpush1.bf16.msra.mxu0 %v1966
      %2232 = vmatprep.subr.bf16.mxu0 %v1963
      %2233 = vmatpush1.bf16.msra.mxu0 %v1962
      %2234 = vmatprep.subr.bf16.mxu0 %v2023
      %2235 = vmatpush2.bf16.msra.mxu0 %v2022
      %2236 = vmatprep.subr.bf16.mxu0 %v2019
      %2237 = vmatpush2.bf16.msra.mxu0 %v2018
      %2238 = vmatprep.subr.bf16.mxu0 %v2015
      %2239 = vmatpush2.bf16.msra.mxu0 %v2014
      %2240 = vmatprep.subr.bf16.mxu0 %v2011
      %2241 = vmatpush2.bf16.msra.mxu0 %v2010
      %2242 = vmatprep.subr.bf16.mxu0 %v2007
      %2243 = vmatpush2.bf16.msra.mxu0 %v2006
      %2244 = vmatprep.subr.bf16.mxu0 %v2003
      %2245 = vmatpush2.bf16.msra.mxu0 %v2002
      %2246 = vmatprep.subr.bf16.mxu0 %v1999
      %2247 = vmatpush2.bf16.msra.mxu0 %v1998
      %2248 = vmatprep.subr.bf16.mxu0 %v1995
      %2249 = vmatpush2.bf16.msra.mxu0 %v1994
      %2250 = vmatprep.mubr.bf16.mxu0 %v1444
      %2251 = vmatmul.mubr.bf16.gmra.mxu0 %v1443
      %v2252 = vpop.f32.mrf.mxu0
      %v2253 = vadd.f32 0.0, %v2252
      %v2254 = vpop.f32.mrf.mxu0
      %v2255 = vadd.f32 0.0, %v2254
      %v2256 = vpop.f32.mrf.mxu0
      %v2257 = vpop.f32.mrf.mxu0
      %2258 = vdwg.mxu0
      %2259 = vmatprep.subr.bf16.mxu0 %v2055
      %2260 = vmatpush1.bf16.msra.mxu0 %v2054
      %2261 = vmatprep.subr.bf16.mxu0 %v2051
      %2262 = vmatpush1.bf16.msra.mxu0 %v2050
      %2263 = vmatprep.subr.bf16.mxu0 %v2047
      %2264 = vmatpush1.bf16.msra.mxu0 %v2046
      %2265 = vmatprep.subr.bf16.mxu0 %v2043
      %2266 = vmatpush1.bf16.msra.mxu0 %v2042
      %2267 = vmatprep.subr.bf16.mxu0 %v2039
      %2268 = vmatpush1.bf16.msra.mxu0 %v2038
      %2269 = vmatprep.subr.bf16.mxu0 %v2035
      %2270 = vmatpush1.bf16.msra.mxu0 %v2034
      %2271 = vmatprep.subr.bf16.mxu0 %v2031
      %2272 = vmatpush1.bf16.msra.mxu0 %v2030
      %2273 = vmatprep.subr.bf16.mxu0 %v2027
      %2274 = vmatpush1.bf16.msra.mxu0 %v2026
      %2275 = vmatprep.subr.bf16.mxu0 %v2087
      %2276 = vmatpush2.bf16.msra.mxu0 %v2086
      %2277 = vmatprep.subr.bf16.mxu0 %v2083
      %2278 = vmatpush2.bf16.msra.mxu0 %v2082
      %2279 = vmatprep.subr.bf16.mxu0 %v2079
      %2280 = vmatpush2.bf16.msra.mxu0 %v2078
      %2281 = vmatprep.subr.bf16.mxu0 %v2075
      %2282 = vmatpush2.bf16.msra.mxu0 %v2074
      %2283 = vmatprep.subr.bf16.mxu0 %v2071
      %2284 = vmatpush2.bf16.msra.mxu0 %v2070
      %2285 = vmatprep.subr.bf16.mxu0 %v2067
      %2286 = vmatpush2.bf16.msra.mxu0 %v2066
      %2287 = vmatprep.subr.bf16.mxu0 %v2063
      %2288 = vmatpush2.bf16.msra.mxu0 %v2062
      %2289 = vmatprep.subr.bf16.mxu0 %v2059
      %2290 = vmatpush2.bf16.msra.mxu0 %v2058
      %2291 = vmatprep.mubr.bf16.mxu0 %v1446
      %2292 = vmatmul.mubr.bf16.gmra.mxu0 %v1445
      %v2293 = vpop.f32.mrf.mxu0
      %v2294 = vadd.f32 %v2253, %v2293
      %v2295 = vpop.f32.mrf.mxu0
      %v2296 = vadd.f32 %v2255, %v2295
      %v2297 = vpop.f32.mrf.mxu0
      %v2298 = vpop.f32.mrf.mxu0
      %2299 = vdwg.mxu0
      %2300 = vmatprep.subr.bf16.mxu0 %v1993
      %2301 = vmatpush1.bf16.msra.mxu0 %v1992
      %2302 = vmatprep.subr.bf16.mxu0 %v1989
      %2303 = vmatpush1.bf16.msra.mxu0 %v1988
      %2304 = vmatprep.subr.bf16.mxu0 %v1985
      %2305 = vmatpush1.bf16.msra.mxu0 %v1984
      %2306 = vmatprep.subr.bf16.mxu0 %v1981
      %2307 = vmatpush1.bf16.msra.mxu0 %v1980
      %2308 = vmatprep.subr.bf16.mxu0 %v1977
      %2309 = vmatpush1.bf16.msra.mxu0 %v1976
      %2310 = vmatprep.subr.bf16.mxu0 %v1973
      %2311 = vmatpush1.bf16.msra.mxu0 %v1972
      %2312 = vmatprep.subr.bf16.mxu0 %v1969
      %2313 = vmatpush1.bf16.msra.mxu0 %v1968
      %2314 = vmatprep.subr.bf16.mxu0 %v1965
      %2315 = vmatpush1.bf16.msra.mxu0 %v1964
      %2316 = vmatprep.subr.bf16.mxu0 %v2025
      %2317 = vmatpush2.bf16.msra.mxu0 %v2024
      %2318 = vmatprep.subr.bf16.mxu0 %v2021
      %2319 = vmatpush2.bf16.msra.mxu0 %v2020
      %2320 = vmatprep.subr.bf16.mxu0 %v2017
      %2321 = vmatpush2.bf16.msra.mxu0 %v2016
      %2322 = vmatprep.subr.bf16.mxu0 %v2013
      %2323 = vmatpush2.bf16.msra.mxu0 %v2012
      %2324 = vmatprep.subr.bf16.mxu0 %v2009
      %2325 = vmatpush2.bf16.msra.mxu0 %v2008
      %2326 = vmatprep.subr.bf16.mxu0 %v2005
      %2327 = vmatpush2.bf16.msra.mxu0 %v2004
      %2328 = vmatprep.subr.bf16.mxu0 %v2001
      %2329 = vmatpush2.bf16.msra.mxu0 %v2000
      %2330 = vmatprep.subr.bf16.mxu0 %v1997
      %2331 = vmatpush2.bf16.msra.mxu0 %v1996
      %2332 = vmatprep.mubr.bf16.mxu0 %v1444
      %2333 = vmatmul.mubr.bf16.gmra.mxu0 %v1443
      %v2334 = vpop.f32.mrf.mxu0
      %v2335 = vadd.f32 0.0, %v2334
      %v2336 = vpop.f32.mrf.mxu0
      %v2337 = vadd.f32 0.0, %v2336
      %v2338 = vpop.f32.mrf.mxu0
      %v2339 = vpop.f32.mrf.mxu0
      %2340 = vdwg.mxu0
      %2341 = vmatprep.subr.bf16.mxu0 %v2057
      %2342 = vmatpush1.bf16.msra.mxu0 %v2056
      %2343 = vmatprep.subr.bf16.mxu0 %v2053
      %2344 = vmatpush1.bf16.msra.mxu0 %v2052
      %2345 = vmatprep.subr.bf16.mxu0 %v2049
      %2346 = vmatpush1.bf16.msra.mxu0 %v2048
      %2347 = vmatprep.subr.bf16.mxu0 %v2045
      %2348 = vmatpush1.bf16.msra.mxu0 %v2044
      %2349 = vmatprep.subr.bf16.mxu0 %v2041
      %2350 = vmatpush1.bf16.msra.mxu0 %v2040
      %2351 = vmatprep.subr.bf16.mxu0 %v2037
      %2352 = vmatpush1.bf16.msra.mxu0 %v2036
      %2353 = vmatprep.subr.bf16.mxu0 %v2033
      %2354 = vmatpush1.bf16.msra.mxu0 %v2032
      %2355 = vmatprep.subr.bf16.mxu0 %v2029
      %2356 = vmatpush1.bf16.msra.mxu0 %v2028
      %2357 = vmatprep.subr.bf16.mxu0 %v2089
      %2358 = vmatpush2.bf16.msra.mxu0 %v2088
      %2359 = vmatprep.subr.bf16.mxu0 %v2085
      %2360 = vmatpush2.bf16.msra.mxu0 %v2084
      %2361 = vmatprep.subr.bf16.mxu0 %v2081
      %2362 = vmatpush2.bf16.msra.mxu0 %v2080
      %2363 = vmatprep.subr.bf16.mxu0 %v2077
      %2364 = vmatpush2.bf16.msra.mxu0 %v2076
      %2365 = vmatprep.subr.bf16.mxu0 %v2073
      %2366 = vmatpush2.bf16.msra.mxu0 %v2072
      %2367 = vmatprep.subr.bf16.mxu0 %v2069
      %2368 = vmatpush2.bf16.msra.mxu0 %v2068
      %2369 = vmatprep.subr.bf16.mxu0 %v2065
      %2370 = vmatpush2.bf16.msra.mxu0 %v2064
      %2371 = vmatprep.subr.bf16.mxu0 %v2061
      %2372 = vmatpush2.bf16.msra.mxu0 %v2060
      %2373 = vmatprep.mubr.bf16.mxu0 %v1446
      %2374 = vmatmul.mubr.bf16.gmra.mxu0 %v1445
      %v2375 = vpop.f32.mrf.mxu0
      %v2376 = vadd.f32 %v2335, %v2375
      %v2377 = vpop.f32.mrf.mxu0
      %v2378 = vadd.f32 %v2337, %v2377
      %v2379 = vpop.f32.mrf.mxu0
      %v2380 = vpop.f32.mrf.mxu0
      %2381 = vdwg.mxu0
      %v2382 = vadd.f32 %v1439, %v2294
      %v2383 = vadd.f32 %v1440, %v2296
      %v2384 = vadd.f32 %v1441, %v2376
      %v2385 = vadd.f32 %v1442, %v2378
      %2386 = vst [vmem:[#allocation2] sm:$0xff] %v2382
      %2387 = vst [vmem:[#allocation2 + $0x8] sm:$0xff] %v2383
      %2388 = vst [vmem:[#allocation2 + $0x10] sm:$0xff] %v2384
      %2389 = vst [vmem:[#allocation2 + $0x18] sm:$0xff] %v2385
      %p2390 = scmp.eq.s32.totalorder %s24, 2
      // Predicated region
      $region57: #{gearnet_forward.12} parent=51 // pred_check
        %p2391 = pneg %p2390
      $region58: #{gearnet_forward.12} parent=51 // pred_check_branch
        %2393 = sbr.rel (%p2391) target = $region60
      $region59: #{gearnet_forward.12} parent=51 // pred_region
        %v2394 = vld [vmem:[#allocation2] sm:$0xff]
        %v2395 = vld [vmem:[#allocation2 + $0x8] sm:$0xff]
        %v2396 = vld [vmem:[#allocation2 + $0x10] sm:$0xff]
        %v2397 = vld [vmem:[#allocation2 + $0x18] sm:$0xff]
        %v2398 = vld [vmem:[%s6] sm:$0xf]
        %v2400 = vlaneseq
        %v2401 = vshrl.u32 %v2400, 7
        %v2402 = vsub.s32 0, %v2401
        %v2403 = vrot.slane %v2398, %v2402
        %v2404 = vlaneseq
        %v2405 = vshrl.u32 %v2404, 7
        %v2406 = vsub.s32 1, %v2405
        %v2407 = vrot.slane %v2398, %v2406
        %v2408 = vlaneseq
        %v2409 = vshrl.u32 %v2408, 7
        %v2410 = vsub.s32 2, %v2409
        %v2411 = vrot.slane %v2398, %v2410
        %v2412 = vlaneseq
        %v2413 = vshrl.u32 %v2412, 7
        %v2414 = vsub.s32 3, %v2413
        %v2415 = vrot.slane %v2398, %v2414
        %v2420 = vmul.f32 %v2394, %v2403
        %v2421 = vmul.f32 %v2395, %v2407
        %v2422 = vmul.f32 %v2396, %v2411
        %v2423 = vmul.f32 %v2397, %v2415
        %v2424 = vld [vmem:[%s7] sm:$0xf]
        %v2426 = vlaneseq
        %v2427 = vshrl.u32 %v2426, 7
        %v2428 = vsub.s32 0, %v2427
        %v2429 = vrot.slane %v2424, %v2428
        %v2430 = vlaneseq
        %v2431 = vshrl.u32 %v2430, 7
        %v2432 = vsub.s32 1, %v2431
        %v2433 = vrot.slane %v2424, %v2432
        %v2434 = vlaneseq
        %v2435 = vshrl.u32 %v2434, 7
        %v2436 = vsub.s32 2, %v2435
        %v2437 = vrot.slane %v2424, %v2436
        %v2438 = vlaneseq
        %v2439 = vshrl.u32 %v2438, 7
        %v2440 = vsub.s32 3, %v2439
        %v2441 = vrot.slane %v2424, %v2440
        %v2446 = vadd.f32 %v2420, %v2429
        %v2447 = vadd.f32 %v2421, %v2433
        %v2448 = vadd.f32 %v2422, %v2437
        %v2449 = vadd.f32 %v2423, %v2441
        %v2450 = vpack.c.bf16 %v2446, %v2446
        %v2451 = vpack.c.bf16 %v2447, %v2447
        %v2452 = vpack.c.bf16 %v2448, %v2448
        %v2453 = vpack.c.bf16 %v2449, %v2449
        %v2458 = vunpack.c.l.b16 %v2450
        %v2459 = vunpack.c.l.b16 %v2451
        %v2460 = vunpack.c.l.b16 %v2452
        %v2461 = vunpack.c.l.b16 %v2453
        %v2462 = vpack.c.b16 %v2459, %v2458
        %v2463 = vpack.c.b16 %v2461, %v2460
        %2466 = vst [vmem:[%s348] sm:$0xff] %v2462
        %2467 = vst [vmem:[%s348 + $0x8] sm:$0xff] %v2463
      $region60: #{gearnet_forward.12} parent=51 // pred_fallthru
        _
      %p2468 = scmp.lt.s32.totalorder %s23, 1
      %s2469 = scalar_select %p2468, %s23, 1
      %s2470 = smul.addr %s2469, 4
      %s2471 = smul.addr %s2470, 4
      %s2472 = scalar_lea.vmem %s8, %s2471
      // Predicated region
      $region61: #{gearnet_forward.12} parent=51 // pred_check
        %p2473 = pneg %p229
      $region62: #{gearnet_forward.12} parent=51 // pred_check_branch
        %2475 = sbr.rel (%p2473) target = $region64
      $region63: #{gearnet_forward.12} parent=51 // pred_region
        _
      $region64: #{gearnet_forward.12} parent=51 // pred_fallthru
        _
    $region52: #{gearnet_forward.12} parent=5 // pred_fallthru
      _
    %p2476 = scmp.le.s32.totalorder 2, %s14
    // Predicated region
    $region65: #{gearnet_forward.12} parent=5 // pred_check
      %p2477 = pneg %p2476
    $region66: #{gearnet_forward.12} parent=5 // pred_check_branch
      %2479 = sbr.rel (%p2477) target = $region68
    $region67: #{gearnet_forward.12} parent=5 // pred_region
      %s2480 = ssub.s32 %s14, 2
      // Predicated region
      $region69: #{gearnet_forward.12} parent=67 // pred_check
        %p2481 = pneg %p235
      $region70: #{gearnet_forward.12} parent=67 // pred_check_branch
        %2483 = sbr.rel (%p2481) target = $region72
      $region71: #{gearnet_forward.12} parent=67 // pred_region
        %p2484 = scmp.lt.s32.totalorder %s25, 1
        %s2485 = scalar_select %p2484, %s25, 1
        %s2486 = smul.addr %s2485, 4
        %s2487 = smul.addr %s2486, 4
        %s2488 = scalar_lea.vmem %s8, %s2487
      $region72: #{gearnet_forward.12} parent=67 // pred_fallthru
        _
    $region68: #{gearnet_forward.12} parent=5 // pred_fallthru
      _
  $region6: #{gearnet_forward.12} parent=0 // loop_footer
    %s18 = sadd.s32 1, %s14
  $region7: #{gearnet_forward.12} parent=0 // loop_footer_branch
    %13 = sbr.rel target = $region3
  $region8: #{gearnet_forward.12} parent=0 // loop_exit
    _

// kernel: gearnet_forward.13
$region0: #{gearnet_forward.13}
  #allocation0 [shape = 'u32[]', space=smem, size = 0x4, offset = 0x4, fixed_abs, tag = 'smem constant byte address 0x4 - core index']
  #allocation1 [shape = 'u32[144,128]{1,0:T(1,128)}', space=vmem, size = 0x12000, scoped, tag = 'internal scratch']
  #allocation2 [shape = 'f32[2,512]{1,0:T(2,128)}', space=vmem, size = 0x1000, scoped, tag = 'scratch operand']
  %s0 = inlined_call_operand.vmem [shape: bf16[2,16], index: 0, kind: input, shape index: {}]
  %s1 = inlined_call_operand.vmem [shape: bf16[16,512], index: 1, kind: input, shape index: {}]
  %s2 = inlined_call_operand.vmem [shape: bf16[512,300], index: 2, kind: input, shape index: {}]
  %s3 = inlined_call_operand.vmem [shape: f32[1,300], index: 3, kind: input, shape index: {}]
  %s4 = inlined_call_operand.vmem [shape: bf16[300,300], index: 4, kind: input, shape index: {}]
  %s5 = inlined_call_operand.vmem [shape: f32[1,300], index: 5, kind: input, shape index: {}]
  %s6 = inlined_call_operand.hbm [shape: f32[2,300], index: 6, kind: output, shape index: {}]
  %s7 = sld [smem:[#allocation0]]
  $region42: #{gearnet_forward.13} parent=0
    _
  %s9 = ssub.s32 1, %s7
  %s10 = scalar_select 0, %s9, %s7
  $region1: #{gearnet_forward.13} parent=0
    #allocation3 [shape = 'u8[3072]{0}', space=vmem, size = 0xc00, scoped, tag = 'output window, operand 0, single buffered']
    #allocation4 [shape = 's32[1]{0}', space=sflag, size = 0x4, scoped, tag = 'scoped memory for gearnet_forward.13']
    %11 = vsyncpa [#allocation4], 0
    // Predicated region
    $region2: #{gearnet_forward.13} parent=1 // pred_check
      _
    $region3: #{gearnet_forward.13} parent=1 // pred_check_branch
      %13 = sbr.rel (0) target = $region5
    $region4: #{gearnet_forward.13} parent=1 // pred_region
      _
    $region5: #{gearnet_forward.13} parent=1 // pred_fallthru
      _
    // Predicated region
    $region6: #{gearnet_forward.13} parent=1 // pred_check
      _
    $region7: #{gearnet_forward.13} parent=1 // pred_check_branch
      %15 = sbr.rel (0) target = $region9
    $region8: #{gearnet_forward.13} parent=1 // pred_region
      _
    $region9: #{gearnet_forward.13} parent=1 // pred_fallthru
      _
    // Predicated region
    $region10: #{gearnet_forward.13} parent=1 // pred_check
      _
    $region11: #{gearnet_forward.13} parent=1 // pred_check_branch
      %17 = sbr.rel (0) target = $region13
    $region12: #{gearnet_forward.13} parent=1 // pred_region
      _
    $region13: #{gearnet_forward.13} parent=1 // pred_fallthru
      _
    // Predicated region
    $region14: #{gearnet_forward.13} parent=1 // pred_check
      _
    $region15: #{gearnet_forward.13} parent=1 // pred_check_branch
      %19 = sbr.rel (0) target = $region17
    $region16: #{gearnet_forward.13} parent=1 // pred_region
      _
    $region17: #{gearnet_forward.13} parent=1 // pred_fallthru
      _
    // Predicated region
    $region18: #{gearnet_forward.13} parent=1 // pred_check
      _
    $region19: #{gearnet_forward.13} parent=1 // pred_check_branch
      %21 = sbr.rel (0) target = $region21
    $region20: #{gearnet_forward.13} parent=1 // pred_region
      _
    $region21: #{gearnet_forward.13} parent=1 // pred_fallthru
      _
    // Predicated region
    $region22: #{gearnet_forward.13} parent=1 // pred_check
      _
    $region23: #{gearnet_forward.13} parent=1 // pred_check_branch
      %23 = sbr.rel (0) target = $region25
    $region24: #{gearnet_forward.13} parent=1 // pred_region
      _
    $region25: #{gearnet_forward.13} parent=1 // pred_fallthru
      _
    %p25 = scmp.eq.s32.totalorder 0, 0
    // Predicated region
    $region26: #{gearnet_forward.13} parent=1 // pred_check
      %p26 = pneg %p25
    $region27: #{gearnet_forward.13} parent=1 // pred_check_branch
      %28 = sbr.rel (%p26) target = $region29
    $region28: #{gearnet_forward.13} parent=1 // pred_region
      %29 = vst [vmem:[#allocation2] sm:$0xff] 0.0
    $region29: #{gearnet_forward.13} parent=1 // pred_fallthru
      _
    %v30 = vld [vmem:[#allocation2] sm:$0xff]
    %v31 = vld [vmem:[%s0] sm:$0x1]
    %v32 = vld [vmem:[%s1] sm:$0xff]
    %v33 = vld [vmem:[%s1 + $0x8] sm:$0xff]
    %v34 = vld [vmem:[%s1 + $0x10] sm:$0xff]
    %v35 = vld [vmem:[%s1 + $0x18] sm:$0xff]
    %v40 = vunpack.c.l.b16 %v32
    %v41 = vunpack.c.h.b16 %v32
    %v42 = vunpack.c.l.b16 %v33
    %v43 = vunpack.c.h.b16 %v33
    %v44 = vunpack.c.l.b16 %v34
    %v45 = vunpack.c.h.b16 %v34
    %v46 = vunpack.c.l.b16 %v35
    %v47 = vunpack.c.h.b16 %v35
    %v48 = vpack.c.b16 %v44, %v40
    %v49 = vpack.c.b16 %v45, %v41
    %v50 = vpack.c.b16 %v46, %v42
    %v51 = vpack.c.b16 %v47, %v43
    %vm56 = vcmask 130048
    %v58 = vsel %vm56, %v31, 0
    %60 = vmatprep.subr.bf16.mxu0 0
    %61 = vmatpush1.bf16.msra.mxu0 0
    %62 = vmatprep.subr.bf16.mxu0 0
    %63 = vmatpush1.bf16.msra.mxu0 0
    %64 = vmatprep.subr.bf16.mxu0 0
    %65 = vmatpush1.bf16.msra.mxu0 0
    %66 = vmatprep.subr.bf16.mxu0 0
    %67 = vmatpush1.bf16.msra.mxu0 0
    %68 = vmatprep.subr.bf16.mxu0 0
    %69 = vmatpush1.bf16.msra.mxu0 0
    %70 = vmatprep.subr.bf16.mxu0 0
    %71 = vmatpush1.bf16.msra.mxu0 0
    %72 = vmatprep.subr.bf16.mxu0 0
    %73 = vmatpush1.bf16.msra.mxu0 0
    %74 = vmatprep.subr.bf16.mxu0 %v49
    %75 = vmatpush1.bf16.msra.mxu0 %v48
    %76 = vmatprep.subr.bf16.mxu0 0
    %77 = vmatpush2.bf16.msra.mxu0 0
    %78 = vmatprep.subr.bf16.mxu0 0
    %79 = vmatpush2.bf16.msra.mxu0 0
    %80 = vmatprep.subr.bf16.mxu0 0
    %81 = vmatpush2.bf16.msra.mxu0 0
    %82 = vmatprep.subr.bf16.mxu0 0
    %83 = vmatpush2.bf16.msra.mxu0 0
    %84 = vmatprep.subr.bf16.mxu0 0
    %85 = vmatpush2.bf16.msra.mxu0 0
    %86 = vmatprep.subr.bf16.mxu0 0
    %87 = vmatpush2.bf16.msra.mxu0 0
    %88 = vmatprep.subr.bf16.mxu0 0
    %89 = vmatpush2.bf16.msra.mxu0 0
    %90 = vmatprep.subr.bf16.mxu0 0
    %91 = vmatpush2.bf16.msra.mxu0 0
    %92 = vmatprep.mubr.bf16.mxu0 0
    %93 = vmatmul.mubr.bf16.gmra.mxu0 %v58
    %v94 = vpop.f32.mrf.mxu0
    %v95 = vadd.f32 0.0, %v94
    %v96 = vpop.f32.mrf.mxu0
    %v97 = vadd.f32 0.0, %v96
    %v98 = vpop.f32.mrf.mxu0
    %v99 = vpop.f32.mrf.mxu0
    %100 = vdwg.mxu0
    %101 = vmatprep.subr.bf16.mxu0 0
    %102 = vmatpush1.bf16.msra.mxu0 0
    %103 = vmatprep.subr.bf16.mxu0 0
    %104 = vmatpush1.bf16.msra.mxu0 0
    %105 = vmatprep.subr.bf16.mxu0 0
    %106 = vmatpush1.bf16.msra.mxu0 0
    %107 = vmatprep.subr.bf16.mxu0 0
    %108 = vmatpush1.bf16.msra.mxu0 0
    %109 = vmatprep.subr.bf16.mxu0 0
    %110 = vmatpush1.bf16.msra.mxu0 0
    %111 = vmatprep.subr.bf16.mxu0 0
    %112 = vmatpush1.bf16.msra.mxu0 0
    %113 = vmatprep.subr.bf16.mxu0 0
    %114 = vmatpush1.bf16.msra.mxu0 0
    %115 = vmatprep.subr.bf16.mxu0 %v51
    %116 = vmatpush1.bf16.msra.mxu0 %v50
    %117 = vmatprep.subr.bf16.mxu0 0
    %118 = vmatpush2.bf16.msra.mxu0 0
    %119 = vmatprep.subr.bf16.mxu0 0
    %120 = vmatpush2.bf16.msra.mxu0 0
    %121 = vmatprep.subr.bf16.mxu0 0
    %122 = vmatpush2.bf16.msra.mxu0 0
    %123 = vmatprep.subr.bf16.mxu0 0
    %124 = vmatpush2.bf16.msra.mxu0 0
    %125 = vmatprep.subr.bf16.mxu0 0
    %126 = vmatpush2.bf16.msra.mxu0 0
    %127 = vmatprep.subr.bf16.mxu0 0
    %128 = vmatpush2.bf16.msra.mxu0 0
    %129 = vmatprep.subr.bf16.mxu0 0
    %130 = vmatpush2.bf16.msra.mxu0 0
    %131 = vmatprep.subr.bf16.mxu0 0
    %132 = vmatpush2.bf16.msra.mxu0 0
    %133 = vmatprep.mubr.bf16.mxu0 0
    %134 = vmatmul.mubr.bf16.gmra.mxu0 %v58
    %v135 = vpop.f32.mrf.mxu0
    %v136 = vadd.f32 0.0, %v135
    %v137 = vpop.f32.mrf.mxu0
    %v138 = vadd.f32 0.0, %v137
    %v139 = vpop.f32.mrf.mxu0
    %v140 = vpop.f32.mrf.mxu0
    %141 = vdwg.mxu0
    %v146 = vcombine.low %v95, %v97
    %v147 = vcombine.low %v136, %v138
    %v149 = vunpack.c.l.s4 1983009808
    %v150 = vunpack.c.0.s8 %v149
    %v151 = vlaneseq
    %v152 = vshrl.u32 %v151, 7
    %v153 = vsub.s32 %v150, %v152
    %v154 = vrot.slane %v146, %v153
    %v156 = vunpack.c.l.s4 1983009808
    %v157 = vunpack.c.0.s8 %v156
    %v158 = vlaneseq
    %v159 = vshrl.u32 %v158, 7
    %v160 = vsub.s32 %v157, %v159
    %v161 = vrot.slane %v147, %v160
    %v162 = vcombine.low %v154, %v161
    %v164 = vadd.f32 %v30, %v162
    %165 = vst [vmem:[#allocation2] sm:$0xff] %v164
    // Predicated region
    $region30: #{gearnet_forward.13} parent=1 // pred_check
      %p166 = pneg %p25
    $region31: #{gearnet_forward.13} parent=1 // pred_check_branch
      %168 = sbr.rel (%p166) target = $region33
    $region32: #{gearnet_forward.13} parent=1 // pred_region
      %v169 = vld [vmem:[#allocation2] sm:$0xff]
      %v171 = vcombine.high %v169, %v169
      %v173 = vunpack.c.l.s4 1983009808
      %v174 = vunpack.c.0.s8 %v173
      %v175 = vlaneseq
      %v176 = vshrl.u32 %v175, 7
      %v177 = vsub.s32 %v174, %v176
      %v178 = vrot.slane %v169, %v177
      %v180 = vunpack.c.l.s4 1983009808
      %v181 = vunpack.c.0.s8 %v180
      %v182 = vlaneseq
      %v183 = vshrl.u32 %v182, 7
      %v184 = vsub.s32 %v181, %v183
      %v185 = vrot.slane %v171, %v184
      %v186 = vcombine.high %v178, %v178
      %v187 = vcombine.high %v185, %v185
      %v192 = vpack.c.bf16 %v178, %v178
      %v193 = vpack.c.bf16 %v186, %v186
      %v194 = vpack.c.bf16 %v185, %v185
      %v195 = vpack.c.bf16 %v187, %v187
      %v196 = vld [vmem:[%s2] sm:$0xff]
      %v197 = vld [vmem:[%s2 + $0x8] sm:$0xf]
      %v198 = vld [vmem:[%s2 + $0xc] sm:$0xff]
      %v199 = vld [vmem:[%s2 + $0x14] sm:$0xf]
      %v200 = vld [vmem:[%s2 + $0x18] sm:$0xff]
      %v201 = vld [vmem:[%s2 + $0x20] sm:$0xf]
      %v202 = vld [vmem:[%s2 + $0x24] sm:$0xff]
      %v203 = vld [vmem:[%s2 + $0x2c] sm:$0xf]
      %v204 = vld [vmem:[%s2 + $0x30] sm:$0xff]
      %v205 = vld [vmem:[%s2 + $0x38] sm:$0xf]
      %v206 = vld [vmem:[%s2 + $0x3c] sm:$0xff]
      %v207 = vld [vmem:[%s2 + $0x44] sm:$0xf]
      %v208 = vld [vmem:[%s2 + $0x48] sm:$0xff]
      %v209 = vld [vmem:[%s2 + $0x50] sm:$0xf]
      %v210 = vld [vmem:[%s2 + $0x54] sm:$0xff]
      %v211 = vld [vmem:[%s2 + $0x5c] sm:$0xf]
      %v212 = vld [vmem:[%s2 + $0x60] sm:$0xff]
      %v213 = vld [vmem:[%s2 + $0x68] sm:$0xf]
      %v214 = vld [vmem:[%s2 + $0x6c] sm:$0xff]
      %v215 = vld [vmem:[%s2 + $0x74] sm:$0xf]
      %v216 = vld [vmem:[%s2 + $0x78] sm:$0xff]
      %v217 = vld [vmem:[%s2 + $0x80] sm:$0xf]
      %v218 = vld [vmem:[%s2 + $0x84] sm:$0xff]
      %v219 = vld [vmem:[%s2 + $0x8c] sm:$0xf]
      %v220 = vld [vmem:[%s2 + $0x90] sm:$0xff]
      %v221 = vld [vmem:[%s2 + $0x98] sm:$0xf]
      %v222 = vld [vmem:[%s2 + $0x9c] sm:$0xff]
      %v223 = vld [vmem:[%s2 + $0xa4] sm:$0xf]
      %v224 = vld [vmem:[%s2 + $0xa8] sm:$0xff]
      %v225 = vld [vmem:[%s2 + $0xb0] sm:$0xf]
      %v226 = vld [vmem:[%s2 + $0xb4] sm:$0xff]
      %v227 = vld [vmem:[%s2 + $0xbc] sm:$0xf]
      %v228 = vld [vmem:[%s2 + $0xc0] sm:$0xff]
      %v229 = vld [vmem:[%s2 + $0xc8] sm:$0xf]
      %v230 = vld [vmem:[%s2 + $0xcc] sm:$0xff]
      %v231 = vld [vmem:[%s2 + $0xd4] sm:$0xf]
      %v232 = vld [vmem:[%s2 + $0xd8] sm:$0xff]
      %v233 = vld [vmem:[%s2 + $0xe0] sm:$0xf]
      %v234 = vld [vmem:[%s2 + $0xe4] sm:$0xff]
      %v235 = vld [vmem:[%s2 + $0xec] sm:$0xf]
      %v236 = vld [vmem:[%s2 + $0xf0] sm:$0xff]
      %v237 = vld [vmem:[%s2 + $0xf8] sm:$0xf]
      %v238 = vld [vmem:[%s2 + $0xfc] sm:$0xff]
      %v239 = vld [vmem:[%s2 + $0x104] sm:$0xf]
      %v240 = vld [vmem:[%s2 + $0x108] sm:$0xff]
      %v241 = vld [vmem:[%s2 + $0x110] sm:$0xf]
      %v242 = vld [vmem:[%s2 + $0x114] sm:$0xff]
      %v243 = vld [vmem:[%s2 + $0x11c] sm:$0xf]
      %v244 = vld [vmem:[%s2 + $0x120] sm:$0xff]
      %v245 = vld [vmem:[%s2 + $0x128] sm:$0xf]
      %v246 = vld [vmem:[%s2 + $0x12c] sm:$0xff]
      %v247 = vld [vmem:[%s2 + $0x134] sm:$0xf]
      %v248 = vld [vmem:[%s2 + $0x138] sm:$0xff]
      %v249 = vld [vmem:[%s2 + $0x140] sm:$0xf]
      %v250 = vld [vmem:[%s2 + $0x144] sm:$0xff]
      %v251 = vld [vmem:[%s2 + $0x14c] sm:$0xf]
      %v252 = vld [vmem:[%s2 + $0x150] sm:$0xff]
      %v253 = vld [vmem:[%s2 + $0x158] sm:$0xf]
      %v254 = vld [vmem:[%s2 + $0x15c] sm:$0xff]
      %v255 = vld [vmem:[%s2 + $0x164] sm:$0xf]
      %v256 = vld [vmem:[%s2 + $0x168] sm:$0xff]
      %v257 = vld [vmem:[%s2 + $0x170] sm:$0xf]
      %v258 = vld [vmem:[%s2 + $0x174] sm:$0xff]
      %v259 = vld [vmem:[%s2 + $0x17c] sm:$0xf]
      %v260 = vld [vmem:[%s2 + $0x180] sm:$0xff]
      %v261 = vld [vmem:[%s2 + $0x188] sm:$0xf]
      %v262 = vld [vmem:[%s2 + $0x18c] sm:$0xff]
      %v263 = vld [vmem:[%s2 + $0x194] sm:$0xf]
      %v264 = vld [vmem:[%s2 + $0x198] sm:$0xff]
      %v265 = vld [vmem:[%s2 + $0x1a0] sm:$0xf]
      %v266 = vld [vmem:[%s2 + $0x1a4] sm:$0xff]
      %v267 = vld [vmem:[%s2 + $0x1ac] sm:$0xf]
      %v268 = vld [vmem:[%s2 + $0x1b0] sm:$0xff]
      %v269 = vld [vmem:[%s2 + $0x1b8] sm:$0xf]
      %v270 = vld [vmem:[%s2 + $0x1bc] sm:$0xff]
      %v271 = vld [vmem:[%s2 + $0x1c4] sm:$0xf]
      %v272 = vld [vmem:[%s2 + $0x1c8] sm:$0xff]
      %v273 = vld [vmem:[%s2 + $0x1d0] sm:$0xf]
      %v274 = vld [vmem:[%s2 + $0x1d4] sm:$0xff]
      %v275 = vld [vmem:[%s2 + $0x1dc] sm:$0xf]
      %v276 = vld [vmem:[%s2 + $0x1e0] sm:$0xff]
      %v277 = vld [vmem:[%s2 + $0x1e8] sm:$0xf]
      %v278 = vld [vmem:[%s2 + $0x1ec] sm:$0xff]
      %v279 = vld [vmem:[%s2 + $0x1f4] sm:$0xf]
      %v280 = vld [vmem:[%s2 + $0x1f8] sm:$0xff]
      %v281 = vld [vmem:[%s2 + $0x200] sm:$0xf]
      %v282 = vld [vmem:[%s2 + $0x204] sm:$0xff]
      %v283 = vld [vmem:[%s2 + $0x20c] sm:$0xf]
      %v284 = vld [vmem:[%s2 + $0x210] sm:$0xff]
      %v285 = vld [vmem:[%s2 + $0x218] sm:$0xf]
      %v286 = vld [vmem:[%s2 + $0x21c] sm:$0xff]
      %v287 = vld [vmem:[%s2 + $0x224] sm:$0xf]
      %v288 = vld [vmem:[%s2 + $0x228] sm:$0xff]
      %v289 = vld [vmem:[%s2 + $0x230] sm:$0xf]
      %v290 = vld [vmem:[%s2 + $0x234] sm:$0xff]
      %v291 = vld [vmem:[%s2 + $0x23c] sm:$0xf]
      %v292 = vld [vmem:[%s2 + $0x240] sm:$0xff]
      %v293 = vld [vmem:[%s2 + $0x248] sm:$0xf]
      %v294 = vld [vmem:[%s2 + $0x24c] sm:$0xff]
      %v295 = vld [vmem:[%s2 + $0x254] sm:$0xf]
      %v296 = vld [vmem:[%s2 + $0x258] sm:$0xff]
      %v297 = vld [vmem:[%s2 + $0x260] sm:$0xf]
      %v298 = vld [vmem:[%s2 + $0x264] sm:$0xff]
      %v299 = vld [vmem:[%s2 + $0x26c] sm:$0xf]
      %v300 = vld [vmem:[%s2 + $0x270] sm:$0xff]
      %v301 = vld [vmem:[%s2 + $0x278] sm:$0xf]
      %v302 = vld [vmem:[%s2 + $0x27c] sm:$0xff]
      %v303 = vld [vmem:[%s2 + $0x284] sm:$0xf]
      %v304 = vld [vmem:[%s2 + $0x288] sm:$0xff]
      %v305 = vld [vmem:[%s2 + $0x290] sm:$0xf]
      %v306 = vld [vmem:[%s2 + $0x294] sm:$0xff]
      %v307 = vld [vmem:[%s2 + $0x29c] sm:$0xf]
      %v308 = vld [vmem:[%s2 + $0x2a0] sm:$0xff]
      %v309 = vld [vmem:[%s2 + $0x2a8] sm:$0xf]
      %v310 = vld [vmem:[%s2 + $0x2ac] sm:$0xff]
      %v311 = vld [vmem:[%s2 + $0x2b4] sm:$0xf]
      %v312 = vld [vmem:[%s2 + $0x2b8] sm:$0xff]
      %v313 = vld [vmem:[%s2 + $0x2c0] sm:$0xf]
      %v314 = vld [vmem:[%s2 + $0x2c4] sm:$0xff]
      %v315 = vld [vmem:[%s2 + $0x2cc] sm:$0xf]
      %v316 = vld [vmem:[%s2 + $0x2d0] sm:$0xff]
      %v317 = vld [vmem:[%s2 + $0x2d8] sm:$0xf]
      %v318 = vld [vmem:[%s2 + $0x2dc] sm:$0xff]
      %v319 = vld [vmem:[%s2 + $0x2e4] sm:$0xf]
      %v320 = vld [vmem:[%s2 + $0x2e8] sm:$0xff]
      %v321 = vld [vmem:[%s2 + $0x2f0] sm:$0xf]
      %v322 = vld [vmem:[%s2 + $0x2f4] sm:$0xff]
      %v323 = vld [vmem:[%s2 + $0x2fc] sm:$0xf]
      %v324 = vld [vmem:[%s3] sm:$0x7]
      %v326 = vlaneseq
      %v327 = vshrl.u32 %v326, 7
      %v328 = vsub.s32 0, %v327
      %v329 = vrot.slane %v324, %v328
      %v330 = vlaneseq
      %v331 = vshrl.u32 %v330, 7
      %v332 = vsub.s32 1, %v331
      %v333 = vrot.slane %v324, %v332
      %v334 = vlaneseq
      %v335 = vshrl.u32 %v334, 7
      %v336 = vsub.s32 2, %v335
      %v337 = vrot.slane %v324, %v336
      %v469 = vunpack.c.l.b16 %v196
      %v470 = vunpack.c.h.b16 %v196
      %v471 = vunpack.c.l.b16 %v197
      %v472 = vunpack.c.l.b16 %v198
      %v473 = vunpack.c.h.b16 %v198
      %v474 = vunpack.c.l.b16 %v199
      %v475 = vunpack.c.l.b16 %v200
      %v476 = vunpack.c.h.b16 %v200
      %v477 = vunpack.c.l.b16 %v201
      %v478 = vunpack.c.l.b16 %v202
      %v479 = vunpack.c.h.b16 %v202
      %v480 = vunpack.c.l.b16 %v203
      %v481 = vunpack.c.l.b16 %v204
      %v482 = vunpack.c.h.b16 %v204
      %v483 = vunpack.c.l.b16 %v205
      %v484 = vunpack.c.l.b16 %v206
      %v485 = vunpack.c.h.b16 %v206
      %v486 = vunpack.c.l.b16 %v207
      %v487 = vunpack.c.l.b16 %v208
      %v488 = vunpack.c.h.b16 %v208
      %v489 = vunpack.c.l.b16 %v209
      %v490 = vunpack.c.l.b16 %v210
      %v491 = vunpack.c.h.b16 %v210
      %v492 = vunpack.c.l.b16 %v211
      %v493 = vunpack.c.l.b16 %v212
      %v494 = vunpack.c.h.b16 %v212
      %v495 = vunpack.c.l.b16 %v213
      %v496 = vunpack.c.l.b16 %v214
      %v497 = vunpack.c.h.b16 %v214
      %v498 = vunpack.c.l.b16 %v215
      %v499 = vunpack.c.l.b16 %v216
      %v500 = vunpack.c.h.b16 %v216
      %v501 = vunpack.c.l.b16 %v217
      %v502 = vunpack.c.l.b16 %v218
      %v503 = vunpack.c.h.b16 %v218
      %v504 = vunpack.c.l.b16 %v219
      %v505 = vunpack.c.l.b16 %v220
      %v506 = vunpack.c.h.b16 %v220
      %v507 = vunpack.c.l.b16 %v221
      %v508 = vunpack.c.l.b16 %v222
      %v509 = vunpack.c.h.b16 %v222
      %v510 = vunpack.c.l.b16 %v223
      %v511 = vunpack.c.l.b16 %v224
      %v512 = vunpack.c.h.b16 %v224
      %v513 = vunpack.c.l.b16 %v225
      %v514 = vunpack.c.l.b16 %v226
      %v515 = vunpack.c.h.b16 %v226
      %v516 = vunpack.c.l.b16 %v227
      %v517 = vunpack.c.l.b16 %v228
      %v518 = vunpack.c.h.b16 %v228
      %v519 = vunpack.c.l.b16 %v229
      %v520 = vunpack.c.l.b16 %v230
      %v521 = vunpack.c.h.b16 %v230
      %v522 = vunpack.c.l.b16 %v231
      %v523 = vunpack.c.l.b16 %v232
      %v524 = vunpack.c.h.b16 %v232
      %v525 = vunpack.c.l.b16 %v233
      %v526 = vunpack.c.l.b16 %v234
      %v527 = vunpack.c.h.b16 %v234
      %v528 = vunpack.c.l.b16 %v235
      %v529 = vunpack.c.l.b16 %v236
      %v530 = vunpack.c.h.b16 %v236
      %v531 = vunpack.c.l.b16 %v237
      %v532 = vunpack.c.l.b16 %v238
      %v533 = vunpack.c.h.b16 %v238
      %v534 = vunpack.c.l.b16 %v239
      %v535 = vunpack.c.l.b16 %v240
      %v536 = vunpack.c.h.b16 %v240
      %v537 = vunpack.c.l.b16 %v241
      %v538 = vunpack.c.l.b16 %v242
      %v539 = vunpack.c.h.b16 %v242
      %v540 = vunpack.c.l.b16 %v243
      %v541 = vunpack.c.l.b16 %v244
      %v542 = vunpack.c.h.b16 %v244
      %v543 = vunpack.c.l.b16 %v245
      %v544 = vunpack.c.l.b16 %v246
      %v545 = vunpack.c.h.b16 %v246
      %v546 = vunpack.c.l.b16 %v247
      %v547 = vunpack.c.l.b16 %v248
      %v548 = vunpack.c.h.b16 %v248
      %v549 = vunpack.c.l.b16 %v249
      %v550 = vunpack.c.l.b16 %v250
      %v551 = vunpack.c.h.b16 %v250
      %v552 = vunpack.c.l.b16 %v251
      %v553 = vunpack.c.l.b16 %v252
      %v554 = vunpack.c.h.b16 %v252
      %v555 = vunpack.c.l.b16 %v253
      %v556 = vunpack.c.l.b16 %v254
      %v557 = vunpack.c.h.b16 %v254
      %v558 = vunpack.c.l.b16 %v255
      %v559 = vunpack.c.l.b16 %v256
      %v560 = vunpack.c.h.b16 %v256
      %v561 = vunpack.c.l.b16 %v257
      %v562 = vunpack.c.l.b16 %v258
      %v563 = vunpack.c.h.b16 %v258
      %v564 = vunpack.c.l.b16 %v259
      %v565 = vunpack.c.l.b16 %v260
      %v566 = vunpack.c.h.b16 %v260
      %v567 = vunpack.c.l.b16 %v261
      %v568 = vunpack.c.l.b16 %v262
      %v569 = vunpack.c.h.b16 %v262
      %v570 = vunpack.c.l.b16 %v263
      %v571 = vunpack.c.l.b16 %v264
      %v572 = vunpack.c.h.b16 %v264
      %v573 = vunpack.c.l.b16 %v265
      %v574 = vunpack.c.l.b16 %v266
      %v575 = vunpack.c.h.b16 %v266
      %v576 = vunpack.c.l.b16 %v267
      %v577 = vunpack.c.l.b16 %v268
      %v578 = vunpack.c.h.b16 %v268
      %v579 = vunpack.c.l.b16 %v269
      %v580 = vunpack.c.l.b16 %v270
      %v581 = vunpack.c.h.b16 %v270
      %v582 = vunpack.c.l.b16 %v271
      %v583 = vunpack.c.l.b16 %v272
      %v584 = vunpack.c.h.b16 %v272
      %v585 = vunpack.c.l.b16 %v273
      %v586 = vunpack.c.l.b16 %v274
      %v587 = vunpack.c.h.b16 %v274
      %v588 = vunpack.c.l.b16 %v275
      %v589 = vunpack.c.l.b16 %v276
      %v590 = vunpack.c.h.b16 %v276
      %v591 = vunpack.c.l.b16 %v277
      %v592 = vunpack.c.l.b16 %v278
      %v593 = vunpack.c.h.b16 %v278
      %v594 = vunpack.c.l.b16 %v279
      %v595 = vunpack.c.l.b16 %v280
      %v596 = vunpack.c.h.b16 %v280
      %v597 = vunpack.c.l.b16 %v281
      %v598 = vunpack.c.l.b16 %v282
      %v599 = vunpack.c.h.b16 %v282
      %v600 = vunpack.c.l.b16 %v283
      %v601 = vunpack.c.l.b16 %v284
      %v602 = vunpack.c.h.b16 %v284
      %v603 = vunpack.c.l.b16 %v285
      %v604 = vunpack.c.l.b16 %v286
      %v605 = vunpack.c.h.b16 %v286
      %v606 = vunpack.c.l.b16 %v287
      %v607 = vunpack.c.l.b16 %v288
      %v608 = vunpack.c.h.b16 %v288
      %v609 = vunpack.c.l.b16 %v289
      %v610 = vunpack.c.l.b16 %v290
      %v611 = vunpack.c.h.b16 %v290
      %v612 = vunpack.c.l.b16 %v291
      %v613 = vunpack.c.l.b16 %v292
      %v614 = vunpack.c.h.b16 %v292
      %v615 = vunpack.c.l.b16 %v293
      %v616 = vunpack.c.l.b16 %v294
      %v617 = vunpack.c.h.b16 %v294
      %v618 = vunpack.c.l.b16 %v295
      %v619 = vunpack.c.l.b16 %v296
      %v620 = vunpack.c.h.b16 %v296
      %v621 = vunpack.c.l.b16 %v297
      %v622 = vunpack.c.l.b16 %v298
      %v623 = vunpack.c.h.b16 %v298
      %v624 = vunpack.c.l.b16 %v299
      %v625 = vunpack.c.l.b16 %v300
      %v626 = vunpack.c.h.b16 %v300
      %v627 = vunpack.c.l.b16 %v301
      %v628 = vunpack.c.l.b16 %v302
      %v629 = vunpack.c.h.b16 %v302
      %v630 = vunpack.c.l.b16 %v303
      %v631 = vunpack.c.l.b16 %v304
      %v632 = vunpack.c.h.b16 %v304
      %v633 = vunpack.c.l.b16 %v305
      %v634 = vunpack.c.l.b16 %v306
      %v635 = vunpack.c.h.b16 %v306
      %v636 = vunpack.c.l.b16 %v307
      %v637 = vunpack.c.l.b16 %v308
      %v638 = vunpack.c.h.b16 %v308
      %v639 = vunpack.c.l.b16 %v309
      %v640 = vunpack.c.l.b16 %v310
      %v641 = vunpack.c.h.b16 %v310
      %v642 = vunpack.c.l.b16 %v311
      %v643 = vunpack.c.l.b16 %v312
      %v644 = vunpack.c.h.b16 %v312
      %v645 = vunpack.c.l.b16 %v313
      %v646 = vunpack.c.l.b16 %v314
      %v647 = vunpack.c.h.b16 %v314
      %v648 = vunpack.c.l.b16 %v315
      %v649 = vunpack.c.l.b16 %v316
      %v650 = vunpack.c.h.b16 %v316
      %v651 = vunpack.c.l.b16 %v317
      %v652 = vunpack.c.l.b16 %v318
      %v653 = vunpack.c.h.b16 %v318
      %v654 = vunpack.c.l.b16 %v319
      %v655 = vunpack.c.l.b16 %v320
      %v656 = vunpack.c.h.b16 %v320
      %v657 = vunpack.c.l.b16 %v321
      %v658 = vunpack.c.l.b16 %v322
      %v659 = vunpack.c.h.b16 %v322
      %v660 = vunpack.c.l.b16 %v323
      %v661 = vpack.c.b16 %v472, %v469
      %v662 = vpack.c.b16 %v473, %v470
      %v663 = vpack.c.b16 %v474, %v471
      %v664 = vpack.c.b16 %v478, %v475
      %v665 = vpack.c.b16 %v479, %v476
      %v666 = vpack.c.b16 %v480, %v477
      %v667 = vpack.c.b16 %v484, %v481
      %v668 = vpack.c.b16 %v485, %v482
      %v669 = vpack.c.b16 %v486, %v483
      %v670 = vpack.c.b16 %v490, %v487
      %v671 = vpack.c.b16 %v491, %v488
      %v672 = vpack.c.b16 %v492, %v489
      %v673 = vpack.c.b16 %v496, %v493
      %v674 = vpack.c.b16 %v497, %v494
      %v675 = vpack.c.b16 %v498, %v495
      %v676 = vpack.c.b16 %v502, %v499
      %v677 = vpack.c.b16 %v503, %v500
      %v678 = vpack.c.b16 %v504, %v501
      %v679 = vpack.c.b16 %v508, %v505
      %v680 = vpack.c.b16 %v509, %v506
      %v681 = vpack.c.b16 %v510, %v507
      %v682 = vpack.c.b16 %v514, %v511
      %v683 = vpack.c.b16 %v515, %v512
      %v684 = vpack.c.b16 %v516, %v513
      %v685 = vpack.c.b16 %v520, %v517
      %v686 = vpack.c.b16 %v521, %v518
      %v687 = vpack.c.b16 %v522, %v519
      %v688 = vpack.c.b16 %v526, %v523
      %v689 = vpack.c.b16 %v527, %v524
      %v690 = vpack.c.b16 %v528, %v525
      %v691 = vpack.c.b16 %v532, %v529
      %v692 = vpack.c.b16 %v533, %v530
      %v693 = vpack.c.b16 %v534, %v531
      %v694 = vpack.c.b16 %v538, %v535
      %v695 = vpack.c.b16 %v539, %v536
      %v696 = vpack.c.b16 %v540, %v537
      %v697 = vpack.c.b16 %v544, %v541
      %v698 = vpack.c.b16 %v545, %v542
      %v699 = vpack.c.b16 %v546, %v543
      %v700 = vpack.c.b16 %v550, %v547
      %v701 = vpack.c.b16 %v551, %v548
      %v702 = vpack.c.b16 %v552, %v549
      %v703 = vpack.c.b16 %v556, %v553
      %v704 = vpack.c.b16 %v557, %v554
      %v705 = vpack.c.b16 %v558, %v555
      %v706 = vpack.c.b16 %v562, %v559
      %v707 = vpack.c.b16 %v563, %v560
      %v708 = vpack.c.b16 %v564, %v561
      %v709 = vpack.c.b16 %v568, %v565
      %v710 = vpack.c.b16 %v569, %v566
      %v711 = vpack.c.b16 %v570, %v567
      %v712 = vpack.c.b16 %v574, %v571
      %v713 = vpack.c.b16 %v575, %v572
      %v714 = vpack.c.b16 %v576, %v573
      %v715 = vpack.c.b16 %v580, %v577
      %v716 = vpack.c.b16 %v581, %v578
      %v717 = vpack.c.b16 %v582, %v579
      %v718 = vpack.c.b16 %v586, %v583
      %v719 = vpack.c.b16 %v587, %v584
      %v720 = vpack.c.b16 %v588, %v585
      %v721 = vpack.c.b16 %v592, %v589
      %v722 = vpack.c.b16 %v593, %v590
      %v723 = vpack.c.b16 %v594, %v591
      %v724 = vpack.c.b16 %v598, %v595
      %v725 = vpack.c.b16 %v599, %v596
      %v726 = vpack.c.b16 %v600, %v597
      %v727 = vpack.c.b16 %v604, %v601
      %v728 = vpack.c.b16 %v605, %v602
      %v729 = vpack.c.b16 %v606, %v603
      %v730 = vpack.c.b16 %v610, %v607
      %v731 = vpack.c.b16 %v611, %v608
      %v732 = vpack.c.b16 %v612, %v609
      %v733 = vpack.c.b16 %v616, %v613
      %v734 = vpack.c.b16 %v617, %v614
      %v735 = vpack.c.b16 %v618, %v615
      %v736 = vpack.c.b16 %v622, %v619
      %v737 = vpack.c.b16 %v623, %v620
      %v738 = vpack.c.b16 %v624, %v621
      %v739 = vpack.c.b16 %v628, %v625
      %v740 = vpack.c.b16 %v629, %v626
      %v741 = vpack.c.b16 %v630, %v627
      %v742 = vpack.c.b16 %v634, %v631
      %v743 = vpack.c.b16 %v635, %v632
      %v744 = vpack.c.b16 %v636, %v633
      %v745 = vpack.c.b16 %v640, %v637
      %v746 = vpack.c.b16 %v641, %v638
      %v747 = vpack.c.b16 %v642, %v639
      %v748 = vpack.c.b16 %v646, %v643
      %v749 = vpack.c.b16 %v647, %v644
      %v750 = vpack.c.b16 %v648, %v645
      %v751 = vpack.c.b16 %v652, %v649
      %v752 = vpack.c.b16 %v653, %v650
      %v753 = vpack.c.b16 %v654, %v651
      %v754 = vpack.c.b16 %v658, %v655
      %v755 = vpack.c.b16 %v659, %v656
      %v756 = vpack.c.b16 %v660, %v657
      %853 = vmatprep.subr.bf16.mxu0 %v683
      %854 = vmatpush1.bf16.msra.mxu0 %v682
      %855 = vmatprep.subr.bf16.mxu0 %v680
      %856 = vmatpush1.bf16.msra.mxu0 %v679
      %857 = vmatprep.subr.bf16.mxu0 %v677
      %858 = vmatpush1.bf16.msra.mxu0 %v676
      %859 = vmatprep.subr.bf16.mxu0 %v674
      %860 = vmatpush1.bf16.msra.mxu0 %v673
      %861 = vmatprep.subr.bf16.mxu0 %v671
      %862 = vmatpush1.bf16.msra.mxu0 %v670
      %863 = vmatprep.subr.bf16.mxu0 %v668
      %864 = vmatpush1.bf16.msra.mxu0 %v667
      %865 = vmatprep.subr.bf16.mxu0 %v665
      %866 = vmatpush1.bf16.msra.mxu0 %v664
      %867 = vmatprep.subr.bf16.mxu0 %v662
      %868 = vmatpush1.bf16.msra.mxu0 %v661
      %869 = vmatprep.subr.bf16.mxu0 %v707
      %870 = vmatpush2.bf16.msra.mxu0 %v706
      %871 = vmatprep.subr.bf16.mxu0 %v704
      %872 = vmatpush2.bf16.msra.mxu0 %v703
      %873 = vmatprep.subr.bf16.mxu0 %v701
      %874 = vmatpush2.bf16.msra.mxu0 %v700
      %875 = vmatprep.subr.bf16.mxu0 %v698
      %876 = vmatpush2.bf16.msra.mxu0 %v697
      %877 = vmatprep.subr.bf16.mxu0 %v695
      %878 = vmatpush2.bf16.msra.mxu0 %v694
      %879 = vmatprep.subr.bf16.mxu0 %v692
      %880 = vmatpush2.bf16.msra.mxu0 %v691
      %881 = vmatprep.subr.bf16.mxu0 %v689
      %882 = vmatpush2.bf16.msra.mxu0 %v688
      %883 = vmatprep.subr.bf16.mxu0 %v686
      %884 = vmatpush2.bf16.msra.mxu0 %v685
      %885 = vmatprep.mubr.bf16.mxu0 %v193
      %886 = vmatmul.mubr.bf16.gmra.mxu0 %v192
      %v887 = vpop.f32.mrf.mxu0
      %v888 = vadd.f32 %v329, %v887
      %v889 = vpop.f32.mrf.mxu0
      %v890 = vadd.f32 %v333, %v889
      %v891 = vpop.f32.mrf.mxu0
      %v892 = vpop.f32.mrf.mxu0
      %893 = vdwg.mxu0
      %894 = vmatprep.subr.bf16.mxu0 %v731
      %895 = vmatpush1.bf16.msra.mxu0 %v730
      %896 = vmatprep.subr.bf16.mxu0 %v728
      %897 = vmatpush1.bf16.msra.mxu0 %v727
      %898 = vmatprep.subr.bf16.mxu0 %v725
      %899 = vmatpush1.bf16.msra.mxu0 %v724
      %900 = vmatprep.subr.bf16.mxu0 %v722
      %901 = vmatpush1.bf16.msra.mxu0 %v721
      %902 = vmatprep.subr.bf16.mxu0 %v719
      %903 = vmatpush1.bf16.msra.mxu0 %v718
      %904 = vmatprep.subr.bf16.mxu0 %v716
      %905 = vmatpush1.bf16.msra.mxu0 %v715
      %906 = vmatprep.subr.bf16.mxu0 %v713
      %907 = vmatpush1.bf16.msra.mxu0 %v712
      %908 = vmatprep.subr.bf16.mxu0 %v710
      %909 = vmatpush1.bf16.msra.mxu0 %v709
      %910 = vmatprep.subr.bf16.mxu0 %v755
      %911 = vmatpush2.bf16.msra.mxu0 %v754
      %912 = vmatprep.subr.bf16.mxu0 %v752
      %913 = vmatpush2.bf16.msra.mxu0 %v751
      %914 = vmatprep.subr.bf16.mxu0 %v749
      %915 = vmatpush2.bf16.msra.mxu0 %v748
      %916 = vmatprep.subr.bf16.mxu0 %v746
      %917 = vmatpush2.bf16.msra.mxu0 %v745
      %918 = vmatprep.subr.bf16.mxu0 %v743
      %919 = vmatpush2.bf16.msra.mxu0 %v742
      %920 = vmatprep.subr.bf16.mxu0 %v740
      %921 = vmatpush2.bf16.msra.mxu0 %v739
      %922 = vmatprep.subr.bf16.mxu0 %v737
      %923 = vmatpush2.bf16.msra.mxu0 %v736
      %924 = vmatprep.subr.bf16.mxu0 %v734
      %925 = vmatpush2.bf16.msra.mxu0 %v733
      %926 = vmatprep.mubr.bf16.mxu0 %v195
      %927 = vmatmul.mubr.bf16.gmra.mxu0 %v194
      %v928 = vpop.f32.mrf.mxu0
      %v929 = vadd.f32 %v888, %v928
      %v930 = vpop.f32.mrf.mxu0
      %v931 = vadd.f32 %v890, %v930
      %v932 = vpop.f32.mrf.mxu0
      %v933 = vpop.f32.mrf.mxu0
      %934 = vdwg.mxu0
      %935 = vmatprep.subr.bf16.mxu0 0
      %936 = vmatpush1.bf16.msra.mxu0 %v684
      %937 = vmatprep.subr.bf16.mxu0 0
      %938 = vmatpush1.bf16.msra.mxu0 %v681
      %939 = vmatprep.subr.bf16.mxu0 0
      %940 = vmatpush1.bf16.msra.mxu0 %v678
      %941 = vmatprep.subr.bf16.mxu0 0
      %942 = vmatpush1.bf16.msra.mxu0 %v675
      %943 = vmatprep.subr.bf16.mxu0 0
      %944 = vmatpush1.bf16.msra.mxu0 %v672
      %945 = vmatprep.subr.bf16.mxu0 0
      %946 = vmatpush1.bf16.msra.mxu0 %v669
      %947 = vmatprep.subr.bf16.mxu0 0
      %948 = vmatpush1.bf16.msra.mxu0 %v666
      %949 = vmatprep.subr.bf16.mxu0 0
      %950 = vmatpush1.bf16.msra.mxu0 %v663
      %951 = vmatprep.subr.bf16.mxu0 0
      %952 = vmatpush2.bf16.msra.mxu0 %v708
      %953 = vmatprep.subr.bf16.mxu0 0
      %954 = vmatpush2.bf16.msra.mxu0 %v705
      %955 = vmatprep.subr.bf16.mxu0 0
      %956 = vmatpush2.bf16.msra.mxu0 %v702
      %957 = vmatprep.subr.bf16.mxu0 0
      %958 = vmatpush2.bf16.msra.mxu0 %v699
      %959 = vmatprep.subr.bf16.mxu0 0
      %960 = vmatpush2.bf16.msra.mxu0 %v696
      %961 = vmatprep.subr.bf16.mxu0 0
      %962 = vmatpush2.bf16.msra.mxu0 %v693
      %963 = vmatprep.subr.bf16.mxu0 0
      %964 = vmatpush2.bf16.msra.mxu0 %v690
      %965 = vmatprep.subr.bf16.mxu0 0
      %966 = vmatpush2.bf16.msra.mxu0 %v687
      %967 = vmatprep.mubr.bf16.mxu0 %v193
      %968 = vmatmul.mubr.bf16.gmra.mxu0 %v192
      %v969 = vpop.f32.mrf.mxu0
      %v970 = vadd.f32 %v337, %v969
      %v971 = vpop.f32.mrf.mxu0
      %v972 = vpop.f32.mrf.mxu0
      %v973 = vpop.f32.mrf.mxu0
      %974 = vdwg.mxu0
      %975 = vmatprep.subr.bf16.mxu0 0
      %976 = vmatpush1.bf16.msra.mxu0 %v732
      %977 = vmatprep.subr.bf16.mxu0 0
      %978 = vmatpush1.bf16.msra.mxu0 %v729
      %979 = vmatprep.subr.bf16.mxu0 0
      %980 = vmatpush1.bf16.msra.mxu0 %v726
      %981 = vmatprep.subr.bf16.mxu0 0
      %982 = vmatpush1.bf16.msra.mxu0 %v723
      %983 = vmatprep.subr.bf16.mxu0 0
      %984 = vmatpush1.bf16.msra.mxu0 %v720
      %985 = vmatprep.subr.bf16.mxu0 0
      %986 = vmatpush1.bf16.msra.mxu0 %v717
      %987 = vmatprep.subr.bf16.mxu0 0
      %988 = vmatpush1.bf16.msra.mxu0 %v714
      %989 = vmatprep.subr.bf16.mxu0 0
      %990 = vmatpush1.bf16.msra.mxu0 %v711
      %991 = vmatprep.subr.bf16.mxu0 0
      %992 = vmatpush2.bf16.msra.mxu0 %v756
      %993 = vmatprep.subr.bf16.mxu0 0
      %994 = vmatpush2.bf16.msra.mxu0 %v753
      %995 = vmatprep.subr.bf16.mxu0 0
      %996 = vmatpush2.bf16.msra.mxu0 %v750
      %997 = vmatprep.subr.bf16.mxu0 0
      %998 = vmatpush2.bf16.msra.mxu0 %v747
      %999 = vmatprep.subr.bf16.mxu0 0
      %1000 = vmatpush2.bf16.msra.mxu0 %v744
      %1001 = vmatprep.subr.bf16.mxu0 0
      %1002 = vmatpush2.bf16.msra.mxu0 %v741
      %1003 = vmatprep.subr.bf16.mxu0 0
      %1004 = vmatpush2.bf16.msra.mxu0 %v738
      %1005 = vmatprep.subr.bf16.mxu0 0
      %1006 = vmatpush2.bf16.msra.mxu0 %v735
      %1007 = vmatprep.mubr.bf16.mxu0 %v195
      %1008 = vmatmul.mubr.bf16.gmra.mxu0 %v194
      %v1009 = vpop.f32.mrf.mxu0
      %v1010 = vadd.f32 %v970, %v1009
      %v1011 = vpop.f32.mrf.mxu0
      %v1012 = vpop.f32.mrf.mxu0
      %v1013 = vpop.f32.mrf.mxu0
      %1014 = vdwg.mxu0
      %v1015 = vmax.f32 %v929, 0.0
      %v1016 = vmax.f32 %v931, 0.0
      %v1017 = vmax.f32 %v1010, 0.0
      %v1018 = vpack.c.bf16 %v1015, %v1015
      %v1019 = vpack.c.bf16 %v1016, %v1016
      %v1020 = vpack.c.bf16 %v1017, %v1017
      %v1021 = vld [vmem:[%s4] sm:$0xff]
      %v1022 = vld [vmem:[%s4 + $0x8] sm:$0xf]
      %v1023 = vld [vmem:[%s4 + $0xc] sm:$0xff]
      %v1024 = vld [vmem:[%s4 + $0x14] sm:$0xf]
      %v1025 = vld [vmem:[%s4 + $0x18] sm:$0xff]
      %v1026 = vld [vmem:[%s4 + $0x20] sm:$0xf]
      %v1027 = vld [vmem:[%s4 + $0x24] sm:$0xff]
      %v1028 = vld [vmem:[%s4 + $0x2c] sm:$0xf]
      %v1029 = vld [vmem:[%s4 + $0x30] sm:$0xff]
      %v1030 = vld [vmem:[%s4 + $0x38] sm:$0xf]
      %v1031 = vld [vmem:[%s4 + $0x3c] sm:$0xff]
      %v1032 = vld [vmem:[%s4 + $0x44] sm:$0xf]
      %v1033 = vld [vmem:[%s4 + $0x48] sm:$0xff]
      %v1034 = vld [vmem:[%s4 + $0x50] sm:$0xf]
      %v1035 = vld [vmem:[%s4 + $0x54] sm:$0xff]
      %v1036 = vld [vmem:[%s4 + $0x5c] sm:$0xf]
      %v1037 = vld [vmem:[%s4 + $0x60] sm:$0xff]
      %v1038 = vld [vmem:[%s4 + $0x68] sm:$0xf]
      %v1039 = vld [vmem:[%s4 + $0x6c] sm:$0xff]
      %v1040 = vld [vmem:[%s4 + $0x74] sm:$0xf]
      %v1041 = vld [vmem:[%s4 + $0x78] sm:$0xff]
      %v1042 = vld [vmem:[%s4 + $0x80] sm:$0xf]
      %v1043 = vld [vmem:[%s4 + $0x84] sm:$0xff]
      %v1044 = vld [vmem:[%s4 + $0x8c] sm:$0xf]
      %v1045 = vld [vmem:[%s4 + $0x90] sm:$0xff]
      %v1046 = vld [vmem:[%s4 + $0x98] sm:$0xf]
      %v1047 = vld [vmem:[%s4 + $0x9c] sm:$0xff]
      %v1048 = vld [vmem:[%s4 + $0xa4] sm:$0xf]
      %v1049 = vld [vmem:[%s4 + $0xa8] sm:$0xff]
      %v1050 = vld [vmem:[%s4 + $0xb0] sm:$0xf]
      %v1051 = vld [vmem:[%s4 + $0xb4] sm:$0xff]
      %v1052 = vld [vmem:[%s4 + $0xbc] sm:$0xf]
      %v1053 = vld [vmem:[%s4 + $0xc0] sm:$0xff]
      %v1054 = vld [vmem:[%s4 + $0xc8] sm:$0xf]
      %v1055 = vld [vmem:[%s4 + $0xcc] sm:$0xff]
      %v1056 = vld [vmem:[%s4 + $0xd4] sm:$0xf]
      %v1057 = vld [vmem:[%s4 + $0xd8] sm:$0xff]
      %v1058 = vld [vmem:[%s4 + $0xe0] sm:$0xf]
      %v1059 = vld [vmem:[%s4 + $0xe4] sm:$0xff]
      %v1060 = vld [vmem:[%s4 + $0xec] sm:$0xf]
      %v1061 = vld [vmem:[%s4 + $0xf0] sm:$0xff]
      %v1062 = vld [vmem:[%s4 + $0xf8] sm:$0xf]
      %v1063 = vld [vmem:[%s4 + $0xfc] sm:$0xff]
      %v1064 = vld [vmem:[%s4 + $0x104] sm:$0xf]
      %v1065 = vld [vmem:[%s4 + $0x108] sm:$0xff]
      %v1066 = vld [vmem:[%s4 + $0x110] sm:$0xf]
      %v1067 = vld [vmem:[%s4 + $0x114] sm:$0xff]
      %v1068 = vld [vmem:[%s4 + $0x11c] sm:$0xf]
      %v1069 = vld [vmem:[%s4 + $0x120] sm:$0xff]
      %v1070 = vld [vmem:[%s4 + $0x128] sm:$0xf]
      %v1071 = vld [vmem:[%s4 + $0x12c] sm:$0xff]
      %v1072 = vld [vmem:[%s4 + $0x134] sm:$0xf]
      %v1073 = vld [vmem:[%s4 + $0x138] sm:$0xff]
      %v1074 = vld [vmem:[%s4 + $0x140] sm:$0xf]
      %v1075 = vld [vmem:[%s4 + $0x144] sm:$0xff]
      %v1076 = vld [vmem:[%s4 + $0x14c] sm:$0xf]
      %v1077 = vld [vmem:[%s4 + $0x150] sm:$0xff]
      %v1078 = vld [vmem:[%s4 + $0x158] sm:$0xf]
      %v1079 = vld [vmem:[%s4 + $0x15c] sm:$0xff]
      %v1080 = vld [vmem:[%s4 + $0x164] sm:$0xf]
      %v1081 = vld [vmem:[%s4 + $0x168] sm:$0xff]
      %v1082 = vld [vmem:[%s4 + $0x170] sm:$0xf]
      %v1083 = vld [vmem:[%s4 + $0x174] sm:$0xff]
      %v1084 = vld [vmem:[%s4 + $0x17c] sm:$0xf]
      %v1085 = vld [vmem:[%s4 + $0x180] sm:$0xff]
      %v1086 = vld [vmem:[%s4 + $0x188] sm:$0xf]
      %v1087 = vld [vmem:[%s4 + $0x18c] sm:$0xff]
      %v1088 = vld [vmem:[%s4 + $0x194] sm:$0xf]
      %v1089 = vld [vmem:[%s4 + $0x198] sm:$0xff]
      %v1090 = vld [vmem:[%s4 + $0x1a0] sm:$0xf]
      %v1091 = vld [vmem:[%s4 + $0x1a4] sm:$0xff]
      %v1092 = vld [vmem:[%s4 + $0x1ac] sm:$0xf]
      %v1093 = vld [vmem:[%s4 + $0x1b0] sm:$0xff]
      %v1094 = vld [vmem:[%s4 + $0x1b8] sm:$0xf]
      %v1095 = vld [vmem:[%s4 + $0x1bc] sm:$0x33]
      %v1096 = vld [vmem:[%s4 + $0x1c4] sm:$0x3]
      %v1097 = vld [vmem:[%s5] sm:$0x7]
      %v1099 = vlaneseq
      %v1100 = vshrl.u32 %v1099, 7
      %v1101 = vsub.s32 0, %v1100
      %v1102 = vrot.slane %v1097, %v1101
      %v1103 = vlaneseq
      %v1104 = vshrl.u32 %v1103, 7
      %v1105 = vsub.s32 1, %v1104
      %v1106 = vrot.slane %v1097, %v1105
      %v1107 = vlaneseq
      %v1108 = vshrl.u32 %v1107, 7
      %v1109 = vsub.s32 2, %v1108
      %v1110 = vrot.slane %v1097, %v1109
      %v1190 = vunpack.c.l.b16 %v1021
      %v1191 = vunpack.c.h.b16 %v1021
      %v1192 = vunpack.c.l.b16 %v1022
      %v1193 = vunpack.c.l.b16 %v1023
      %v1194 = vunpack.c.h.b16 %v1023
      %v1195 = vunpack.c.l.b16 %v1024
      %v1196 = vunpack.c.l.b16 %v1025
      %v1197 = vunpack.c.h.b16 %v1025
      %v1198 = vunpack.c.l.b16 %v1026
      %v1199 = vunpack.c.l.b16 %v1027
      %v1200 = vunpack.c.h.b16 %v1027
      %v1201 = vunpack.c.l.b16 %v1028
      %v1202 = vunpack.c.l.b16 %v1029
      %v1203 = vunpack.c.h.b16 %v1029
      %v1204 = vunpack.c.l.b16 %v1030
      %v1205 = vunpack.c.l.b16 %v1031
      %v1206 = vunpack.c.h.b16 %v1031
      %v1207 = vunpack.c.l.b16 %v1032
      %v1208 = vunpack.c.l.b16 %v1033
      %v1209 = vunpack.c.h.b16 %v1033
      %v1210 = vunpack.c.l.b16 %v1034
      %v1211 = vunpack.c.l.b16 %v1035
      %v1212 = vunpack.c.h.b16 %v1035
      %v1213 = vunpack.c.l.b16 %v1036
      %v1214 = vunpack.c.l.b16 %v1037
      %v1215 = vunpack.c.h.b16 %v1037
      %v1216 = vunpack.c.l.b16 %v1038
      %v1217 = vunpack.c.l.b16 %v1039
      %v1218 = vunpack.c.h.b16 %v1039
      %v1219 = vunpack.c.l.b16 %v1040
      %v1220 = vunpack.c.l.b16 %v1041
      %v1221 = vunpack.c.h.b16 %v1041
      %v1222 = vunpack.c.l.b16 %v1042
      %v1223 = vunpack.c.l.b16 %v1043
      %v1224 = vunpack.c.h.b16 %v1043
      %v1225 = vunpack.c.l.b16 %v1044
      %v1226 = vunpack.c.l.b16 %v1045
      %v1227 = vunpack.c.h.b16 %v1045
      %v1228 = vunpack.c.l.b16 %v1046
      %v1229 = vunpack.c.l.b16 %v1047
      %v1230 = vunpack.c.h.b16 %v1047
      %v1231 = vunpack.c.l.b16 %v1048
      %v1232 = vunpack.c.l.b16 %v1049
      %v1233 = vunpack.c.h.b16 %v1049
      %v1234 = vunpack.c.l.b16 %v1050
      %v1235 = vunpack.c.l.b16 %v1051
      %v1236 = vunpack.c.h.b16 %v1051
      %v1237 = vunpack.c.l.b16 %v1052
      %v1238 = vunpack.c.l.b16 %v1053
      %v1239 = vunpack.c.h.b16 %v1053
      %v1240 = vunpack.c.l.b16 %v1054
      %v1241 = vunpack.c.l.b16 %v1055
      %v1242 = vunpack.c.h.b16 %v1055
      %v1243 = vunpack.c.l.b16 %v1056
      %v1244 = vunpack.c.l.b16 %v1057
      %v1245 = vunpack.c.h.b16 %v1057
      %v1246 = vunpack.c.l.b16 %v1058
      %v1247 = vunpack.c.l.b16 %v1059
      %v1248 = vunpack.c.h.b16 %v1059
      %v1249 = vunpack.c.l.b16 %v1060
      %v1250 = vunpack.c.l.b16 %v1061
      %v1251 = vunpack.c.h.b16 %v1061
      %v1252 = vunpack.c.l.b16 %v1062
      %v1253 = vunpack.c.l.b16 %v1063
      %v1254 = vunpack.c.h.b16 %v1063
      %v1255 = vunpack.c.l.b16 %v1064
      %v1256 = vunpack.c.l.b16 %v1065
      %v1257 = vunpack.c.h.b16 %v1065
      %v1258 = vunpack.c.l.b16 %v1066
      %v1259 = vunpack.c.l.b16 %v1067
      %v1260 = vunpack.c.h.b16 %v1067
      %v1261 = vunpack.c.l.b16 %v1068
      %v1262 = vunpack.c.l.b16 %v1069
      %v1263 = vunpack.c.h.b16 %v1069
      %v1264 = vunpack.c.l.b16 %v1070
      %v1265 = vunpack.c.l.b16 %v1071
      %v1266 = vunpack.c.h.b16 %v1071
      %v1267 = vunpack.c.l.b16 %v1072
      %v1268 = vunpack.c.l.b16 %v1073
      %v1269 = vunpack.c.h.b16 %v1073
      %v1270 = vunpack.c.l.b16 %v1074
      %v1271 = vunpack.c.l.b16 %v1075
      %v1272 = vunpack.c.h.b16 %v1075
      %v1273 = vunpack.c.l.b16 %v1076
      %v1274 = vunpack.c.l.b16 %v1077
      %v1275 = vunpack.c.h.b16 %v1077
      %v1276 = vunpack.c.l.b16 %v1078
      %v1277 = vunpack.c.l.b16 %v1079
      %v1278 = vunpack.c.h.b16 %v1079
      %v1279 = vunpack.c.l.b16 %v1080
      %v1280 = vunpack.c.l.b16 %v1081
      %v1281 = vunpack.c.h.b16 %v1081
      %v1282 = vunpack.c.l.b16 %v1082
      %v1283 = vunpack.c.l.b16 %v1083
      %v1284 = vunpack.c.h.b16 %v1083
      %v1285 = vunpack.c.l.b16 %v1084
      %v1286 = vunpack.c.l.b16 %v1085
      %v1287 = vunpack.c.h.b16 %v1085
      %v1288 = vunpack.c.l.b16 %v1086
      %v1289 = vunpack.c.l.b16 %v1087
      %v1290 = vunpack.c.h.b16 %v1087
      %v1291 = vunpack.c.l.b16 %v1088
      %v1292 = vunpack.c.l.b16 %v1089
      %v1293 = vunpack.c.h.b16 %v1089
      %v1294 = vunpack.c.l.b16 %v1090
      %v1295 = vunpack.c.l.b16 %v1091
      %v1296 = vunpack.c.h.b16 %v1091
      %v1297 = vunpack.c.l.b16 %v1092
      %v1298 = vunpack.c.l.b16 %v1093
      %v1299 = vunpack.c.h.b16 %v1093
      %v1300 = vunpack.c.l.b16 %v1094
      %v1301 = vunpack.c.l.b16 %v1095
      %v1302 = vunpack.c.h.b16 %v1095
      %v1303 = vunpack.c.l.b16 %v1096
      %v1304 = vpack.c.b16 %v1193, %v1190
      %v1305 = vpack.c.b16 %v1194, %v1191
      %v1306 = vpack.c.b16 %v1195, %v1192
      %v1307 = vpack.c.b16 %v1199, %v1196
      %v1308 = vpack.c.b16 %v1200, %v1197
      %v1309 = vpack.c.b16 %v1201, %v1198
      %v1310 = vpack.c.b16 %v1205, %v1202
      %v1311 = vpack.c.b16 %v1206, %v1203
      %v1312 = vpack.c.b16 %v1207, %v1204
      %v1313 = vpack.c.b16 %v1211, %v1208
      %v1314 = vpack.c.b16 %v1212, %v1209
      %v1315 = vpack.c.b16 %v1213, %v1210
      %v1316 = vpack.c.b16 %v1217, %v1214
      %v1317 = vpack.c.b16 %v1218, %v1215
      %v1318 = vpack.c.b16 %v1219, %v1216
      %v1319 = vpack.c.b16 %v1223, %v1220
      %v1320 = vpack.c.b16 %v1224, %v1221
      %v1321 = vpack.c.b16 %v1225, %v1222
      %v1322 = vpack.c.b16 %v1229, %v1226
      %v1323 = vpack.c.b16 %v1230, %v1227
      %v1324 = vpack.c.b16 %v1231, %v1228
      %v1325 = vpack.c.b16 %v1235, %v1232
      %v1326 = vpack.c.b16 %v1236, %v1233
      %v1327 = vpack.c.b16 %v1237, %v1234
      %v1328 = vpack.c.b16 %v1241, %v1238
      %v1329 = vpack.c.b16 %v1242, %v1239
      %v1330 = vpack.c.b16 %v1243, %v1240
      %v1331 = vpack.c.b16 %v1247, %v1244
      %v1332 = vpack.c.b16 %v1248, %v1245
      %v1333 = vpack.c.b16 %v1249, %v1246
      %v1334 = vpack.c.b16 %v1253, %v1250
      %v1335 = vpack.c.b16 %v1254, %v1251
      %v1336 = vpack.c.b16 %v1255, %v1252
      %v1337 = vpack.c.b16 %v1259, %v1256
      %v1338 = vpack.c.b16 %v1260, %v1257
      %v1339 = vpack.c.b16 %v1261, %v1258
      %v1340 = vpack.c.b16 %v1265, %v1262
      %v1341 = vpack.c.b16 %v1266, %v1263
      %v1342 = vpack.c.b16 %v1267, %v1264
      %v1343 = vpack.c.b16 %v1271, %v1268
      %v1344 = vpack.c.b16 %v1272, %v1269
      %v1345 = vpack.c.b16 %v1273, %v1270
      %v1346 = vpack.c.b16 %v1277, %v1274
      %v1347 = vpack.c.b16 %v1278, %v1275
      %v1348 = vpack.c.b16 %v1279, %v1276
      %v1349 = vpack.c.b16 %v1283, %v1280
      %v1350 = vpack.c.b16 %v1284, %v1281
      %v1351 = vpack.c.b16 %v1285, %v1282
      %v1352 = vpack.c.b16 %v1289, %v1286
      %v1353 = vpack.c.b16 %v1290, %v1287
      %v1354 = vpack.c.b16 %v1291, %v1288
      %v1355 = vpack.c.b16 %v1295, %v1292
      %v1356 = vpack.c.b16 %v1296, %v1293
      %v1357 = vpack.c.b16 %v1297, %v1294
      %v1358 = vpack.c.b16 %v1301, %v1298
      %v1359 = vpack.c.b16 %v1302, %v1299
      %v1360 = vpack.c.b16 %v1303, %v1300
      %vm1415 = vcmask 359424
      %v1417 = vsel %vm1415, %v1020, 0
      %vm1419 = vcmask 1045504
      %v1421 = vsel %vm1419, %v1358, 0
      %v1424 = vsel %vm1419, %v1359, 0
      %v1427 = vsel %vm1419, %v1360, 0
      %1429 = vmatprep.subr.bf16.mxu0 %v1326
      %1430 = vmatpush1.bf16.msra.mxu0 %v1325
      %1431 = vmatprep.subr.bf16.mxu0 %v1323
      %1432 = vmatpush1.bf16.msra.mxu0 %v1322
      %1433 = vmatprep.subr.bf16.mxu0 %v1320
      %1434 = vmatpush1.bf16.msra.mxu0 %v1319
      %1435 = vmatprep.subr.bf16.mxu0 %v1317
      %1436 = vmatpush1.bf16.msra.mxu0 %v1316
      %1437 = vmatprep.subr.bf16.mxu0 %v1314
      %1438 = vmatpush1.bf16.msra.mxu0 %v1313
      %1439 = vmatprep.subr.bf16.mxu0 %v1311
      %1440 = vmatpush1.bf16.msra.mxu0 %v1310
      %1441 = vmatprep.subr.bf16.mxu0 %v1308
      %1442 = vmatpush1.bf16.msra.mxu0 %v1307
      %1443 = vmatprep.subr.bf16.mxu0 %v1305
      %1444 = vmatpush1.bf16.msra.mxu0 %v1304
      %1445 = vmatprep.subr.bf16.mxu0 %v1350
      %1446 = vmatpush2.bf16.msra.mxu0 %v1349
      %1447 = vmatprep.subr.bf16.mxu0 %v1347
      %1448 = vmatpush2.bf16.msra.mxu0 %v1346
      %1449 = vmatprep.subr.bf16.mxu0 %v1344
      %1450 = vmatpush2.bf16.msra.mxu0 %v1343
      %1451 = vmatprep.subr.bf16.mxu0 %v1341
      %1452 = vmatpush2.bf16.msra.mxu0 %v1340
      %1453 = vmatprep.subr.bf16.mxu0 %v1338
      %1454 = vmatpush2.bf16.msra.mxu0 %v1337
      %1455 = vmatprep.subr.bf16.mxu0 %v1335
      %1456 = vmatpush2.bf16.msra.mxu0 %v1334
      %1457 = vmatprep.subr.bf16.mxu0 %v1332
      %1458 = vmatpush2.bf16.msra.mxu0 %v1331
      %1459 = vmatprep.subr.bf16.mxu0 %v1329
      %1460 = vmatpush2.bf16.msra.mxu0 %v1328
      %1461 = vmatprep.mubr.bf16.mxu0 %v1019
      %1462 = vmatmul.mubr.bf16.gmra.mxu0 %v1018
      %v1463 = vpop.f32.mrf.mxu0
      %v1464 = vadd.f32 %v1102, %v1463
      %v1465 = vpop.f32.mrf.mxu0
      %v1466 = vadd.f32 %v1106, %v1465
      %v1467 = vpop.f32.mrf.mxu0
      %v1468 = vpop.f32.mrf.mxu0
      %1469 = vdwg.mxu0
      %1470 = vmatprep.subr.bf16.mxu0 0
      %1471 = vmatpush1.bf16.msra.mxu0 0
      %1472 = vmatprep.subr.bf16.mxu0 0
      %1473 = vmatpush1.bf16.msra.mxu0 0
      %1474 = vmatprep.subr.bf16.mxu0 0
      %1475 = vmatpush1.bf16.msra.mxu0 0
      %1476 = vmatprep.subr.bf16.mxu0 0
      %1477 = vmatpush1.bf16.msra.mxu0 0
      %1478 = vmatprep.subr.bf16.mxu0 0
      %1479 = vmatpush1.bf16.msra.mxu0 0
      %1480 = vmatprep.subr.bf16.mxu0 %v1424
      %1481 = vmatpush1.bf16.msra.mxu0 %v1421
      %1482 = vmatprep.subr.bf16.mxu0 %v1356
      %1483 = vmatpush1.bf16.msra.mxu0 %v1355
      %1484 = vmatprep.subr.bf16.mxu0 %v1353
      %1485 = vmatpush1.bf16.msra.mxu0 %v1352
      %1486 = vmatprep.subr.bf16.mxu0 0
      %1487 = vmatpush2.bf16.msra.mxu0 0
      %1488 = vmatprep.subr.bf16.mxu0 0
      %1489 = vmatpush2.bf16.msra.mxu0 0
      %1490 = vmatprep.subr.bf16.mxu0 0
      %1491 = vmatpush2.bf16.msra.mxu0 0
      %1492 = vmatprep.subr.bf16.mxu0 0
      %1493 = vmatpush2.bf16.msra.mxu0 0
      %1494 = vmatprep.subr.bf16.mxu0 0
      %1495 = vmatpush2.bf16.msra.mxu0 0
      %1496 = vmatprep.subr.bf16.mxu0 0
      %1497 = vmatpush2.bf16.msra.mxu0 0
      %1498 = vmatprep.subr.bf16.mxu0 0
      %1499 = vmatpush2.bf16.msra.mxu0 0
      %1500 = vmatprep.subr.bf16.mxu0 0
      %1501 = vmatpush2.bf16.msra.mxu0 0
      %1502 = vmatprep.mubr.bf16.mxu0 0
      %1503 = vmatmul.mubr.bf16.gmra.mxu0 %v1417
      %v1504 = vpop.f32.mrf.mxu0
      %v1505 = vadd.f32 %v1464, %v1504
      %v1506 = vpop.f32.mrf.mxu0
      %v1507 = vadd.f32 %v1466, %v1506
      %v1508 = vpop.f32.mrf.mxu0
      %v1509 = vpop.f32.mrf.mxu0
      %1510 = vdwg.mxu0
      %1511 = vmatprep.subr.bf16.mxu0 0
      %1512 = vmatpush1.bf16.msra.mxu0 %v1327
      %1513 = vmatprep.subr.bf16.mxu0 0
      %1514 = vmatpush1.bf16.msra.mxu0 %v1324
      %1515 = vmatprep.subr.bf16.mxu0 0
      %1516 = vmatpush1.bf16.msra.mxu0 %v1321
      %1517 = vmatprep.subr.bf16.mxu0 0
      %1518 = vmatpush1.bf16.msra.mxu0 %v1318
      %1519 = vmatprep.subr.bf16.mxu0 0
      %1520 = vmatpush1.bf16.msra.mxu0 %v1315
      %1521 = vmatprep.subr.bf16.mxu0 0
      %1522 = vmatpush1.bf16.msra.mxu0 %v1312
      %1523 = vmatprep.subr.bf16.mxu0 0
      %1524 = vmatpush1.bf16.msra.mxu0 %v1309
      %1525 = vmatprep.subr.bf16.mxu0 0
      %1526 = vmatpush1.bf16.msra.mxu0 %v1306
      %1527 = vmatprep.subr.bf16.mxu0 0
      %1528 = vmatpush2.bf16.msra.mxu0 %v1351
      %1529 = vmatprep.subr.bf16.mxu0 0
      %1530 = vmatpush2.bf16.msra.mxu0 %v1348
      %1531 = vmatprep.subr.bf16.mxu0 0
      %1532 = vmatpush2.bf16.msra.mxu0 %v1345
      %1533 = vmatprep.subr.bf16.mxu0 0
      %1534 = vmatpush2.bf16.msra.mxu0 %v1342
      %1535 = vmatprep.subr.bf16.mxu0 0
      %1536 = vmatpush2.bf16.msra.mxu0 %v1339
      %1537 = vmatprep.subr.bf16.mxu0 0
      %1538 = vmatpush2.bf16.msra.mxu0 %v1336
      %1539 = vmatprep.subr.bf16.mxu0 0
      %1540 = vmatpush2.bf16.msra.mxu0 %v1333
      %1541 = vmatprep.subr.bf16.mxu0 0
      %1542 = vmatpush2.bf16.msra.mxu0 %v1330
      %1543 = vmatprep.mubr.bf16.mxu0 %v1019
      %1544 = vmatmul.mubr.bf16.gmra.mxu0 %v1018
      %v1545 = vpop.f32.mrf.mxu0
      %v1546 = vadd.f32 %v1110, %v1545
      %v1547 = vpop.f32.mrf.mxu0
      %v1548 = vpop.f32.mrf.mxu0
      %v1549 = vpop.f32.mrf.mxu0
      %1550 = vdwg.mxu0
      %1551 = vmatprep.subr.bf16.mxu0 0
      %1552 = vmatpush1.bf16.msra.mxu0 0
      %1553 = vmatprep.subr.bf16.mxu0 0
      %1554 = vmatpush1.bf16.msra.mxu0 0
      %1555 = vmatprep.subr.bf16.mxu0 0
      %1556 = vmatpush1.bf16.msra.mxu0 0
      %1557 = vmatprep.subr.bf16.mxu0 0
      %1558 = vmatpush1.bf16.msra.mxu0 0
      %1559 = vmatprep.subr.bf16.mxu0 0
      %1560 = vmatpush1.bf16.msra.mxu0 0
      %1561 = vmatprep.subr.bf16.mxu0 0
      %1562 = vmatpush1.bf16.msra.mxu0 %v1427
      %1563 = vmatprep.subr.bf16.mxu0 0
      %1564 = vmatpush1.bf16.msra.mxu0 %v1357
      %1565 = vmatprep.subr.bf16.mxu0 0
      %1566 = vmatpush1.bf16.msra.mxu0 %v1354
      %1567 = vmatprep.subr.bf16.mxu0 0
      %1568 = vmatpush2.bf16.msra.mxu0 0
      %1569 = vmatprep.subr.bf16.mxu0 0
      %1570 = vmatpush2.bf16.msra.mxu0 0
      %1571 = vmatprep.subr.bf16.mxu0 0
      %1572 = vmatpush2.bf16.msra.mxu0 0
      %1573 = vmatprep.subr.bf16.mxu0 0
      %1574 = vmatpush2.bf16.msra.mxu0 0
      %1575 = vmatprep.subr.bf16.mxu0 0
      %1576 = vmatpush2.bf16.msra.mxu0 0
      %1577 = vmatprep.subr.bf16.mxu0 0
      %1578 = vmatpush2.bf16.msra.mxu0 0
      %1579 = vmatprep.subr.bf16.mxu0 0
      %1580 = vmatpush2.bf16.msra.mxu0 0
      %1581 = vmatprep.subr.bf16.mxu0 0
      %1582 = vmatpush2.bf16.msra.mxu0 0
      %1583 = vmatprep.mubr.bf16.mxu0 0
      %1584 = vmatmul.mubr.bf16.gmra.mxu0 %v1417
      %v1585 = vpop.f32.mrf.mxu0
      %v1586 = vadd.f32 %v1546, %v1585
      %v1587 = vpop.f32.mrf.mxu0
      %v1588 = vpop.f32.mrf.mxu0
      %v1589 = vpop.f32.mrf.mxu0
      %1590 = vdwg.mxu0
      %v1594 = vcombine.low %v1505, %v1507
      %v1596 = vunpack.c.l.s4 1983009808
      %v1597 = vunpack.c.0.s8 %v1596
      %v1598 = vlaneseq
      %v1599 = vshrl.u32 %v1598, 7
      %v1600 = vsub.s32 %v1597, %v1599
      %v1601 = vrot.slane %v1594, %v1600
      %v1603 = vunpack.c.l.s4 1983009808
      %v1604 = vunpack.c.0.s8 %v1603
      %v1605 = vlaneseq
      %v1606 = vshrl.u32 %v1605, 7
      %v1607 = vsub.s32 %v1604, %v1606
      %v1608 = vrot.slane %v1586, %v1607
      %v1609 = vcombine.low %v1601, %v1608
      %vm1611 = vcmask 1041408
      %vm1612 = vcmask 1043458
      %vm1613 = vmor %vm1612, %vm1611
      %vm1614 = vcmask 357380
      %vm1615 = vmor %vm1614, %vm1613
      %1616 = vst.msk [vmem:[#allocation3] sm:$0x3f] %vm1615, %v1609
    $region33: #{gearnet_forward.13} parent=1 // pred_fallthru
      _
    // Predicated region
    $region34: #{gearnet_forward.13} parent=1 // pred_check
      _
    $region35: #{gearnet_forward.13} parent=1 // pred_check_branch
      %1618 = sbr.rel (0) target = $region37
    $region36: #{gearnet_forward.13} parent=1 // pred_region
      %s1620 = ssub.s32 96, 96
      %1621 = vsyncadd [#allocation4], %s1620
      %s1623 = sshll.u32 [#allocation3], 4
      %s1624 = int_to_ptr.vmem [resolvable:$true] %s1623
      %1626 = dma.vmem_to_hbm [thread:$0]  %s1624, 96, %s6, [#allocation4]
    $region37: #{gearnet_forward.13} parent=1 // pred_fallthru
      _
    // Predicated region
    $region38: #{gearnet_forward.13} parent=1 // pred_check
      _
    $region39: #{gearnet_forward.13} parent=1 // pred_check_branch
      %1628 = sbr.rel (0) target = $region41
    $region40: #{gearnet_forward.13} parent=1 // pred_region
      %1629 = dma.done [#allocation4], 96
    $region41: #{gearnet_forward.13} parent=1 // pred_fallthru
      _
    %1630 = vsyncpa [#allocation4], 1

</llo_original>
